<compile_context>
chip_gen: v7x
topology: tpu7x:2x2x1
jax: 0.10.0
libtpu: 0.0.40
codegen_flags: <defaults>
</compile_context>

<pallas_src>
import numpy as np
import jax
import jax.numpy as jnp
from jax.experimental import pallas as pl
from jax.experimental.pallas import tpu as pltpu

# ----------------------------- model configuration ---------------------------
N       = 4          # batch
S       = 8          # sequence length
D       = 32         # hidden size
H       = 4          # attention heads
DH      = D // H     # head dim
FF      = 128        # FFN inner dim (4 * D)
V       = 128        # vocab size
L       = 2          # transformer layers
NC      = 2          # classes
NC_PAD  = 128        # lane-dense padded class dim for the kernel output
B_TILE  = 2          # samples per grid step (grid = N // B_TILE = 2 steps)
BS      = B_TILE * S

LN_EPS      = 1e-12
INV_SQRT_DH = 1.0 / float(np.sqrt(DH))
NEG         = float(np.finfo(np.float32).min)   # HF masked_fill value


# --------------------------------- kernel ------------------------------------

def _layernorm(h, g, b):
    mu = jnp.mean(h, axis=-1, keepdims=True)
    xc = h - mu
    var = jnp.mean(xc * xc, axis=-1, keepdims=True)
    return xc * jax.lax.rsqrt(var + LN_EPS) * g + b


def _gelu(x):
    # tanh-approximate GELU (tanh runs on the EUP slot).
    # TODO(synk): HF DistilBERT uses exact erf-GELU; tanh approximation is used
    # identically in kernel and reference.
    c = 0.7978845608028654  # sqrt(2/pi)
    return 0.5 * x * (1.0 + jnp.tanh(c * (x + 0.044715 * x * x * x)))


def distilbert_kernel(ids_ref, mask_ref, wemb_ref, pemb_ref, lneg_ref, lneb_ref,
                      wq_ref, bq_ref, wk_ref, bk_ref, wv_ref, bv_ref,
                      wo_ref, bo_ref, ln1g_ref, ln1b_ref,
                      w1_ref, b1_ref, w2_ref, b2_ref, ln2g_ref, ln2b_ref,
                      sel_ref, wc_ref, bc_ref, out_ref):
    # ---- embeddings: one-hot gather on the MXU, batch folded into rows ----
    ids = ids_ref[...].reshape(BS, 1)                                  # (B*S, 1) int32
    iota_v = jax.lax.broadcasted_iota(jnp.int32, (BS, V), 1)
    onehot = (ids == iota_v).astype(jnp.float32)                       # (B*S, V)
    h = jnp.dot(onehot, wemb_ref[...], preferred_element_type=jnp.float32)
    h = h + pemb_ref[...]                                              # pre-tiled positions
    h = _layernorm(h, lneg_ref[...], lneb_ref[...])

    # key mask, hoisted out of the layer loop (no broadcast inside loops)
    maskk = jnp.broadcast_to(mask_ref[...], (B_TILE, S, S))            # (B, Sq, Sk)

    for l in range(L):
        # ---- multi-head self-attention ----
        attn = jnp.zeros((BS, D), jnp.float32)
        for hh in range(H):
            q = jnp.dot(h, wq_ref[l, hh], preferred_element_type=jnp.float32) + bq_ref[l, hh]
            k = jnp.dot(h, wk_ref[l, hh], preferred_element_type=jnp.float32) + bk_ref[l, hh]
            v = jnp.dot(h, wv_ref[l, hh], preferred_element_type=jnp.float32) + bv_ref[l, hh]
            q3 = q.reshape(B_TILE, S, DH) * INV_SQRT_DH
            k3 = k.reshape(B_TILE, S, DH)
            v3 = v.reshape(B_TILE, S, DH)
            scores = jnp.einsum('bsd,btd->bst', q3, k3,
                                preferred_element_type=jnp.float32)    # (B, S, S)
            scores = jnp.where(maskk == 0.0, NEG, scores)
            m = jnp.max(scores, axis=-1, keepdims=True)
            e = jnp.exp(scores - m)
            probs = e / jnp.sum(e, axis=-1, keepdims=True)
            ctx = jnp.einsum('bst,btd->bsd', probs, v3,
                             preferred_element_type=jnp.float32)       # (B, S, DH)
            attn = attn + jnp.dot(ctx.reshape(BS, DH), wo_ref[l, hh],
                                  preferred_element_type=jnp.float32)
        attn = attn + bo_ref[l]
        h = _layernorm(attn + h, ln1g_ref[l], ln1b_ref[l])

        # ---- feed-forward ----
        ff = jnp.dot(h, w1_ref[l], preferred_element_type=jnp.float32) + b1_ref[l]
        ff = _gelu(ff)
        ff = jnp.dot(ff, w2_ref[l], preferred_element_type=jnp.float32) + b2_ref[l]
        h = _layernorm(ff + h, ln2g_ref[l], ln2b_ref[l])
        # dropouts are identity at inference

    # ---- CLS pooling (selection matmul) + classifier, lane-dense output ----
    pooled = jnp.dot(sel_ref[...], h, preferred_element_type=jnp.float32)      # (B_TILE, D)
    logits = jnp.dot(pooled, wc_ref[...], preferred_element_type=jnp.float32) + bc_ref[...]
    out_ref[0] = logits                                                         # (B_TILE, 128)


# --------------------------------- wrapper -----------------------------------

def distilbert_classifier_forward(x, p):
    """x: (N, S, 2) int32 (ids, attention_mask).  Returns (N, NC) f32 logits."""
    n, s, _ = x.shape
    assert s == S and n % B_TILE == 0
    n_steps = n // B_TILE

    ids = x[:, :, 0:1].astype(jnp.int32)                    # (N, S, 1)
    mask = x[:, :, 1][:, None, :].astype(jnp.float32)        # (N, 1, S)

    # host-side per-head weight slicing (kernel never lane-slices activations)
    wq_h = p['wq'].reshape(L, D, H, DH).transpose(0, 2, 1, 3)    # (L, H, D, DH)
    wk_h = p['wk'].reshape(L, D, H, DH).transpose(0, 2, 1, 3)
    wv_h = p['wv'].reshape(L, D, H, DH).transpose(0, 2, 1, 3)
    bq_h = p['bq'].reshape(L, H, 1, DH)
    bk_h = p['bk'].reshape(L, H, 1, DH)
    bv_h = p['bv'].reshape(L, H, 1, DH)
    wo_h = p['wo'].reshape(L, H, DH, D)                          # row-blocks of Wo per head
    bo   = p['bo'].reshape(L, 1, D)

    pemb_t = jnp.tile(p['pemb'], (B_TILE, 1))                    # (B_TILE*S, D)

    sel_np = np.zeros((B_TILE, BS), np.float32)                  # CLS-token selector
    for b in range(B_TILE):
        sel_np[b, b * S] = 1.0
    sel = jnp.asarray(sel_np)

    wc_pad = jnp.zeros((D, NC_PAD), jnp.float32).at[:, :NC].set(p['wc'])
    bc_pad = jnp.zeros((1, NC_PAD), jnp.float32).at[0, :NC].set(p['bc'])

    inputs = [
        ids, mask,
        p['wemb'], pemb_t, p['lneg'].reshape(1, D), p['lneb'].reshape(1, D),
        wq_h, bq_h, wk_h, bk_h, wv_h, bv_h, wo_h, bo,
        p['ln1g'].reshape(L, 1, D), p['ln1b'].reshape(L, 1, D),
        p['w1'], p['b1'].reshape(L, 1, FF), p['w2'], p['b2'].reshape(L, 1, D),
        p['ln2g'].reshape(L, 1, D), p['ln2b'].reshape(L, 1, D),
        sel, wc_pad, bc_pad,
    ]

    def const_spec(a):
        nd = a.ndim
        return pl.BlockSpec(a.shape, lambda i, _nd=nd: (0,) * _nd)

    in_specs = [
        pl.BlockSpec((B_TILE, S, 1), lambda i: (i, 0, 0)),   # ids
        pl.BlockSpec((B_TILE, 1, S), lambda i: (i, 0, 0)),   # attention mask
    ]
    in_specs += [const_spec(a) for a in inputs[2:]]

    out = pl.pallas_call(
        distilbert_kernel,
        out_shape=jax.ShapeDtypeStruct((n_steps, B_TILE, NC_PAD), jnp.float32),
        grid_spec=pltpu.PrefetchScalarGridSpec(
            num_scalar_prefetch=0,
            grid=(n_steps,),
            in_specs=in_specs,
            out_specs=pl.BlockSpec((1, B_TILE, NC_PAD), lambda i: (i, 0, 0)),
        ),
        compiler_params=pltpu.CompilerParams(dimension_semantics=("parallel",)),
    )(*inputs)
    return out.reshape(n, NC_PAD)[:, :NC]


# ------------------------- pure-JAX reference (check) -------------------------

def reference_forward(x, p):
    n = x.shape[0]
    ids = x[:, :, 0]
    mask = x[:, :, 1].astype(jnp.float32)

    def ln(h, g, b):
        mu = jnp.mean(h, axis=-1, keepdims=True)
        xc = h - mu
        var = jnp.mean(xc * xc, axis=-1, keepdims=True)
        return xc / jnp.sqrt(var + LN_EPS) * g + b

    h = p['wemb'][ids] + p['pemb'][None, :, :]
    h = ln(h, p['lneg'], p['lneb'])
    for l in range(L):
        q = h @ p['wq'][l] + p['bq'][l]
        k = h @ p['wk'][l] + p['bk'][l]
        v = h @ p['wv'][l] + p['bv'][l]

        def split(t):
            return t.reshape(n, S, H, DH).transpose(0, 2, 1, 3)   # (N, H, S, DH)

        qh, kh, vh = split(q), split(k), split(v)
        scores = jnp.einsum('nhsd,nhtd->nhst', qh, kh) * INV_SQRT_DH
        scores = jnp.where(mask[:, None, None, :] == 0.0, NEG, scores)
        probs = jax.nn.softmax(scores, axis=-1)
        ctx = jnp.einsum('nhst,nhtd->nhsd', probs, vh)
        ctx = ctx.transpose(0, 2, 1, 3).reshape(n, S, D)
        attn = ctx @ p['wo'][l] + p['bo'][l]
        h = ln(attn + h, p['ln1g'][l], p['ln1b'][l])
        ff = _gelu(h @ p['w1'][l] + p['b1'][l])
        ff = ff @ p['w2'][l] + p['b2'][l]
        h = ln(ff + h, p['ln2g'][l], p['ln2b'][l])
    pooled = h[:, 0]
    return pooled @ p['wc'] + p['bc']


# ------------------------------------ main ------------------------------------

if __name__ == "__main__":
    key = jax.random.PRNGKey(0)
    keys = jax.random.split(key, 24)

    def nrm(k, shape, scale=0.1):
        return scale * jax.random.normal(k, shape, dtype=jnp.float32)

    params = {
        'wemb': nrm(keys[0], (V, D), 0.5),
        'pemb': nrm(keys[1], (S, D), 0.5),
        'lneg': 1.0 + nrm(keys[2], (D,)),   'lneb': nrm(keys[3], (D,)),
        'wq': nrm(keys[4], (L, D, D)),      'bq': nrm(keys[5], (L, D)),
        'wk': nrm(keys[6], (L, D, D)),      'bk': nrm(keys[7], (L, D)),
        'wv': nrm(keys[8], (L, D, D)),      'bv': nrm(keys[9], (L, D)),
        'wo': nrm(keys[10], (L, D, D)),     'bo': nrm(keys[11], (L, D)),
        'ln1g': 1.0 + nrm(keys[12], (L, D)), 'ln1b': nrm(keys[13], (L, D)),
        'w1': nrm(keys[14], (L, D, FF)),    'b1': nrm(keys[15], (L, FF)),
        'w2': nrm(keys[16], (L, FF, D)),    'b2': nrm(keys[17], (L, D)),
        'ln2g': 1.0 + nrm(keys[18], (L, D)), 'ln2b': nrm(keys[19], (L, D)),
        'wc': nrm(keys[20], (D, NC)),       'bc': nrm(keys[21], (NC,)),
    }

    ids = jax.random.randint(keys[22], (N, S), 0, V, dtype=jnp.int32)
    lengths = jnp.array([S, S - 2, S, S - 3], dtype=jnp.int32)        # some padding
    attn_mask = (jnp.arange(S)[None, :] < lengths[:, None]).astype(jnp.int32)
    x = jnp.stack([ids, attn_mask], axis=-1)                          # (N, S, 2) int32

    out = jax.block_until_ready(distilbert_classifier_forward(x, params))
    assert out.shape == (N, NC)

    ref = jax.block_until_ready(reference_forward(x, params))
    np.testing.assert_allclose(np.asarray(out), np.asarray(ref), rtol=2e-3, atol=2e-3)
    print("KERNEL_OK")
</pallas_src>

<mosaic_0001>
module attributes {stable_mosaic.version = 11 : i64} {
  func.func @distilbert_kernel(%arg0: i32, %arg1: memref<2x8x1xi32, #tpu.memory_space<vmem>>, %arg2: memref<2x1x8xf32, #tpu.memory_space<vmem>>, %arg3: memref<128x32xf32, #tpu.memory_space<vmem>>, %arg4: memref<16x32xf32, #tpu.memory_space<vmem>>, %arg5: memref<1x32xf32, #tpu.memory_space<vmem>>, %arg6: memref<1x32xf32, #tpu.memory_space<vmem>>, %arg7: memref<2x4x32x8xf32, #tpu.memory_space<vmem>>, %arg8: memref<2x4x1x8xf32, #tpu.memory_space<vmem>>, %arg9: memref<2x4x32x8xf32, #tpu.memory_space<vmem>>, %arg10: memref<2x4x1x8xf32, #tpu.memory_space<vmem>>, %arg11: memref<2x4x32x8xf32, #tpu.memory_space<vmem>>, %arg12: memref<2x4x1x8xf32, #tpu.memory_space<vmem>>, %arg13: memref<2x4x8x32xf32, #tpu.memory_space<vmem>>, %arg14: memref<2x1x32xf32, #tpu.memory_space<vmem>>, %arg15: memref<2x1x32xf32, #tpu.memory_space<vmem>>, %arg16: memref<2x1x32xf32, #tpu.memory_space<vmem>>, %arg17: memref<2x32x128xf32, #tpu.memory_space<vmem>>, %arg18: memref<2x1x128xf32, #tpu.memory_space<vmem>>, %arg19: memref<2x128x32xf32, #tpu.memory_space<vmem>>, %arg20: memref<2x1x32xf32, #tpu.memory_space<vmem>>, %arg21: memref<2x1x32xf32, #tpu.memory_space<vmem>>, %arg22: memref<2x1x32xf32, #tpu.memory_space<vmem>>, %arg23: memref<2x16xf32, #tpu.memory_space<vmem>>, %arg24: memref<32x128xf32, #tpu.memory_space<vmem>>, %arg25: memref<1x128xf32, #tpu.memory_space<vmem>>, %arg26: memref<1x2x128xf32, #tpu.memory_space<vmem>>) attributes {dimension_semantics = [#tpu.dimension_semantics<parallel>], iteration_bounds = array<i64: 2>, scalar_prefetch = 0 : i64, scratch_operands = 0 : i64, tpu.core_type = #tpu.core_type<tc>, window_params = [{transform_indices = @transform_0, window_bounds = array<i64: 2, 8, 1>}, {transform_indices = @transform_1, window_bounds = array<i64: 2, 1, 8>}, {pipeline_mode = #tpu.pipeline_mode<synchronous>, transform_indices = @transform_2, window_bounds = array<i64: 128, 32>}, {pipeline_mode = #tpu.pipeline_mode<synchronous>, transform_indices = @transform_3, window_bounds = array<i64: 16, 32>}, {pipeline_mode = #tpu.pipeline_mode<synchronous>, transform_indices = @transform_4, window_bounds = array<i64: 1, 32>}, {pipeline_mode = #tpu.pipeline_mode<synchronous>, transform_indices = @transform_5, window_bounds = array<i64: 1, 32>}, {pipeline_mode = #tpu.pipeline_mode<synchronous>, transform_indices = @transform_6, window_bounds = array<i64: 2, 4, 32, 8>}, {pipeline_mode = #tpu.pipeline_mode<synchronous>, transform_indices = @transform_7, window_bounds = array<i64: 2, 4, 1, 8>}, {pipeline_mode = #tpu.pipeline_mode<synchronous>, transform_indices = @transform_8, window_bounds = array<i64: 2, 4, 32, 8>}, {pipeline_mode = #tpu.pipeline_mode<synchronous>, transform_indices = @transform_9, window_bounds = array<i64: 2, 4, 1, 8>}, {pipeline_mode = #tpu.pipeline_mode<synchronous>, transform_indices = @transform_10, window_bounds = array<i64: 2, 4, 32, 8>}, {pipeline_mode = #tpu.pipeline_mode<synchronous>, transform_indices = @transform_11, window_bounds = array<i64: 2, 4, 1, 8>}, {pipeline_mode = #tpu.pipeline_mode<synchronous>, transform_indices = @transform_12, window_bounds = array<i64: 2, 4, 8, 32>}, {pipeline_mode = #tpu.pipeline_mode<synchronous>, transform_indices = @transform_13, window_bounds = array<i64: 2, 1, 32>}, {pipeline_mode = #tpu.pipeline_mode<synchronous>, transform_indices = @transform_14, window_bounds = array<i64: 2, 1, 32>}, {pipeline_mode = #tpu.pipeline_mode<synchronous>, transform_indices = @transform_15, window_bounds = array<i64: 2, 1, 32>}, {pipeline_mode = #tpu.pipeline_mode<synchronous>, transform_indices = @transform_16, window_bounds = array<i64: 2, 32, 128>}, {pipeline_mode = #tpu.pipeline_mode<synchronous>, transform_indices = @transform_17, window_bounds = array<i64: 2, 1, 128>}, {pipeline_mode = #tpu.pipeline_mode<synchronous>, transform_indices = @transform_18, window_bounds = array<i64: 2, 128, 32>}, {pipeline_mode = #tpu.pipeline_mode<synchronous>, transform_indices = @transform_19, window_bounds = array<i64: 2, 1, 32>}, {pipeline_mode = #tpu.pipeline_mode<synchronous>, transform_indices = @transform_20, window_bounds = array<i64: 2, 1, 32>}, {pipeline_mode = #tpu.pipeline_mode<synchronous>, transform_indices = @transform_21, window_bounds = array<i64: 2, 1, 32>}, {pipeline_mode = #tpu.pipeline_mode<synchronous>, transform_indices = @transform_22, window_bounds = array<i64: 2, 16>}, {pipeline_mode = #tpu.pipeline_mode<synchronous>, transform_indices = @transform_23, window_bounds = array<i64: 32, 128>}, {pipeline_mode = #tpu.pipeline_mode<synchronous>, transform_indices = @transform_24, window_bounds = array<i64: 1, 128>}, {transform_indices = @transform_25, window_bounds = array<i64: 1, 2, 128>}]} {
    %c0 = arith.constant 0 : index
    %c0_0 = arith.constant 0 : index
    %c0_1 = arith.constant 0 : index
    %0 = vector.load %arg1[%c0, %c0_0, %c0_1] : memref<2x8x1xi32, #tpu.memory_space<vmem>>, vector<2x8x1xi32>
    %1 = vector.shape_cast %0 : vector<2x8x1xi32> to vector<16x1xi32>
    %2 = tpu.iota {dimensions = array<i32: 1>} : vector<16x128xi32>
    %3 = vector.broadcast %1 : vector<16x1xi32> to vector<16x128xi32>
    %4 = arith.cmpi eq, %3, %2 : vector<16x128xi32>
    %5 = arith.extui %4 : vector<16x128xi1> to vector<16x128xi32>
    %6 = arith.sitofp %5 : vector<16x128xi32> to vector<16x128xf32>
    %c0_2 = arith.constant 0 : index
    %c0_3 = arith.constant 0 : index
    %7 = vector.load %arg3[%c0_2, %c0_3] : memref<128x32xf32, #tpu.memory_space<vmem>>, vector<128x32xf32>
    %cst = arith.constant dense<0.000000e+00> : vector<16x32xf32>
    %8 = tpu.matmul %6, %7, %cst {dimension_numbers = #tpu.dot_dimension_numbers<[1], [0], [0], [1], [0, 0, 1, 1], [], []>} : vector<16x128xf32>, vector<128x32xf32>, vector<16x32xf32> -> vector<16x32xf32>
    %c0_4 = arith.constant 0 : index
    %c0_5 = arith.constant 0 : index
    %9 = vector.load %arg4[%c0_4, %c0_5] : memref<16x32xf32, #tpu.memory_space<vmem>>, vector<16x32xf32>
    %10 = arith.addf %8, %9 : vector<16x32xf32>
    %c0_6 = arith.constant 0 : index
    %c0_7 = arith.constant 0 : index
    %11 = vector.load %arg5[%c0_6, %c0_7] : memref<1x32xf32, #tpu.memory_space<vmem>>, vector<1x32xf32>
    %c0_8 = arith.constant 0 : index
    %c0_9 = arith.constant 0 : index
    %12 = vector.load %arg6[%c0_8, %c0_9] : memref<1x32xf32, #tpu.memory_space<vmem>>, vector<1x32xf32>
    %cst_10 = arith.constant dense<0.000000e+00> : vector<16xf32>
    %13 = vector.multi_reduction <add>, %10, %cst_10 [1] : vector<16x32xf32> to vector<16xf32>
    %14 = vector.shape_cast %13 : vector<16xf32> to vector<16x1xf32>
    %cst_11 = arith.constant 3.200000e+01 : f32
    %15 = vector.broadcast %cst_11 : f32 to vector<16x1xf32>
    %16 = arith.divf %14, %15 : vector<16x1xf32>
    %17 = vector.broadcast %16 : vector<16x1xf32> to vector<16x32xf32>
    %18 = arith.subf %10, %17 : vector<16x32xf32>
    %19 = arith.mulf %18, %18 : vector<16x32xf32>
    %cst_12 = arith.constant dense<0.000000e+00> : vector<16xf32>
    %20 = vector.multi_reduction <add>, %19, %cst_12 [1] : vector<16x32xf32> to vector<16xf32>
    %21 = vector.shape_cast %20 : vector<16xf32> to vector<16x1xf32>
    %cst_13 = arith.constant 3.200000e+01 : f32
    %22 = vector.broadcast %cst_13 : f32 to vector<16x1xf32>
    %23 = arith.divf %21, %22 : vector<16x1xf32>
    %cst_14 = arith.constant 9.99999996E-13 : f32
    %24 = vector.broadcast %cst_14 : f32 to vector<16x1xf32>
    %25 = arith.addf %23, %24 : vector<16x1xf32>
    %26 = math.rsqrt %25 : vector<16x1xf32>
    %27 = vector.broadcast %26 : vector<16x1xf32> to vector<16x32xf32>
    %28 = arith.mulf %18, %27 : vector<16x32xf32>
    %29 = vector.broadcast %11 : vector<1x32xf32> to vector<16x32xf32>
    %30 = arith.mulf %28, %29 : vector<16x32xf32>
    %31 = vector.broadcast %12 : vector<1x32xf32> to vector<16x32xf32>
    %32 = arith.addf %30, %31 : vector<16x32xf32>
    %c0_15 = arith.constant 0 : index
    %c0_16 = arith.constant 0 : index
    %c0_17 = arith.constant 0 : index
    %33 = vector.load %arg2[%c0_15, %c0_16, %c0_17] : memref<2x1x8xf32, #tpu.memory_space<vmem>>, vector<2x1x8xf32>
    %34 = vector.shape_cast %33 : vector<2x1x8xf32> to vector<2x1x8xf32>
    %35 = vector.broadcast %34 : vector<2x1x8xf32> to vector<2x8x8xf32>
    %cst_18 = arith.constant 0.000000e+00 : f32
    %36 = vector.broadcast %cst_18 : f32 to vector<16x32xf32>
    %c0_19 = arith.constant 0 : index
    %c0_20 = arith.constant 0 : index
    %c0_21 = arith.constant 0 : index
    %c0_22 = arith.constant 0 : index
    %37 = vector.load %arg7[%c0_19, %c0_20, %c0_21, %c0_22] : memref<2x4x32x8xf32, #tpu.memory_space<vmem>>, vector<1x1x32x8xf32>
    %38 = vector.shape_cast %37 : vector<1x1x32x8xf32> to vector<32x8xf32>
    %cst_23 = arith.constant dense<0.000000e+00> : vector<16x8xf32>
    %39 = tpu.matmul %32, %38, %cst_23 {dimension_numbers = #tpu.dot_dimension_numbers<[1], [0], [0], [1], [0, 0, 1, 1], [], []>} : vector<16x32xf32>, vector<32x8xf32>, vector<16x8xf32> -> vector<16x8xf32>
    %c0_24 = arith.constant 0 : index
    %c0_25 = arith.constant 0 : index
    %c0_26 = arith.constant 0 : index
    %c0_27 = arith.constant 0 : index
    %40 = vector.load %arg8[%c0_24, %c0_25, %c0_26, %c0_27] : memref<2x4x1x8xf32, #tpu.memory_space<vmem>>, vector<1x1x1x8xf32>
    %41 = vector.shape_cast %40 : vector<1x1x1x8xf32> to vector<1x8xf32>
    %42 = vector.broadcast %41 : vector<1x8xf32> to vector<16x8xf32>
    %43 = arith.addf %39, %42 : vector<16x8xf32>
    %c0_28 = arith.constant 0 : index
    %c0_29 = arith.constant 0 : index
    %c0_30 = arith.constant 0 : index
    %c0_31 = arith.constant 0 : index
    %44 = vector.load %arg9[%c0_28, %c0_29, %c0_30, %c0_31] : memref<2x4x32x8xf32, #tpu.memory_space<vmem>>, vector<1x1x32x8xf32>
    %45 = vector.shape_cast %44 : vector<1x1x32x8xf32> to vector<32x8xf32>
    %cst_32 = arith.constant dense<0.000000e+00> : vector<16x8xf32>
    %46 = tpu.matmul %32, %45, %cst_32 {dimension_numbers = #tpu.dot_dimension_numbers<[1], [0], [0], [1], [0, 0, 1, 1], [], []>} : vector<16x32xf32>, vector<32x8xf32>, vector<16x8xf32> -> vector<16x8xf32>
    %c0_33 = arith.constant 0 : index
    %c0_34 = arith.constant 0 : index
    %c0_35 = arith.constant 0 : index
    %c0_36 = arith.constant 0 : index
    %47 = vector.load %arg10[%c0_33, %c0_34, %c0_35, %c0_36] : memref<2x4x1x8xf32, #tpu.memory_space<vmem>>, vector<1x1x1x8xf32>
    %48 = vector.shape_cast %47 : vector<1x1x1x8xf32> to vector<1x8xf32>
    %49 = vector.broadcast %48 : vector<1x8xf32> to vector<16x8xf32>
    %50 = arith.addf %46, %49 : vector<16x8xf32>
    %c0_37 = arith.constant 0 : index
    %c0_38 = arith.constant 0 : index
    %c0_39 = arith.constant 0 : index
    %c0_40 = arith.constant 0 : index
    %51 = vector.load %arg11[%c0_37, %c0_38, %c0_39, %c0_40] : memref<2x4x32x8xf32, #tpu.memory_space<vmem>>, vector<1x1x32x8xf32>
    %52 = vector.shape_cast %51 : vector<1x1x32x8xf32> to vector<32x8xf32>
    %cst_41 = arith.constant dense<0.000000e+00> : vector<16x8xf32>
    %53 = tpu.matmul %32, %52, %cst_41 {dimension_numbers = #tpu.dot_dimension_numbers<[1], [0], [0], [1], [0, 0, 1, 1], [], []>} : vector<16x32xf32>, vector<32x8xf32>, vector<16x8xf32> -> vector<16x8xf32>
    %c0_42 = arith.constant 0 : index
    %c0_43 = arith.constant 0 : index
    %c0_44 = arith.constant 0 : index
    %c0_45 = arith.constant 0 : index
    %54 = vector.load %arg12[%c0_42, %c0_43, %c0_44, %c0_45] : memref<2x4x1x8xf32, #tpu.memory_space<vmem>>, vector<1x1x1x8xf32>
    %55 = vector.shape_cast %54 : vector<1x1x1x8xf32> to vector<1x8xf32>
    %56 = vector.broadcast %55 : vector<1x8xf32> to vector<16x8xf32>
    %57 = arith.addf %53, %56 : vector<16x8xf32>
    %58 = vector.shape_cast %43 : vector<16x8xf32> to vector<2x8x8xf32>
    %cst_46 = arith.constant 0.353553385 : f32
    %59 = vector.broadcast %cst_46 : f32 to vector<2x8x8xf32>
    %60 = arith.mulf %58, %59 : vector<2x8x8xf32>
    %61 = vector.shape_cast %50 : vector<16x8xf32> to vector<2x8x8xf32>
    %62 = vector.shape_cast %57 : vector<16x8xf32> to vector<2x8x8xf32>
    "tpu.trace_start"() <{level = 10 : i32, message = "bsd,btd->bst"}> : () -> ()
    %cst_47 = arith.constant dense<0.000000e+00> : vector<2x8x8xf32>
    %63 = tpu.matmul %60, %61, %cst_47 {dimension_numbers = #tpu.dot_dimension_numbers<[2], [2], [1], [1], [0, 0, 0, 1, 1, 1], [0], [0]>} : vector<2x8x8xf32>, vector<2x8x8xf32>, vector<2x8x8xf32> -> vector<2x8x8xf32>
    %cst_48 = arith.constant 0.000000e+00 : f32
    "tpu.trace_stop"() : () -> ()
    %64 = vector.broadcast %cst_48 : f32 to vector<2x8x8xf32>
    %65 = arith.cmpf oeq, %35, %64 : vector<2x8x8xf32>
    %cst_49 = arith.constant -3.40282347E+38 : f32
    %66 = vector.broadcast %cst_49 : f32 to vector<2x8x8xf32>
    %67 = arith.select %65, %66, %63 : vector<2x8x8xi1>, vector<2x8x8xf32>
    %cst_50 = arith.constant dense<0xFF800000> : vector<2x8xf32>
    %68 = vector.multi_reduction <maximumf>, %67, %cst_50 [2] : vector<2x8x8xf32> to vector<2x8xf32>
    %69 = vector.shape_cast %68 : vector<2x8xf32> to vector<2x8x1xf32>
    %70 = vector.broadcast %69 : vector<2x8x1xf32> to vector<2x8x8xf32>
    %71 = arith.subf %67, %70 : vector<2x8x8xf32>
    %72 = math.exp %71 : vector<2x8x8xf32>
    %cst_51 = arith.constant dense<0.000000e+00> : vector<2x8xf32>
    %73 = vector.multi_reduction <add>, %72, %cst_51 [2] : vector<2x8x8xf32> to vector<2x8xf32>
    %74 = vector.shape_cast %73 : vector<2x8xf32> to vector<2x8x1xf32>
    %75 = vector.broadcast %74 : vector<2x8x1xf32> to vector<2x8x8xf32>
    %76 = arith.divf %72, %75 : vector<2x8x8xf32>
    "tpu.trace_start"() <{level = 10 : i32, message = "bst,btd->bsd"}> : () -> ()
    %cst_52 = arith.constant dense<0.000000e+00> : vector<2x8x8xf32>
    %77 = tpu.matmul %76, %62, %cst_52 {dimension_numbers = #tpu.dot_dimension_numbers<[2], [1], [1], [2], [0, 0, 0, 1, 1, 2], [0], [0]>} : vector<2x8x8xf32>, vector<2x8x8xf32>, vector<2x8x8xf32> -> vector<2x8x8xf32>
    "tpu.trace_stop"() : () -> ()
    %78 = vector.shape_cast %77 : vector<2x8x8xf32> to vector<16x8xf32>
    %c0_53 = arith.constant 0 : index
    %c0_54 = arith.constant 0 : index
    %c0_55 = arith.constant 0 : index
    %c0_56 = arith.constant 0 : index
    %79 = vector.load %arg13[%c0_53, %c0_54, %c0_55, %c0_56] : memref<2x4x8x32xf32, #tpu.memory_space<vmem>>, vector<1x1x8x32xf32>
    %80 = vector.shape_cast %79 : vector<1x1x8x32xf32> to vector<8x32xf32>
    %cst_57 = arith.constant dense<0.000000e+00> : vector<16x32xf32>
    %81 = tpu.matmul %78, %80, %cst_57 {dimension_numbers = #tpu.dot_dimension_numbers<[1], [0], [0], [1], [0, 0, 1, 1], [], []>} : vector<16x8xf32>, vector<8x32xf32>, vector<16x32xf32> -> vector<16x32xf32>
    %82 = arith.addf %36, %81 : vector<16x32xf32>
    %c0_58 = arith.constant 0 : index
    %c1 = arith.constant 1 : index
    %c0_59 = arith.constant 0 : index
    %c0_60 = arith.constant 0 : index
    %83 = vector.load %arg7[%c0_58, %c1, %c0_59, %c0_60] : memref<2x4x32x8xf32, #tpu.memory_space<vmem>>, vector<1x1x32x8xf32>
    %84 = vector.shape_cast %83 : vector<1x1x32x8xf32> to vector<32x8xf32>
    %cst_61 = arith.constant dense<0.000000e+00> : vector<16x8xf32>
    %85 = tpu.matmul %32, %84, %cst_61 {dimension_numbers = #tpu.dot_dimension_numbers<[1], [0], [0], [1], [0, 0, 1, 1], [], []>} : vector<16x32xf32>, vector<32x8xf32>, vector<16x8xf32> -> vector<16x8xf32>
    %c0_62 = arith.constant 0 : index
    %c1_63 = arith.constant 1 : index
    %c0_64 = arith.constant 0 : index
    %c0_65 = arith.constant 0 : index
    %86 = vector.load %arg8[%c0_62, %c1_63, %c0_64, %c0_65] : memref<2x4x1x8xf32, #tpu.memory_space<vmem>>, vector<1x1x1x8xf32>
    %87 = vector.shape_cast %86 : vector<1x1x1x8xf32> to vector<1x8xf32>
    %88 = vector.broadcast %87 : vector<1x8xf32> to vector<16x8xf32>
    %89 = arith.addf %85, %88 : vector<16x8xf32>
    %c0_66 = arith.constant 0 : index
    %c1_67 = arith.constant 1 : index
    %c0_68 = arith.constant 0 : index
    %c0_69 = arith.constant 0 : index
    %90 = vector.load %arg9[%c0_66, %c1_67, %c0_68, %c0_69] : memref<2x4x32x8xf32, #tpu.memory_space<vmem>>, vector<1x1x32x8xf32>
    %91 = vector.shape_cast %90 : vector<1x1x32x8xf32> to vector<32x8xf32>
    %cst_70 = arith.constant dense<0.000000e+00> : vector<16x8xf32>
    %92 = tpu.matmul %32, %91, %cst_70 {dimension_numbers = #tpu.dot_dimension_numbers<[1], [0], [0], [1], [0, 0, 1, 1], [], []>} : vector<16x32xf32>, vector<32x8xf32>, vector<16x8xf32> -> vector<16x8xf32>
    %c0_71 = arith.constant 0 : index
    %c1_72 = arith.constant 1 : index
    %c0_73 = arith.constant 0 : index
    %c0_74 = arith.constant 0 : index
    %93 = vector.load %arg10[%c0_71, %c1_72, %c0_73, %c0_74] : memref<2x4x1x8xf32, #tpu.memory_space<vmem>>, vector<1x1x1x8xf32>
    %94 = vector.shape_cast %93 : vector<1x1x1x8xf32> to vector<1x8xf32>
    %95 = vector.broadcast %94 : vector<1x8xf32> to vector<16x8xf32>
    %96 = arith.addf %92, %95 : vector<16x8xf32>
    %c0_75 = arith.constant 0 : index
    %c1_76 = arith.constant 1 : index
    %c0_77 = arith.constant 0 : index
    %c0_78 = arith.constant 0 : index
    %97 = vector.load %arg11[%c0_75, %c1_76, %c0_77, %c0_78] : memref<2x4x32x8xf32, #tpu.memory_space<vmem>>, vector<1x1x32x8xf32>
    %98 = vector.shape_cast %97 : vector<1x1x32x8xf32> to vector<32x8xf32>
    %cst_79 = arith.constant dense<0.000000e+00> : vector<16x8xf32>
    %99 = tpu.matmul %32, %98, %cst_79 {dimension_numbers = #tpu.dot_dimension_numbers<[1], [0], [0], [1], [0, 0, 1, 1], [], []>} : vector<16x32xf32>, vector<32x8xf32>, vector<16x8xf32> -> vector<16x8xf32>
    %c0_80 = arith.constant 0 : index
    %c1_81 = arith.constant 1 : index
    %c0_82 = arith.constant 0 : index
    %c0_83 = arith.constant 0 : index
    %100 = vector.load %arg12[%c0_80, %c1_81, %c0_82, %c0_83] : memref<2x4x1x8xf32, #tpu.memory_space<vmem>>, vector<1x1x1x8xf32>
    %101 = vector.shape_cast %100 : vector<1x1x1x8xf32> to vector<1x8xf32>
    %102 = vector.broadcast %101 : vector<1x8xf32> to vector<16x8xf32>
    %103 = arith.addf %99, %102 : vector<16x8xf32>
    %104 = vector.shape_cast %89 : vector<16x8xf32> to vector<2x8x8xf32>
    %cst_84 = arith.constant 0.353553385 : f32
    %105 = vector.broadcast %cst_84 : f32 to vector<2x8x8xf32>
    %106 = arith.mulf %104, %105 : vector<2x8x8xf32>
    %107 = vector.shape_cast %96 : vector<16x8xf32> to vector<2x8x8xf32>
    %108 = vector.shape_cast %103 : vector<16x8xf32> to vector<2x8x8xf32>
    "tpu.trace_start"() <{level = 10 : i32, message = "bsd,btd->bst"}> : () -> ()
    %cst_85 = arith.constant dense<0.000000e+00> : vector<2x8x8xf32>
    %109 = tpu.matmul %106, %107, %cst_85 {dimension_numbers = #tpu.dot_dimension_numbers<[2], [2], [1], [1], [0, 0, 0, 1, 1, 1], [0], [0]>} : vector<2x8x8xf32>, vector<2x8x8xf32>, vector<2x8x8xf32> -> vector<2x8x8xf32>
    %cst_86 = arith.constant 0.000000e+00 : f32
    "tpu.trace_stop"() : () -> ()
    %110 = vector.broadcast %cst_86 : f32 to vector<2x8x8xf32>
    %111 = arith.cmpf oeq, %35, %110 : vector<2x8x8xf32>
    %cst_87 = arith.constant -3.40282347E+38 : f32
    %112 = vector.broadcast %cst_87 : f32 to vector<2x8x8xf32>
    %113 = arith.select %111, %112, %109 : vector<2x8x8xi1>, vector<2x8x8xf32>
    %cst_88 = arith.constant dense<0xFF800000> : vector<2x8xf32>
    %114 = vector.multi_reduction <maximumf>, %113, %cst_88 [2] : vector<2x8x8xf32> to vector<2x8xf32>
    %115 = vector.shape_cast %114 : vector<2x8xf32> to vector<2x8x1xf32>
    %116 = vector.broadcast %115 : vector<2x8x1xf32> to vector<2x8x8xf32>
    %117 = arith.subf %113, %116 : vector<2x8x8xf32>
    %118 = math.exp %117 : vector<2x8x8xf32>
    %cst_89 = arith.constant dense<0.000000e+00> : vector<2x8xf32>
    %119 = vector.multi_reduction <add>, %118, %cst_89 [2] : vector<2x8x8xf32> to vector<2x8xf32>
    %120 = vector.shape_cast %119 : vector<2x8xf32> to vector<2x8x1xf32>
    %121 = vector.broadcast %120 : vector<2x8x1xf32> to vector<2x8x8xf32>
    %122 = arith.divf %118, %121 : vector<2x8x8xf32>
    "tpu.trace_start"() <{level = 10 : i32, message = "bst,btd->bsd"}> : () -> ()
    %cst_90 = arith.constant dense<0.000000e+00> : vector<2x8x8xf32>
    %123 = tpu.matmul %122, %108, %cst_90 {dimension_numbers = #tpu.dot_dimension_numbers<[2], [1], [1], [2], [0, 0, 0, 1, 1, 2], [0], [0]>} : vector<2x8x8xf32>, vector<2x8x8xf32>, vector<2x8x8xf32> -> vector<2x8x8xf32>
    "tpu.trace_stop"() : () -> ()
    %124 = vector.shape_cast %123 : vector<2x8x8xf32> to vector<16x8xf32>
    %c0_91 = arith.constant 0 : index
    %c1_92 = arith.constant 1 : index
    %c0_93 = arith.constant 0 : index
    %c0_94 = arith.constant 0 : index
    %125 = vector.load %arg13[%c0_91, %c1_92, %c0_93, %c0_94] : memref<2x4x8x32xf32, #tpu.memory_space<vmem>>, vector<1x1x8x32xf32>
    %126 = vector.shape_cast %125 : vector<1x1x8x32xf32> to vector<8x32xf32>
    %cst_95 = arith.constant dense<0.000000e+00> : vector<16x32xf32>
    %127 = tpu.matmul %124, %126, %cst_95 {dimension_numbers = #tpu.dot_dimension_numbers<[1], [0], [0], [1], [0, 0, 1, 1], [], []>} : vector<16x8xf32>, vector<8x32xf32>, vector<16x32xf32> -> vector<16x32xf32>
    %128 = arith.addf %82, %127 : vector<16x32xf32>
    %c0_96 = arith.constant 0 : index
    %c2 = arith.constant 2 : index
    %c0_97 = arith.constant 0 : index
    %c0_98 = arith.constant 0 : index
    %129 = vector.load %arg7[%c0_96, %c2, %c0_97, %c0_98] : memref<2x4x32x8xf32, #tpu.memory_space<vmem>>, vector<1x1x32x8xf32>
    %130 = vector.shape_cast %129 : vector<1x1x32x8xf32> to vector<32x8xf32>
    %cst_99 = arith.constant dense<0.000000e+00> : vector<16x8xf32>
    %131 = tpu.matmul %32, %130, %cst_99 {dimension_numbers = #tpu.dot_dimension_numbers<[1], [0], [0], [1], [0, 0, 1, 1], [], []>} : vector<16x32xf32>, vector<32x8xf32>, vector<16x8xf32> -> vector<16x8xf32>
    %c0_100 = arith.constant 0 : index
    %c2_101 = arith.constant 2 : index
    %c0_102 = arith.constant 0 : index
    %c0_103 = arith.constant 0 : index
    %132 = vector.load %arg8[%c0_100, %c2_101, %c0_102, %c0_103] : memref<2x4x1x8xf32, #tpu.memory_space<vmem>>, vector<1x1x1x8xf32>
    %133 = vector.shape_cast %132 : vector<1x1x1x8xf32> to vector<1x8xf32>
    %134 = vector.broadcast %133 : vector<1x8xf32> to vector<16x8xf32>
    %135 = arith.addf %131, %134 : vector<16x8xf32>
    %c0_104 = arith.constant 0 : index
    %c2_105 = arith.constant 2 : index
    %c0_106 = arith.constant 0 : index
    %c0_107 = arith.constant 0 : index
    %136 = vector.load %arg9[%c0_104, %c2_105, %c0_106, %c0_107] : memref<2x4x32x8xf32, #tpu.memory_space<vmem>>, vector<1x1x32x8xf32>
    %137 = vector.shape_cast %136 : vector<1x1x32x8xf32> to vector<32x8xf32>
    %cst_108 = arith.constant dense<0.000000e+00> : vector<16x8xf32>
    %138 = tpu.matmul %32, %137, %cst_108 {dimension_numbers = #tpu.dot_dimension_numbers<[1], [0], [0], [1], [0, 0, 1, 1], [], []>} : vector<16x32xf32>, vector<32x8xf32>, vector<16x8xf32> -> vector<16x8xf32>
    %c0_109 = arith.constant 0 : index
    %c2_110 = arith.constant 2 : index
    %c0_111 = arith.constant 0 : index
    %c0_112 = arith.constant 0 : index
    %139 = vector.load %arg10[%c0_109, %c2_110, %c0_111, %c0_112] : memref<2x4x1x8xf32, #tpu.memory_space<vmem>>, vector<1x1x1x8xf32>
    %140 = vector.shape_cast %139 : vector<1x1x1x8xf32> to vector<1x8xf32>
    %141 = vector.broadcast %140 : vector<1x8xf32> to vector<16x8xf32>
    %142 = arith.addf %138, %141 : vector<16x8xf32>
    %c0_113 = arith.constant 0 : index
    %c2_114 = arith.constant 2 : index
    %c0_115 = arith.constant 0 : index
    %c0_116 = arith.constant 0 : index
    %143 = vector.load %arg11[%c0_113, %c2_114, %c0_115, %c0_116] : memref<2x4x32x8xf32, #tpu.memory_space<vmem>>, vector<1x1x32x8xf32>
    %144 = vector.shape_cast %143 : vector<1x1x32x8xf32> to vector<32x8xf32>
    %cst_117 = arith.constant dense<0.000000e+00> : vector<16x8xf32>
    %145 = tpu.matmul %32, %144, %cst_117 {dimension_numbers = #tpu.dot_dimension_numbers<[1], [0], [0], [1], [0, 0, 1, 1], [], []>} : vector<16x32xf32>, vector<32x8xf32>, vector<16x8xf32> -> vector<16x8xf32>
    %c0_118 = arith.constant 0 : index
    %c2_119 = arith.constant 2 : index
    %c0_120 = arith.constant 0 : index
    %c0_121 = arith.constant 0 : index
    %146 = vector.load %arg12[%c0_118, %c2_119, %c0_120, %c0_121] : memref<2x4x1x8xf32, #tpu.memory_space<vmem>>, vector<1x1x1x8xf32>
    %147 = vector.shape_cast %146 : vector<1x1x1x8xf32> to vector<1x8xf32>
    %148 = vector.broadcast %147 : vector<1x8xf32> to vector<16x8xf32>
    %149 = arith.addf %145, %148 : vector<16x8xf32>
    %150 = vector.shape_cast %135 : vector<16x8xf32> to vector<2x8x8xf32>
    %cst_122 = arith.constant 0.353553385 : f32
    %151 = vector.broadcast %cst_122 : f32 to vector<2x8x8xf32>
    %152 = arith.mulf %150, %151 : vector<2x8x8xf32>
    %153 = vector.shape_cast %142 : vector<16x8xf32> to vector<2x8x8xf32>
    %154 = vector.shape_cast %149 : vector<16x8xf32> to vector<2x8x8xf32>
    "tpu.trace_start"() <{level = 10 : i32, message = "bsd,btd->bst"}> : () -> ()
    %cst_123 = arith.constant dense<0.000000e+00> : vector<2x8x8xf32>
    %155 = tpu.matmul %152, %153, %cst_123 {dimension_numbers = #tpu.dot_dimension_numbers<[2], [2], [1], [1], [0, 0, 0, 1, 1, 1], [0], [0]>} : vector<2x8x8xf32>, vector<2x8x8xf32>, vector<2x8x8xf32> -> vector<2x8x8xf32>
    %cst_124 = arith.constant 0.000000e+00 : f32
    "tpu.trace_stop"() : () -> ()
    %156 = vector.broadcast %cst_124 : f32 to vector<2x8x8xf32>
    %157 = arith.cmpf oeq, %35, %156 : vector<2x8x8xf32>
    %cst_125 = arith.constant -3.40282347E+38 : f32
    %158 = vector.broadcast %cst_125 : f32 to vector<2x8x8xf32>
    %159 = arith.select %157, %158, %155 : vector<2x8x8xi1>, vector<2x8x8xf32>
    %cst_126 = arith.constant dense<0xFF800000> : vector<2x8xf32>
    %160 = vector.multi_reduction <maximumf>, %159, %cst_126 [2] : vector<2x8x8xf32> to vector<2x8xf32>
    %161 = vector.shape_cast %160 : vector<2x8xf32> to vector<2x8x1xf32>
    %162 = vector.broadcast %161 : vector<2x8x1xf32> to vector<2x8x8xf32>
    %163 = arith.subf %159, %162 : vector<2x8x8xf32>
    %164 = math.exp %163 : vector<2x8x8xf32>
    %cst_127 = arith.constant dense<0.000000e+00> : vector<2x8xf32>
    %165 = vector.multi_reduction <add>, %164, %cst_127 [2] : vector<2x8x8xf32> to vector<2x8xf32>
    %166 = vector.shape_cast %165 : vector<2x8xf32> to vector<2x8x1xf32>
    %167 = vector.broadcast %166 : vector<2x8x1xf32> to vector<2x8x8xf32>
    %168 = arith.divf %164, %167 : vector<2x8x8xf32>
    "tpu.trace_start"() <{level = 10 : i32, message = "bst,btd->bsd"}> : () -> ()
    %cst_128 = arith.constant dense<0.000000e+00> : vector<2x8x8xf32>
    %169 = tpu.matmul %168, %154, %cst_128 {dimension_numbers = #tpu.dot_dimension_numbers<[2], [1], [1], [2], [0, 0, 0, 1, 1, 2], [0], [0]>} : vector<2x8x8xf32>, vector<2x8x8xf32>, vector<2x8x8xf32> -> vector<2x8x8xf32>
    "tpu.trace_stop"() : () -> ()
    %170 = vector.shape_cast %169 : vector<2x8x8xf32> to vector<16x8xf32>
    %c0_129 = arith.constant 0 : index
    %c2_130 = arith.constant 2 : index
    %c0_131 = arith.constant 0 : index
    %c0_132 = arith.constant 0 : index
    %171 = vector.load %arg13[%c0_129, %c2_130, %c0_131, %c0_132] : memref<2x4x8x32xf32, #tpu.memory_space<vmem>>, vector<1x1x8x32xf32>
    %172 = vector.shape_cast %171 : vector<1x1x8x32xf32> to vector<8x32xf32>
    %cst_133 = arith.constant dense<0.000000e+00> : vector<16x32xf32>
    %173 = tpu.matmul %170, %172, %cst_133 {dimension_numbers = #tpu.dot_dimension_numbers<[1], [0], [0], [1], [0, 0, 1, 1], [], []>} : vector<16x8xf32>, vector<8x32xf32>, vector<16x32xf32> -> vector<16x32xf32>
    %174 = arith.addf %128, %173 : vector<16x32xf32>
    %c0_134 = arith.constant 0 : index
    %c3 = arith.constant 3 : index
    %c0_135 = arith.constant 0 : index
    %c0_136 = arith.constant 0 : index
    %175 = vector.load %arg7[%c0_134, %c3, %c0_135, %c0_136] : memref<2x4x32x8xf32, #tpu.memory_space<vmem>>, vector<1x1x32x8xf32>
    %176 = vector.shape_cast %175 : vector<1x1x32x8xf32> to vector<32x8xf32>
    %cst_137 = arith.constant dense<0.000000e+00> : vector<16x8xf32>
    %177 = tpu.matmul %32, %176, %cst_137 {dimension_numbers = #tpu.dot_dimension_numbers<[1], [0], [0], [1], [0, 0, 1, 1], [], []>} : vector<16x32xf32>, vector<32x8xf32>, vector<16x8xf32> -> vector<16x8xf32>
    %c0_138 = arith.constant 0 : index
    %c3_139 = arith.constant 3 : index
    %c0_140 = arith.constant 0 : index
    %c0_141 = arith.constant 0 : index
    %178 = vector.load %arg8[%c0_138, %c3_139, %c0_140, %c0_141] : memref<2x4x1x8xf32, #tpu.memory_space<vmem>>, vector<1x1x1x8xf32>
    %179 = vector.shape_cast %178 : vector<1x1x1x8xf32> to vector<1x8xf32>
    %180 = vector.broadcast %179 : vector<1x8xf32> to vector<16x8xf32>
    %181 = arith.addf %177, %180 : vector<16x8xf32>
    %c0_142 = arith.constant 0 : index
    %c3_143 = arith.constant 3 : index
    %c0_144 = arith.constant 0 : index
    %c0_145 = arith.constant 0 : index
    %182 = vector.load %arg9[%c0_142, %c3_143, %c0_144, %c0_145] : memref<2x4x32x8xf32, #tpu.memory_space<vmem>>, vector<1x1x32x8xf32>
    %183 = vector.shape_cast %182 : vector<1x1x32x8xf32> to vector<32x8xf32>
    %cst_146 = arith.constant dense<0.000000e+00> : vector<16x8xf32>
    %184 = tpu.matmul %32, %183, %cst_146 {dimension_numbers = #tpu.dot_dimension_numbers<[1], [0], [0], [1], [0, 0, 1, 1], [], []>} : vector<16x32xf32>, vector<32x8xf32>, vector<16x8xf32> -> vector<16x8xf32>
    %c0_147 = arith.constant 0 : index
    %c3_148 = arith.constant 3 : index
    %c0_149 = arith.constant 0 : index
    %c0_150 = arith.constant 0 : index
    %185 = vector.load %arg10[%c0_147, %c3_148, %c0_149, %c0_150] : memref<2x4x1x8xf32, #tpu.memory_space<vmem>>, vector<1x1x1x8xf32>
    %186 = vector.shape_cast %185 : vector<1x1x1x8xf32> to vector<1x8xf32>
    %187 = vector.broadcast %186 : vector<1x8xf32> to vector<16x8xf32>
    %188 = arith.addf %184, %187 : vector<16x8xf32>
    %c0_151 = arith.constant 0 : index
    %c3_152 = arith.constant 3 : index
    %c0_153 = arith.constant 0 : index
    %c0_154 = arith.constant 0 : index
    %189 = vector.load %arg11[%c0_151, %c3_152, %c0_153, %c0_154] : memref<2x4x32x8xf32, #tpu.memory_space<vmem>>, vector<1x1x32x8xf32>
    %190 = vector.shape_cast %189 : vector<1x1x32x8xf32> to vector<32x8xf32>
    %cst_155 = arith.constant dense<0.000000e+00> : vector<16x8xf32>
    %191 = tpu.matmul %32, %190, %cst_155 {dimension_numbers = #tpu.dot_dimension_numbers<[1], [0], [0], [1], [0, 0, 1, 1], [], []>} : vector<16x32xf32>, vector<32x8xf32>, vector<16x8xf32> -> vector<16x8xf32>
    %c0_156 = arith.constant 0 : index
    %c3_157 = arith.constant 3 : index
    %c0_158 = arith.constant 0 : index
    %c0_159 = arith.constant 0 : index
    %192 = vector.load %arg12[%c0_156, %c3_157, %c0_158, %c0_159] : memref<2x4x1x8xf32, #tpu.memory_space<vmem>>, vector<1x1x1x8xf32>
    %193 = vector.shape_cast %192 : vector<1x1x1x8xf32> to vector<1x8xf32>
    %194 = vector.broadcast %193 : vector<1x8xf32> to vector<16x8xf32>
    %195 = arith.addf %191, %194 : vector<16x8xf32>
    %196 = vector.shape_cast %181 : vector<16x8xf32> to vector<2x8x8xf32>
    %cst_160 = arith.constant 0.353553385 : f32
    %197 = vector.broadcast %cst_160 : f32 to vector<2x8x8xf32>
    %198 = arith.mulf %196, %197 : vector<2x8x8xf32>
    %199 = vector.shape_cast %188 : vector<16x8xf32> to vector<2x8x8xf32>
    %200 = vector.shape_cast %195 : vector<16x8xf32> to vector<2x8x8xf32>
    "tpu.trace_start"() <{level = 10 : i32, message = "bsd,btd->bst"}> : () -> ()
    %cst_161 = arith.constant dense<0.000000e+00> : vector<2x8x8xf32>
    %201 = tpu.matmul %198, %199, %cst_161 {dimension_numbers = #tpu.dot_dimension_numbers<[2], [2], [1], [1], [0, 0, 0, 1, 1, 1], [0], [0]>} : vector<2x8x8xf32>, vector<2x8x8xf32>, vector<2x8x8xf32> -> vector<2x8x8xf32>
    %cst_162 = arith.constant 0.000000e+00 : f32
    "tpu.trace_stop"() : () -> ()
    %202 = vector.broadcast %cst_162 : f32 to vector<2x8x8xf32>
    %203 = arith.cmpf oeq, %35, %202 : vector<2x8x8xf32>
    %cst_163 = arith.constant -3.40282347E+38 : f32
    %204 = vector.broadcast %cst_163 : f32 to vector<2x8x8xf32>
    %205 = arith.select %203, %204, %201 : vector<2x8x8xi1>, vector<2x8x8xf32>
    %cst_164 = arith.constant dense<0xFF800000> : vector<2x8xf32>
    %206 = vector.multi_reduction <maximumf>, %205, %cst_164 [2] : vector<2x8x8xf32> to vector<2x8xf32>
    %207 = vector.shape_cast %206 : vector<2x8xf32> to vector<2x8x1xf32>
    %208 = vector.broadcast %207 : vector<2x8x1xf32> to vector<2x8x8xf32>
    %209 = arith.subf %205, %208 : vector<2x8x8xf32>
    %210 = math.exp %209 : vector<2x8x8xf32>
    %cst_165 = arith.constant dense<0.000000e+00> : vector<2x8xf32>
    %211 = vector.multi_reduction <add>, %210, %cst_165 [2] : vector<2x8x8xf32> to vector<2x8xf32>
    %212 = vector.shape_cast %211 : vector<2x8xf32> to vector<2x8x1xf32>
    %213 = vector.broadcast %212 : vector<2x8x1xf32> to vector<2x8x8xf32>
    %214 = arith.divf %210, %213 : vector<2x8x8xf32>
    "tpu.trace_start"() <{level = 10 : i32, message = "bst,btd->bsd"}> : () -> ()
    %cst_166 = arith.constant dense<0.000000e+00> : vector<2x8x8xf32>
    %215 = tpu.matmul %214, %200, %cst_166 {dimension_numbers = #tpu.dot_dimension_numbers<[2], [1], [1], [2], [0, 0, 0, 1, 1, 2], [0], [0]>} : vector<2x8x8xf32>, vector<2x8x8xf32>, vector<2x8x8xf32> -> vector<2x8x8xf32>
    "tpu.trace_stop"() : () -> ()
    %216 = vector.shape_cast %215 : vector<2x8x8xf32> to vector<16x8xf32>
    %c0_167 = arith.constant 0 : index
    %c3_168 = arith.constant 3 : index
    %c0_169 = arith.constant 0 : index
    %c0_170 = arith.constant 0 : index
    %217 = vector.load %arg13[%c0_167, %c3_168, %c0_169, %c0_170] : memref<2x4x8x32xf32, #tpu.memory_space<vmem>>, vector<1x1x8x32xf32>
    %218 = vector.shape_cast %217 : vector<1x1x8x32xf32> to vector<8x32xf32>
    %cst_171 = arith.constant dense<0.000000e+00> : vector<16x32xf32>
    %219 = tpu.matmul %216, %218, %cst_171 {dimension_numbers = #tpu.dot_dimension_numbers<[1], [0], [0], [1], [0, 0, 1, 1], [], []>} : vector<16x8xf32>, vector<8x32xf32>, vector<16x32xf32> -> vector<16x32xf32>
    %220 = arith.addf %174, %219 : vector<16x32xf32>
    %c0_172 = arith.constant 0 : index
    %c0_173 = arith.constant 0 : index
    %c0_174 = arith.constant 0 : index
    %221 = vector.load %arg14[%c0_172, %c0_173, %c0_174] : memref<2x1x32xf32, #tpu.memory_space<vmem>>, vector<1x1x32xf32>
    %222 = vector.shape_cast %221 : vector<1x1x32xf32> to vector<1x32xf32>
    %223 = vector.broadcast %222 : vector<1x32xf32> to vector<16x32xf32>
    %224 = arith.addf %220, %223 : vector<16x32xf32>
    %225 = arith.addf %224, %32 : vector<16x32xf32>
    %c0_175 = arith.constant 0 : index
    %c0_176 = arith.constant 0 : index
    %c0_177 = arith.constant 0 : index
    %226 = vector.load %arg15[%c0_175, %c0_176, %c0_177] : memref<2x1x32xf32, #tpu.memory_space<vmem>>, vector<1x1x32xf32>
    %227 = vector.shape_cast %226 : vector<1x1x32xf32> to vector<1x32xf32>
    %c0_178 = arith.constant 0 : index
    %c0_179 = arith.constant 0 : index
    %c0_180 = arith.constant 0 : index
    %228 = vector.load %arg16[%c0_178, %c0_179, %c0_180] : memref<2x1x32xf32, #tpu.memory_space<vmem>>, vector<1x1x32xf32>
    %229 = vector.shape_cast %228 : vector<1x1x32xf32> to vector<1x32xf32>
    %cst_181 = arith.constant dense<0.000000e+00> : vector<16xf32>
    %230 = vector.multi_reduction <add>, %225, %cst_181 [1] : vector<16x32xf32> to vector<16xf32>
    %231 = vector.shape_cast %230 : vector<16xf32> to vector<16x1xf32>
    %cst_182 = arith.constant 3.200000e+01 : f32
    %232 = vector.broadcast %cst_182 : f32 to vector<16x1xf32>
    %233 = arith.divf %231, %232 : vector<16x1xf32>
    %234 = vector.broadcast %233 : vector<16x1xf32> to vector<16x32xf32>
    %235 = arith.subf %225, %234 : vector<16x32xf32>
    %236 = arith.mulf %235, %235 : vector<16x32xf32>
    %cst_183 = arith.constant dense<0.000000e+00> : vector<16xf32>
    %237 = vector.multi_reduction <add>, %236, %cst_183 [1] : vector<16x32xf32> to vector<16xf32>
    %238 = vector.shape_cast %237 : vector<16xf32> to vector<16x1xf32>
    %cst_184 = arith.constant 3.200000e+01 : f32
    %239 = vector.broadcast %cst_184 : f32 to vector<16x1xf32>
    %240 = arith.divf %238, %239 : vector<16x1xf32>
    %cst_185 = arith.constant 9.99999996E-13 : f32
    %241 = vector.broadcast %cst_185 : f32 to vector<16x1xf32>
    %242 = arith.addf %240, %241 : vector<16x1xf32>
    %243 = math.rsqrt %242 : vector<16x1xf32>
    %244 = vector.broadcast %243 : vector<16x1xf32> to vector<16x32xf32>
    %245 = arith.mulf %235, %244 : vector<16x32xf32>
    %246 = vector.broadcast %227 : vector<1x32xf32> to vector<16x32xf32>
    %247 = arith.mulf %245, %246 : vector<16x32xf32>
    %248 = vector.broadcast %229 : vector<1x32xf32> to vector<16x32xf32>
    %249 = arith.addf %247, %248 : vector<16x32xf32>
    %c0_186 = arith.constant 0 : index
    %c0_187 = arith.constant 0 : index
    %c0_188 = arith.constant 0 : index
    %250 = vector.load %arg17[%c0_186, %c0_187, %c0_188] : memref<2x32x128xf32, #tpu.memory_space<vmem>>, vector<1x32x128xf32>
    %251 = vector.shape_cast %250 : vector<1x32x128xf32> to vector<32x128xf32>
    %cst_189 = arith.constant dense<0.000000e+00> : vector<16x128xf32>
    %252 = tpu.matmul %249, %251, %cst_189 {dimension_numbers = #tpu.dot_dimension_numbers<[1], [0], [0], [1], [0, 0, 1, 1], [], []>} : vector<16x32xf32>, vector<32x128xf32>, vector<16x128xf32> -> vector<16x128xf32>
    %c0_190 = arith.constant 0 : index
    %c0_191 = arith.constant 0 : index
    %c0_192 = arith.constant 0 : index
    %253 = vector.load %arg18[%c0_190, %c0_191, %c0_192] : memref<2x1x128xf32, #tpu.memory_space<vmem>>, vector<1x1x128xf32>
    %254 = vector.shape_cast %253 : vector<1x1x128xf32> to vector<1x128xf32>
    %255 = vector.broadcast %254 : vector<1x128xf32> to vector<16x128xf32>
    %256 = arith.addf %252, %255 : vector<16x128xf32>
    %cst_193 = arith.constant 5.000000e-01 : f32
    %257 = vector.broadcast %cst_193 : f32 to vector<16x128xf32>
    %258 = arith.mulf %257, %256 : vector<16x128xf32>
    %cst_194 = arith.constant 4.471500e-02 : f32
    %259 = vector.broadcast %cst_194 : f32 to vector<16x128xf32>
    %260 = arith.mulf %259, %256 : vector<16x128xf32>
    %261 = arith.mulf %260, %256 : vector<16x128xf32>
    %262 = arith.mulf %261, %256 : vector<16x128xf32>
    %263 = arith.addf %256, %262 : vector<16x128xf32>
    %cst_195 = arith.constant 0.797884583 : f32
    %264 = vector.broadcast %cst_195 : f32 to vector<16x128xf32>
    %265 = arith.mulf %264, %263 : vector<16x128xf32>
    %266 = math.tanh %265 : vector<16x128xf32>
    %cst_196 = arith.constant 1.000000e+00 : f32
    %267 = vector.broadcast %cst_196 : f32 to vector<16x128xf32>
    %268 = arith.addf %267, %266 : vector<16x128xf32>
    %269 = arith.mulf %258, %268 : vector<16x128xf32>
    %c0_197 = arith.constant 0 : index
    %c0_198 = arith.constant 0 : index
    %c0_199 = arith.constant 0 : index
    %270 = vector.load %arg19[%c0_197, %c0_198, %c0_199] : memref<2x128x32xf32, #tpu.memory_space<vmem>>, vector<1x128x32xf32>
    %271 = vector.shape_cast %270 : vector<1x128x32xf32> to vector<128x32xf32>
    %cst_200 = arith.constant dense<0.000000e+00> : vector<16x32xf32>
    %272 = tpu.matmul %269, %271, %cst_200 {dimension_numbers = #tpu.dot_dimension_numbers<[1], [0], [0], [1], [0, 0, 1, 1], [], []>} : vector<16x128xf32>, vector<128x32xf32>, vector<16x32xf32> -> vector<16x32xf32>
    %c0_201 = arith.constant 0 : index
    %c0_202 = arith.constant 0 : index
    %c0_203 = arith.constant 0 : index
    %273 = vector.load %arg20[%c0_201, %c0_202, %c0_203] : memref<2x1x32xf32, #tpu.memory_space<vmem>>, vector<1x1x32xf32>
    %274 = vector.shape_cast %273 : vector<1x1x32xf32> to vector<1x32xf32>
    %275 = vector.broadcast %274 : vector<1x32xf32> to vector<16x32xf32>
    %276 = arith.addf %272, %275 : vector<16x32xf32>
    %277 = arith.addf %276, %249 : vector<16x32xf32>
    %c0_204 = arith.constant 0 : index
    %c0_205 = arith.constant 0 : index
    %c0_206 = arith.constant 0 : index
    %278 = vector.load %arg21[%c0_204, %c0_205, %c0_206] : memref<2x1x32xf32, #tpu.memory_space<vmem>>, vector<1x1x32xf32>
    %279 = vector.shape_cast %278 : vector<1x1x32xf32> to vector<1x32xf32>
    %c0_207 = arith.constant 0 : index
    %c0_208 = arith.constant 0 : index
    %c0_209 = arith.constant 0 : index
    %280 = vector.load %arg22[%c0_207, %c0_208, %c0_209] : memref<2x1x32xf32, #tpu.memory_space<vmem>>, vector<1x1x32xf32>
    %281 = vector.shape_cast %280 : vector<1x1x32xf32> to vector<1x32xf32>
    %cst_210 = arith.constant dense<0.000000e+00> : vector<16xf32>
    %282 = vector.multi_reduction <add>, %277, %cst_210 [1] : vector<16x32xf32> to vector<16xf32>
    %283 = vector.shape_cast %282 : vector<16xf32> to vector<16x1xf32>
    %cst_211 = arith.constant 3.200000e+01 : f32
    %284 = vector.broadcast %cst_211 : f32 to vector<16x1xf32>
    %285 = arith.divf %283, %284 : vector<16x1xf32>
    %286 = vector.broadcast %285 : vector<16x1xf32> to vector<16x32xf32>
    %287 = arith.subf %277, %286 : vector<16x32xf32>
    %288 = arith.mulf %287, %287 : vector<16x32xf32>
    %cst_212 = arith.constant dense<0.000000e+00> : vector<16xf32>
    %289 = vector.multi_reduction <add>, %288, %cst_212 [1] : vector<16x32xf32> to vector<16xf32>
    %290 = vector.shape_cast %289 : vector<16xf32> to vector<16x1xf32>
    %cst_213 = arith.constant 3.200000e+01 : f32
    %291 = vector.broadcast %cst_213 : f32 to vector<16x1xf32>
    %292 = arith.divf %290, %291 : vector<16x1xf32>
    %cst_214 = arith.constant 9.99999996E-13 : f32
    %293 = vector.broadcast %cst_214 : f32 to vector<16x1xf32>
    %294 = arith.addf %292, %293 : vector<16x1xf32>
    %295 = math.rsqrt %294 : vector<16x1xf32>
    %296 = vector.broadcast %295 : vector<16x1xf32> to vector<16x32xf32>
    %297 = arith.mulf %287, %296 : vector<16x32xf32>
    %298 = vector.broadcast %279 : vector<1x32xf32> to vector<16x32xf32>
    %299 = arith.mulf %297, %298 : vector<16x32xf32>
    %300 = vector.broadcast %281 : vector<1x32xf32> to vector<16x32xf32>
    %301 = arith.addf %299, %300 : vector<16x32xf32>
    %cst_215 = arith.constant 0.000000e+00 : f32
    %302 = vector.broadcast %cst_215 : f32 to vector<16x32xf32>
    %c1_216 = arith.constant 1 : index
    %c0_217 = arith.constant 0 : index
    %c0_218 = arith.constant 0 : index
    %c0_219 = arith.constant 0 : index
    %303 = vector.load %arg7[%c1_216, %c0_217, %c0_218, %c0_219] : memref<2x4x32x8xf32, #tpu.memory_space<vmem>>, vector<1x1x32x8xf32>
    %304 = vector.shape_cast %303 : vector<1x1x32x8xf32> to vector<32x8xf32>
    %cst_220 = arith.constant dense<0.000000e+00> : vector<16x8xf32>
    %305 = tpu.matmul %301, %304, %cst_220 {dimension_numbers = #tpu.dot_dimension_numbers<[1], [0], [0], [1], [0, 0, 1, 1], [], []>} : vector<16x32xf32>, vector<32x8xf32>, vector<16x8xf32> -> vector<16x8xf32>
    %c1_221 = arith.constant 1 : index
    %c0_222 = arith.constant 0 : index
    %c0_223 = arith.constant 0 : index
    %c0_224 = arith.constant 0 : index
    %306 = vector.load %arg8[%c1_221, %c0_222, %c0_223, %c0_224] : memref<2x4x1x8xf32, #tpu.memory_space<vmem>>, vector<1x1x1x8xf32>
    %307 = vector.shape_cast %306 : vector<1x1x1x8xf32> to vector<1x8xf32>
    %308 = vector.broadcast %307 : vector<1x8xf32> to vector<16x8xf32>
    %309 = arith.addf %305, %308 : vector<16x8xf32>
    %c1_225 = arith.constant 1 : index
    %c0_226 = arith.constant 0 : index
    %c0_227 = arith.constant 0 : index
    %c0_228 = arith.constant 0 : index
    %310 = vector.load %arg9[%c1_225, %c0_226, %c0_227, %c0_228] : memref<2x4x32x8xf32, #tpu.memory_space<vmem>>, vector<1x1x32x8xf32>
    %311 = vector.shape_cast %310 : vector<1x1x32x8xf32> to vector<32x8xf32>
    %cst_229 = arith.constant dense<0.000000e+00> : vector<16x8xf32>
    %312 = tpu.matmul %301, %311, %cst_229 {dimension_numbers = #tpu.dot_dimension_numbers<[1], [0], [0], [1], [0, 0, 1, 1], [], []>} : vector<16x32xf32>, vector<32x8xf32>, vector<16x8xf32> -> vector<16x8xf32>
    %c1_230 = arith.constant 1 : index
    %c0_231 = arith.constant 0 : index
    %c0_232 = arith.constant 0 : index
    %c0_233 = arith.constant 0 : index
    %313 = vector.load %arg10[%c1_230, %c0_231, %c0_232, %c0_233] : memref<2x4x1x8xf32, #tpu.memory_space<vmem>>, vector<1x1x1x8xf32>
    %314 = vector.shape_cast %313 : vector<1x1x1x8xf32> to vector<1x8xf32>
    %315 = vector.broadcast %314 : vector<1x8xf32> to vector<16x8xf32>
    %316 = arith.addf %312, %315 : vector<16x8xf32>
    %c1_234 = arith.constant 1 : index
    %c0_235 = arith.constant 0 : index
    %c0_236 = arith.constant 0 : index
    %c0_237 = arith.constant 0 : index
    %317 = vector.load %arg11[%c1_234, %c0_235, %c0_236, %c0_237] : memref<2x4x32x8xf32, #tpu.memory_space<vmem>>, vector<1x1x32x8xf32>
    %318 = vector.shape_cast %317 : vector<1x1x32x8xf32> to vector<32x8xf32>
    %cst_238 = arith.constant dense<0.000000e+00> : vector<16x8xf32>
    %319 = tpu.matmul %301, %318, %cst_238 {dimension_numbers = #tpu.dot_dimension_numbers<[1], [0], [0], [1], [0, 0, 1, 1], [], []>} : vector<16x32xf32>, vector<32x8xf32>, vector<16x8xf32> -> vector<16x8xf32>
    %c1_239 = arith.constant 1 : index
    %c0_240 = arith.constant 0 : index
    %c0_241 = arith.constant 0 : index
    %c0_242 = arith.constant 0 : index
    %320 = vector.load %arg12[%c1_239, %c0_240, %c0_241, %c0_242] : memref<2x4x1x8xf32, #tpu.memory_space<vmem>>, vector<1x1x1x8xf32>
    %321 = vector.shape_cast %320 : vector<1x1x1x8xf32> to vector<1x8xf32>
    %322 = vector.broadcast %321 : vector<1x8xf32> to vector<16x8xf32>
    %323 = arith.addf %319, %322 : vector<16x8xf32>
    %324 = vector.shape_cast %309 : vector<16x8xf32> to vector<2x8x8xf32>
    %cst_243 = arith.constant 0.353553385 : f32
    %325 = vector.broadcast %cst_243 : f32 to vector<2x8x8xf32>
    %326 = arith.mulf %324, %325 : vector<2x8x8xf32>
    %327 = vector.shape_cast %316 : vector<16x8xf32> to vector<2x8x8xf32>
    %328 = vector.shape_cast %323 : vector<16x8xf32> to vector<2x8x8xf32>
    "tpu.trace_start"() <{level = 10 : i32, message = "bsd,btd->bst"}> : () -> ()
    %cst_244 = arith.constant dense<0.000000e+00> : vector<2x8x8xf32>
    %329 = tpu.matmul %326, %327, %cst_244 {dimension_numbers = #tpu.dot_dimension_numbers<[2], [2], [1], [1], [0, 0, 0, 1, 1, 1], [0], [0]>} : vector<2x8x8xf32>, vector<2x8x8xf32>, vector<2x8x8xf32> -> vector<2x8x8xf32>
    %cst_245 = arith.constant 0.000000e+00 : f32
    "tpu.trace_stop"() : () -> ()
    %330 = vector.broadcast %cst_245 : f32 to vector<2x8x8xf32>
    %331 = arith.cmpf oeq, %35, %330 : vector<2x8x8xf32>
    %cst_246 = arith.constant -3.40282347E+38 : f32
    %332 = vector.broadcast %cst_246 : f32 to vector<2x8x8xf32>
    %333 = arith.select %331, %332, %329 : vector<2x8x8xi1>, vector<2x8x8xf32>
    %cst_247 = arith.constant dense<0xFF800000> : vector<2x8xf32>
    %334 = vector.multi_reduction <maximumf>, %333, %cst_247 [2] : vector<2x8x8xf32> to vector<2x8xf32>
    %335 = vector.shape_cast %334 : vector<2x8xf32> to vector<2x8x1xf32>
    %336 = vector.broadcast %335 : vector<2x8x1xf32> to vector<2x8x8xf32>
    %337 = arith.subf %333, %336 : vector<2x8x8xf32>
    %338 = math.exp %337 : vector<2x8x8xf32>
    %cst_248 = arith.constant dense<0.000000e+00> : vector<2x8xf32>
    %339 = vector.multi_reduction <add>, %338, %cst_248 [2] : vector<2x8x8xf32> to vector<2x8xf32>
    %340 = vector.shape_cast %339 : vector<2x8xf32> to vector<2x8x1xf32>
    %341 = vector.broadcast %340 : vector<2x8x1xf32> to vector<2x8x8xf32>
    %342 = arith.divf %338, %341 : vector<2x8x8xf32>
    "tpu.trace_start"() <{level = 10 : i32, message = "bst,btd->bsd"}> : () -> ()
    %cst_249 = arith.constant dense<0.000000e+00> : vector<2x8x8xf32>
    %343 = tpu.matmul %342, %328, %cst_249 {dimension_numbers = #tpu.dot_dimension_numbers<[2], [1], [1], [2], [0, 0, 0, 1, 1, 2], [0], [0]>} : vector<2x8x8xf32>, vector<2x8x8xf32>, vector<2x8x8xf32> -> vector<2x8x8xf32>
    "tpu.trace_stop"() : () -> ()
    %344 = vector.shape_cast %343 : vector<2x8x8xf32> to vector<16x8xf32>
    %c1_250 = arith.constant 1 : index
    %c0_251 = arith.constant 0 : index
    %c0_252 = arith.constant 0 : index
    %c0_253 = arith.constant 0 : index
    %345 = vector.load %arg13[%c1_250, %c0_251, %c0_252, %c0_253] : memref<2x4x8x32xf32, #tpu.memory_space<vmem>>, vector<1x1x8x32xf32>
    %346 = vector.shape_cast %345 : vector<1x1x8x32xf32> to vector<8x32xf32>
    %cst_254 = arith.constant dense<0.000000e+00> : vector<16x32xf32>
    %347 = tpu.matmul %344, %346, %cst_254 {dimension_numbers = #tpu.dot_dimension_numbers<[1], [0], [0], [1], [0, 0, 1, 1], [], []>} : vector<16x8xf32>, vector<8x32xf32>, vector<16x32xf32> -> vector<16x32xf32>
    %348 = arith.addf %302, %347 : vector<16x32xf32>
    %c1_255 = arith.constant 1 : index
    %c1_256 = arith.constant 1 : index
    %c0_257 = arith.constant 0 : index
    %c0_258 = arith.constant 0 : index
    %349 = vector.load %arg7[%c1_255, %c1_256, %c0_257, %c0_258] : memref<2x4x32x8xf32, #tpu.memory_space<vmem>>, vector<1x1x32x8xf32>
    %350 = vector.shape_cast %349 : vector<1x1x32x8xf32> to vector<32x8xf32>
    %cst_259 = arith.constant dense<0.000000e+00> : vector<16x8xf32>
    %351 = tpu.matmul %301, %350, %cst_259 {dimension_numbers = #tpu.dot_dimension_numbers<[1], [0], [0], [1], [0, 0, 1, 1], [], []>} : vector<16x32xf32>, vector<32x8xf32>, vector<16x8xf32> -> vector<16x8xf32>
    %c1_260 = arith.constant 1 : index
    %c1_261 = arith.constant 1 : index
    %c0_262 = arith.constant 0 : index
    %c0_263 = arith.constant 0 : index
    %352 = vector.load %arg8[%c1_260, %c1_261, %c0_262, %c0_263] : memref<2x4x1x8xf32, #tpu.memory_space<vmem>>, vector<1x1x1x8xf32>
    %353 = vector.shape_cast %352 : vector<1x1x1x8xf32> to vector<1x8xf32>
    %354 = vector.broadcast %353 : vector<1x8xf32> to vector<16x8xf32>
    %355 = arith.addf %351, %354 : vector<16x8xf32>
    %c1_264 = arith.constant 1 : index
    %c1_265 = arith.constant 1 : index
    %c0_266 = arith.constant 0 : index
    %c0_267 = arith.constant 0 : index
    %356 = vector.load %arg9[%c1_264, %c1_265, %c0_266, %c0_267] : memref<2x4x32x8xf32, #tpu.memory_space<vmem>>, vector<1x1x32x8xf32>
    %357 = vector.shape_cast %356 : vector<1x1x32x8xf32> to vector<32x8xf32>
    %cst_268 = arith.constant dense<0.000000e+00> : vector<16x8xf32>
    %358 = tpu.matmul %301, %357, %cst_268 {dimension_numbers = #tpu.dot_dimension_numbers<[1], [0], [0], [1], [0, 0, 1, 1], [], []>} : vector<16x32xf32>, vector<32x8xf32>, vector<16x8xf32> -> vector<16x8xf32>
    %c1_269 = arith.constant 1 : index
    %c1_270 = arith.constant 1 : index
    %c0_271 = arith.constant 0 : index
    %c0_272 = arith.constant 0 : index
    %359 = vector.load %arg10[%c1_269, %c1_270, %c0_271, %c0_272] : memref<2x4x1x8xf32, #tpu.memory_space<vmem>>, vector<1x1x1x8xf32>
    %360 = vector.shape_cast %359 : vector<1x1x1x8xf32> to vector<1x8xf32>
    %361 = vector.broadcast %360 : vector<1x8xf32> to vector<16x8xf32>
    %362 = arith.addf %358, %361 : vector<16x8xf32>
    %c1_273 = arith.constant 1 : index
    %c1_274 = arith.constant 1 : index
    %c0_275 = arith.constant 0 : index
    %c0_276 = arith.constant 0 : index
    %363 = vector.load %arg11[%c1_273, %c1_274, %c0_275, %c0_276] : memref<2x4x32x8xf32, #tpu.memory_space<vmem>>, vector<1x1x32x8xf32>
    %364 = vector.shape_cast %363 : vector<1x1x32x8xf32> to vector<32x8xf32>
    %cst_277 = arith.constant dense<0.000000e+00> : vector<16x8xf32>
    %365 = tpu.matmul %301, %364, %cst_277 {dimension_numbers = #tpu.dot_dimension_numbers<[1], [0], [0], [1], [0, 0, 1, 1], [], []>} : vector<16x32xf32>, vector<32x8xf32>, vector<16x8xf32> -> vector<16x8xf32>
    %c1_278 = arith.constant 1 : index
    %c1_279 = arith.constant 1 : index
    %c0_280 = arith.constant 0 : index
    %c0_281 = arith.constant 0 : index
    %366 = vector.load %arg12[%c1_278, %c1_279, %c0_280, %c0_281] : memref<2x4x1x8xf32, #tpu.memory_space<vmem>>, vector<1x1x1x8xf32>
    %367 = vector.shape_cast %366 : vector<1x1x1x8xf32> to vector<1x8xf32>
    %368 = vector.broadcast %367 : vector<1x8xf32> to vector<16x8xf32>
    %369 = arith.addf %365, %368 : vector<16x8xf32>
    %370 = vector.shape_cast %355 : vector<16x8xf32> to vector<2x8x8xf32>
    %cst_282 = arith.constant 0.353553385 : f32
    %371 = vector.broadcast %cst_282 : f32 to vector<2x8x8xf32>
    %372 = arith.mulf %370, %371 : vector<2x8x8xf32>
    %373 = vector.shape_cast %362 : vector<16x8xf32> to vector<2x8x8xf32>
    %374 = vector.shape_cast %369 : vector<16x8xf32> to vector<2x8x8xf32>
    "tpu.trace_start"() <{level = 10 : i32, message = "bsd,btd->bst"}> : () -> ()
    %cst_283 = arith.constant dense<0.000000e+00> : vector<2x8x8xf32>
    %375 = tpu.matmul %372, %373, %cst_283 {dimension_numbers = #tpu.dot_dimension_numbers<[2], [2], [1], [1], [0, 0, 0, 1, 1, 1], [0], [0]>} : vector<2x8x8xf32>, vector<2x8x8xf32>, vector<2x8x8xf32> -> vector<2x8x8xf32>
    %cst_284 = arith.constant 0.000000e+00 : f32
    "tpu.trace_stop"() : () -> ()
    %376 = vector.broadcast %cst_284 : f32 to vector<2x8x8xf32>
    %377 = arith.cmpf oeq, %35, %376 : vector<2x8x8xf32>
    %cst_285 = arith.constant -3.40282347E+38 : f32
    %378 = vector.broadcast %cst_285 : f32 to vector<2x8x8xf32>
    %379 = arith.select %377, %378, %375 : vector<2x8x8xi1>, vector<2x8x8xf32>
    %cst_286 = arith.constant dense<0xFF800000> : vector<2x8xf32>
    %380 = vector.multi_reduction <maximumf>, %379, %cst_286 [2] : vector<2x8x8xf32> to vector<2x8xf32>
    %381 = vector.shape_cast %380 : vector<2x8xf32> to vector<2x8x1xf32>
    %382 = vector.broadcast %381 : vector<2x8x1xf32> to vector<2x8x8xf32>
    %383 = arith.subf %379, %382 : vector<2x8x8xf32>
    %384 = math.exp %383 : vector<2x8x8xf32>
    %cst_287 = arith.constant dense<0.000000e+00> : vector<2x8xf32>
    %385 = vector.multi_reduction <add>, %384, %cst_287 [2] : vector<2x8x8xf32> to vector<2x8xf32>
    %386 = vector.shape_cast %385 : vector<2x8xf32> to vector<2x8x1xf32>
    %387 = vector.broadcast %386 : vector<2x8x1xf32> to vector<2x8x8xf32>
    %388 = arith.divf %384, %387 : vector<2x8x8xf32>
    "tpu.trace_start"() <{level = 10 : i32, message = "bst,btd->bsd"}> : () -> ()
    %cst_288 = arith.constant dense<0.000000e+00> : vector<2x8x8xf32>
    %389 = tpu.matmul %388, %374, %cst_288 {dimension_numbers = #tpu.dot_dimension_numbers<[2], [1], [1], [2], [0, 0, 0, 1, 1, 2], [0], [0]>} : vector<2x8x8xf32>, vector<2x8x8xf32>, vector<2x8x8xf32> -> vector<2x8x8xf32>
    "tpu.trace_stop"() : () -> ()
    %390 = vector.shape_cast %389 : vector<2x8x8xf32> to vector<16x8xf32>
    %c1_289 = arith.constant 1 : index
    %c1_290 = arith.constant 1 : index
    %c0_291 = arith.constant 0 : index
    %c0_292 = arith.constant 0 : index
    %391 = vector.load %arg13[%c1_289, %c1_290, %c0_291, %c0_292] : memref<2x4x8x32xf32, #tpu.memory_space<vmem>>, vector<1x1x8x32xf32>
    %392 = vector.shape_cast %391 : vector<1x1x8x32xf32> to vector<8x32xf32>
    %cst_293 = arith.constant dense<0.000000e+00> : vector<16x32xf32>
    %393 = tpu.matmul %390, %392, %cst_293 {dimension_numbers = #tpu.dot_dimension_numbers<[1], [0], [0], [1], [0, 0, 1, 1], [], []>} : vector<16x8xf32>, vector<8x32xf32>, vector<16x32xf32> -> vector<16x32xf32>
    %394 = arith.addf %348, %393 : vector<16x32xf32>
    %c1_294 = arith.constant 1 : index
    %c2_295 = arith.constant 2 : index
    %c0_296 = arith.constant 0 : index
    %c0_297 = arith.constant 0 : index
    %395 = vector.load %arg7[%c1_294, %c2_295, %c0_296, %c0_297] : memref<2x4x32x8xf32, #tpu.memory_space<vmem>>, vector<1x1x32x8xf32>
    %396 = vector.shape_cast %395 : vector<1x1x32x8xf32> to vector<32x8xf32>
    %cst_298 = arith.constant dense<0.000000e+00> : vector<16x8xf32>
    %397 = tpu.matmul %301, %396, %cst_298 {dimension_numbers = #tpu.dot_dimension_numbers<[1], [0], [0], [1], [0, 0, 1, 1], [], []>} : vector<16x32xf32>, vector<32x8xf32>, vector<16x8xf32> -> vector<16x8xf32>
    %c1_299 = arith.constant 1 : index
    %c2_300 = arith.constant 2 : index
    %c0_301 = arith.constant 0 : index
    %c0_302 = arith.constant 0 : index
    %398 = vector.load %arg8[%c1_299, %c2_300, %c0_301, %c0_302] : memref<2x4x1x8xf32, #tpu.memory_space<vmem>>, vector<1x1x1x8xf32>
    %399 = vector.shape_cast %398 : vector<1x1x1x8xf32> to vector<1x8xf32>
    %400 = vector.broadcast %399 : vector<1x8xf32> to vector<16x8xf32>
    %401 = arith.addf %397, %400 : vector<16x8xf32>
    %c1_303 = arith.constant 1 : index
    %c2_304 = arith.constant 2 : index
    %c0_305 = arith.constant 0 : index
    %c0_306 = arith.constant 0 : index
    %402 = vector.load %arg9[%c1_303, %c2_304, %c0_305, %c0_306] : memref<2x4x32x8xf32, #tpu.memory_space<vmem>>, vector<1x1x32x8xf32>
    %403 = vector.shape_cast %402 : vector<1x1x32x8xf32> to vector<32x8xf32>
    %cst_307 = arith.constant dense<0.000000e+00> : vector<16x8xf32>
    %404 = tpu.matmul %301, %403, %cst_307 {dimension_numbers = #tpu.dot_dimension_numbers<[1], [0], [0], [1], [0, 0, 1, 1], [], []>} : vector<16x32xf32>, vector<32x8xf32>, vector<16x8xf32> -> vector<16x8xf32>
    %c1_308 = arith.constant 1 : index
    %c2_309 = arith.constant 2 : index
    %c0_310 = arith.constant 0 : index
    %c0_311 = arith.constant 0 : index
    %405 = vector.load %arg10[%c1_308, %c2_309, %c0_310, %c0_311] : memref<2x4x1x8xf32, #tpu.memory_space<vmem>>, vector<1x1x1x8xf32>
    %406 = vector.shape_cast %405 : vector<1x1x1x8xf32> to vector<1x8xf32>
    %407 = vector.broadcast %406 : vector<1x8xf32> to vector<16x8xf32>
    %408 = arith.addf %404, %407 : vector<16x8xf32>
    %c1_312 = arith.constant 1 : index
    %c2_313 = arith.constant 2 : index
    %c0_314 = arith.constant 0 : index
    %c0_315 = arith.constant 0 : index
    %409 = vector.load %arg11[%c1_312, %c2_313, %c0_314, %c0_315] : memref<2x4x32x8xf32, #tpu.memory_space<vmem>>, vector<1x1x32x8xf32>
    %410 = vector.shape_cast %409 : vector<1x1x32x8xf32> to vector<32x8xf32>
    %cst_316 = arith.constant dense<0.000000e+00> : vector<16x8xf32>
    %411 = tpu.matmul %301, %410, %cst_316 {dimension_numbers = #tpu.dot_dimension_numbers<[1], [0], [0], [1], [0, 0, 1, 1], [], []>} : vector<16x32xf32>, vector<32x8xf32>, vector<16x8xf32> -> vector<16x8xf32>
    %c1_317 = arith.constant 1 : index
    %c2_318 = arith.constant 2 : index
    %c0_319 = arith.constant 0 : index
    %c0_320 = arith.constant 0 : index
    %412 = vector.load %arg12[%c1_317, %c2_318, %c0_319, %c0_320] : memref<2x4x1x8xf32, #tpu.memory_space<vmem>>, vector<1x1x1x8xf32>
    %413 = vector.shape_cast %412 : vector<1x1x1x8xf32> to vector<1x8xf32>
    %414 = vector.broadcast %413 : vector<1x8xf32> to vector<16x8xf32>
    %415 = arith.addf %411, %414 : vector<16x8xf32>
    %416 = vector.shape_cast %401 : vector<16x8xf32> to vector<2x8x8xf32>
    %cst_321 = arith.constant 0.353553385 : f32
    %417 = vector.broadcast %cst_321 : f32 to vector<2x8x8xf32>
    %418 = arith.mulf %416, %417 : vector<2x8x8xf32>
    %419 = vector.shape_cast %408 : vector<16x8xf32> to vector<2x8x8xf32>
    %420 = vector.shape_cast %415 : vector<16x8xf32> to vector<2x8x8xf32>
    "tpu.trace_start"() <{level = 10 : i32, message = "bsd,btd->bst"}> : () -> ()
    %cst_322 = arith.constant dense<0.000000e+00> : vector<2x8x8xf32>
    %421 = tpu.matmul %418, %419, %cst_322 {dimension_numbers = #tpu.dot_dimension_numbers<[2], [2], [1], [1], [0, 0, 0, 1, 1, 1], [0], [0]>} : vector<2x8x8xf32>, vector<2x8x8xf32>, vector<2x8x8xf32> -> vector<2x8x8xf32>
    %cst_323 = arith.constant 0.000000e+00 : f32
    "tpu.trace_stop"() : () -> ()
    %422 = vector.broadcast %cst_323 : f32 to vector<2x8x8xf32>
    %423 = arith.cmpf oeq, %35, %422 : vector<2x8x8xf32>
    %cst_324 = arith.constant -3.40282347E+38 : f32
    %424 = vector.broadcast %cst_324 : f32 to vector<2x8x8xf32>
    %425 = arith.select %423, %424, %421 : vector<2x8x8xi1>, vector<2x8x8xf32>
    %cst_325 = arith.constant dense<0xFF800000> : vector<2x8xf32>
    %426 = vector.multi_reduction <maximumf>, %425, %cst_325 [2] : vector<2x8x8xf32> to vector<2x8xf32>
    %427 = vector.shape_cast %426 : vector<2x8xf32> to vector<2x8x1xf32>
    %428 = vector.broadcast %427 : vector<2x8x1xf32> to vector<2x8x8xf32>
    %429 = arith.subf %425, %428 : vector<2x8x8xf32>
    %430 = math.exp %429 : vector<2x8x8xf32>
    %cst_326 = arith.constant dense<0.000000e+00> : vector<2x8xf32>
    %431 = vector.multi_reduction <add>, %430, %cst_326 [2] : vector<2x8x8xf32> to vector<2x8xf32>
    %432 = vector.shape_cast %431 : vector<2x8xf32> to vector<2x8x1xf32>
    %433 = vector.broadcast %432 : vector<2x8x1xf32> to vector<2x8x8xf32>
    %434 = arith.divf %430, %433 : vector<2x8x8xf32>
    "tpu.trace_start"() <{level = 10 : i32, message = "bst,btd->bsd"}> : () -> ()
    %cst_327 = arith.constant dense<0.000000e+00> : vector<2x8x8xf32>
    %435 = tpu.matmul %434, %420, %cst_327 {dimension_numbers = #tpu.dot_dimension_numbers<[2], [1], [1], [2], [0, 0, 0, 1, 1, 2], [0], [0]>} : vector<2x8x8xf32>, vector<2x8x8xf32>, vector<2x8x8xf32> -> vector<2x8x8xf32>
    "tpu.trace_stop"() : () -> ()
    %436 = vector.shape_cast %435 : vector<2x8x8xf32> to vector<16x8xf32>
    %c1_328 = arith.constant 1 : index
    %c2_329 = arith.constant 2 : index
    %c0_330 = arith.constant 0 : index
    %c0_331 = arith.constant 0 : index
    %437 = vector.load %arg13[%c1_328, %c2_329, %c0_330, %c0_331] : memref<2x4x8x32xf32, #tpu.memory_space<vmem>>, vector<1x1x8x32xf32>
    %438 = vector.shape_cast %437 : vector<1x1x8x32xf32> to vector<8x32xf32>
    %cst_332 = arith.constant dense<0.000000e+00> : vector<16x32xf32>
    %439 = tpu.matmul %436, %438, %cst_332 {dimension_numbers = #tpu.dot_dimension_numbers<[1], [0], [0], [1], [0, 0, 1, 1], [], []>} : vector<16x8xf32>, vector<8x32xf32>, vector<16x32xf32> -> vector<16x32xf32>
    %440 = arith.addf %394, %439 : vector<16x32xf32>
    %c1_333 = arith.constant 1 : index
    %c3_334 = arith.constant 3 : index
    %c0_335 = arith.constant 0 : index
    %c0_336 = arith.constant 0 : index
    %441 = vector.load %arg7[%c1_333, %c3_334, %c0_335, %c0_336] : memref<2x4x32x8xf32, #tpu.memory_space<vmem>>, vector<1x1x32x8xf32>
    %442 = vector.shape_cast %441 : vector<1x1x32x8xf32> to vector<32x8xf32>
    %cst_337 = arith.constant dense<0.000000e+00> : vector<16x8xf32>
    %443 = tpu.matmul %301, %442, %cst_337 {dimension_numbers = #tpu.dot_dimension_numbers<[1], [0], [0], [1], [0, 0, 1, 1], [], []>} : vector<16x32xf32>, vector<32x8xf32>, vector<16x8xf32> -> vector<16x8xf32>
    %c1_338 = arith.constant 1 : index
    %c3_339 = arith.constant 3 : index
    %c0_340 = arith.constant 0 : index
    %c0_341 = arith.constant 0 : index
    %444 = vector.load %arg8[%c1_338, %c3_339, %c0_340, %c0_341] : memref<2x4x1x8xf32, #tpu.memory_space<vmem>>, vector<1x1x1x8xf32>
    %445 = vector.shape_cast %444 : vector<1x1x1x8xf32> to vector<1x8xf32>
    %446 = vector.broadcast %445 : vector<1x8xf32> to vector<16x8xf32>
    %447 = arith.addf %443, %446 : vector<16x8xf32>
    %c1_342 = arith.constant 1 : index
    %c3_343 = arith.constant 3 : index
    %c0_344 = arith.constant 0 : index
    %c0_345 = arith.constant 0 : index
    %448 = vector.load %arg9[%c1_342, %c3_343, %c0_344, %c0_345] : memref<2x4x32x8xf32, #tpu.memory_space<vmem>>, vector<1x1x32x8xf32>
    %449 = vector.shape_cast %448 : vector<1x1x32x8xf32> to vector<32x8xf32>
    %cst_346 = arith.constant dense<0.000000e+00> : vector<16x8xf32>
    %450 = tpu.matmul %301, %449, %cst_346 {dimension_numbers = #tpu.dot_dimension_numbers<[1], [0], [0], [1], [0, 0, 1, 1], [], []>} : vector<16x32xf32>, vector<32x8xf32>, vector<16x8xf32> -> vector<16x8xf32>
    %c1_347 = arith.constant 1 : index
    %c3_348 = arith.constant 3 : index
    %c0_349 = arith.constant 0 : index
    %c0_350 = arith.constant 0 : index
    %451 = vector.load %arg10[%c1_347, %c3_348, %c0_349, %c0_350] : memref<2x4x1x8xf32, #tpu.memory_space<vmem>>, vector<1x1x1x8xf32>
    %452 = vector.shape_cast %451 : vector<1x1x1x8xf32> to vector<1x8xf32>
    %453 = vector.broadcast %452 : vector<1x8xf32> to vector<16x8xf32>
    %454 = arith.addf %450, %453 : vector<16x8xf32>
    %c1_351 = arith.constant 1 : index
    %c3_352 = arith.constant 3 : index
    %c0_353 = arith.constant 0 : index
    %c0_354 = arith.constant 0 : index
    %455 = vector.load %arg11[%c1_351, %c3_352, %c0_353, %c0_354] : memref<2x4x32x8xf32, #tpu.memory_space<vmem>>, vector<1x1x32x8xf32>
    %456 = vector.shape_cast %455 : vector<1x1x32x8xf32> to vector<32x8xf32>
    %cst_355 = arith.constant dense<0.000000e+00> : vector<16x8xf32>
    %457 = tpu.matmul %301, %456, %cst_355 {dimension_numbers = #tpu.dot_dimension_numbers<[1], [0], [0], [1], [0, 0, 1, 1], [], []>} : vector<16x32xf32>, vector<32x8xf32>, vector<16x8xf32> -> vector<16x8xf32>
    %c1_356 = arith.constant 1 : index
    %c3_357 = arith.constant 3 : index
    %c0_358 = arith.constant 0 : index
    %c0_359 = arith.constant 0 : index
    %458 = vector.load %arg12[%c1_356, %c3_357, %c0_358, %c0_359] : memref<2x4x1x8xf32, #tpu.memory_space<vmem>>, vector<1x1x1x8xf32>
    %459 = vector.shape_cast %458 : vector<1x1x1x8xf32> to vector<1x8xf32>
    %460 = vector.broadcast %459 : vector<1x8xf32> to vector<16x8xf32>
    %461 = arith.addf %457, %460 : vector<16x8xf32>
    %462 = vector.shape_cast %447 : vector<16x8xf32> to vector<2x8x8xf32>
    %cst_360 = arith.constant 0.353553385 : f32
    %463 = vector.broadcast %cst_360 : f32 to vector<2x8x8xf32>
    %464 = arith.mulf %462, %463 : vector<2x8x8xf32>
    %465 = vector.shape_cast %454 : vector<16x8xf32> to vector<2x8x8xf32>
    %466 = vector.shape_cast %461 : vector<16x8xf32> to vector<2x8x8xf32>
    "tpu.trace_start"() <{level = 10 : i32, message = "bsd,btd->bst"}> : () -> ()
    %cst_361 = arith.constant dense<0.000000e+00> : vector<2x8x8xf32>
    %467 = tpu.matmul %464, %465, %cst_361 {dimension_numbers = #tpu.dot_dimension_numbers<[2], [2], [1], [1], [0, 0, 0, 1, 1, 1], [0], [0]>} : vector<2x8x8xf32>, vector<2x8x8xf32>, vector<2x8x8xf32> -> vector<2x8x8xf32>
    %cst_362 = arith.constant 0.000000e+00 : f32
    "tpu.trace_stop"() : () -> ()
    %468 = vector.broadcast %cst_362 : f32 to vector<2x8x8xf32>
    %469 = arith.cmpf oeq, %35, %468 : vector<2x8x8xf32>
    %cst_363 = arith.constant -3.40282347E+38 : f32
    %470 = vector.broadcast %cst_363 : f32 to vector<2x8x8xf32>
    %471 = arith.select %469, %470, %467 : vector<2x8x8xi1>, vector<2x8x8xf32>
    %cst_364 = arith.constant dense<0xFF800000> : vector<2x8xf32>
    %472 = vector.multi_reduction <maximumf>, %471, %cst_364 [2] : vector<2x8x8xf32> to vector<2x8xf32>
    %473 = vector.shape_cast %472 : vector<2x8xf32> to vector<2x8x1xf32>
    %474 = vector.broadcast %473 : vector<2x8x1xf32> to vector<2x8x8xf32>
    %475 = arith.subf %471, %474 : vector<2x8x8xf32>
    %476 = math.exp %475 : vector<2x8x8xf32>
    %cst_365 = arith.constant dense<0.000000e+00> : vector<2x8xf32>
    %477 = vector.multi_reduction <add>, %476, %cst_365 [2] : vector<2x8x8xf32> to vector<2x8xf32>
    %478 = vector.shape_cast %477 : vector<2x8xf32> to vector<2x8x1xf32>
    %479 = vector.broadcast %478 : vector<2x8x1xf32> to vector<2x8x8xf32>
    %480 = arith.divf %476, %479 : vector<2x8x8xf32>
    "tpu.trace_start"() <{level = 10 : i32, message = "bst,btd->bsd"}> : () -> ()
    %cst_366 = arith.constant dense<0.000000e+00> : vector<2x8x8xf32>
    %481 = tpu.matmul %480, %466, %cst_366 {dimension_numbers = #tpu.dot_dimension_numbers<[2], [1], [1], [2], [0, 0, 0, 1, 1, 2], [0], [0]>} : vector<2x8x8xf32>, vector<2x8x8xf32>, vector<2x8x8xf32> -> vector<2x8x8xf32>
    "tpu.trace_stop"() : () -> ()
    %482 = vector.shape_cast %481 : vector<2x8x8xf32> to vector<16x8xf32>
    %c1_367 = arith.constant 1 : index
    %c3_368 = arith.constant 3 : index
    %c0_369 = arith.constant 0 : index
    %c0_370 = arith.constant 0 : index
    %483 = vector.load %arg13[%c1_367, %c3_368, %c0_369, %c0_370] : memref<2x4x8x32xf32, #tpu.memory_space<vmem>>, vector<1x1x8x32xf32>
    %484 = vector.shape_cast %483 : vector<1x1x8x32xf32> to vector<8x32xf32>
    %cst_371 = arith.constant dense<0.000000e+00> : vector<16x32xf32>
    %485 = tpu.matmul %482, %484, %cst_371 {dimension_numbers = #tpu.dot_dimension_numbers<[1], [0], [0], [1], [0, 0, 1, 1], [], []>} : vector<16x8xf32>, vector<8x32xf32>, vector<16x32xf32> -> vector<16x32xf32>
    %486 = arith.addf %440, %485 : vector<16x32xf32>
    %c1_372 = arith.constant 1 : index
    %c0_373 = arith.constant 0 : index
    %c0_374 = arith.constant 0 : index
    %487 = vector.load %arg14[%c1_372, %c0_373, %c0_374] : memref<2x1x32xf32, #tpu.memory_space<vmem>>, vector<1x1x32xf32>
    %488 = vector.shape_cast %487 : vector<1x1x32xf32> to vector<1x32xf32>
    %489 = vector.broadcast %488 : vector<1x32xf32> to vector<16x32xf32>
    %490 = arith.addf %486, %489 : vector<16x32xf32>
    %491 = arith.addf %490, %301 : vector<16x32xf32>
    %c1_375 = arith.constant 1 : index
    %c0_376 = arith.constant 0 : index
    %c0_377 = arith.constant 0 : index
    %492 = vector.load %arg15[%c1_375, %c0_376, %c0_377] : memref<2x1x32xf32, #tpu.memory_space<vmem>>, vector<1x1x32xf32>
    %493 = vector.shape_cast %492 : vector<1x1x32xf32> to vector<1x32xf32>
    %c1_378 = arith.constant 1 : index
    %c0_379 = arith.constant 0 : index
    %c0_380 = arith.constant 0 : index
    %494 = vector.load %arg16[%c1_378, %c0_379, %c0_380] : memref<2x1x32xf32, #tpu.memory_space<vmem>>, vector<1x1x32xf32>
    %495 = vector.shape_cast %494 : vector<1x1x32xf32> to vector<1x32xf32>
    %cst_381 = arith.constant dense<0.000000e+00> : vector<16xf32>
    %496 = vector.multi_reduction <add>, %491, %cst_381 [1] : vector<16x32xf32> to vector<16xf32>
    %497 = vector.shape_cast %496 : vector<16xf32> to vector<16x1xf32>
    %cst_382 = arith.constant 3.200000e+01 : f32
    %498 = vector.broadcast %cst_382 : f32 to vector<16x1xf32>
    %499 = arith.divf %497, %498 : vector<16x1xf32>
    %500 = vector.broadcast %499 : vector<16x1xf32> to vector<16x32xf32>
    %501 = arith.subf %491, %500 : vector<16x32xf32>
    %502 = arith.mulf %501, %501 : vector<16x32xf32>
    %cst_383 = arith.constant dense<0.000000e+00> : vector<16xf32>
    %503 = vector.multi_reduction <add>, %502, %cst_383 [1] : vector<16x32xf32> to vector<16xf32>
    %504 = vector.shape_cast %503 : vector<16xf32> to vector<16x1xf32>
    %cst_384 = arith.constant 3.200000e+01 : f32
    %505 = vector.broadcast %cst_384 : f32 to vector<16x1xf32>
    %506 = arith.divf %504, %505 : vector<16x1xf32>
    %cst_385 = arith.constant 9.99999996E-13 : f32
    %507 = vector.broadcast %cst_385 : f32 to vector<16x1xf32>
    %508 = arith.addf %506, %507 : vector<16x1xf32>
    %509 = math.rsqrt %508 : vector<16x1xf32>
    %510 = vector.broadcast %509 : vector<16x1xf32> to vector<16x32xf32>
    %511 = arith.mulf %501, %510 : vector<16x32xf32>
    %512 = vector.broadcast %493 : vector<1x32xf32> to vector<16x32xf32>
    %513 = arith.mulf %511, %512 : vector<16x32xf32>
    %514 = vector.broadcast %495 : vector<1x32xf32> to vector<16x32xf32>
    %515 = arith.addf %513, %514 : vector<16x32xf32>
    %c1_386 = arith.constant 1 : index
    %c0_387 = arith.constant 0 : index
    %c0_388 = arith.constant 0 : index
    %516 = vector.load %arg17[%c1_386, %c0_387, %c0_388] : memref<2x32x128xf32, #tpu.memory_space<vmem>>, vector<1x32x128xf32>
    %517 = vector.shape_cast %516 : vector<1x32x128xf32> to vector<32x128xf32>
    %cst_389 = arith.constant dense<0.000000e+00> : vector<16x128xf32>
    %518 = tpu.matmul %515, %517, %cst_389 {dimension_numbers = #tpu.dot_dimension_numbers<[1], [0], [0], [1], [0, 0, 1, 1], [], []>} : vector<16x32xf32>, vector<32x128xf32>, vector<16x128xf32> -> vector<16x128xf32>
    %c1_390 = arith.constant 1 : index
    %c0_391 = arith.constant 0 : index
    %c0_392 = arith.constant 0 : index
    %519 = vector.load %arg18[%c1_390, %c0_391, %c0_392] : memref<2x1x128xf32, #tpu.memory_space<vmem>>, vector<1x1x128xf32>
    %520 = vector.shape_cast %519 : vector<1x1x128xf32> to vector<1x128xf32>
    %521 = vector.broadcast %520 : vector<1x128xf32> to vector<16x128xf32>
    %522 = arith.addf %518, %521 : vector<16x128xf32>
    %cst_393 = arith.constant 5.000000e-01 : f32
    %523 = vector.broadcast %cst_393 : f32 to vector<16x128xf32>
    %524 = arith.mulf %523, %522 : vector<16x128xf32>
    %cst_394 = arith.constant 4.471500e-02 : f32
    %525 = vector.broadcast %cst_394 : f32 to vector<16x128xf32>
    %526 = arith.mulf %525, %522 : vector<16x128xf32>
    %527 = arith.mulf %526, %522 : vector<16x128xf32>
    %528 = arith.mulf %527, %522 : vector<16x128xf32>
    %529 = arith.addf %522, %528 : vector<16x128xf32>
    %cst_395 = arith.constant 0.797884583 : f32
    %530 = vector.broadcast %cst_395 : f32 to vector<16x128xf32>
    %531 = arith.mulf %530, %529 : vector<16x128xf32>
    %532 = math.tanh %531 : vector<16x128xf32>
    %cst_396 = arith.constant 1.000000e+00 : f32
    %533 = vector.broadcast %cst_396 : f32 to vector<16x128xf32>
    %534 = arith.addf %533, %532 : vector<16x128xf32>
    %535 = arith.mulf %524, %534 : vector<16x128xf32>
    %c1_397 = arith.constant 1 : index
    %c0_398 = arith.constant 0 : index
    %c0_399 = arith.constant 0 : index
    %536 = vector.load %arg19[%c1_397, %c0_398, %c0_399] : memref<2x128x32xf32, #tpu.memory_space<vmem>>, vector<1x128x32xf32>
    %537 = vector.shape_cast %536 : vector<1x128x32xf32> to vector<128x32xf32>
    %cst_400 = arith.constant dense<0.000000e+00> : vector<16x32xf32>
    %538 = tpu.matmul %535, %537, %cst_400 {dimension_numbers = #tpu.dot_dimension_numbers<[1], [0], [0], [1], [0, 0, 1, 1], [], []>} : vector<16x128xf32>, vector<128x32xf32>, vector<16x32xf32> -> vector<16x32xf32>
    %c1_401 = arith.constant 1 : index
    %c0_402 = arith.constant 0 : index
    %c0_403 = arith.constant 0 : index
    %539 = vector.load %arg20[%c1_401, %c0_402, %c0_403] : memref<2x1x32xf32, #tpu.memory_space<vmem>>, vector<1x1x32xf32>
    %540 = vector.shape_cast %539 : vector<1x1x32xf32> to vector<1x32xf32>
    %541 = vector.broadcast %540 : vector<1x32xf32> to vector<16x32xf32>
    %542 = arith.addf %538, %541 : vector<16x32xf32>
    %543 = arith.addf %542, %515 : vector<16x32xf32>
    %c1_404 = arith.constant 1 : index
    %c0_405 = arith.constant 0 : index
    %c0_406 = arith.constant 0 : index
    %544 = vector.load %arg21[%c1_404, %c0_405, %c0_406] : memref<2x1x32xf32, #tpu.memory_space<vmem>>, vector<1x1x32xf32>
    %545 = vector.shape_cast %544 : vector<1x1x32xf32> to vector<1x32xf32>
    %c1_407 = arith.constant 1 : index
    %c0_408 = arith.constant 0 : index
    %c0_409 = arith.constant 0 : index
    %546 = vector.load %arg22[%c1_407, %c0_408, %c0_409] : memref<2x1x32xf32, #tpu.memory_space<vmem>>, vector<1x1x32xf32>
    %547 = vector.shape_cast %546 : vector<1x1x32xf32> to vector<1x32xf32>
    %cst_410 = arith.constant dense<0.000000e+00> : vector<16xf32>
    %548 = vector.multi_reduction <add>, %543, %cst_410 [1] : vector<16x32xf32> to vector<16xf32>
    %549 = vector.shape_cast %548 : vector<16xf32> to vector<16x1xf32>
    %cst_411 = arith.constant 3.200000e+01 : f32
    %550 = vector.broadcast %cst_411 : f32 to vector<16x1xf32>
    %551 = arith.divf %549, %550 : vector<16x1xf32>
    %552 = vector.broadcast %551 : vector<16x1xf32> to vector<16x32xf32>
    %553 = arith.subf %543, %552 : vector<16x32xf32>
    %554 = arith.mulf %553, %553 : vector<16x32xf32>
    %cst_412 = arith.constant dense<0.000000e+00> : vector<16xf32>
    %555 = vector.multi_reduction <add>, %554, %cst_412 [1] : vector<16x32xf32> to vector<16xf32>
    %556 = vector.shape_cast %555 : vector<16xf32> to vector<16x1xf32>
    %cst_413 = arith.constant 3.200000e+01 : f32
    %557 = vector.broadcast %cst_413 : f32 to vector<16x1xf32>
    %558 = arith.divf %556, %557 : vector<16x1xf32>
    %cst_414 = arith.constant 9.99999996E-13 : f32
    %559 = vector.broadcast %cst_414 : f32 to vector<16x1xf32>
    %560 = arith.addf %558, %559 : vector<16x1xf32>
    %561 = math.rsqrt %560 : vector<16x1xf32>
    %562 = vector.broadcast %561 : vector<16x1xf32> to vector<16x32xf32>
    %563 = arith.mulf %553, %562 : vector<16x32xf32>
    %564 = vector.broadcast %545 : vector<1x32xf32> to vector<16x32xf32>
    %565 = arith.mulf %563, %564 : vector<16x32xf32>
    %566 = vector.broadcast %547 : vector<1x32xf32> to vector<16x32xf32>
    %567 = arith.addf %565, %566 : vector<16x32xf32>
    %c0_415 = arith.constant 0 : index
    %c0_416 = arith.constant 0 : index
    %568 = vector.load %arg23[%c0_415, %c0_416] : memref<2x16xf32, #tpu.memory_space<vmem>>, vector<2x16xf32>
    %cst_417 = arith.constant dense<0.000000e+00> : vector<2x32xf32>
    %569 = tpu.matmul %568, %567, %cst_417 {dimension_numbers = #tpu.dot_dimension_numbers<[1], [0], [0], [1], [0, 0, 1, 1], [], []>} : vector<2x16xf32>, vector<16x32xf32>, vector<2x32xf32> -> vector<2x32xf32>
    %c0_418 = arith.constant 0 : index
    %c0_419 = arith.constant 0 : index
    %570 = vector.load %arg24[%c0_418, %c0_419] : memref<32x128xf32, #tpu.memory_space<vmem>>, vector<32x128xf32>
    %cst_420 = arith.constant dense<0.000000e+00> : vector<2x128xf32>
    %571 = tpu.matmul %569, %570, %cst_420 {dimension_numbers = #tpu.dot_dimension_numbers<[1], [0], [0], [1], [0, 0, 1, 1], [], []>} : vector<2x32xf32>, vector<32x128xf32>, vector<2x128xf32> -> vector<2x128xf32>
    %c0_421 = arith.constant 0 : index
    %c0_422 = arith.constant 0 : index
    %572 = vector.load %arg25[%c0_421, %c0_422] : memref<1x128xf32, #tpu.memory_space<vmem>>, vector<1x128xf32>
    %573 = vector.broadcast %572 : vector<1x128xf32> to vector<2x128xf32>
    %574 = arith.addf %571, %573 : vector<2x128xf32>
    %c0_423 = arith.constant 0 : index
    %c0_424 = arith.constant 0 : index
    %c0_425 = arith.constant 0 : index
    %575 = vector.load %arg26[%c0_423, %c0_424, %c0_425] : memref<1x2x128xf32, #tpu.memory_space<vmem>>, vector<1x2x128xf32>
    %576 = vector.shape_cast %575 : vector<1x2x128xf32> to vector<2x128xf32>
    %577 = vector.shape_cast %574 : vector<2x128xf32> to vector<1x2x128xf32>
    tpu.vector_store %arg26[%c0_423, %c0_424, %c0_425], %577 {strides = array<i32>} : memref<1x2x128xf32, #tpu.memory_space<vmem>>, vector<1x2x128xf32>,
    return
  }
  func.func @transform_0(%arg0: i32) -> (i32, i32, i32) {
    %c0_i32 = arith.constant 0 : i32
    %c0_i32_0 = arith.constant 0 : i32
    %c0_i32_1 = arith.constant 0 : i32
    return %arg0, %c0_i32, %c0_i32_0 : i32, i32, i32
  }
  func.func @transform_1(%arg0: i32) -> (i32, i32, i32) {
    %c0_i32 = arith.constant 0 : i32
    %c0_i32_0 = arith.constant 0 : i32
    %c0_i32_1 = arith.constant 0 : i32
    return %arg0, %c0_i32, %c0_i32_0 : i32, i32, i32
  }
  func.func @transform_2(%arg0: i32) -> (i32, i32) {
    %c0_i32 = arith.constant 0 : i32
    %c0_i32_0 = arith.constant 0 : i32
    %c0_i32_1 = arith.constant 0 : i32
    return %c0_i32, %c0_i32_0 : i32, i32
  }
  func.func @transform_3(%arg0: i32) -> (i32, i32) {
    %c0_i32 = arith.constant 0 : i32
    %c0_i32_0 = arith.constant 0 : i32
    %c0_i32_1 = arith.constant 0 : i32
    return %c0_i32, %c0_i32_0 : i32, i32
  }
  func.func @transform_4(%arg0: i32) -> (i32, i32) {
    %c0_i32 = arith.constant 0 : i32
    %c0_i32_0 = arith.constant 0 : i32
    %c0_i32_1 = arith.constant 0 : i32
    return %c0_i32, %c0_i32_0 : i32, i32
  }
  func.func @transform_5(%arg0: i32) -> (i32, i32) {
    %c0_i32 = arith.constant 0 : i32
    %c0_i32_0 = arith.constant 0 : i32
    %c0_i32_1 = arith.constant 0 : i32
    return %c0_i32, %c0_i32_0 : i32, i32
  }
  func.func @transform_6(%arg0: i32) -> (i32, i32, i32, i32) {
    %c0_i32 = arith.constant 0 : i32
    %c0_i32_0 = arith.constant 0 : i32
    %c0_i32_1 = arith.constant 0 : i32
    %c0_i32_2 = arith.constant 0 : i32
    %c0_i32_3 = arith.constant 0 : i32
    return %c0_i32, %c0_i32_0, %c0_i32_1, %c0_i32_2 : i32, i32, i32, i32
  }
  func.func @transform_7(%arg0: i32) -> (i32, i32, i32, i32) {
    %c0_i32 = arith.constant 0 : i32
    %c0_i32_0 = arith.constant 0 : i32
    %c0_i32_1 = arith.constant 0 : i32
    %c0_i32_2 = arith.constant 0 : i32
    %c0_i32_3 = arith.constant 0 : i32
    return %c0_i32, %c0_i32_0, %c0_i32_1, %c0_i32_2 : i32, i32, i32, i32
  }
  func.func @transform_8(%arg0: i32) -> (i32, i32, i32, i32) {
    %c0_i32 = arith.constant 0 : i32
    %c0_i32_0 = arith.constant 0 : i32
    %c0_i32_1 = arith.constant 0 : i32
    %c0_i32_2 = arith.constant 0 : i32
    %c0_i32_3 = arith.constant 0 : i32
    return %c0_i32, %c0_i32_0, %c0_i32_1, %c0_i32_2 : i32, i32, i32, i32
  }
  func.func @transform_9(%arg0: i32) -> (i32, i32, i32, i32) {
    %c0_i32 = arith.constant 0 : i32
    %c0_i32_0 = arith.constant 0 : i32
    %c0_i32_1 = arith.constant 0 : i32
    %c0_i32_2 = arith.constant 0 : i32
    %c0_i32_3 = arith.constant 0 : i32
    return %c0_i32, %c0_i32_0, %c0_i32_1, %c0_i32_2 : i32, i32, i32, i32
  }
  func.func @transform_10(%arg0: i32) -> (i32, i32, i32, i32) {
    %c0_i32 = arith.constant 0 : i32
    %c0_i32_0 = arith.constant 0 : i32
    %c0_i32_1 = arith.constant 0 : i32
    %c0_i32_2 = arith.constant 0 : i32
    %c0_i32_3 = arith.constant 0 : i32
    return %c0_i32, %c0_i32_0, %c0_i32_1, %c0_i32_2 : i32, i32, i32, i32
  }
  func.func @transform_11(%arg0: i32) -> (i32, i32, i32, i32) {
    %c0_i32 = arith.constant 0 : i32
    %c0_i32_0 = arith.constant 0 : i32
    %c0_i32_1 = arith.constant 0 : i32
    %c0_i32_2 = arith.constant 0 : i32
    %c0_i32_3 = arith.constant 0 : i32
    return %c0_i32, %c0_i32_0, %c0_i32_1, %c0_i32_2 : i32, i32, i32, i32
  }
  func.func @transform_12(%arg0: i32) -> (i32, i32, i32, i32) {
    %c0_i32 = arith.constant 0 : i32
    %c0_i32_0 = arith.constant 0 : i32
    %c0_i32_1 = arith.constant 0 : i32
    %c0_i32_2 = arith.constant 0 : i32
    %c0_i32_3 = arith.constant 0 : i32
    return %c0_i32, %c0_i32_0, %c0_i32_1, %c0_i32_2 : i32, i32, i32, i32
  }
  func.func @transform_13(%arg0: i32) -> (i32, i32, i32) {
    %c0_i32 = arith.constant 0 : i32
    %c0_i32_0 = arith.constant 0 : i32
    %c0_i32_1 = arith.constant 0 : i32
    %c0_i32_2 = arith.constant 0 : i32
    return %c0_i32, %c0_i32_0, %c0_i32_1 : i32, i32, i32
  }
  func.func @transform_14(%arg0: i32) -> (i32, i32, i32) {
    %c0_i32 = arith.constant 0 : i32
    %c0_i32_0 = arith.constant 0 : i32
    %c0_i32_1 = arith.constant 0 : i32
    %c0_i32_2 = arith.constant 0 : i32
    return %c0_i32, %c0_i32_0, %c0_i32_1 : i32, i32, i32
  }
  func.func @transform_15(%arg0: i32) -> (i32, i32, i32) {
    %c0_i32 = arith.constant 0 : i32
    %c0_i32_0 = arith.constant 0 : i32
    %c0_i32_1 = arith.constant 0 : i32
    %c0_i32_2 = arith.constant 0 : i32
    return %c0_i32, %c0_i32_0, %c0_i32_1 : i32, i32, i32
  }
  func.func @transform_16(%arg0: i32) -> (i32, i32, i32) {
    %c0_i32 = arith.constant 0 : i32
    %c0_i32_0 = arith.constant 0 : i32
    %c0_i32_1 = arith.constant 0 : i32
    %c0_i32_2 = arith.constant 0 : i32
    return %c0_i32, %c0_i32_0, %c0_i32_1 : i32, i32, i32
  }
  func.func @transform_17(%arg0: i32) -> (i32, i32, i32) {
    %c0_i32 = arith.constant 0 : i32
    %c0_i32_0 = arith.constant 0 : i32
    %c0_i32_1 = arith.constant 0 : i32
    %c0_i32_2 = arith.constant 0 : i32
    return %c0_i32, %c0_i32_0, %c0_i32_1 : i32, i32, i32
  }
  func.func @transform_18(%arg0: i32) -> (i32, i32, i32) {
    %c0_i32 = arith.constant 0 : i32
    %c0_i32_0 = arith.constant 0 : i32
    %c0_i32_1 = arith.constant 0 : i32
    %c0_i32_2 = arith.constant 0 : i32
    return %c0_i32, %c0_i32_0, %c0_i32_1 : i32, i32, i32
  }
  func.func @transform_19(%arg0: i32) -> (i32, i32, i32) {
    %c0_i32 = arith.constant 0 : i32
    %c0_i32_0 = arith.constant 0 : i32
    %c0_i32_1 = arith.constant 0 : i32
    %c0_i32_2 = arith.constant 0 : i32
    return %c0_i32, %c0_i32_0, %c0_i32_1 : i32, i32, i32
  }
  func.func @transform_20(%arg0: i32) -> (i32, i32, i32) {
    %c0_i32 = arith.constant 0 : i32
    %c0_i32_0 = arith.constant 0 : i32
    %c0_i32_1 = arith.constant 0 : i32
    %c0_i32_2 = arith.constant 0 : i32
    return %c0_i32, %c0_i32_0, %c0_i32_1 : i32, i32, i32
  }
  func.func @transform_21(%arg0: i32) -> (i32, i32, i32) {
    %c0_i32 = arith.constant 0 : i32
    %c0_i32_0 = arith.constant 0 : i32
    %c0_i32_1 = arith.constant 0 : i32
    %c0_i32_2 = arith.constant 0 : i32
    return %c0_i32, %c0_i32_0, %c0_i32_1 : i32, i32, i32
  }
  func.func @transform_22(%arg0: i32) -> (i32, i32) {
    %c0_i32 = arith.constant 0 : i32
    %c0_i32_0 = arith.constant 0 : i32
    %c0_i32_1 = arith.constant 0 : i32
    return %c0_i32, %c0_i32_0 : i32, i32
  }
  func.func @transform_23(%arg0: i32) -> (i32, i32) {
    %c0_i32 = arith.constant 0 : i32
    %c0_i32_0 = arith.constant 0 : i32
    %c0_i32_1 = arith.constant 0 : i32
    return %c0_i32, %c0_i32_0 : i32, i32
  }
  func.func @transform_24(%arg0: i32) -> (i32, i32) {
    %c0_i32 = arith.constant 0 : i32
    %c0_i32_0 = arith.constant 0 : i32
    %c0_i32_1 = arith.constant 0 : i32
    return %c0_i32, %c0_i32_0 : i32, i32
  }
  func.func @transform_25(%arg0: i32) -> (i32, i32, i32) {
    %c0_i32 = arith.constant 0 : i32
    %c0_i32_0 = arith.constant 0 : i32
    %c0_i32_1 = arith.constant 0 : i32
    return %arg0, %c0_i32, %c0_i32_0 : i32, i32, i32
  }
}

</mosaic_0001>

<llo_original>
// kernel: tpu_custom_call.1
$region0: #{tpu_custom_call.1}
  #allocation0 [shape = 'u32[]', space=smem, size = 0x4, offset = 0x4, fixed_abs, tag = 'smem constant byte address 0x4 - core index']
  #allocation1 [shape = 'u32[144,128]{1,0:T(1,128)}', space=vmem, size = 0x12000, scoped, tag = 'internal scratch']
  %s0 = inlined_call_operand.vmem [shape: s32[4,8,1], index: 0, kind: input, shape index: {}]
  %s1 = inlined_call_operand.vmem [shape: f32[4,1,8], index: 1, kind: input, shape index: {}]
  %s2 = inlined_call_operand.vmem [shape: f32[128,32], index: 2, kind: input, shape index: {}]
  %s3 = inlined_call_operand.vmem [shape: f32[16,32], index: 3, kind: input, shape index: {}]
  %s4 = inlined_call_operand.vmem [shape: f32[1,32], index: 4, kind: input, shape index: {}]
  %s5 = inlined_call_operand.vmem [shape: f32[1,32], index: 5, kind: input, shape index: {}]
  %s6 = inlined_call_operand.vmem [shape: f32[2,4,32,8], index: 6, kind: input, shape index: {}]
  %s7 = inlined_call_operand.vmem [shape: f32[2,4,1,8], index: 7, kind: input, shape index: {}]
  %s8 = inlined_call_operand.vmem [shape: f32[2,4,32,8], index: 8, kind: input, shape index: {}]
  %s9 = inlined_call_operand.vmem [shape: f32[2,4,1,8], index: 9, kind: input, shape index: {}]
  %s10 = inlined_call_operand.vmem [shape: f32[2,4,32,8], index: 10, kind: input, shape index: {}]
  %s11 = inlined_call_operand.vmem [shape: f32[2,4,1,8], index: 11, kind: input, shape index: {}]
  %s12 = inlined_call_operand.vmem [shape: f32[2,4,8,32], index: 12, kind: input, shape index: {}]
  %s13 = inlined_call_operand.vmem [shape: f32[2,1,32], index: 13, kind: input, shape index: {}]
  %s14 = inlined_call_operand.vmem [shape: f32[2,1,32], index: 14, kind: input, shape index: {}]
  %s15 = inlined_call_operand.vmem [shape: f32[2,1,32], index: 15, kind: input, shape index: {}]
  %s16 = inlined_call_operand.vmem [shape: f32[2,32,128], index: 16, kind: input, shape index: {}]
  %s17 = inlined_call_operand.vmem [shape: f32[2,1,128], index: 17, kind: input, shape index: {}]
  %s18 = inlined_call_operand.vmem [shape: f32[2,128,32], index: 18, kind: input, shape index: {}]
  %s19 = inlined_call_operand.vmem [shape: f32[2,1,32], index: 19, kind: input, shape index: {}]
  %s20 = inlined_call_operand.vmem [shape: f32[2,1,32], index: 20, kind: input, shape index: {}]
  %s21 = inlined_call_operand.vmem [shape: f32[2,1,32], index: 21, kind: input, shape index: {}]
  %s22 = inlined_call_operand.vmem [shape: f32[2,16], index: 22, kind: input, shape index: {}]
  %s23 = inlined_call_operand.vmem [shape: f32[32,128], index: 23, kind: input, shape index: {}]
  %s24 = inlined_call_operand.vmem [shape: f32[1,128], index: 24, kind: input, shape index: {}]
  %s25 = inlined_call_operand.hbm [shape: f32[2,2,128], index: 25, kind: output, shape index: {}]
  %s26 = sld [smem:[#allocation0]]
  $region133: #{tpu_custom_call.1} parent=0
    _
  %s28 = ssub.s32 1, %s26
  %s29 = scalar_select 0, %s28, %s26
  $region1: #{tpu_custom_call.1} parent=0
    #allocation2 [shape = 'u8[2048]{0}', space=vmem, size = 0x800, scoped, tag = 'output window, operand 0']
    #allocation3 [shape = 's32[2]{0}', space=sflag, size = 0x8, scoped, tag = 'scoped memory for tpu_custom_call.1']
    %30 = vsyncpa [#allocation3], 0
    %s31 = scalar_lea.sflag [#allocation3], 1
    %32 = vsyncpa %s31, 0
    loop: start=0, step=1, limit=4
    $region2: #{tpu_custom_call.1} parent=1 // loop_pre_header
      _
    $region3: #{tpu_custom_call.1} parent=1 // loop_header
      %s34 = sphi 0, %s38
      %p35 = scmp.ge.s32.totalorder %s34, 4
      %s44 = sphi 0, %s46
      %s47 = sphi 0, %s44
      %s48 = sphi 0, %s47
      %s64 = sphi 0, %s48
      %s70 = sphi 0, %s72
      %s73 = sphi 0, %s70
      %s74 = sphi 0, %s73
      %s90 = sphi 0, %s74
      %s94 = sphi 0, %s94
      %s96 = sphi 0, %s94
      %s97 = sphi 0, %s96
      %s111 = sphi 0, %s97
      %s115 = sphi 0, %s115
      %s117 = sphi 0, %s115
      %s118 = sphi 0, %s117
      %s132 = sphi 0, %s118
      %s136 = sphi 0, %s136
      %s138 = sphi 0, %s136
      %s139 = sphi 0, %s138
      %s153 = sphi 0, %s139
      %s157 = sphi 0, %s157
      %s159 = sphi 0, %s157
      %s160 = sphi 0, %s159
      %s174 = sphi 0, %s160
      %s178 = sphi 0, %s178
      %s180 = sphi 0, %s178
      %s181 = sphi 0, %s180
      %s195 = sphi 0, %s181
      %s199 = sphi 0, %s199
      %s201 = sphi 0, %s199
      %s202 = sphi 0, %s201
      %s216 = sphi 0, %s202
      %s220 = sphi 0, %s220
      %s222 = sphi 0, %s220
      %s223 = sphi 0, %s222
      %s237 = sphi 0, %s223
      %s241 = sphi 0, %s241
      %s243 = sphi 0, %s241
      %s244 = sphi 0, %s243
      %s258 = sphi 0, %s244
      %s262 = sphi 0, %s262
      %s264 = sphi 0, %s262
      %s265 = sphi 0, %s264
      %s279 = sphi 0, %s265
      %s283 = sphi 0, %s283
      %s285 = sphi 0, %s283
      %s286 = sphi 0, %s285
      %s300 = sphi 0, %s286
      %s304 = sphi 0, %s304
      %s306 = sphi 0, %s304
      %s307 = sphi 0, %s306
      %s321 = sphi 0, %s307
      %s325 = sphi 0, %s325
      %s327 = sphi 0, %s325
      %s328 = sphi 0, %s327
      %s342 = sphi 0, %s328
      %s346 = sphi 0, %s346
      %s348 = sphi 0, %s346
      %s349 = sphi 0, %s348
      %s363 = sphi 0, %s349
      %s367 = sphi 0, %s367
      %s369 = sphi 0, %s367
      %s370 = sphi 0, %s369
      %s384 = sphi 0, %s370
      %s388 = sphi 0, %s388
      %s390 = sphi 0, %s388
      %s391 = sphi 0, %s390
      %s405 = sphi 0, %s391
      %s409 = sphi 0, %s409
      %s411 = sphi 0, %s409
      %s412 = sphi 0, %s411
      %s426 = sphi 0, %s412
      %s430 = sphi 0, %s430
      %s432 = sphi 0, %s430
      %s433 = sphi 0, %s432
      %s447 = sphi 0, %s433
      %s451 = sphi 0, %s451
      %s453 = sphi 0, %s451
      %s454 = sphi 0, %s453
      %s468 = sphi 0, %s454
      %s472 = sphi 0, %s472
      %s474 = sphi 0, %s472
      %s475 = sphi 0, %s474
      %s489 = sphi 0, %s475
      %s493 = sphi 0, %s493
      %s495 = sphi 0, %s493
      %s496 = sphi 0, %s495
      %s510 = sphi 0, %s496
      %s514 = sphi 0, %s514
      %s516 = sphi 0, %s514
      %s517 = sphi 0, %s516
      %s531 = sphi 0, %s517
      %s535 = sphi 0, %s535
      %s537 = sphi 0, %s535
      %s538 = sphi 0, %s537
      %s552 = sphi 0, %s538
      %s556 = sphi 0, %s556
      %s558 = sphi 0, %s556
      %s559 = sphi 0, %s558
      %s573 = sphi 0, %s559
      %s579 = sphi 0, %s581
      %s582 = sphi 0, %s579
      %s583 = sphi 0, %s582
      %s599 = sphi 0, %s583
    $region4: #{tpu_custom_call.1} parent=1 // loop_header_branch
      %37 = sbr.rel (%p35) target = $region8
    $region5: #{tpu_custom_call.1} parent=1 // loop_body
      %s39 = ssub.s32 %s34, 1
      %s40 = ssub.s32 %s34, 2
      %s41 = sadd.s32 %s34, 1
      %s42 = ssub.s32 %s34, %s41
      %p43 = scmp.eq.s32.totalorder %s42, 0
      %s45 = sadd.s32 %s44, 1
      %s46 = scalar_select %p43, %s44, %s45
      %p49 = pneg %p43
      %p50 = scmp.eq.s32.totalorder %s34, 1
      %p51 = por %p49, %p50
      %p52 = scmp.ne.s32.totalorder %s44, %s47
      %p53 = scmp.eq.s32.totalorder %s34, 0
      %p54 = por %p52, %p53
      %p55 = scmp.ne.s32.totalorder %s44, %s47
      %p56 = scmp.eq.s32.totalorder %s39, 1
      %p57 = por %p55, %p56
      %p58 = scmp.ne.s32.totalorder %s47, %s48
      %p59 = scmp.eq.s32.totalorder %s39, 0
      %p60 = por %p58, %p59
      %p61 = scmp.ne.s32.totalorder %s47, %s48
      %p62 = scmp.eq.s32.totalorder %s40, 1
      %p63 = por %p61, %p62
      %p65 = scmp.ne.s32.totalorder %s48, %s64
      %p66 = scmp.eq.s32.totalorder %s40, 0
      %p67 = por %p65, %p66
      %s68 = ssub.s32 %s34, %s41
      %p69 = scmp.eq.s32.totalorder %s68, 0
      %s71 = sadd.s32 %s70, 1
      %s72 = scalar_select %p69, %s70, %s71
      %p75 = pneg %p69
      %p76 = scmp.eq.s32.totalorder %s34, 1
      %p77 = por %p75, %p76
      %p78 = scmp.ne.s32.totalorder %s70, %s73
      %p79 = scmp.eq.s32.totalorder %s34, 0
      %p80 = por %p78, %p79
      %p81 = scmp.ne.s32.totalorder %s70, %s73
      %p82 = scmp.eq.s32.totalorder %s39, 1
      %p83 = por %p81, %p82
      %p84 = scmp.ne.s32.totalorder %s73, %s74
      %p85 = scmp.eq.s32.totalorder %s39, 0
      %p86 = por %p84, %p85
      %p87 = scmp.ne.s32.totalorder %s73, %s74
      %p88 = scmp.eq.s32.totalorder %s40, 1
      %p89 = por %p87, %p88
      %p91 = scmp.ne.s32.totalorder %s74, %s90
      %p92 = scmp.eq.s32.totalorder %s40, 0
      %p93 = por %p91, %p92
      %s95 = sadd.s32 %s94, 1
      %p98 = scmp.eq.s32.totalorder %s34, 1
      %p99 = scmp.ne.s32.totalorder %s94, %s96
      %p100 = scmp.eq.s32.totalorder %s34, 0
      %p101 = por %p99, %p100
      %p102 = scmp.ne.s32.totalorder %s94, %s96
      %p103 = scmp.eq.s32.totalorder %s39, 1
      %p104 = por %p102, %p103
      %p105 = scmp.ne.s32.totalorder %s96, %s97
      %p106 = scmp.eq.s32.totalorder %s39, 0
      %p107 = por %p105, %p106
      %p108 = scmp.ne.s32.totalorder %s96, %s97
      %p109 = scmp.eq.s32.totalorder %s40, 1
      %p110 = por %p108, %p109
      %p112 = scmp.ne.s32.totalorder %s97, %s111
      %p113 = scmp.eq.s32.totalorder %s40, 0
      %p114 = por %p112, %p113
      %s116 = sadd.s32 %s115, 1
      %p119 = scmp.eq.s32.totalorder %s34, 1
      %p120 = scmp.ne.s32.totalorder %s115, %s117
      %p121 = scmp.eq.s32.totalorder %s34, 0
      %p122 = por %p120, %p121
      %p123 = scmp.ne.s32.totalorder %s115, %s117
      %p124 = scmp.eq.s32.totalorder %s39, 1
      %p125 = por %p123, %p124
      %p126 = scmp.ne.s32.totalorder %s117, %s118
      %p127 = scmp.eq.s32.totalorder %s39, 0
      %p128 = por %p126, %p127
      %p129 = scmp.ne.s32.totalorder %s117, %s118
      %p130 = scmp.eq.s32.totalorder %s40, 1
      %p131 = por %p129, %p130
      %p133 = scmp.ne.s32.totalorder %s118, %s132
      %p134 = scmp.eq.s32.totalorder %s40, 0
      %p135 = por %p133, %p134
      %s137 = sadd.s32 %s136, 1
      %p140 = scmp.eq.s32.totalorder %s34, 1
      %p141 = scmp.ne.s32.totalorder %s136, %s138
      %p142 = scmp.eq.s32.totalorder %s34, 0
      %p143 = por %p141, %p142
      %p144 = scmp.ne.s32.totalorder %s136, %s138
      %p145 = scmp.eq.s32.totalorder %s39, 1
      %p146 = por %p144, %p145
      %p147 = scmp.ne.s32.totalorder %s138, %s139
      %p148 = scmp.eq.s32.totalorder %s39, 0
      %p149 = por %p147, %p148
      %p150 = scmp.ne.s32.totalorder %s138, %s139
      %p151 = scmp.eq.s32.totalorder %s40, 1
      %p152 = por %p150, %p151
      %p154 = scmp.ne.s32.totalorder %s139, %s153
      %p155 = scmp.eq.s32.totalorder %s40, 0
      %p156 = por %p154, %p155
      %s158 = sadd.s32 %s157, 1
      %p161 = scmp.eq.s32.totalorder %s34, 1
      %p162 = scmp.ne.s32.totalorder %s157, %s159
      %p163 = scmp.eq.s32.totalorder %s34, 0
      %p164 = por %p162, %p163
      %p165 = scmp.ne.s32.totalorder %s157, %s159
      %p166 = scmp.eq.s32.totalorder %s39, 1
      %p167 = por %p165, %p166
      %p168 = scmp.ne.s32.totalorder %s159, %s160
      %p169 = scmp.eq.s32.totalorder %s39, 0
      %p170 = por %p168, %p169
      %p171 = scmp.ne.s32.totalorder %s159, %s160
      %p172 = scmp.eq.s32.totalorder %s40, 1
      %p173 = por %p171, %p172
      %p175 = scmp.ne.s32.totalorder %s160, %s174
      %p176 = scmp.eq.s32.totalorder %s40, 0
      %p177 = por %p175, %p176
      %s179 = sadd.s32 %s178, 1
      %p182 = scmp.eq.s32.totalorder %s34, 1
      %p183 = scmp.ne.s32.totalorder %s178, %s180
      %p184 = scmp.eq.s32.totalorder %s34, 0
      %p185 = por %p183, %p184
      %p186 = scmp.ne.s32.totalorder %s178, %s180
      %p187 = scmp.eq.s32.totalorder %s39, 1
      %p188 = por %p186, %p187
      %p189 = scmp.ne.s32.totalorder %s180, %s181
      %p190 = scmp.eq.s32.totalorder %s39, 0
      %p191 = por %p189, %p190
      %p192 = scmp.ne.s32.totalorder %s180, %s181
      %p193 = scmp.eq.s32.totalorder %s40, 1
      %p194 = por %p192, %p193
      %p196 = scmp.ne.s32.totalorder %s181, %s195
      %p197 = scmp.eq.s32.totalorder %s40, 0
      %p198 = por %p196, %p197
      %s200 = sadd.s32 %s199, 1
      %p203 = scmp.eq.s32.totalorder %s34, 1
      %p204 = scmp.ne.s32.totalorder %s199, %s201
      %p205 = scmp.eq.s32.totalorder %s34, 0
      %p206 = por %p204, %p205
      %p207 = scmp.ne.s32.totalorder %s199, %s201
      %p208 = scmp.eq.s32.totalorder %s39, 1
      %p209 = por %p207, %p208
      %p210 = scmp.ne.s32.totalorder %s201, %s202
      %p211 = scmp.eq.s32.totalorder %s39, 0
      %p212 = por %p210, %p211
      %p213 = scmp.ne.s32.totalorder %s201, %s202
      %p214 = scmp.eq.s32.totalorder %s40, 1
      %p215 = por %p213, %p214
      %p217 = scmp.ne.s32.totalorder %s202, %s216
      %p218 = scmp.eq.s32.totalorder %s40, 0
      %p219 = por %p217, %p218
      %s221 = sadd.s32 %s220, 1
      %p224 = scmp.eq.s32.totalorder %s34, 1
      %p225 = scmp.ne.s32.totalorder %s220, %s222
      %p226 = scmp.eq.s32.totalorder %s34, 0
      %p227 = por %p225, %p226
      %p228 = scmp.ne.s32.totalorder %s220, %s222
      %p229 = scmp.eq.s32.totalorder %s39, 1
      %p230 = por %p228, %p229
      %p231 = scmp.ne.s32.totalorder %s222, %s223
      %p232 = scmp.eq.s32.totalorder %s39, 0
      %p233 = por %p231, %p232
      %p234 = scmp.ne.s32.totalorder %s222, %s223
      %p235 = scmp.eq.s32.totalorder %s40, 1
      %p236 = por %p234, %p235
      %p238 = scmp.ne.s32.totalorder %s223, %s237
      %p239 = scmp.eq.s32.totalorder %s40, 0
      %p240 = por %p238, %p239
      %s242 = sadd.s32 %s241, 1
      %p245 = scmp.eq.s32.totalorder %s34, 1
      %p246 = scmp.ne.s32.totalorder %s241, %s243
      %p247 = scmp.eq.s32.totalorder %s34, 0
      %p248 = por %p246, %p247
      %p249 = scmp.ne.s32.totalorder %s241, %s243
      %p250 = scmp.eq.s32.totalorder %s39, 1
      %p251 = por %p249, %p250
      %p252 = scmp.ne.s32.totalorder %s243, %s244
      %p253 = scmp.eq.s32.totalorder %s39, 0
      %p254 = por %p252, %p253
      %p255 = scmp.ne.s32.totalorder %s243, %s244
      %p256 = scmp.eq.s32.totalorder %s40, 1
      %p257 = por %p255, %p256
      %p259 = scmp.ne.s32.totalorder %s244, %s258
      %p260 = scmp.eq.s32.totalorder %s40, 0
      %p261 = por %p259, %p260
      %s263 = sadd.s32 %s262, 1
      %p266 = scmp.eq.s32.totalorder %s34, 1
      %p267 = scmp.ne.s32.totalorder %s262, %s264
      %p268 = scmp.eq.s32.totalorder %s34, 0
      %p269 = por %p267, %p268
      %p270 = scmp.ne.s32.totalorder %s262, %s264
      %p271 = scmp.eq.s32.totalorder %s39, 1
      %p272 = por %p270, %p271
      %p273 = scmp.ne.s32.totalorder %s264, %s265
      %p274 = scmp.eq.s32.totalorder %s39, 0
      %p275 = por %p273, %p274
      %p276 = scmp.ne.s32.totalorder %s264, %s265
      %p277 = scmp.eq.s32.totalorder %s40, 1
      %p278 = por %p276, %p277
      %p280 = scmp.ne.s32.totalorder %s265, %s279
      %p281 = scmp.eq.s32.totalorder %s40, 0
      %p282 = por %p280, %p281
      %s284 = sadd.s32 %s283, 1
      %p287 = scmp.eq.s32.totalorder %s34, 1
      %p288 = scmp.ne.s32.totalorder %s283, %s285
      %p289 = scmp.eq.s32.totalorder %s34, 0
      %p290 = por %p288, %p289
      %p291 = scmp.ne.s32.totalorder %s283, %s285
      %p292 = scmp.eq.s32.totalorder %s39, 1
      %p293 = por %p291, %p292
      %p294 = scmp.ne.s32.totalorder %s285, %s286
      %p295 = scmp.eq.s32.totalorder %s39, 0
      %p296 = por %p294, %p295
      %p297 = scmp.ne.s32.totalorder %s285, %s286
      %p298 = scmp.eq.s32.totalorder %s40, 1
      %p299 = por %p297, %p298
      %p301 = scmp.ne.s32.totalorder %s286, %s300
      %p302 = scmp.eq.s32.totalorder %s40, 0
      %p303 = por %p301, %p302
      %s305 = sadd.s32 %s304, 1
      %p308 = scmp.eq.s32.totalorder %s34, 1
      %p309 = scmp.ne.s32.totalorder %s304, %s306
      %p310 = scmp.eq.s32.totalorder %s34, 0
      %p311 = por %p309, %p310
      %p312 = scmp.ne.s32.totalorder %s304, %s306
      %p313 = scmp.eq.s32.totalorder %s39, 1
      %p314 = por %p312, %p313
      %p315 = scmp.ne.s32.totalorder %s306, %s307
      %p316 = scmp.eq.s32.totalorder %s39, 0
      %p317 = por %p315, %p316
      %p318 = scmp.ne.s32.totalorder %s306, %s307
      %p319 = scmp.eq.s32.totalorder %s40, 1
      %p320 = por %p318, %p319
      %p322 = scmp.ne.s32.totalorder %s307, %s321
      %p323 = scmp.eq.s32.totalorder %s40, 0
      %p324 = por %p322, %p323
      %s326 = sadd.s32 %s325, 1
      %p329 = scmp.eq.s32.totalorder %s34, 1
      %p330 = scmp.ne.s32.totalorder %s325, %s327
      %p331 = scmp.eq.s32.totalorder %s34, 0
      %p332 = por %p330, %p331
      %p333 = scmp.ne.s32.totalorder %s325, %s327
      %p334 = scmp.eq.s32.totalorder %s39, 1
      %p335 = por %p333, %p334
      %p336 = scmp.ne.s32.totalorder %s327, %s328
      %p337 = scmp.eq.s32.totalorder %s39, 0
      %p338 = por %p336, %p337
      %p339 = scmp.ne.s32.totalorder %s327, %s328
      %p340 = scmp.eq.s32.totalorder %s40, 1
      %p341 = por %p339, %p340
      %p343 = scmp.ne.s32.totalorder %s328, %s342
      %p344 = scmp.eq.s32.totalorder %s40, 0
      %p345 = por %p343, %p344
      %s347 = sadd.s32 %s346, 1
      %p350 = scmp.eq.s32.totalorder %s34, 1
      %p351 = scmp.ne.s32.totalorder %s346, %s348
      %p352 = scmp.eq.s32.totalorder %s34, 0
      %p353 = por %p351, %p352
      %p354 = scmp.ne.s32.totalorder %s346, %s348
      %p355 = scmp.eq.s32.totalorder %s39, 1
      %p356 = por %p354, %p355
      %p357 = scmp.ne.s32.totalorder %s348, %s349
      %p358 = scmp.eq.s32.totalorder %s39, 0
      %p359 = por %p357, %p358
      %p360 = scmp.ne.s32.totalorder %s348, %s349
      %p361 = scmp.eq.s32.totalorder %s40, 1
      %p362 = por %p360, %p361
      %p364 = scmp.ne.s32.totalorder %s349, %s363
      %p365 = scmp.eq.s32.totalorder %s40, 0
      %p366 = por %p364, %p365
      %s368 = sadd.s32 %s367, 1
      %p371 = scmp.eq.s32.totalorder %s34, 1
      %p372 = scmp.ne.s32.totalorder %s367, %s369
      %p373 = scmp.eq.s32.totalorder %s34, 0
      %p374 = por %p372, %p373
      %p375 = scmp.ne.s32.totalorder %s367, %s369
      %p376 = scmp.eq.s32.totalorder %s39, 1
      %p377 = por %p375, %p376
      %p378 = scmp.ne.s32.totalorder %s369, %s370
      %p379 = scmp.eq.s32.totalorder %s39, 0
      %p380 = por %p378, %p379
      %p381 = scmp.ne.s32.totalorder %s369, %s370
      %p382 = scmp.eq.s32.totalorder %s40, 1
      %p383 = por %p381, %p382
      %p385 = scmp.ne.s32.totalorder %s370, %s384
      %p386 = scmp.eq.s32.totalorder %s40, 0
      %p387 = por %p385, %p386
      %s389 = sadd.s32 %s388, 1
      %p392 = scmp.eq.s32.totalorder %s34, 1
      %p393 = scmp.ne.s32.totalorder %s388, %s390
      %p394 = scmp.eq.s32.totalorder %s34, 0
      %p395 = por %p393, %p394
      %p396 = scmp.ne.s32.totalorder %s388, %s390
      %p397 = scmp.eq.s32.totalorder %s39, 1
      %p398 = por %p396, %p397
      %p399 = scmp.ne.s32.totalorder %s390, %s391
      %p400 = scmp.eq.s32.totalorder %s39, 0
      %p401 = por %p399, %p400
      %p402 = scmp.ne.s32.totalorder %s390, %s391
      %p403 = scmp.eq.s32.totalorder %s40, 1
      %p404 = por %p402, %p403
      %p406 = scmp.ne.s32.totalorder %s391, %s405
      %p407 = scmp.eq.s32.totalorder %s40, 0
      %p408 = por %p406, %p407
      %s410 = sadd.s32 %s409, 1
      %p413 = scmp.eq.s32.totalorder %s34, 1
      %p414 = scmp.ne.s32.totalorder %s409, %s411
      %p415 = scmp.eq.s32.totalorder %s34, 0
      %p416 = por %p414, %p415
      %p417 = scmp.ne.s32.totalorder %s409, %s411
      %p418 = scmp.eq.s32.totalorder %s39, 1
      %p419 = por %p417, %p418
      %p420 = scmp.ne.s32.totalorder %s411, %s412
      %p421 = scmp.eq.s32.totalorder %s39, 0
      %p422 = por %p420, %p421
      %p423 = scmp.ne.s32.totalorder %s411, %s412
      %p424 = scmp.eq.s32.totalorder %s40, 1
      %p425 = por %p423, %p424
      %p427 = scmp.ne.s32.totalorder %s412, %s426
      %p428 = scmp.eq.s32.totalorder %s40, 0
      %p429 = por %p427, %p428
      %s431 = sadd.s32 %s430, 1
      %p434 = scmp.eq.s32.totalorder %s34, 1
      %p435 = scmp.ne.s32.totalorder %s430, %s432
      %p436 = scmp.eq.s32.totalorder %s34, 0
      %p437 = por %p435, %p436
      %p438 = scmp.ne.s32.totalorder %s430, %s432
      %p439 = scmp.eq.s32.totalorder %s39, 1
      %p440 = por %p438, %p439
      %p441 = scmp.ne.s32.totalorder %s432, %s433
      %p442 = scmp.eq.s32.totalorder %s39, 0
      %p443 = por %p441, %p442
      %p444 = scmp.ne.s32.totalorder %s432, %s433
      %p445 = scmp.eq.s32.totalorder %s40, 1
      %p446 = por %p444, %p445
      %p448 = scmp.ne.s32.totalorder %s433, %s447
      %p449 = scmp.eq.s32.totalorder %s40, 0
      %p450 = por %p448, %p449
      %s452 = sadd.s32 %s451, 1
      %p455 = scmp.eq.s32.totalorder %s34, 1
      %p456 = scmp.ne.s32.totalorder %s451, %s453
      %p457 = scmp.eq.s32.totalorder %s34, 0
      %p458 = por %p456, %p457
      %p459 = scmp.ne.s32.totalorder %s451, %s453
      %p460 = scmp.eq.s32.totalorder %s39, 1
      %p461 = por %p459, %p460
      %p462 = scmp.ne.s32.totalorder %s453, %s454
      %p463 = scmp.eq.s32.totalorder %s39, 0
      %p464 = por %p462, %p463
      %p465 = scmp.ne.s32.totalorder %s453, %s454
      %p466 = scmp.eq.s32.totalorder %s40, 1
      %p467 = por %p465, %p466
      %p469 = scmp.ne.s32.totalorder %s454, %s468
      %p470 = scmp.eq.s32.totalorder %s40, 0
      %p471 = por %p469, %p470
      %s473 = sadd.s32 %s472, 1
      %p476 = scmp.eq.s32.totalorder %s34, 1
      %p477 = scmp.ne.s32.totalorder %s472, %s474
      %p478 = scmp.eq.s32.totalorder %s34, 0
      %p479 = por %p477, %p478
      %p480 = scmp.ne.s32.totalorder %s472, %s474
      %p481 = scmp.eq.s32.totalorder %s39, 1
      %p482 = por %p480, %p481
      %p483 = scmp.ne.s32.totalorder %s474, %s475
      %p484 = scmp.eq.s32.totalorder %s39, 0
      %p485 = por %p483, %p484
      %p486 = scmp.ne.s32.totalorder %s474, %s475
      %p487 = scmp.eq.s32.totalorder %s40, 1
      %p488 = por %p486, %p487
      %p490 = scmp.ne.s32.totalorder %s475, %s489
      %p491 = scmp.eq.s32.totalorder %s40, 0
      %p492 = por %p490, %p491
      %s494 = sadd.s32 %s493, 1
      %p497 = scmp.eq.s32.totalorder %s34, 1
      %p498 = scmp.ne.s32.totalorder %s493, %s495
      %p499 = scmp.eq.s32.totalorder %s34, 0
      %p500 = por %p498, %p499
      %p501 = scmp.ne.s32.totalorder %s493, %s495
      %p502 = scmp.eq.s32.totalorder %s39, 1
      %p503 = por %p501, %p502
      %p504 = scmp.ne.s32.totalorder %s495, %s496
      %p505 = scmp.eq.s32.totalorder %s39, 0
      %p506 = por %p504, %p505
      %p507 = scmp.ne.s32.totalorder %s495, %s496
      %p508 = scmp.eq.s32.totalorder %s40, 1
      %p509 = por %p507, %p508
      %p511 = scmp.ne.s32.totalorder %s496, %s510
      %p512 = scmp.eq.s32.totalorder %s40, 0
      %p513 = por %p511, %p512
      %s515 = sadd.s32 %s514, 1
      %p518 = scmp.eq.s32.totalorder %s34, 1
      %p519 = scmp.ne.s32.totalorder %s514, %s516
      %p520 = scmp.eq.s32.totalorder %s34, 0
      %p521 = por %p519, %p520
      %p522 = scmp.ne.s32.totalorder %s514, %s516
      %p523 = scmp.eq.s32.totalorder %s39, 1
      %p524 = por %p522, %p523
      %p525 = scmp.ne.s32.totalorder %s516, %s517
      %p526 = scmp.eq.s32.totalorder %s39, 0
      %p527 = por %p525, %p526
      %p528 = scmp.ne.s32.totalorder %s516, %s517
      %p529 = scmp.eq.s32.totalorder %s40, 1
      %p530 = por %p528, %p529
      %p532 = scmp.ne.s32.totalorder %s517, %s531
      %p533 = scmp.eq.s32.totalorder %s40, 0
      %p534 = por %p532, %p533
      %s536 = sadd.s32 %s535, 1
      %p539 = scmp.eq.s32.totalorder %s34, 1
      %p540 = scmp.ne.s32.totalorder %s535, %s537
      %p541 = scmp.eq.s32.totalorder %s34, 0
      %p542 = por %p540, %p541
      %p543 = scmp.ne.s32.totalorder %s535, %s537
      %p544 = scmp.eq.s32.totalorder %s39, 1
      %p545 = por %p543, %p544
      %p546 = scmp.ne.s32.totalorder %s537, %s538
      %p547 = scmp.eq.s32.totalorder %s39, 0
      %p548 = por %p546, %p547
      %p549 = scmp.ne.s32.totalorder %s537, %s538
      %p550 = scmp.eq.s32.totalorder %s40, 1
      %p551 = por %p549, %p550
      %p553 = scmp.ne.s32.totalorder %s538, %s552
      %p554 = scmp.eq.s32.totalorder %s40, 0
      %p555 = por %p553, %p554
      %s557 = sadd.s32 %s556, 1
      %p560 = scmp.eq.s32.totalorder %s34, 1
      %p561 = scmp.ne.s32.totalorder %s556, %s558
      %p562 = scmp.eq.s32.totalorder %s34, 0
      %p563 = por %p561, %p562
      %p564 = scmp.ne.s32.totalorder %s556, %s558
      %p565 = scmp.eq.s32.totalorder %s39, 1
      %p566 = por %p564, %p565
      %p567 = scmp.ne.s32.totalorder %s558, %s559
      %p568 = scmp.eq.s32.totalorder %s39, 0
      %p569 = por %p567, %p568
      %p570 = scmp.ne.s32.totalorder %s558, %s559
      %p571 = scmp.eq.s32.totalorder %s40, 1
      %p572 = por %p570, %p571
      %p574 = scmp.ne.s32.totalorder %s559, %s573
      %p575 = scmp.eq.s32.totalorder %s40, 0
      %p576 = por %p574, %p575
      %s577 = ssub.s32 %s34, %s41
      %p578 = scmp.eq.s32.totalorder %s577, 0
      %s580 = sadd.s32 %s579, 1
      %s581 = scalar_select %p578, %s579, %s580
      %p584 = pneg %p578
      %p585 = scmp.eq.s32.totalorder %s34, 1
      %p586 = por %p584, %p585
      %p587 = scmp.ne.s32.totalorder %s579, %s582
      %p588 = scmp.eq.s32.totalorder %s34, 0
      %p589 = por %p587, %p588
      %p590 = scmp.ne.s32.totalorder %s579, %s582
      %p591 = scmp.eq.s32.totalorder %s39, 1
      %p592 = por %p590, %p591
      %p593 = scmp.ne.s32.totalorder %s582, %s583
      %p594 = scmp.eq.s32.totalorder %s39, 0
      %p595 = por %p593, %p594
      %p596 = scmp.ne.s32.totalorder %s582, %s583
      %p597 = scmp.eq.s32.totalorder %s40, 1
      %p598 = por %p596, %p597
      %p600 = scmp.ne.s32.totalorder %s583, %s599
      %p601 = scmp.eq.s32.totalorder %s40, 0
      %p602 = por %p600, %p601
      %p603 = scmp.le.s32.totalorder 1, %s34
      %p604 = scmp.lt.s32.totalorder %s34, 3
      %p605 = pnand %p603, %p604
      %p606 = pneg %p605
      // Predicated region
      $region9: #{tpu_custom_call.1} parent=5 // pred_check
        _
      $region10: #{tpu_custom_call.1} parent=5 // pred_check_branch
        %608 = sbr.rel (%p605) target = $region12
      $region11: #{tpu_custom_call.1} parent=5 // pred_region
        %s609 = ssub.s32 %s34, 1
        // Predicated region
        $region13: #{tpu_custom_call.1} parent=11 // pred_check
          %p610 = pneg %p107
        $region14: #{tpu_custom_call.1} parent=11 // pred_check_branch
          %612 = sbr.rel (%p610) target = $region16
        $region15: #{tpu_custom_call.1} parent=11 // pred_region
          _
        $region16: #{tpu_custom_call.1} parent=11 // pred_fallthru
          _
        // Predicated region
        $region17: #{tpu_custom_call.1} parent=11 // pred_check
          %p613 = pneg %p128
        $region18: #{tpu_custom_call.1} parent=11 // pred_check_branch
          %615 = sbr.rel (%p613) target = $region20
        $region19: #{tpu_custom_call.1} parent=11 // pred_region
          _
        $region20: #{tpu_custom_call.1} parent=11 // pred_fallthru
          _
        // Predicated region
        $region21: #{tpu_custom_call.1} parent=11 // pred_check
          %p616 = pneg %p149
        $region22: #{tpu_custom_call.1} parent=11 // pred_check_branch
          %618 = sbr.rel (%p616) target = $region24
        $region23: #{tpu_custom_call.1} parent=11 // pred_region
          _
        $region24: #{tpu_custom_call.1} parent=11 // pred_fallthru
          _
        // Predicated region
        $region25: #{tpu_custom_call.1} parent=11 // pred_check
          %p619 = pneg %p170
        $region26: #{tpu_custom_call.1} parent=11 // pred_check_branch
          %621 = sbr.rel (%p619) target = $region28
        $region27: #{tpu_custom_call.1} parent=11 // pred_region
          _
        $region28: #{tpu_custom_call.1} parent=11 // pred_fallthru
          _
        // Predicated region
        $region29: #{tpu_custom_call.1} parent=11 // pred_check
          %p622 = pneg %p191
        $region30: #{tpu_custom_call.1} parent=11 // pred_check_branch
          %624 = sbr.rel (%p622) target = $region32
        $region31: #{tpu_custom_call.1} parent=11 // pred_region
          _
        $region32: #{tpu_custom_call.1} parent=11 // pred_fallthru
          _
        // Predicated region
        $region33: #{tpu_custom_call.1} parent=11 // pred_check
          %p625 = pneg %p212
        $region34: #{tpu_custom_call.1} parent=11 // pred_check_branch
          %627 = sbr.rel (%p625) target = $region36
        $region35: #{tpu_custom_call.1} parent=11 // pred_region
          _
        $region36: #{tpu_custom_call.1} parent=11 // pred_fallthru
          _
        // Predicated region
        $region37: #{tpu_custom_call.1} parent=11 // pred_check
          %p628 = pneg %p233
        $region38: #{tpu_custom_call.1} parent=11 // pred_check_branch
          %630 = sbr.rel (%p628) target = $region40
        $region39: #{tpu_custom_call.1} parent=11 // pred_region
          _
        $region40: #{tpu_custom_call.1} parent=11 // pred_fallthru
          _
        // Predicated region
        $region41: #{tpu_custom_call.1} parent=11 // pred_check
          %p631 = pneg %p254
        $region42: #{tpu_custom_call.1} parent=11 // pred_check_branch
          %633 = sbr.rel (%p631) target = $region44
        $region43: #{tpu_custom_call.1} parent=11 // pred_region
          _
        $region44: #{tpu_custom_call.1} parent=11 // pred_fallthru
          _
        // Predicated region
        $region45: #{tpu_custom_call.1} parent=11 // pred_check
          %p634 = pneg %p275
        $region46: #{tpu_custom_call.1} parent=11 // pred_check_branch
          %636 = sbr.rel (%p634) target = $region48
        $region47: #{tpu_custom_call.1} parent=11 // pred_region
          _
        $region48: #{tpu_custom_call.1} parent=11 // pred_fallthru
          _
        // Predicated region
        $region49: #{tpu_custom_call.1} parent=11 // pred_check
          %p637 = pneg %p296
        $region50: #{tpu_custom_call.1} parent=11 // pred_check_branch
          %639 = sbr.rel (%p637) target = $region52
        $region51: #{tpu_custom_call.1} parent=11 // pred_region
          _
        $region52: #{tpu_custom_call.1} parent=11 // pred_fallthru
          _
        // Predicated region
        $region53: #{tpu_custom_call.1} parent=11 // pred_check
          %p640 = pneg %p317
        $region54: #{tpu_custom_call.1} parent=11 // pred_check_branch
          %642 = sbr.rel (%p640) target = $region56
        $region55: #{tpu_custom_call.1} parent=11 // pred_region
          _
        $region56: #{tpu_custom_call.1} parent=11 // pred_fallthru
          _
        // Predicated region
        $region57: #{tpu_custom_call.1} parent=11 // pred_check
          %p643 = pneg %p338
        $region58: #{tpu_custom_call.1} parent=11 // pred_check_branch
          %645 = sbr.rel (%p643) target = $region60
        $region59: #{tpu_custom_call.1} parent=11 // pred_region
          _
        $region60: #{tpu_custom_call.1} parent=11 // pred_fallthru
          _
        // Predicated region
        $region61: #{tpu_custom_call.1} parent=11 // pred_check
          %p646 = pneg %p359
        $region62: #{tpu_custom_call.1} parent=11 // pred_check_branch
          %648 = sbr.rel (%p646) target = $region64
        $region63: #{tpu_custom_call.1} parent=11 // pred_region
          _
        $region64: #{tpu_custom_call.1} parent=11 // pred_fallthru
          _
        // Predicated region
        $region65: #{tpu_custom_call.1} parent=11 // pred_check
          %p649 = pneg %p380
        $region66: #{tpu_custom_call.1} parent=11 // pred_check_branch
          %651 = sbr.rel (%p649) target = $region68
        $region67: #{tpu_custom_call.1} parent=11 // pred_region
          _
        $region68: #{tpu_custom_call.1} parent=11 // pred_fallthru
          _
        // Predicated region
        $region69: #{tpu_custom_call.1} parent=11 // pred_check
          %p652 = pneg %p401
        $region70: #{tpu_custom_call.1} parent=11 // pred_check_branch
          %654 = sbr.rel (%p652) target = $region72
        $region71: #{tpu_custom_call.1} parent=11 // pred_region
          _
        $region72: #{tpu_custom_call.1} parent=11 // pred_fallthru
          _
        // Predicated region
        $region73: #{tpu_custom_call.1} parent=11 // pred_check
          %p655 = pneg %p422
        $region74: #{tpu_custom_call.1} parent=11 // pred_check_branch
          %657 = sbr.rel (%p655) target = $region76
        $region75: #{tpu_custom_call.1} parent=11 // pred_region
          _
        $region76: #{tpu_custom_call.1} parent=11 // pred_fallthru
          _
        // Predicated region
        $region77: #{tpu_custom_call.1} parent=11 // pred_check
          %p658 = pneg %p443
        $region78: #{tpu_custom_call.1} parent=11 // pred_check_branch
          %660 = sbr.rel (%p658) target = $region80
        $region79: #{tpu_custom_call.1} parent=11 // pred_region
          _
        $region80: #{tpu_custom_call.1} parent=11 // pred_fallthru
          _
        // Predicated region
        $region81: #{tpu_custom_call.1} parent=11 // pred_check
          %p661 = pneg %p464
        $region82: #{tpu_custom_call.1} parent=11 // pred_check_branch
          %663 = sbr.rel (%p661) target = $region84
        $region83: #{tpu_custom_call.1} parent=11 // pred_region
          _
        $region84: #{tpu_custom_call.1} parent=11 // pred_fallthru
          _
        // Predicated region
        $region85: #{tpu_custom_call.1} parent=11 // pred_check
          %p664 = pneg %p485
        $region86: #{tpu_custom_call.1} parent=11 // pred_check_branch
          %666 = sbr.rel (%p664) target = $region88
        $region87: #{tpu_custom_call.1} parent=11 // pred_region
          _
        $region88: #{tpu_custom_call.1} parent=11 // pred_fallthru
          _
        // Predicated region
        $region89: #{tpu_custom_call.1} parent=11 // pred_check
          %p667 = pneg %p506
        $region90: #{tpu_custom_call.1} parent=11 // pred_check_branch
          %669 = sbr.rel (%p667) target = $region92
        $region91: #{tpu_custom_call.1} parent=11 // pred_region
          _
        $region92: #{tpu_custom_call.1} parent=11 // pred_fallthru
          _
        // Predicated region
        $region93: #{tpu_custom_call.1} parent=11 // pred_check
          %p670 = pneg %p527
        $region94: #{tpu_custom_call.1} parent=11 // pred_check_branch
          %672 = sbr.rel (%p670) target = $region96
        $region95: #{tpu_custom_call.1} parent=11 // pred_region
          _
        $region96: #{tpu_custom_call.1} parent=11 // pred_fallthru
          _
        // Predicated region
        $region97: #{tpu_custom_call.1} parent=11 // pred_check
          %p673 = pneg %p548
        $region98: #{tpu_custom_call.1} parent=11 // pred_check_branch
          %675 = sbr.rel (%p673) target = $region100
        $region99: #{tpu_custom_call.1} parent=11 // pred_region
          _
        $region100: #{tpu_custom_call.1} parent=11 // pred_fallthru
          _
        // Predicated region
        $region101: #{tpu_custom_call.1} parent=11 // pred_check
          %p676 = pneg %p569
        $region102: #{tpu_custom_call.1} parent=11 // pred_check_branch
          %678 = sbr.rel (%p676) target = $region104
        $region103: #{tpu_custom_call.1} parent=11 // pred_region
          _
        $region104: #{tpu_custom_call.1} parent=11 // pred_fallthru
          _
      $region12: #{tpu_custom_call.1} parent=5 // pred_fallthru
        _
      %p679 = scmp.lt.s32.totalorder %s34, 2
      // Predicated region
      $region105: #{tpu_custom_call.1} parent=5 // pred_check
        %p680 = pneg %p679
      $region106: #{tpu_custom_call.1} parent=5 // pred_check_branch
        %682 = sbr.rel (%p680) target = $region108
      $region107: #{tpu_custom_call.1} parent=5 // pred_region
        // Predicated region
        $region109: #{tpu_custom_call.1} parent=107 // pred_check
          %p683 = pneg %p54
        $region110: #{tpu_custom_call.1} parent=107 // pred_check_branch
          %685 = sbr.rel (%p683) target = $region112
        $region111: #{tpu_custom_call.1} parent=107 // pred_region
          %s686 = smul.u32 2, %s34
          %p687 = scmp.lt.s32.totalorder %s686, 3
          %s688 = scalar_select %p687, %s686, 3
          %s689 = smul.addr %s688, 8
          %s690 = scalar_lea.vmem %s0, %s689
          %s691 = smul.u32 2, %s34
        $region112: #{tpu_custom_call.1} parent=107 // pred_fallthru
          _
        // Predicated region
        $region113: #{tpu_custom_call.1} parent=107 // pred_check
          %p692 = pneg %p80
        $region114: #{tpu_custom_call.1} parent=107 // pred_check_branch
          %694 = sbr.rel (%p692) target = $region116
        $region115: #{tpu_custom_call.1} parent=107 // pred_region
          %s695 = smul.u32 2, %s34
          %p696 = scmp.lt.s32.totalorder %s695, 3
          %s697 = scalar_select %p696, %s695, 3
          %s698 = scalar_lea.vmem %s1, %s697
          %s699 = smul.u32 2, %s34
        $region116: #{tpu_custom_call.1} parent=107 // pred_fallthru
          _
      $region108: #{tpu_custom_call.1} parent=5 // pred_fallthru
        _
      %p700 = scmp.le.s32.totalorder 1, %s34
      %p701 = scmp.lt.s32.totalorder %s34, 3
      %p702 = pnand %p700, %p701
      %p703 = pneg %p702
      // Predicated region
      $region117: #{tpu_custom_call.1} parent=5 // pred_check
        _
      $region118: #{tpu_custom_call.1} parent=5 // pred_check_branch
        %705 = sbr.rel (%p702) target = $region120
      $region119: #{tpu_custom_call.1} parent=5 // pred_region
        %s706 = ssub.s32 %s34, 1
        %s707 = smul.u32 2, %s39
        %p708 = scmp.lt.s32.totalorder %s707, 3
        %s709 = scalar_select %p708, %s707, 3
        %s710 = smul.addr %s709, 8
        %s711 = scalar_lea.vmem %s0, %s710
        %p712 = pneg %p60
        %p713 = pneg %p57
        %s714 = smul.u32 2, %s39
        %p715 = scmp.lt.s32.totalorder %s714, 3
        %s716 = scalar_select %p715, %s714, 3
        %s717 = scalar_lea.vmem %s1, %s716
        %p718 = pneg %p86
        %p719 = pneg %p83
        %p720 = pneg %p107
        %p721 = pneg %p104
        %p722 = pneg %p128
        %p723 = pneg %p125
        %p724 = pneg %p149
        %p725 = pneg %p146
        %p726 = pneg %p170
        %p727 = pneg %p167
        %p728 = pneg %p191
        %p729 = pneg %p188
        %p730 = pneg %p212
        %p731 = pneg %p209
        %p732 = pneg %p233
        %p733 = pneg %p230
        %p734 = pneg %p254
        %p735 = pneg %p251
        %p736 = pneg %p275
        %p737 = pneg %p272
        %p738 = pneg %p296
        %p739 = pneg %p293
        %p740 = pneg %p317
        %p741 = pneg %p314
        %p742 = pneg %p338
        %p743 = pneg %p335
        %p744 = pneg %p359
        %p745 = pneg %p356
        %p746 = pneg %p380
        %p747 = pneg %p377
        %p748 = pneg %p401
        %p749 = pneg %p398
        %p750 = pneg %p422
        %p751 = pneg %p419
        %p752 = pneg %p443
        %p753 = pneg %p440
        %p754 = pneg %p464
        %p755 = pneg %p461
        %p756 = pneg %p485
        %p757 = pneg %p482
        %p758 = pneg %p506
        %p759 = pneg %p503
        %p760 = pneg %p527
        %p761 = pneg %p524
        %p762 = pneg %p548
        %p763 = pneg %p545
        %p764 = pneg %p569
        %p765 = pneg %p566
        %p766 = pneg %p595
        %p767 = pneg %p592
        %s768 = sand.u32 %s582, 1
        %s769 = scalar_lea.sflag [#allocation3], %s768
        %s770 = sand.u32 %s582, 1
        %s771 = smul.addr %s770, 2
        %s772 = scalar_lea.vmem [#allocation2], %s771
        %s773 = smul.u32 2, %s39
        %p774 = scmp.lt.s32.totalorder %s773, 3
        %s775 = scalar_select %p774, %s773, 3
        %s776 = smul.addr %s775, 8
        %s777 = scalar_lea.vmem %s0, %s776
        %s778 = smul.u32 2, %s39
        %s779 = smul.u32 2, %s39
        %p780 = scmp.lt.s32.totalorder %s779, 3
        %s781 = scalar_select %p780, %s779, 3
        %s782 = scalar_lea.vmem %s1, %s781
        %s783 = smul.u32 2, %s39
        %v784 = vld [vmem:[%s777] sm:$0xff]
        %v785 = vld [vmem:[%s777 + $0x8] sm:$0xff]
        %v786 = vlaneseq
        %v787 = vand.u32 %v786, 127
        %788 = vset.pattern.permute.xlu0 0
        %789 = vperm.xlu0 %788, %v784
        %v790 = vpop.permute.xlu0 %789
        %791 = vset.pattern.permute.xlu0 0
        %792 = vperm.xlu0 %791, %v785
        %v793 = vpop.permute.xlu0 %792
        %vm794 = vcmp.eq.s32.totalorder %v790, %v787
        %vm795 = vcmp.eq.s32.totalorder %v793, %v787
        %v796 = vsel %vm794, 1, 0
        %v797 = vsel %vm795, 1, 0
        %v798 = vcvt.s32.f32 %v796
        %v799 = vcvt.s32.f32 %v797
        %v800 = vld [vmem:[%s2] sm:$0xff]
        %v801 = vld [vmem:[%s2 + $0x8] sm:$0xff]
        %v802 = vld [vmem:[%s2 + $0x10] sm:$0xff]
        %v803 = vld [vmem:[%s2 + $0x18] sm:$0xff]
        %v804 = vld [vmem:[%s2 + $0x20] sm:$0xff]
        %v805 = vld [vmem:[%s2 + $0x28] sm:$0xff]
        %v806 = vld [vmem:[%s2 + $0x30] sm:$0xff]
        %v807 = vld [vmem:[%s2 + $0x38] sm:$0xff]
        %v808 = vld [vmem:[%s2 + $0x40] sm:$0xff]
        %v809 = vld [vmem:[%s2 + $0x48] sm:$0xff]
        %v810 = vld [vmem:[%s2 + $0x50] sm:$0xff]
        %v811 = vld [vmem:[%s2 + $0x58] sm:$0xff]
        %v812 = vld [vmem:[%s2 + $0x60] sm:$0xff]
        %v813 = vld [vmem:[%s2 + $0x68] sm:$0xff]
        %v814 = vld [vmem:[%s2 + $0x70] sm:$0xff]
        %v815 = vld [vmem:[%s2 + $0x78] sm:$0xff]
        %v816 = vld [vmem:[%s3] sm:$0xff]
        %v817 = vld [vmem:[%s3 + $0x8] sm:$0xff]
        %818 = vmatprep.subr.mxu0 0.0
        %819 = vmatpush1.msra.mxu0 %v800
        %820 = vmatprep.subr.mxu0 0.0
        %821 = vmatpush1.msra.mxu0 %v801
        %822 = vmatprep.subr.mxu0 0.0
        %823 = vmatpush1.msra.mxu0 %v802
        %824 = vmatprep.subr.mxu0 0.0
        %825 = vmatpush1.msra.mxu0 %v803
        %826 = vmatprep.subr.mxu0 0.0
        %827 = vmatpush1.msra.mxu0 %v804
        %828 = vmatprep.subr.mxu0 0.0
        %829 = vmatpush1.msra.mxu0 %v805
        %830 = vmatprep.subr.mxu0 0.0
        %831 = vmatpush1.msra.mxu0 %v806
        %832 = vmatprep.subr.mxu0 0.0
        %833 = vmatpush1.msra.mxu0 %v807
        %834 = vmatprep.subr.mxu0 0.0
        %835 = vmatpush1.msra.mxu0 %v808
        %836 = vmatprep.subr.mxu0 0.0
        %837 = vmatpush1.msra.mxu0 %v809
        %838 = vmatprep.subr.mxu0 0.0
        %839 = vmatpush1.msra.mxu0 %v810
        %840 = vmatprep.subr.mxu0 0.0
        %841 = vmatpush1.msra.mxu0 %v811
        %842 = vmatprep.subr.mxu0 0.0
        %843 = vmatpush1.msra.mxu0 %v812
        %844 = vmatprep.subr.mxu0 0.0
        %845 = vmatpush1.msra.mxu0 %v813
        %846 = vmatprep.subr.mxu0 0.0
        %847 = vmatpush1.msra.mxu0 %v814
        %848 = vmatprep.subr.mxu0 0.0
        %849 = vmatpush1.msra.mxu0 %v815
        %850 = vmatprep.subr.mxu0 0.0
        %851 = vmatpush1.msra.mxu0 0.0
        %852 = vmatprep.subr.mxu0 0.0
        %853 = vmatpush1.msra.mxu0 0.0
        %854 = vmatprep.subr.mxu0 0.0
        %855 = vmatpush1.msra.mxu0 0.0
        %856 = vmatprep.subr.mxu0 0.0
        %857 = vmatpush1.msra.mxu0 0.0
        %858 = vmatprep.subr.mxu0 0.0
        %859 = vmatpush1.msra.mxu0 0.0
        %860 = vmatprep.subr.mxu0 0.0
        %861 = vmatpush1.msra.mxu0 0.0
        %862 = vmatprep.subr.mxu0 0.0
        %863 = vmatpush1.msra.mxu0 0.0
        %864 = vmatprep.subr.mxu0 0.0
        %865 = vmatpush1.msra.mxu0 0.0
        %866 = vmatprep.subr.mxu0 0.0
        %867 = vmatpush1.msra.mxu0 0.0
        %868 = vmatprep.subr.mxu0 0.0
        %869 = vmatpush1.msra.mxu0 0.0
        %870 = vmatprep.subr.mxu0 0.0
        %871 = vmatpush1.msra.mxu0 0.0
        %872 = vmatprep.subr.mxu0 0.0
        %873 = vmatpush1.msra.mxu0 0.0
        %874 = vmatprep.subr.mxu0 0.0
        %875 = vmatpush1.msra.mxu0 0.0
        %876 = vmatprep.subr.mxu0 0.0
        %877 = vmatpush1.msra.mxu0 0.0
        %878 = vmatprep.subr.mxu0 0.0
        %879 = vmatpush1.msra.mxu0 0.0
        %880 = vmatprep.subr.mxu0 0.0
        %881 = vmatpush1.msra.mxu0 0.0
        %882 = vmatprep.mubr.f32.mxu0 0.0
        %883 = vmatmul.mubr.f32.gmra.mrb[0].mxu0 %v798
        %v884 = vpop.f32.mrb[0].mxu0
        %v885 = vadd.f32 %v816, %v884
        %v886 = vpop.f32.mrb[0].mxu0
        %887 = vmatprep.mubr.f32.mxu0 0.0
        %888 = vmatmul.mubr.f32.gmra.mrb[0].mxu0 %v799
        %v889 = vpop.f32.mrb[0].mxu0
        %v890 = vadd.f32 %v817, %v889
        %v891 = vpop.f32.mrb[0].mxu0
        %892 = vdwg.mxu0
        %v893 = vld [vmem:[%s4] sm:$0x1]
        %v894 = vld [vmem:[%s5] sm:$0x1]
        %vm895 = vcmask 261120
        %v896 = vsel %vm895, %v885, 0.0
        %897 = vadd.xlane.f32.xlu0 %v896
        %v898 = vpop.xlane.xlu0 %897
        %v899 = vsel %vm895, %v890, 0.0
        %900 = vadd.xlane.f32.xlu0 %v899
        %v901 = vpop.xlane.xlu0 %900
        %v902 = vrcp.pop 32.0
        %v903 = vmul.f32 %v898, %v902
        %v904 = vmul.f32 %v901, %v902
        %v905 = vsub.f32 %v885, %v903
        %v906 = vsub.f32 %v890, %v904
        %v907 = vmul.f32 %v905, %v905
        %v908 = vmul.f32 %v906, %v906
        %v909 = vsel %vm895, %v907, 0.0
        %910 = vadd.xlane.f32.xlu0 %v909
        %v911 = vpop.xlane.xlu0 %910
        %v912 = vsel %vm895, %v908, 0.0
        %913 = vadd.xlane.f32.xlu0 %v912
        %v914 = vpop.xlane.xlu0 %913
        %v915 = vmul.f32 %v911, %v902
        %v916 = vmul.f32 %v914, %v902
        %v917 = vadd.f32 %v915, 1e-12
        %v918 = vadd.f32 %v916, 1e-12
        %v919 = vrsqrt.pop %v917
        %v920 = vrsqrt.pop %v918
        %v921 = vmul.f32 %v905, %v919
        %v922 = vmul.f32 %v906, %v920
        %v924 = vlaneseq
        %v925 = vshrl.u32 %v924, 7
        %v926 = vsub.s32 0, %v925
        %v927 = vrot.slane %v893, %v926
        %v929 = vmul.f32 %v921, %v927
        %v930 = vmul.f32 %v922, %v927
        %v932 = vlaneseq
        %v933 = vshrl.u32 %v932, 7
        %v934 = vsub.s32 0, %v933
        %v935 = vrot.slane %v894, %v934
        %v937 = vadd.f32 %v929, %v935
        %v938 = vadd.f32 %v930, %v935
        %v939 = vld [vmem:[%s782] sm:$0x1]
        %v940 = vld [vmem:[%s782 + $0x1] sm:$0x1]
        %v943 = vlaneseq
        %v944 = vshrl.u32 %v943, 7
        %v945 = vsub.s32 0, %v944
        %v946 = vrot.slane %v939, %v945
        %v947 = vlaneseq
        %v948 = vshrl.u32 %v947, 7
        %v949 = vsub.s32 0, %v948
        %v950 = vrot.slane %v940, %v949
        %v953 = vld [vmem:[%s6] sm:$0xff]
        %v954 = vld [vmem:[%s6 + $0x8] sm:$0xff]
        %v955 = vld [vmem:[%s6 + $0x10] sm:$0xff]
        %v956 = vld [vmem:[%s6 + $0x18] sm:$0xff]
        %v957 = vld [vmem:[%s7] sm:$0x1]
        %v959 = vlaneseq
        %v960 = vshrl.u32 %v959, 7
        %v961 = vsub.s32 0, %v960
        %v962 = vrot.slane %v957, %v961
        %v965 = vsel %vm895, %v937, 0
        %v968 = vsel %vm895, %v938, 0
        %970 = vmatprep.subr.mxu0 0.0
        %971 = vmatpush1.msra.mxu0 %v953
        %972 = vmatprep.subr.mxu0 0.0
        %973 = vmatpush1.msra.mxu0 %v954
        %974 = vmatprep.subr.mxu0 0.0
        %975 = vmatpush1.msra.mxu0 %v955
        %976 = vmatprep.subr.mxu0 0.0
        %977 = vmatpush1.msra.mxu0 %v956
        %978 = vmatprep.subr.mxu0 0.0
        %979 = vmatpush1.msra.mxu0 0.0
        %980 = vmatprep.subr.mxu0 0.0
        %981 = vmatpush1.msra.mxu0 0.0
        %982 = vmatprep.subr.mxu0 0.0
        %983 = vmatpush1.msra.mxu0 0.0
        %984 = vmatprep.subr.mxu0 0.0
        %985 = vmatpush1.msra.mxu0 0.0
        %986 = vmatprep.subr.mxu0 0.0
        %987 = vmatpush1.msra.mxu0 0.0
        %988 = vmatprep.subr.mxu0 0.0
        %989 = vmatpush1.msra.mxu0 0.0
        %990 = vmatprep.subr.mxu0 0.0
        %991 = vmatpush1.msra.mxu0 0.0
        %992 = vmatprep.subr.mxu0 0.0
        %993 = vmatpush1.msra.mxu0 0.0
        %994 = vmatprep.subr.mxu0 0.0
        %995 = vmatpush1.msra.mxu0 0.0
        %996 = vmatprep.subr.mxu0 0.0
        %997 = vmatpush1.msra.mxu0 0.0
        %998 = vmatprep.subr.mxu0 0.0
        %999 = vmatpush1.msra.mxu0 0.0
        %1000 = vmatprep.subr.mxu0 0.0
        %1001 = vmatpush1.msra.mxu0 0.0
        %1002 = vmatprep.subr.mxu0 0.0
        %1003 = vmatpush1.msra.mxu0 0.0
        %1004 = vmatprep.subr.mxu0 0.0
        %1005 = vmatpush1.msra.mxu0 0.0
        %1006 = vmatprep.subr.mxu0 0.0
        %1007 = vmatpush1.msra.mxu0 0.0
        %1008 = vmatprep.subr.mxu0 0.0
        %1009 = vmatpush1.msra.mxu0 0.0
        %1010 = vmatprep.subr.mxu0 0.0
        %1011 = vmatpush1.msra.mxu0 0.0
        %1012 = vmatprep.subr.mxu0 0.0
        %1013 = vmatpush1.msra.mxu0 0.0
        %1014 = vmatprep.subr.mxu0 0.0
        %1015 = vmatpush1.msra.mxu0 0.0
        %1016 = vmatprep.subr.mxu0 0.0
        %1017 = vmatpush1.msra.mxu0 0.0
        %1018 = vmatprep.subr.mxu0 0.0
        %1019 = vmatpush1.msra.mxu0 0.0
        %1020 = vmatprep.subr.mxu0 0.0
        %1021 = vmatpush1.msra.mxu0 0.0
        %1022 = vmatprep.subr.mxu0 0.0
        %1023 = vmatpush1.msra.mxu0 0.0
        %1024 = vmatprep.subr.mxu0 0.0
        %1025 = vmatpush1.msra.mxu0 0.0
        %1026 = vmatprep.subr.mxu0 0.0
        %1027 = vmatpush1.msra.mxu0 0.0
        %1028 = vmatprep.subr.mxu0 0.0
        %1029 = vmatpush1.msra.mxu0 0.0
        %1030 = vmatprep.subr.mxu0 0.0
        %1031 = vmatpush1.msra.mxu0 0.0
        %1032 = vmatprep.subr.mxu0 0.0
        %1033 = vmatpush1.msra.mxu0 0.0
        %1034 = vmatprep.mubr.f32.mxu0 0.0
        %1035 = vmatmul.mubr.f32.gmra.mrb[0].mxu0 %v965
        %v1036 = vpop.f32.mrb[0].mxu0
        %v1037 = vadd.f32 %v962, %v1036
        %v1038 = vpop.f32.mrb[0].mxu0
        %1039 = vmatprep.mubr.f32.mxu0 0.0
        %1040 = vmatmul.mubr.f32.gmra.mrb[0].mxu0 %v968
        %v1041 = vpop.f32.mrb[0].mxu0
        %v1042 = vadd.f32 %v962, %v1041
        %v1043 = vpop.f32.mrb[0].mxu0
        %1044 = vdwg.mxu0
        %v1045 = vld [vmem:[%s8] sm:$0xff]
        %v1046 = vld [vmem:[%s8 + $0x8] sm:$0xff]
        %v1047 = vld [vmem:[%s8 + $0x10] sm:$0xff]
        %v1048 = vld [vmem:[%s8 + $0x18] sm:$0xff]
        %v1049 = vld [vmem:[%s9] sm:$0x1]
        %v1051 = vlaneseq
        %v1052 = vshrl.u32 %v1051, 7
        %v1053 = vsub.s32 0, %v1052
        %v1054 = vrot.slane %v1049, %v1053
        %1056 = vmatprep.subr.mxu0 0.0
        %1057 = vmatpush1.msra.mxu0 %v1045
        %1058 = vmatprep.subr.mxu0 0.0
        %1059 = vmatpush1.msra.mxu0 %v1046
        %1060 = vmatprep.subr.mxu0 0.0
        %1061 = vmatpush1.msra.mxu0 %v1047
        %1062 = vmatprep.subr.mxu0 0.0
        %1063 = vmatpush1.msra.mxu0 %v1048
        %1064 = vmatprep.subr.mxu0 0.0
        %1065 = vmatpush1.msra.mxu0 0.0
        %1066 = vmatprep.subr.mxu0 0.0
        %1067 = vmatpush1.msra.mxu0 0.0
        %1068 = vmatprep.subr.mxu0 0.0
        %1069 = vmatpush1.msra.mxu0 0.0
        %1070 = vmatprep.subr.mxu0 0.0
        %1071 = vmatpush1.msra.mxu0 0.0
        %1072 = vmatprep.subr.mxu0 0.0
        %1073 = vmatpush1.msra.mxu0 0.0
        %1074 = vmatprep.subr.mxu0 0.0
        %1075 = vmatpush1.msra.mxu0 0.0
        %1076 = vmatprep.subr.mxu0 0.0
        %1077 = vmatpush1.msra.mxu0 0.0
        %1078 = vmatprep.subr.mxu0 0.0
        %1079 = vmatpush1.msra.mxu0 0.0
        %1080 = vmatprep.subr.mxu0 0.0
        %1081 = vmatpush1.msra.mxu0 0.0
        %1082 = vmatprep.subr.mxu0 0.0
        %1083 = vmatpush1.msra.mxu0 0.0
        %1084 = vmatprep.subr.mxu0 0.0
        %1085 = vmatpush1.msra.mxu0 0.0
        %1086 = vmatprep.subr.mxu0 0.0
        %1087 = vmatpush1.msra.mxu0 0.0
        %1088 = vmatprep.subr.mxu0 0.0
        %1089 = vmatpush1.msra.mxu0 0.0
        %1090 = vmatprep.subr.mxu0 0.0
        %1091 = vmatpush1.msra.mxu0 0.0
        %1092 = vmatprep.subr.mxu0 0.0
        %1093 = vmatpush1.msra.mxu0 0.0
        %1094 = vmatprep.subr.mxu0 0.0
        %1095 = vmatpush1.msra.mxu0 0.0
        %1096 = vmatprep.subr.mxu0 0.0
        %1097 = vmatpush1.msra.mxu0 0.0
        %1098 = vmatprep.subr.mxu0 0.0
        %1099 = vmatpush1.msra.mxu0 0.0
        %1100 = vmatprep.subr.mxu0 0.0
        %1101 = vmatpush1.msra.mxu0 0.0
        %1102 = vmatprep.subr.mxu0 0.0
        %1103 = vmatpush1.msra.mxu0 0.0
        %1104 = vmatprep.subr.mxu0 0.0
        %1105 = vmatpush1.msra.mxu0 0.0
        %1106 = vmatprep.subr.mxu0 0.0
        %1107 = vmatpush1.msra.mxu0 0.0
        %1108 = vmatprep.subr.mxu0 0.0
        %1109 = vmatpush1.msra.mxu0 0.0
        %1110 = vmatprep.subr.mxu0 0.0
        %1111 = vmatpush1.msra.mxu0 0.0
        %1112 = vmatprep.subr.mxu0 0.0
        %1113 = vmatpush1.msra.mxu0 0.0
        %1114 = vmatprep.subr.mxu0 0.0
        %1115 = vmatpush1.msra.mxu0 0.0
        %1116 = vmatprep.subr.mxu0 0.0
        %1117 = vmatpush1.msra.mxu0 0.0
        %1118 = vmatprep.subr.mxu0 0.0
        %1119 = vmatpush1.msra.mxu0 0.0
        %1120 = vmatprep.mubr.f32.mxu0 0.0
        %1121 = vmatmul.mubr.f32.gmra.mrb[0].mxu0 %v965
        %v1122 = vpop.f32.mrb[0].mxu0
        %v1123 = vadd.f32 %v1054, %v1122
        %v1124 = vpop.f32.mrb[0].mxu0
        %1125 = vmatprep.mubr.f32.mxu0 0.0
        %1126 = vmatmul.mubr.f32.gmra.mrb[0].mxu0 %v968
        %v1127 = vpop.f32.mrb[0].mxu0
        %v1128 = vadd.f32 %v1054, %v1127
        %v1129 = vpop.f32.mrb[0].mxu0
        %1130 = vdwg.mxu0
        %v1131 = vld [vmem:[%s10] sm:$0xff]
        %v1132 = vld [vmem:[%s10 + $0x8] sm:$0xff]
        %v1133 = vld [vmem:[%s10 + $0x10] sm:$0xff]
        %v1134 = vld [vmem:[%s10 + $0x18] sm:$0xff]
        %v1135 = vld [vmem:[%s11] sm:$0x1]
        %v1137 = vlaneseq
        %v1138 = vshrl.u32 %v1137, 7
        %v1139 = vsub.s32 0, %v1138
        %v1140 = vrot.slane %v1135, %v1139
        %1142 = vmatprep.subr.mxu0 0.0
        %1143 = vmatpush1.msra.mxu0 %v1131
        %1144 = vmatprep.subr.mxu0 0.0
        %1145 = vmatpush1.msra.mxu0 %v1132
        %1146 = vmatprep.subr.mxu0 0.0
        %1147 = vmatpush1.msra.mxu0 %v1133
        %1148 = vmatprep.subr.mxu0 0.0
        %1149 = vmatpush1.msra.mxu0 %v1134
        %1150 = vmatprep.subr.mxu0 0.0
        %1151 = vmatpush1.msra.mxu0 0.0
        %1152 = vmatprep.subr.mxu0 0.0
        %1153 = vmatpush1.msra.mxu0 0.0
        %1154 = vmatprep.subr.mxu0 0.0
        %1155 = vmatpush1.msra.mxu0 0.0
        %1156 = vmatprep.subr.mxu0 0.0
        %1157 = vmatpush1.msra.mxu0 0.0
        %1158 = vmatprep.subr.mxu0 0.0
        %1159 = vmatpush1.msra.mxu0 0.0
        %1160 = vmatprep.subr.mxu0 0.0
        %1161 = vmatpush1.msra.mxu0 0.0
        %1162 = vmatprep.subr.mxu0 0.0
        %1163 = vmatpush1.msra.mxu0 0.0
        %1164 = vmatprep.subr.mxu0 0.0
        %1165 = vmatpush1.msra.mxu0 0.0
        %1166 = vmatprep.subr.mxu0 0.0
        %1167 = vmatpush1.msra.mxu0 0.0
        %1168 = vmatprep.subr.mxu0 0.0
        %1169 = vmatpush1.msra.mxu0 0.0
        %1170 = vmatprep.subr.mxu0 0.0
        %1171 = vmatpush1.msra.mxu0 0.0
        %1172 = vmatprep.subr.mxu0 0.0
        %1173 = vmatpush1.msra.mxu0 0.0
        %1174 = vmatprep.subr.mxu0 0.0
        %1175 = vmatpush1.msra.mxu0 0.0
        %1176 = vmatprep.subr.mxu0 0.0
        %1177 = vmatpush1.msra.mxu0 0.0
        %1178 = vmatprep.subr.mxu0 0.0
        %1179 = vmatpush1.msra.mxu0 0.0
        %1180 = vmatprep.subr.mxu0 0.0
        %1181 = vmatpush1.msra.mxu0 0.0
        %1182 = vmatprep.subr.mxu0 0.0
        %1183 = vmatpush1.msra.mxu0 0.0
        %1184 = vmatprep.subr.mxu0 0.0
        %1185 = vmatpush1.msra.mxu0 0.0
        %1186 = vmatprep.subr.mxu0 0.0
        %1187 = vmatpush1.msra.mxu0 0.0
        %1188 = vmatprep.subr.mxu0 0.0
        %1189 = vmatpush1.msra.mxu0 0.0
        %1190 = vmatprep.subr.mxu0 0.0
        %1191 = vmatpush1.msra.mxu0 0.0
        %1192 = vmatprep.subr.mxu0 0.0
        %1193 = vmatpush1.msra.mxu0 0.0
        %1194 = vmatprep.subr.mxu0 0.0
        %1195 = vmatpush1.msra.mxu0 0.0
        %1196 = vmatprep.subr.mxu0 0.0
        %1197 = vmatpush1.msra.mxu0 0.0
        %1198 = vmatprep.subr.mxu0 0.0
        %1199 = vmatpush1.msra.mxu0 0.0
        %1200 = vmatprep.subr.mxu0 0.0
        %1201 = vmatpush1.msra.mxu0 0.0
        %1202 = vmatprep.subr.mxu0 0.0
        %1203 = vmatpush1.msra.mxu0 0.0
        %1204 = vmatprep.subr.mxu0 0.0
        %1205 = vmatpush1.msra.mxu0 0.0
        %1206 = vmatprep.mubr.f32.mxu0 0.0
        %1207 = vmatmul.mubr.f32.gmra.mrb[0].mxu0 %v965
        %v1208 = vpop.f32.mrb[0].mxu0
        %v1209 = vadd.f32 %v1140, %v1208
        %v1210 = vpop.f32.mrb[0].mxu0
        %1211 = vmatprep.mubr.f32.mxu0 0.0
        %1212 = vmatmul.mubr.f32.gmra.mrb[0].mxu0 %v968
        %v1213 = vpop.f32.mrb[0].mxu0
        %v1214 = vadd.f32 %v1140, %v1213
        %v1215 = vpop.f32.mrb[0].mxu0
        %1216 = vdwg.mxu0
        %v1217 = vmul.f32 %v1037, 0.35355338
        %v1218 = vmul.f32 %v1042, 0.35355338
        %vm1219 = vcmask 64512
        %v1221 = vsel %vm1219, %v1217, 0
        %v1224 = vsel %vm1219, %v1123, 0
        %1226 = vmatprep.subr.mxu0 0.0
        %1227 = vmatpush1.xpose.msra.mxu0 %v1224
        %1228 = vmatprep.subr.mxu0 0.0
        %1229 = vmatpush1.xpose.msra.mxu0 0.0
        %1230 = vmatprep.subr.mxu0 0.0
        %1231 = vmatpush1.xpose.msra.mxu0 0.0
        %1232 = vmatprep.subr.mxu0 0.0
        %1233 = vmatpush1.xpose.msra.mxu0 0.0
        %1234 = vmatprep.subr.mxu0 0.0
        %1235 = vmatpush1.xpose.msra.mxu0 0.0
        %1236 = vmatprep.subr.mxu0 0.0
        %1237 = vmatpush1.xpose.msra.mxu0 0.0
        %1238 = vmatprep.subr.mxu0 0.0
        %1239 = vmatpush1.xpose.msra.mxu0 0.0
        %1240 = vmatprep.subr.mxu0 0.0
        %1241 = vmatpush1.xpose.msra.mxu0 0.0
        %1242 = vmatprep.subr.mxu0 0.0
        %1243 = vmatpush1.xpose.msra.mxu0 0.0
        %1244 = vmatprep.subr.mxu0 0.0
        %1245 = vmatpush1.xpose.msra.mxu0 0.0
        %1246 = vmatprep.subr.mxu0 0.0
        %1247 = vmatpush1.xpose.msra.mxu0 0.0
        %1248 = vmatprep.subr.mxu0 0.0
        %1249 = vmatpush1.xpose.msra.mxu0 0.0
        %1250 = vmatprep.subr.mxu0 0.0
        %1251 = vmatpush1.xpose.msra.mxu0 0.0
        %1252 = vmatprep.subr.mxu0 0.0
        %1253 = vmatpush1.xpose.msra.mxu0 0.0
        %1254 = vmatprep.subr.mxu0 0.0
        %1255 = vmatpush1.xpose.msra.mxu0 0.0
        %1256 = vmatprep.subr.mxu0 0.0
        %1257 = vmatpush1.xpose.msra.mxu0 0.0
        %1258 = vmatprep.subr.mxu0 0.0
        %1259 = vmatpush1.xpose.msra.mxu0 0.0
        %1260 = vmatprep.subr.mxu0 0.0
        %1261 = vmatpush1.xpose.msra.mxu0 0.0
        %1262 = vmatprep.subr.mxu0 0.0
        %1263 = vmatpush1.xpose.msra.mxu0 0.0
        %1264 = vmatprep.subr.mxu0 0.0
        %1265 = vmatpush1.xpose.msra.mxu0 0.0
        %1266 = vmatprep.subr.mxu0 0.0
        %1267 = vmatpush1.xpose.msra.mxu0 0.0
        %1268 = vmatprep.subr.mxu0 0.0
        %1269 = vmatpush1.xpose.msra.mxu0 0.0
        %1270 = vmatprep.subr.mxu0 0.0
        %1271 = vmatpush1.xpose.msra.mxu0 0.0
        %1272 = vmatprep.subr.mxu0 0.0
        %1273 = vmatpush1.xpose.msra.mxu0 0.0
        %1274 = vmatprep.subr.mxu0 0.0
        %1275 = vmatpush1.xpose.msra.mxu0 0.0
        %1276 = vmatprep.subr.mxu0 0.0
        %1277 = vmatpush1.xpose.msra.mxu0 0.0
        %1278 = vmatprep.subr.mxu0 0.0
        %1279 = vmatpush1.xpose.msra.mxu0 0.0
        %1280 = vmatprep.subr.mxu0 0.0
        %1281 = vmatpush1.xpose.msra.mxu0 0.0
        %1282 = vmatprep.subr.mxu0 0.0
        %1283 = vmatpush1.xpose.msra.mxu0 0.0
        %1284 = vmatprep.subr.mxu0 0.0
        %1285 = vmatpush1.xpose.msra.mxu0 0.0
        %1286 = vmatprep.subr.mxu0 0.0
        %1287 = vmatpush1.xpose.msra.mxu0 0.0
        %1288 = vmatprep.subr.mxu0 0.0
        %1289 = vmatpush1.xpose.msra.mxu0 0.0
        %1290 = vmatprep.mubr.f32.mxu0 0.0
        %1291 = vmatmul.mubr.f32.gmra.mrb[0].mxu0 %v1221
        %v1292 = vpop.f32.mrb[0].mxu0
        %v1293 = vadd.f32 0.0, %v1292
        %v1294 = vpop.f32.mrb[0].mxu0
        %1295 = vdwg.mxu0
        %v1297 = vsel %vm1219, %v1218, 0
        %v1300 = vsel %vm1219, %v1128, 0
        %1302 = vmatprep.subr.mxu0 0.0
        %1303 = vmatpush1.xpose.msra.mxu0 %v1300
        %1304 = vmatprep.subr.mxu0 0.0
        %1305 = vmatpush1.xpose.msra.mxu0 0.0
        %1306 = vmatprep.subr.mxu0 0.0
        %1307 = vmatpush1.xpose.msra.mxu0 0.0
        %1308 = vmatprep.subr.mxu0 0.0
        %1309 = vmatpush1.xpose.msra.mxu0 0.0
        %1310 = vmatprep.subr.mxu0 0.0
        %1311 = vmatpush1.xpose.msra.mxu0 0.0
        %1312 = vmatprep.subr.mxu0 0.0
        %1313 = vmatpush1.xpose.msra.mxu0 0.0
        %1314 = vmatprep.subr.mxu0 0.0
        %1315 = vmatpush1.xpose.msra.mxu0 0.0
        %1316 = vmatprep.subr.mxu0 0.0
        %1317 = vmatpush1.xpose.msra.mxu0 0.0
        %1318 = vmatprep.subr.mxu0 0.0
        %1319 = vmatpush1.xpose.msra.mxu0 0.0
        %1320 = vmatprep.subr.mxu0 0.0
        %1321 = vmatpush1.xpose.msra.mxu0 0.0
        %1322 = vmatprep.subr.mxu0 0.0
        %1323 = vmatpush1.xpose.msra.mxu0 0.0
        %1324 = vmatprep.subr.mxu0 0.0
        %1325 = vmatpush1.xpose.msra.mxu0 0.0
        %1326 = vmatprep.subr.mxu0 0.0
        %1327 = vmatpush1.xpose.msra.mxu0 0.0
        %1328 = vmatprep.subr.mxu0 0.0
        %1329 = vmatpush1.xpose.msra.mxu0 0.0
        %1330 = vmatprep.subr.mxu0 0.0
        %1331 = vmatpush1.xpose.msra.mxu0 0.0
        %1332 = vmatprep.subr.mxu0 0.0
        %1333 = vmatpush1.xpose.msra.mxu0 0.0
        %1334 = vmatprep.subr.mxu0 0.0
        %1335 = vmatpush1.xpose.msra.mxu0 0.0
        %1336 = vmatprep.subr.mxu0 0.0
        %1337 = vmatpush1.xpose.msra.mxu0 0.0
        %1338 = vmatprep.subr.mxu0 0.0
        %1339 = vmatpush1.xpose.msra.mxu0 0.0
        %1340 = vmatprep.subr.mxu0 0.0
        %1341 = vmatpush1.xpose.msra.mxu0 0.0
        %1342 = vmatprep.subr.mxu0 0.0
        %1343 = vmatpush1.xpose.msra.mxu0 0.0
        %1344 = vmatprep.subr.mxu0 0.0
        %1345 = vmatpush1.xpose.msra.mxu0 0.0
        %1346 = vmatprep.subr.mxu0 0.0
        %1347 = vmatpush1.xpose.msra.mxu0 0.0
        %1348 = vmatprep.subr.mxu0 0.0
        %1349 = vmatpush1.xpose.msra.mxu0 0.0
        %1350 = vmatprep.subr.mxu0 0.0
        %1351 = vmatpush1.xpose.msra.mxu0 0.0
        %1352 = vmatprep.subr.mxu0 0.0
        %1353 = vmatpush1.xpose.msra.mxu0 0.0
        %1354 = vmatprep.subr.mxu0 0.0
        %1355 = vmatpush1.xpose.msra.mxu0 0.0
        %1356 = vmatprep.subr.mxu0 0.0
        %1357 = vmatpush1.xpose.msra.mxu0 0.0
        %1358 = vmatprep.subr.mxu0 0.0
        %1359 = vmatpush1.xpose.msra.mxu0 0.0
        %1360 = vmatprep.subr.mxu0 0.0
        %1361 = vmatpush1.xpose.msra.mxu0 0.0
        %1362 = vmatprep.subr.mxu0 0.0
        %1363 = vmatpush1.xpose.msra.mxu0 0.0
        %1364 = vmatprep.subr.mxu0 0.0
        %1365 = vmatpush1.xpose.msra.mxu0 0.0
        %1366 = vmatprep.mubr.f32.mxu0 0.0
        %1367 = vmatmul.mubr.f32.gmra.mrb[0].mxu0 %v1297
        %v1368 = vpop.f32.mrb[0].mxu0
        %v1369 = vadd.f32 0.0, %v1368
        %v1370 = vpop.f32.mrb[0].mxu0
        %1371 = vdwg.mxu0
        %vm1372 = vcmp.eq.f32.partialorder %v946, 0.0
        %vm1373 = vcmp.eq.f32.partialorder %v950, 0.0
        %v1374 = vsel %vm1372, -3.4028235e+38, %v1293
        %v1375 = vsel %vm1373, -3.4028235e+38, %v1369
        %v1376 = vsel %vm1219, %v1374, -inf
        %1377 = vmax.xlane.f32.xlu0 %v1376
        %v1378 = vpop.xlane.xlu0 %1377
        %v1379 = vsel %vm1219, %v1375, -inf
        %1380 = vmax.xlane.f32.xlu0 %v1379
        %v1381 = vpop.xlane.xlu0 %1380
        %v1382 = vsub.f32 %v1374, %v1378
        %v1383 = vsub.f32 %v1375, %v1381
        %v1384 = vmul.f32 %v1382, 1.442695
        %v1385 = vpow.pop %v1384
        %v1386 = vmul.f32 %v1383, 1.442695
        %v1387 = vpow.pop %v1386
        %v1388 = vsel %vm1219, %v1385, 0.0
        %1389 = vadd.xlane.f32.xlu0 %v1388
        %v1390 = vpop.xlane.xlu0 %1389
        %v1391 = vsel %vm1219, %v1387, 0.0
        %1392 = vadd.xlane.f32.xlu0 %v1391
        %v1393 = vpop.xlane.xlu0 %1392
        %v1394 = vrcp.pop %v1390
        %v1395 = vmul.f32 %v1385, %v1394
        %v1396 = vrcp.pop %v1393
        %v1397 = vmul.f32 %v1387, %v1396
        %v1399 = vsel %vm1219, %v1395, 0
        %1401 = vmatprep.subr.mxu0 0.0
        %1402 = vmatpush1.msra.mxu0 %v1209
        %1403 = vmatprep.subr.mxu0 0.0
        %1404 = vmatpush1.msra.mxu0 0.0
        %1405 = vmatprep.subr.mxu0 0.0
        %1406 = vmatpush1.msra.mxu0 0.0
        %1407 = vmatprep.subr.mxu0 0.0
        %1408 = vmatpush1.msra.mxu0 0.0
        %1409 = vmatprep.subr.mxu0 0.0
        %1410 = vmatpush1.msra.mxu0 0.0
        %1411 = vmatprep.subr.mxu0 0.0
        %1412 = vmatpush1.msra.mxu0 0.0
        %1413 = vmatprep.subr.mxu0 0.0
        %1414 = vmatpush1.msra.mxu0 0.0
        %1415 = vmatprep.subr.mxu0 0.0
        %1416 = vmatpush1.msra.mxu0 0.0
        %1417 = vmatprep.subr.mxu0 0.0
        %1418 = vmatpush1.msra.mxu0 0.0
        %1419 = vmatprep.subr.mxu0 0.0
        %1420 = vmatpush1.msra.mxu0 0.0
        %1421 = vmatprep.subr.mxu0 0.0
        %1422 = vmatpush1.msra.mxu0 0.0
        %1423 = vmatprep.subr.mxu0 0.0
        %1424 = vmatpush1.msra.mxu0 0.0
        %1425 = vmatprep.subr.mxu0 0.0
        %1426 = vmatpush1.msra.mxu0 0.0
        %1427 = vmatprep.subr.mxu0 0.0
        %1428 = vmatpush1.msra.mxu0 0.0
        %1429 = vmatprep.subr.mxu0 0.0
        %1430 = vmatpush1.msra.mxu0 0.0
        %1431 = vmatprep.subr.mxu0 0.0
        %1432 = vmatpush1.msra.mxu0 0.0
        %1433 = vmatprep.subr.mxu0 0.0
        %1434 = vmatpush1.msra.mxu0 0.0
        %1435 = vmatprep.subr.mxu0 0.0
        %1436 = vmatpush1.msra.mxu0 0.0
        %1437 = vmatprep.subr.mxu0 0.0
        %1438 = vmatpush1.msra.mxu0 0.0
        %1439 = vmatprep.subr.mxu0 0.0
        %1440 = vmatpush1.msra.mxu0 0.0
        %1441 = vmatprep.subr.mxu0 0.0
        %1442 = vmatpush1.msra.mxu0 0.0
        %1443 = vmatprep.subr.mxu0 0.0
        %1444 = vmatpush1.msra.mxu0 0.0
        %1445 = vmatprep.subr.mxu0 0.0
        %1446 = vmatpush1.msra.mxu0 0.0
        %1447 = vmatprep.subr.mxu0 0.0
        %1448 = vmatpush1.msra.mxu0 0.0
        %1449 = vmatprep.subr.mxu0 0.0
        %1450 = vmatpush1.msra.mxu0 0.0
        %1451 = vmatprep.subr.mxu0 0.0
        %1452 = vmatpush1.msra.mxu0 0.0
        %1453 = vmatprep.subr.mxu0 0.0
        %1454 = vmatpush1.msra.mxu0 0.0
        %1455 = vmatprep.subr.mxu0 0.0
        %1456 = vmatpush1.msra.mxu0 0.0
        %1457 = vmatprep.subr.mxu0 0.0
        %1458 = vmatpush1.msra.mxu0 0.0
        %1459 = vmatprep.subr.mxu0 0.0
        %1460 = vmatpush1.msra.mxu0 0.0
        %1461 = vmatprep.subr.mxu0 0.0
        %1462 = vmatpush1.msra.mxu0 0.0
        %1463 = vmatprep.subr.mxu0 0.0
        %1464 = vmatpush1.msra.mxu0 0.0
        %1465 = vmatprep.mubr.f32.mxu0 0.0
        %1466 = vmatmul.mubr.f32.gmra.mrb[0].mxu0 %v1399
        %v1467 = vpop.f32.mrb[0].mxu0
        %v1468 = vadd.f32 0.0, %v1467
        %v1469 = vpop.f32.mrb[0].mxu0
        %1470 = vdwg.mxu0
        %v1472 = vsel %vm1219, %v1397, 0
        %1474 = vmatprep.subr.mxu0 0.0
        %1475 = vmatpush1.msra.mxu0 %v1214
        %1476 = vmatprep.subr.mxu0 0.0
        %1477 = vmatpush1.msra.mxu0 0.0
        %1478 = vmatprep.subr.mxu0 0.0
        %1479 = vmatpush1.msra.mxu0 0.0
        %1480 = vmatprep.subr.mxu0 0.0
        %1481 = vmatpush1.msra.mxu0 0.0
        %1482 = vmatprep.subr.mxu0 0.0
        %1483 = vmatpush1.msra.mxu0 0.0
        %1484 = vmatprep.subr.mxu0 0.0
        %1485 = vmatpush1.msra.mxu0 0.0
        %1486 = vmatprep.subr.mxu0 0.0
        %1487 = vmatpush1.msra.mxu0 0.0
        %1488 = vmatprep.subr.mxu0 0.0
        %1489 = vmatpush1.msra.mxu0 0.0
        %1490 = vmatprep.subr.mxu0 0.0
        %1491 = vmatpush1.msra.mxu0 0.0
        %1492 = vmatprep.subr.mxu0 0.0
        %1493 = vmatpush1.msra.mxu0 0.0
        %1494 = vmatprep.subr.mxu0 0.0
        %1495 = vmatpush1.msra.mxu0 0.0
        %1496 = vmatprep.subr.mxu0 0.0
        %1497 = vmatpush1.msra.mxu0 0.0
        %1498 = vmatprep.subr.mxu0 0.0
        %1499 = vmatpush1.msra.mxu0 0.0
        %1500 = vmatprep.subr.mxu0 0.0
        %1501 = vmatpush1.msra.mxu0 0.0
        %1502 = vmatprep.subr.mxu0 0.0
        %1503 = vmatpush1.msra.mxu0 0.0
        %1504 = vmatprep.subr.mxu0 0.0
        %1505 = vmatpush1.msra.mxu0 0.0
        %1506 = vmatprep.subr.mxu0 0.0
        %1507 = vmatpush1.msra.mxu0 0.0
        %1508 = vmatprep.subr.mxu0 0.0
        %1509 = vmatpush1.msra.mxu0 0.0
        %1510 = vmatprep.subr.mxu0 0.0
        %1511 = vmatpush1.msra.mxu0 0.0
        %1512 = vmatprep.subr.mxu0 0.0
        %1513 = vmatpush1.msra.mxu0 0.0
        %1514 = vmatprep.subr.mxu0 0.0
        %1515 = vmatpush1.msra.mxu0 0.0
        %1516 = vmatprep.subr.mxu0 0.0
        %1517 = vmatpush1.msra.mxu0 0.0
        %1518 = vmatprep.subr.mxu0 0.0
        %1519 = vmatpush1.msra.mxu0 0.0
        %1520 = vmatprep.subr.mxu0 0.0
        %1521 = vmatpush1.msra.mxu0 0.0
        %1522 = vmatprep.subr.mxu0 0.0
        %1523 = vmatpush1.msra.mxu0 0.0
        %1524 = vmatprep.subr.mxu0 0.0
        %1525 = vmatpush1.msra.mxu0 0.0
        %1526 = vmatprep.subr.mxu0 0.0
        %1527 = vmatpush1.msra.mxu0 0.0
        %1528 = vmatprep.subr.mxu0 0.0
        %1529 = vmatpush1.msra.mxu0 0.0
        %1530 = vmatprep.subr.mxu0 0.0
        %1531 = vmatpush1.msra.mxu0 0.0
        %1532 = vmatprep.subr.mxu0 0.0
        %1533 = vmatpush1.msra.mxu0 0.0
        %1534 = vmatprep.subr.mxu0 0.0
        %1535 = vmatpush1.msra.mxu0 0.0
        %1536 = vmatprep.subr.mxu0 0.0
        %1537 = vmatpush1.msra.mxu0 0.0
        %1538 = vmatprep.mubr.f32.mxu0 0.0
        %1539 = vmatmul.mubr.f32.gmra.mrb[0].mxu0 %v1472
        %v1540 = vpop.f32.mrb[0].mxu0
        %v1541 = vadd.f32 0.0, %v1540
        %v1542 = vpop.f32.mrb[0].mxu0
        %1543 = vdwg.mxu0
        %v1544 = vld [vmem:[%s12] sm:$0xff]
        %s1545 = scalar_lea.vmem %s6, 32
        %v1546 = vld [vmem:[%s1545] sm:$0xff]
        %v1547 = vld [vmem:[%s1545 + $0x8] sm:$0xff]
        %v1548 = vld [vmem:[%s1545 + $0x10] sm:$0xff]
        %v1549 = vld [vmem:[%s1545 + $0x18] sm:$0xff]
        %s1550 = scalar_lea.vmem %s7, 1
        %v1551 = vld [vmem:[%s1550] sm:$0x1]
        %v1553 = vlaneseq
        %v1554 = vshrl.u32 %v1553, 7
        %v1555 = vsub.s32 0, %v1554
        %v1556 = vrot.slane %v1551, %v1555
        %1558 = vmatprep.subr.mxu0 0.0
        %1559 = vmatpush1.msra.mxu0 %v1546
        %1560 = vmatprep.subr.mxu0 0.0
        %1561 = vmatpush1.msra.mxu0 %v1547
        %1562 = vmatprep.subr.mxu0 0.0
        %1563 = vmatpush1.msra.mxu0 %v1548
        %1564 = vmatprep.subr.mxu0 0.0
        %1565 = vmatpush1.msra.mxu0 %v1549
        %1566 = vmatprep.subr.mxu0 0.0
        %1567 = vmatpush1.msra.mxu0 0.0
        %1568 = vmatprep.subr.mxu0 0.0
        %1569 = vmatpush1.msra.mxu0 0.0
        %1570 = vmatprep.subr.mxu0 0.0
        %1571 = vmatpush1.msra.mxu0 0.0
        %1572 = vmatprep.subr.mxu0 0.0
        %1573 = vmatpush1.msra.mxu0 0.0
        %1574 = vmatprep.subr.mxu0 0.0
        %1575 = vmatpush1.msra.mxu0 0.0
        %1576 = vmatprep.subr.mxu0 0.0
        %1577 = vmatpush1.msra.mxu0 0.0
        %1578 = vmatprep.subr.mxu0 0.0
        %1579 = vmatpush1.msra.mxu0 0.0
        %1580 = vmatprep.subr.mxu0 0.0
        %1581 = vmatpush1.msra.mxu0 0.0
        %1582 = vmatprep.subr.mxu0 0.0
        %1583 = vmatpush1.msra.mxu0 0.0
        %1584 = vmatprep.subr.mxu0 0.0
        %1585 = vmatpush1.msra.mxu0 0.0
        %1586 = vmatprep.subr.mxu0 0.0
        %1587 = vmatpush1.msra.mxu0 0.0
        %1588 = vmatprep.subr.mxu0 0.0
        %1589 = vmatpush1.msra.mxu0 0.0
        %1590 = vmatprep.subr.mxu0 0.0
        %1591 = vmatpush1.msra.mxu0 0.0
        %1592 = vmatprep.subr.mxu0 0.0
        %1593 = vmatpush1.msra.mxu0 0.0
        %1594 = vmatprep.subr.mxu0 0.0
        %1595 = vmatpush1.msra.mxu0 0.0
        %1596 = vmatprep.subr.mxu0 0.0
        %1597 = vmatpush1.msra.mxu0 0.0
        %1598 = vmatprep.subr.mxu0 0.0
        %1599 = vmatpush1.msra.mxu0 0.0
        %1600 = vmatprep.subr.mxu0 0.0
        %1601 = vmatpush1.msra.mxu0 0.0
        %1602 = vmatprep.subr.mxu0 0.0
        %1603 = vmatpush1.msra.mxu0 0.0
        %1604 = vmatprep.subr.mxu0 0.0
        %1605 = vmatpush1.msra.mxu0 0.0
        %1606 = vmatprep.subr.mxu0 0.0
        %1607 = vmatpush1.msra.mxu0 0.0
        %1608 = vmatprep.subr.mxu0 0.0
        %1609 = vmatpush1.msra.mxu0 0.0
        %1610 = vmatprep.subr.mxu0 0.0
        %1611 = vmatpush1.msra.mxu0 0.0
        %1612 = vmatprep.subr.mxu0 0.0
        %1613 = vmatpush1.msra.mxu0 0.0
        %1614 = vmatprep.subr.mxu0 0.0
        %1615 = vmatpush1.msra.mxu0 0.0
        %1616 = vmatprep.subr.mxu0 0.0
        %1617 = vmatpush1.msra.mxu0 0.0
        %1618 = vmatprep.subr.mxu0 0.0
        %1619 = vmatpush1.msra.mxu0 0.0
        %1620 = vmatprep.subr.mxu0 0.0
        %1621 = vmatpush1.msra.mxu0 0.0
        %1622 = vmatprep.mubr.f32.mxu0 0.0
        %1623 = vmatmul.mubr.f32.gmra.mrb[0].mxu0 %v965
        %v1624 = vpop.f32.mrb[0].mxu0
        %v1625 = vadd.f32 %v1556, %v1624
        %v1626 = vpop.f32.mrb[0].mxu0
        %1627 = vmatprep.mubr.f32.mxu0 0.0
        %1628 = vmatmul.mubr.f32.gmra.mrb[0].mxu0 %v968
        %v1629 = vpop.f32.mrb[0].mxu0
        %v1630 = vadd.f32 %v1556, %v1629
        %v1631 = vpop.f32.mrb[0].mxu0
        %1632 = vdwg.mxu0
        %s1633 = scalar_lea.vmem %s8, 32
        %v1634 = vld [vmem:[%s1633] sm:$0xff]
        %v1635 = vld [vmem:[%s1633 + $0x8] sm:$0xff]
        %v1636 = vld [vmem:[%s1633 + $0x10] sm:$0xff]
        %v1637 = vld [vmem:[%s1633 + $0x18] sm:$0xff]
        %s1638 = scalar_lea.vmem %s9, 1
        %v1639 = vld [vmem:[%s1638] sm:$0x1]
        %v1641 = vlaneseq
        %v1642 = vshrl.u32 %v1641, 7
        %v1643 = vsub.s32 0, %v1642
        %v1644 = vrot.slane %v1639, %v1643
        %1646 = vmatprep.subr.mxu0 0.0
        %1647 = vmatpush1.msra.mxu0 %v1634
        %1648 = vmatprep.subr.mxu0 0.0
        %1649 = vmatpush1.msra.mxu0 %v1635
        %1650 = vmatprep.subr.mxu0 0.0
        %1651 = vmatpush1.msra.mxu0 %v1636
        %1652 = vmatprep.subr.mxu0 0.0
        %1653 = vmatpush1.msra.mxu0 %v1637
        %1654 = vmatprep.subr.mxu0 0.0
        %1655 = vmatpush1.msra.mxu0 0.0
        %1656 = vmatprep.subr.mxu0 0.0
        %1657 = vmatpush1.msra.mxu0 0.0
        %1658 = vmatprep.subr.mxu0 0.0
        %1659 = vmatpush1.msra.mxu0 0.0
        %1660 = vmatprep.subr.mxu0 0.0
        %1661 = vmatpush1.msra.mxu0 0.0
        %1662 = vmatprep.subr.mxu0 0.0
        %1663 = vmatpush1.msra.mxu0 0.0
        %1664 = vmatprep.subr.mxu0 0.0
        %1665 = vmatpush1.msra.mxu0 0.0
        %1666 = vmatprep.subr.mxu0 0.0
        %1667 = vmatpush1.msra.mxu0 0.0
        %1668 = vmatprep.subr.mxu0 0.0
        %1669 = vmatpush1.msra.mxu0 0.0
        %1670 = vmatprep.subr.mxu0 0.0
        %1671 = vmatpush1.msra.mxu0 0.0
        %1672 = vmatprep.subr.mxu0 0.0
        %1673 = vmatpush1.msra.mxu0 0.0
        %1674 = vmatprep.subr.mxu0 0.0
        %1675 = vmatpush1.msra.mxu0 0.0
        %1676 = vmatprep.subr.mxu0 0.0
        %1677 = vmatpush1.msra.mxu0 0.0
        %1678 = vmatprep.subr.mxu0 0.0
        %1679 = vmatpush1.msra.mxu0 0.0
        %1680 = vmatprep.subr.mxu0 0.0
        %1681 = vmatpush1.msra.mxu0 0.0
        %1682 = vmatprep.subr.mxu0 0.0
        %1683 = vmatpush1.msra.mxu0 0.0
        %1684 = vmatprep.subr.mxu0 0.0
        %1685 = vmatpush1.msra.mxu0 0.0
        %1686 = vmatprep.subr.mxu0 0.0
        %1687 = vmatpush1.msra.mxu0 0.0
        %1688 = vmatprep.subr.mxu0 0.0
        %1689 = vmatpush1.msra.mxu0 0.0
        %1690 = vmatprep.subr.mxu0 0.0
        %1691 = vmatpush1.msra.mxu0 0.0
        %1692 = vmatprep.subr.mxu0 0.0
        %1693 = vmatpush1.msra.mxu0 0.0
        %1694 = vmatprep.subr.mxu0 0.0
        %1695 = vmatpush1.msra.mxu0 0.0
        %1696 = vmatprep.subr.mxu0 0.0
        %1697 = vmatpush1.msra.mxu0 0.0
        %1698 = vmatprep.subr.mxu0 0.0
        %1699 = vmatpush1.msra.mxu0 0.0
        %1700 = vmatprep.subr.mxu0 0.0
        %1701 = vmatpush1.msra.mxu0 0.0
        %1702 = vmatprep.subr.mxu0 0.0
        %1703 = vmatpush1.msra.mxu0 0.0
        %1704 = vmatprep.subr.mxu0 0.0
        %1705 = vmatpush1.msra.mxu0 0.0
        %1706 = vmatprep.subr.mxu0 0.0
        %1707 = vmatpush1.msra.mxu0 0.0
        %1708 = vmatprep.subr.mxu0 0.0
        %1709 = vmatpush1.msra.mxu0 0.0
        %1710 = vmatprep.mubr.f32.mxu0 0.0
        %1711 = vmatmul.mubr.f32.gmra.mrb[0].mxu0 %v965
        %v1712 = vpop.f32.mrb[0].mxu0
        %v1713 = vadd.f32 %v1644, %v1712
        %v1714 = vpop.f32.mrb[0].mxu0
        %1715 = vmatprep.mubr.f32.mxu0 0.0
        %1716 = vmatmul.mubr.f32.gmra.mrb[0].mxu0 %v968
        %v1717 = vpop.f32.mrb[0].mxu0
        %v1718 = vadd.f32 %v1644, %v1717
        %v1719 = vpop.f32.mrb[0].mxu0
        %1720 = vdwg.mxu0
        %s1721 = scalar_lea.vmem %s10, 32
        %v1722 = vld [vmem:[%s1721] sm:$0xff]
        %v1723 = vld [vmem:[%s1721 + $0x8] sm:$0xff]
        %v1724 = vld [vmem:[%s1721 + $0x10] sm:$0xff]
        %v1725 = vld [vmem:[%s1721 + $0x18] sm:$0xff]
        %s1726 = scalar_lea.vmem %s11, 1
        %v1727 = vld [vmem:[%s1726] sm:$0x1]
        %v1729 = vlaneseq
        %v1730 = vshrl.u32 %v1729, 7
        %v1731 = vsub.s32 0, %v1730
        %v1732 = vrot.slane %v1727, %v1731
        %1734 = vmatprep.subr.mxu0 0.0
        %1735 = vmatpush1.msra.mxu0 %v1722
        %1736 = vmatprep.subr.mxu0 0.0
        %1737 = vmatpush1.msra.mxu0 %v1723
        %1738 = vmatprep.subr.mxu0 0.0
        %1739 = vmatpush1.msra.mxu0 %v1724
        %1740 = vmatprep.subr.mxu0 0.0
        %1741 = vmatpush1.msra.mxu0 %v1725
        %1742 = vmatprep.subr.mxu0 0.0
        %1743 = vmatpush1.msra.mxu0 0.0
        %1744 = vmatprep.subr.mxu0 0.0
        %1745 = vmatpush1.msra.mxu0 0.0
        %1746 = vmatprep.subr.mxu0 0.0
        %1747 = vmatpush1.msra.mxu0 0.0
        %1748 = vmatprep.subr.mxu0 0.0
        %1749 = vmatpush1.msra.mxu0 0.0
        %1750 = vmatprep.subr.mxu0 0.0
        %1751 = vmatpush1.msra.mxu0 0.0
        %1752 = vmatprep.subr.mxu0 0.0
        %1753 = vmatpush1.msra.mxu0 0.0
        %1754 = vmatprep.subr.mxu0 0.0
        %1755 = vmatpush1.msra.mxu0 0.0
        %1756 = vmatprep.subr.mxu0 0.0
        %1757 = vmatpush1.msra.mxu0 0.0
        %1758 = vmatprep.subr.mxu0 0.0
        %1759 = vmatpush1.msra.mxu0 0.0
        %1760 = vmatprep.subr.mxu0 0.0
        %1761 = vmatpush1.msra.mxu0 0.0
        %1762 = vmatprep.subr.mxu0 0.0
        %1763 = vmatpush1.msra.mxu0 0.0
        %1764 = vmatprep.subr.mxu0 0.0
        %1765 = vmatpush1.msra.mxu0 0.0
        %1766 = vmatprep.subr.mxu0 0.0
        %1767 = vmatpush1.msra.mxu0 0.0
        %1768 = vmatprep.subr.mxu0 0.0
        %1769 = vmatpush1.msra.mxu0 0.0
        %1770 = vmatprep.subr.mxu0 0.0
        %1771 = vmatpush1.msra.mxu0 0.0
        %1772 = vmatprep.subr.mxu0 0.0
        %1773 = vmatpush1.msra.mxu0 0.0
        %1774 = vmatprep.subr.mxu0 0.0
        %1775 = vmatpush1.msra.mxu0 0.0
        %1776 = vmatprep.subr.mxu0 0.0
        %1777 = vmatpush1.msra.mxu0 0.0
        %1778 = vmatprep.subr.mxu0 0.0
        %1779 = vmatpush1.msra.mxu0 0.0
        %1780 = vmatprep.subr.mxu0 0.0
        %1781 = vmatpush1.msra.mxu0 0.0
        %1782 = vmatprep.subr.mxu0 0.0
        %1783 = vmatpush1.msra.mxu0 0.0
        %1784 = vmatprep.subr.mxu0 0.0
        %1785 = vmatpush1.msra.mxu0 0.0
        %1786 = vmatprep.subr.mxu0 0.0
        %1787 = vmatpush1.msra.mxu0 0.0
        %1788 = vmatprep.subr.mxu0 0.0
        %1789 = vmatpush1.msra.mxu0 0.0
        %1790 = vmatprep.subr.mxu0 0.0
        %1791 = vmatpush1.msra.mxu0 0.0
        %1792 = vmatprep.subr.mxu0 0.0
        %1793 = vmatpush1.msra.mxu0 0.0
        %1794 = vmatprep.subr.mxu0 0.0
        %1795 = vmatpush1.msra.mxu0 0.0
        %1796 = vmatprep.subr.mxu0 0.0
        %1797 = vmatpush1.msra.mxu0 0.0
        %1798 = vmatprep.mubr.f32.mxu0 0.0
        %1799 = vmatmul.mubr.f32.gmra.mrb[0].mxu0 %v965
        %v1800 = vpop.f32.mrb[0].mxu0
        %v1801 = vadd.f32 %v1732, %v1800
        %v1802 = vpop.f32.mrb[0].mxu0
        %1803 = vmatprep.mubr.f32.mxu0 0.0
        %1804 = vmatmul.mubr.f32.gmra.mrb[0].mxu0 %v968
        %v1805 = vpop.f32.mrb[0].mxu0
        %v1806 = vadd.f32 %v1732, %v1805
        %v1807 = vpop.f32.mrb[0].mxu0
        %1808 = vdwg.mxu0
        %v1809 = vmul.f32 %v1625, 0.35355338
        %v1810 = vmul.f32 %v1630, 0.35355338
        %v1812 = vsel %vm1219, %v1809, 0
        %v1815 = vsel %vm1219, %v1713, 0
        %1817 = vmatprep.subr.mxu0 0.0
        %1818 = vmatpush1.xpose.msra.mxu0 %v1815
        %1819 = vmatprep.subr.mxu0 0.0
        %1820 = vmatpush1.xpose.msra.mxu0 0.0
        %1821 = vmatprep.subr.mxu0 0.0
        %1822 = vmatpush1.xpose.msra.mxu0 0.0
        %1823 = vmatprep.subr.mxu0 0.0
        %1824 = vmatpush1.xpose.msra.mxu0 0.0
        %1825 = vmatprep.subr.mxu0 0.0
        %1826 = vmatpush1.xpose.msra.mxu0 0.0
        %1827 = vmatprep.subr.mxu0 0.0
        %1828 = vmatpush1.xpose.msra.mxu0 0.0
        %1829 = vmatprep.subr.mxu0 0.0
        %1830 = vmatpush1.xpose.msra.mxu0 0.0
        %1831 = vmatprep.subr.mxu0 0.0
        %1832 = vmatpush1.xpose.msra.mxu0 0.0
        %1833 = vmatprep.subr.mxu0 0.0
        %1834 = vmatpush1.xpose.msra.mxu0 0.0
        %1835 = vmatprep.subr.mxu0 0.0
        %1836 = vmatpush1.xpose.msra.mxu0 0.0
        %1837 = vmatprep.subr.mxu0 0.0
        %1838 = vmatpush1.xpose.msra.mxu0 0.0
        %1839 = vmatprep.subr.mxu0 0.0
        %1840 = vmatpush1.xpose.msra.mxu0 0.0
        %1841 = vmatprep.subr.mxu0 0.0
        %1842 = vmatpush1.xpose.msra.mxu0 0.0
        %1843 = vmatprep.subr.mxu0 0.0
        %1844 = vmatpush1.xpose.msra.mxu0 0.0
        %1845 = vmatprep.subr.mxu0 0.0
        %1846 = vmatpush1.xpose.msra.mxu0 0.0
        %1847 = vmatprep.subr.mxu0 0.0
        %1848 = vmatpush1.xpose.msra.mxu0 0.0
        %1849 = vmatprep.subr.mxu0 0.0
        %1850 = vmatpush1.xpose.msra.mxu0 0.0
        %1851 = vmatprep.subr.mxu0 0.0
        %1852 = vmatpush1.xpose.msra.mxu0 0.0
        %1853 = vmatprep.subr.mxu0 0.0
        %1854 = vmatpush1.xpose.msra.mxu0 0.0
        %1855 = vmatprep.subr.mxu0 0.0
        %1856 = vmatpush1.xpose.msra.mxu0 0.0
        %1857 = vmatprep.subr.mxu0 0.0
        %1858 = vmatpush1.xpose.msra.mxu0 0.0
        %1859 = vmatprep.subr.mxu0 0.0
        %1860 = vmatpush1.xpose.msra.mxu0 0.0
        %1861 = vmatprep.subr.mxu0 0.0
        %1862 = vmatpush1.xpose.msra.mxu0 0.0
        %1863 = vmatprep.subr.mxu0 0.0
        %1864 = vmatpush1.xpose.msra.mxu0 0.0
        %1865 = vmatprep.subr.mxu0 0.0
        %1866 = vmatpush1.xpose.msra.mxu0 0.0
        %1867 = vmatprep.subr.mxu0 0.0
        %1868 = vmatpush1.xpose.msra.mxu0 0.0
        %1869 = vmatprep.subr.mxu0 0.0
        %1870 = vmatpush1.xpose.msra.mxu0 0.0
        %1871 = vmatprep.subr.mxu0 0.0
        %1872 = vmatpush1.xpose.msra.mxu0 0.0
        %1873 = vmatprep.subr.mxu0 0.0
        %1874 = vmatpush1.xpose.msra.mxu0 0.0
        %1875 = vmatprep.subr.mxu0 0.0
        %1876 = vmatpush1.xpose.msra.mxu0 0.0
        %1877 = vmatprep.subr.mxu0 0.0
        %1878 = vmatpush1.xpose.msra.mxu0 0.0
        %1879 = vmatprep.subr.mxu0 0.0
        %1880 = vmatpush1.xpose.msra.mxu0 0.0
        %1881 = vmatprep.mubr.f32.mxu0 0.0
        %1882 = vmatmul.mubr.f32.gmra.mrb[0].mxu0 %v1812
        %v1883 = vpop.f32.mrb[0].mxu0
        %v1884 = vadd.f32 0.0, %v1883
        %v1885 = vpop.f32.mrb[0].mxu0
        %1886 = vdwg.mxu0
        %v1888 = vsel %vm1219, %v1810, 0
        %v1891 = vsel %vm1219, %v1718, 0
        %1893 = vmatprep.subr.mxu0 0.0
        %1894 = vmatpush1.xpose.msra.mxu0 %v1891
        %1895 = vmatprep.subr.mxu0 0.0
        %1896 = vmatpush1.xpose.msra.mxu0 0.0
        %1897 = vmatprep.subr.mxu0 0.0
        %1898 = vmatpush1.xpose.msra.mxu0 0.0
        %1899 = vmatprep.subr.mxu0 0.0
        %1900 = vmatpush1.xpose.msra.mxu0 0.0
        %1901 = vmatprep.subr.mxu0 0.0
        %1902 = vmatpush1.xpose.msra.mxu0 0.0
        %1903 = vmatprep.subr.mxu0 0.0
        %1904 = vmatpush1.xpose.msra.mxu0 0.0
        %1905 = vmatprep.subr.mxu0 0.0
        %1906 = vmatpush1.xpose.msra.mxu0 0.0
        %1907 = vmatprep.subr.mxu0 0.0
        %1908 = vmatpush1.xpose.msra.mxu0 0.0
        %1909 = vmatprep.subr.mxu0 0.0
        %1910 = vmatpush1.xpose.msra.mxu0 0.0
        %1911 = vmatprep.subr.mxu0 0.0
        %1912 = vmatpush1.xpose.msra.mxu0 0.0
        %1913 = vmatprep.subr.mxu0 0.0
        %1914 = vmatpush1.xpose.msra.mxu0 0.0
        %1915 = vmatprep.subr.mxu0 0.0
        %1916 = vmatpush1.xpose.msra.mxu0 0.0
        %1917 = vmatprep.subr.mxu0 0.0
        %1918 = vmatpush1.xpose.msra.mxu0 0.0
        %1919 = vmatprep.subr.mxu0 0.0
        %1920 = vmatpush1.xpose.msra.mxu0 0.0
        %1921 = vmatprep.subr.mxu0 0.0
        %1922 = vmatpush1.xpose.msra.mxu0 0.0
        %1923 = vmatprep.subr.mxu0 0.0
        %1924 = vmatpush1.xpose.msra.mxu0 0.0
        %1925 = vmatprep.subr.mxu0 0.0
        %1926 = vmatpush1.xpose.msra.mxu0 0.0
        %1927 = vmatprep.subr.mxu0 0.0
        %1928 = vmatpush1.xpose.msra.mxu0 0.0
        %1929 = vmatprep.subr.mxu0 0.0
        %1930 = vmatpush1.xpose.msra.mxu0 0.0
        %1931 = vmatprep.subr.mxu0 0.0
        %1932 = vmatpush1.xpose.msra.mxu0 0.0
        %1933 = vmatprep.subr.mxu0 0.0
        %1934 = vmatpush1.xpose.msra.mxu0 0.0
        %1935 = vmatprep.subr.mxu0 0.0
        %1936 = vmatpush1.xpose.msra.mxu0 0.0
        %1937 = vmatprep.subr.mxu0 0.0
        %1938 = vmatpush1.xpose.msra.mxu0 0.0
        %1939 = vmatprep.subr.mxu0 0.0
        %1940 = vmatpush1.xpose.msra.mxu0 0.0
        %1941 = vmatprep.subr.mxu0 0.0
        %1942 = vmatpush1.xpose.msra.mxu0 0.0
        %1943 = vmatprep.subr.mxu0 0.0
        %1944 = vmatpush1.xpose.msra.mxu0 0.0
        %1945 = vmatprep.subr.mxu0 0.0
        %1946 = vmatpush1.xpose.msra.mxu0 0.0
        %1947 = vmatprep.subr.mxu0 0.0
        %1948 = vmatpush1.xpose.msra.mxu0 0.0
        %1949 = vmatprep.subr.mxu0 0.0
        %1950 = vmatpush1.xpose.msra.mxu0 0.0
        %1951 = vmatprep.subr.mxu0 0.0
        %1952 = vmatpush1.xpose.msra.mxu0 0.0
        %1953 = vmatprep.subr.mxu0 0.0
        %1954 = vmatpush1.xpose.msra.mxu0 0.0
        %1955 = vmatprep.subr.mxu0 0.0
        %1956 = vmatpush1.xpose.msra.mxu0 0.0
        %1957 = vmatprep.mubr.f32.mxu0 0.0
        %1958 = vmatmul.mubr.f32.gmra.mrb[0].mxu0 %v1888
        %v1959 = vpop.f32.mrb[0].mxu0
        %v1960 = vadd.f32 0.0, %v1959
        %v1961 = vpop.f32.mrb[0].mxu0
        %1962 = vdwg.mxu0
        %v1963 = vsel %vm1372, -3.4028235e+38, %v1884
        %v1964 = vsel %vm1373, -3.4028235e+38, %v1960
        %v1965 = vsel %vm1219, %v1963, -inf
        %1966 = vmax.xlane.f32.xlu0 %v1965
        %v1967 = vpop.xlane.xlu0 %1966
        %v1968 = vsel %vm1219, %v1964, -inf
        %1969 = vmax.xlane.f32.xlu0 %v1968
        %v1970 = vpop.xlane.xlu0 %1969
        %v1971 = vsub.f32 %v1963, %v1967
        %v1972 = vsub.f32 %v1964, %v1970
        %v1973 = vmul.f32 %v1971, 1.442695
        %v1974 = vpow.pop %v1973
        %v1975 = vmul.f32 %v1972, 1.442695
        %v1976 = vpow.pop %v1975
        %v1977 = vsel %vm1219, %v1974, 0.0
        %1978 = vadd.xlane.f32.xlu0 %v1977
        %v1979 = vpop.xlane.xlu0 %1978
        %v1980 = vsel %vm1219, %v1976, 0.0
        %1981 = vadd.xlane.f32.xlu0 %v1980
        %v1982 = vpop.xlane.xlu0 %1981
        %v1983 = vrcp.pop %v1979
        %v1984 = vmul.f32 %v1974, %v1983
        %v1985 = vrcp.pop %v1982
        %v1986 = vmul.f32 %v1976, %v1985
        %v1988 = vsel %vm1219, %v1984, 0
        %1990 = vmatprep.subr.mxu0 0.0
        %1991 = vmatpush1.msra.mxu0 %v1801
        %1992 = vmatprep.subr.mxu0 0.0
        %1993 = vmatpush1.msra.mxu0 0.0
        %1994 = vmatprep.subr.mxu0 0.0
        %1995 = vmatpush1.msra.mxu0 0.0
        %1996 = vmatprep.subr.mxu0 0.0
        %1997 = vmatpush1.msra.mxu0 0.0
        %1998 = vmatprep.subr.mxu0 0.0
        %1999 = vmatpush1.msra.mxu0 0.0
        %2000 = vmatprep.subr.mxu0 0.0
        %2001 = vmatpush1.msra.mxu0 0.0
        %2002 = vmatprep.subr.mxu0 0.0
        %2003 = vmatpush1.msra.mxu0 0.0
        %2004 = vmatprep.subr.mxu0 0.0
        %2005 = vmatpush1.msra.mxu0 0.0
        %2006 = vmatprep.subr.mxu0 0.0
        %2007 = vmatpush1.msra.mxu0 0.0
        %2008 = vmatprep.subr.mxu0 0.0
        %2009 = vmatpush1.msra.mxu0 0.0
        %2010 = vmatprep.subr.mxu0 0.0
        %2011 = vmatpush1.msra.mxu0 0.0
        %2012 = vmatprep.subr.mxu0 0.0
        %2013 = vmatpush1.msra.mxu0 0.0
        %2014 = vmatprep.subr.mxu0 0.0
        %2015 = vmatpush1.msra.mxu0 0.0
        %2016 = vmatprep.subr.mxu0 0.0
        %2017 = vmatpush1.msra.mxu0 0.0
        %2018 = vmatprep.subr.mxu0 0.0
        %2019 = vmatpush1.msra.mxu0 0.0
        %2020 = vmatprep.subr.mxu0 0.0
        %2021 = vmatpush1.msra.mxu0 0.0
        %2022 = vmatprep.subr.mxu0 0.0
        %2023 = vmatpush1.msra.mxu0 0.0
        %2024 = vmatprep.subr.mxu0 0.0
        %2025 = vmatpush1.msra.mxu0 0.0
        %2026 = vmatprep.subr.mxu0 0.0
        %2027 = vmatpush1.msra.mxu0 0.0
        %2028 = vmatprep.subr.mxu0 0.0
        %2029 = vmatpush1.msra.mxu0 0.0
        %2030 = vmatprep.subr.mxu0 0.0
        %2031 = vmatpush1.msra.mxu0 0.0
        %2032 = vmatprep.subr.mxu0 0.0
        %2033 = vmatpush1.msra.mxu0 0.0
        %2034 = vmatprep.subr.mxu0 0.0
        %2035 = vmatpush1.msra.mxu0 0.0
        %2036 = vmatprep.subr.mxu0 0.0
        %2037 = vmatpush1.msra.mxu0 0.0
        %2038 = vmatprep.subr.mxu0 0.0
        %2039 = vmatpush1.msra.mxu0 0.0
        %2040 = vmatprep.subr.mxu0 0.0
        %2041 = vmatpush1.msra.mxu0 0.0
        %2042 = vmatprep.subr.mxu0 0.0
        %2043 = vmatpush1.msra.mxu0 0.0
        %2044 = vmatprep.subr.mxu0 0.0
        %2045 = vmatpush1.msra.mxu0 0.0
        %2046 = vmatprep.subr.mxu0 0.0
        %2047 = vmatpush1.msra.mxu0 0.0
        %2048 = vmatprep.subr.mxu0 0.0
        %2049 = vmatpush1.msra.mxu0 0.0
        %2050 = vmatprep.subr.mxu0 0.0
        %2051 = vmatpush1.msra.mxu0 0.0
        %2052 = vmatprep.subr.mxu0 0.0
        %2053 = vmatpush1.msra.mxu0 0.0
        %2054 = vmatprep.mubr.f32.mxu0 0.0
        %2055 = vmatmul.mubr.f32.gmra.mrb[0].mxu0 %v1988
        %v2056 = vpop.f32.mrb[0].mxu0
        %v2057 = vadd.f32 0.0, %v2056
        %v2058 = vpop.f32.mrb[0].mxu0
        %2059 = vdwg.mxu0
        %v2061 = vsel %vm1219, %v1986, 0
        %2063 = vmatprep.subr.mxu0 0.0
        %2064 = vmatpush1.msra.mxu0 %v1806
        %2065 = vmatprep.subr.mxu0 0.0
        %2066 = vmatpush1.msra.mxu0 0.0
        %2067 = vmatprep.subr.mxu0 0.0
        %2068 = vmatpush1.msra.mxu0 0.0
        %2069 = vmatprep.subr.mxu0 0.0
        %2070 = vmatpush1.msra.mxu0 0.0
        %2071 = vmatprep.subr.mxu0 0.0
        %2072 = vmatpush1.msra.mxu0 0.0
        %2073 = vmatprep.subr.mxu0 0.0
        %2074 = vmatpush1.msra.mxu0 0.0
        %2075 = vmatprep.subr.mxu0 0.0
        %2076 = vmatpush1.msra.mxu0 0.0
        %2077 = vmatprep.subr.mxu0 0.0
        %2078 = vmatpush1.msra.mxu0 0.0
        %2079 = vmatprep.subr.mxu0 0.0
        %2080 = vmatpush1.msra.mxu0 0.0
        %2081 = vmatprep.subr.mxu0 0.0
        %2082 = vmatpush1.msra.mxu0 0.0
        %2083 = vmatprep.subr.mxu0 0.0
        %2084 = vmatpush1.msra.mxu0 0.0
        %2085 = vmatprep.subr.mxu0 0.0
        %2086 = vmatpush1.msra.mxu0 0.0
        %2087 = vmatprep.subr.mxu0 0.0
        %2088 = vmatpush1.msra.mxu0 0.0
        %2089 = vmatprep.subr.mxu0 0.0
        %2090 = vmatpush1.msra.mxu0 0.0
        %2091 = vmatprep.subr.mxu0 0.0
        %2092 = vmatpush1.msra.mxu0 0.0
        %2093 = vmatprep.subr.mxu0 0.0
        %2094 = vmatpush1.msra.mxu0 0.0
        %2095 = vmatprep.subr.mxu0 0.0
        %2096 = vmatpush1.msra.mxu0 0.0
        %2097 = vmatprep.subr.mxu0 0.0
        %2098 = vmatpush1.msra.mxu0 0.0
        %2099 = vmatprep.subr.mxu0 0.0
        %2100 = vmatpush1.msra.mxu0 0.0
        %2101 = vmatprep.subr.mxu0 0.0
        %2102 = vmatpush1.msra.mxu0 0.0
        %2103 = vmatprep.subr.mxu0 0.0
        %2104 = vmatpush1.msra.mxu0 0.0
        %2105 = vmatprep.subr.mxu0 0.0
        %2106 = vmatpush1.msra.mxu0 0.0
        %2107 = vmatprep.subr.mxu0 0.0
        %2108 = vmatpush1.msra.mxu0 0.0
        %2109 = vmatprep.subr.mxu0 0.0
        %2110 = vmatpush1.msra.mxu0 0.0
        %2111 = vmatprep.subr.mxu0 0.0
        %2112 = vmatpush1.msra.mxu0 0.0
        %2113 = vmatprep.subr.mxu0 0.0
        %2114 = vmatpush1.msra.mxu0 0.0
        %2115 = vmatprep.subr.mxu0 0.0
        %2116 = vmatpush1.msra.mxu0 0.0
        %2117 = vmatprep.subr.mxu0 0.0
        %2118 = vmatpush1.msra.mxu0 0.0
        %2119 = vmatprep.subr.mxu0 0.0
        %2120 = vmatpush1.msra.mxu0 0.0
        %2121 = vmatprep.subr.mxu0 0.0
        %2122 = vmatpush1.msra.mxu0 0.0
        %2123 = vmatprep.subr.mxu0 0.0
        %2124 = vmatpush1.msra.mxu0 0.0
        %2125 = vmatprep.subr.mxu0 0.0
        %2126 = vmatpush1.msra.mxu0 0.0
        %2127 = vmatprep.mubr.f32.mxu0 0.0
        %2128 = vmatmul.mubr.f32.gmra.mrb[0].mxu0 %v2061
        %v2129 = vpop.f32.mrb[0].mxu0
        %v2130 = vadd.f32 0.0, %v2129
        %v2131 = vpop.f32.mrb[0].mxu0
        %2132 = vdwg.mxu0
        %s2133 = scalar_lea.vmem %s12, 8
        %v2134 = vld [vmem:[%s2133] sm:$0xff]
        %v2136 = vsel %vm1219, %v2057, 0
        %v2139 = vsel %vm1219, %v2130, 0
        %2141 = vmatprep.subr.mxu0 0.0
        %2142 = vmatpush1.msra.mxu0 %v2134
        %2143 = vmatprep.subr.mxu0 0.0
        %2144 = vmatpush1.msra.mxu0 0.0
        %2145 = vmatprep.subr.mxu0 0.0
        %2146 = vmatpush1.msra.mxu0 0.0
        %2147 = vmatprep.subr.mxu0 0.0
        %2148 = vmatpush1.msra.mxu0 0.0
        %2149 = vmatprep.subr.mxu0 0.0
        %2150 = vmatpush1.msra.mxu0 0.0
        %2151 = vmatprep.subr.mxu0 0.0
        %2152 = vmatpush1.msra.mxu0 0.0
        %2153 = vmatprep.subr.mxu0 0.0
        %2154 = vmatpush1.msra.mxu0 0.0
        %2155 = vmatprep.subr.mxu0 0.0
        %2156 = vmatpush1.msra.mxu0 0.0
        %2157 = vmatprep.subr.mxu0 0.0
        %2158 = vmatpush1.msra.mxu0 0.0
        %2159 = vmatprep.subr.mxu0 0.0
        %2160 = vmatpush1.msra.mxu0 0.0
        %2161 = vmatprep.subr.mxu0 0.0
        %2162 = vmatpush1.msra.mxu0 0.0
        %2163 = vmatprep.subr.mxu0 0.0
        %2164 = vmatpush1.msra.mxu0 0.0
        %2165 = vmatprep.subr.mxu0 0.0
        %2166 = vmatpush1.msra.mxu0 0.0
        %2167 = vmatprep.subr.mxu0 0.0
        %2168 = vmatpush1.msra.mxu0 0.0
        %2169 = vmatprep.subr.mxu0 0.0
        %2170 = vmatpush1.msra.mxu0 0.0
        %2171 = vmatprep.subr.mxu0 0.0
        %2172 = vmatpush1.msra.mxu0 0.0
        %2173 = vmatprep.subr.mxu0 0.0
        %2174 = vmatpush1.msra.mxu0 0.0
        %2175 = vmatprep.subr.mxu0 0.0
        %2176 = vmatpush1.msra.mxu0 0.0
        %2177 = vmatprep.subr.mxu0 0.0
        %2178 = vmatpush1.msra.mxu0 0.0
        %2179 = vmatprep.subr.mxu0 0.0
        %2180 = vmatpush1.msra.mxu0 0.0
        %2181 = vmatprep.subr.mxu0 0.0
        %2182 = vmatpush1.msra.mxu0 0.0
        %2183 = vmatprep.subr.mxu0 0.0
        %2184 = vmatpush1.msra.mxu0 0.0
        %2185 = vmatprep.subr.mxu0 0.0
        %2186 = vmatpush1.msra.mxu0 0.0
        %2187 = vmatprep.subr.mxu0 0.0
        %2188 = vmatpush1.msra.mxu0 0.0
        %2189 = vmatprep.subr.mxu0 0.0
        %2190 = vmatpush1.msra.mxu0 0.0
        %2191 = vmatprep.subr.mxu0 0.0
        %2192 = vmatpush1.msra.mxu0 0.0
        %2193 = vmatprep.subr.mxu0 0.0
        %2194 = vmatpush1.msra.mxu0 0.0
        %2195 = vmatprep.subr.mxu0 0.0
        %2196 = vmatpush1.msra.mxu0 0.0
        %2197 = vmatprep.subr.mxu0 0.0
        %2198 = vmatpush1.msra.mxu0 0.0
        %2199 = vmatprep.subr.mxu0 0.0
        %2200 = vmatpush1.msra.mxu0 0.0
        %2201 = vmatprep.subr.mxu0 0.0
        %2202 = vmatpush1.msra.mxu0 0.0
        %2203 = vmatprep.subr.mxu0 0.0
        %2204 = vmatpush1.msra.mxu0 0.0
        %2205 = vmatprep.mubr.f32.mxu0 0.0
        %2206 = vmatmul.mubr.f32.gmra.mrb[0].mxu0 %v2136
        %v2207 = vpop.f32.mrb[0].mxu0
        %v2208 = vadd.f32 0.0, %v2207
        %v2209 = vpop.f32.mrb[0].mxu0
        %2210 = vmatprep.mubr.f32.mxu0 0.0
        %2211 = vmatmul.mubr.f32.gmra.mrb[0].mxu0 %v2139
        %v2212 = vpop.f32.mrb[0].mxu0
        %v2213 = vadd.f32 0.0, %v2212
        %v2214 = vpop.f32.mrb[0].mxu0
        %2215 = vdwg.mxu0
        %v2217 = vsel %vm1219, %v1468, 0
        %v2220 = vsel %vm1219, %v1541, 0
        %2222 = vmatprep.subr.mxu0 0.0
        %2223 = vmatpush1.msra.mxu0 %v1544
        %2224 = vmatprep.subr.mxu0 0.0
        %2225 = vmatpush1.msra.mxu0 0.0
        %2226 = vmatprep.subr.mxu0 0.0
        %2227 = vmatpush1.msra.mxu0 0.0
        %2228 = vmatprep.subr.mxu0 0.0
        %2229 = vmatpush1.msra.mxu0 0.0
        %2230 = vmatprep.subr.mxu0 0.0
        %2231 = vmatpush1.msra.mxu0 0.0
        %2232 = vmatprep.subr.mxu0 0.0
        %2233 = vmatpush1.msra.mxu0 0.0
        %2234 = vmatprep.subr.mxu0 0.0
        %2235 = vmatpush1.msra.mxu0 0.0
        %2236 = vmatprep.subr.mxu0 0.0
        %2237 = vmatpush1.msra.mxu0 0.0
        %2238 = vmatprep.subr.mxu0 0.0
        %2239 = vmatpush1.msra.mxu0 0.0
        %2240 = vmatprep.subr.mxu0 0.0
        %2241 = vmatpush1.msra.mxu0 0.0
        %2242 = vmatprep.subr.mxu0 0.0
        %2243 = vmatpush1.msra.mxu0 0.0
        %2244 = vmatprep.subr.mxu0 0.0
        %2245 = vmatpush1.msra.mxu0 0.0
        %2246 = vmatprep.subr.mxu0 0.0
        %2247 = vmatpush1.msra.mxu0 0.0
        %2248 = vmatprep.subr.mxu0 0.0
        %2249 = vmatpush1.msra.mxu0 0.0
        %2250 = vmatprep.subr.mxu0 0.0
        %2251 = vmatpush1.msra.mxu0 0.0
        %2252 = vmatprep.subr.mxu0 0.0
        %2253 = vmatpush1.msra.mxu0 0.0
        %2254 = vmatprep.subr.mxu0 0.0
        %2255 = vmatpush1.msra.mxu0 0.0
        %2256 = vmatprep.subr.mxu0 0.0
        %2257 = vmatpush1.msra.mxu0 0.0
        %2258 = vmatprep.subr.mxu0 0.0
        %2259 = vmatpush1.msra.mxu0 0.0
        %2260 = vmatprep.subr.mxu0 0.0
        %2261 = vmatpush1.msra.mxu0 0.0
        %2262 = vmatprep.subr.mxu0 0.0
        %2263 = vmatpush1.msra.mxu0 0.0
        %2264 = vmatprep.subr.mxu0 0.0
        %2265 = vmatpush1.msra.mxu0 0.0
        %2266 = vmatprep.subr.mxu0 0.0
        %2267 = vmatpush1.msra.mxu0 0.0
        %2268 = vmatprep.subr.mxu0 0.0
        %2269 = vmatpush1.msra.mxu0 0.0
        %2270 = vmatprep.subr.mxu0 0.0
        %2271 = vmatpush1.msra.mxu0 0.0
        %2272 = vmatprep.subr.mxu0 0.0
        %2273 = vmatpush1.msra.mxu0 0.0
        %2274 = vmatprep.subr.mxu0 0.0
        %2275 = vmatpush1.msra.mxu0 0.0
        %2276 = vmatprep.subr.mxu0 0.0
        %2277 = vmatpush1.msra.mxu0 0.0
        %2278 = vmatprep.subr.mxu0 0.0
        %2279 = vmatpush1.msra.mxu0 0.0
        %2280 = vmatprep.subr.mxu0 0.0
        %2281 = vmatpush1.msra.mxu0 0.0
        %2282 = vmatprep.subr.mxu0 0.0
        %2283 = vmatpush1.msra.mxu0 0.0
        %2284 = vmatprep.subr.mxu0 0.0
        %2285 = vmatpush1.msra.mxu0 0.0
        %2286 = vmatprep.mubr.f32.mxu0 0.0
        %2287 = vmatmul.mubr.f32.gmra.mrb[0].mxu0 %v2217
        %v2288 = vpop.f32.mrb[0].mxu0
        %v2289 = vadd.f32 %v2208, %v2288
        %v2290 = vpop.f32.mrb[0].mxu0
        %2291 = vmatprep.mubr.f32.mxu0 0.0
        %2292 = vmatmul.mubr.f32.gmra.mrb[0].mxu0 %v2220
        %v2293 = vpop.f32.mrb[0].mxu0
        %v2294 = vadd.f32 %v2213, %v2293
        %v2295 = vpop.f32.mrb[0].mxu0
        %2296 = vdwg.mxu0
        %s2297 = scalar_lea.vmem %s6, 64
        %v2298 = vld [vmem:[%s2297] sm:$0xff]
        %v2299 = vld [vmem:[%s2297 + $0x8] sm:$0xff]
        %v2300 = vld [vmem:[%s2297 + $0x10] sm:$0xff]
        %v2301 = vld [vmem:[%s2297 + $0x18] sm:$0xff]
        %s2302 = scalar_lea.vmem %s7, 2
        %v2303 = vld [vmem:[%s2302] sm:$0x1]
        %v2305 = vlaneseq
        %v2306 = vshrl.u32 %v2305, 7
        %v2307 = vsub.s32 0, %v2306
        %v2308 = vrot.slane %v2303, %v2307
        %2310 = vmatprep.subr.mxu0 0.0
        %2311 = vmatpush1.msra.mxu0 %v2298
        %2312 = vmatprep.subr.mxu0 0.0
        %2313 = vmatpush1.msra.mxu0 %v2299
        %2314 = vmatprep.subr.mxu0 0.0
        %2315 = vmatpush1.msra.mxu0 %v2300
        %2316 = vmatprep.subr.mxu0 0.0
        %2317 = vmatpush1.msra.mxu0 %v2301
        %2318 = vmatprep.subr.mxu0 0.0
        %2319 = vmatpush1.msra.mxu0 0.0
        %2320 = vmatprep.subr.mxu0 0.0
        %2321 = vmatpush1.msra.mxu0 0.0
        %2322 = vmatprep.subr.mxu0 0.0
        %2323 = vmatpush1.msra.mxu0 0.0
        %2324 = vmatprep.subr.mxu0 0.0
        %2325 = vmatpush1.msra.mxu0 0.0
        %2326 = vmatprep.subr.mxu0 0.0
        %2327 = vmatpush1.msra.mxu0 0.0
        %2328 = vmatprep.subr.mxu0 0.0
        %2329 = vmatpush1.msra.mxu0 0.0
        %2330 = vmatprep.subr.mxu0 0.0
        %2331 = vmatpush1.msra.mxu0 0.0
        %2332 = vmatprep.subr.mxu0 0.0
        %2333 = vmatpush1.msra.mxu0 0.0
        %2334 = vmatprep.subr.mxu0 0.0
        %2335 = vmatpush1.msra.mxu0 0.0
        %2336 = vmatprep.subr.mxu0 0.0
        %2337 = vmatpush1.msra.mxu0 0.0
        %2338 = vmatprep.subr.mxu0 0.0
        %2339 = vmatpush1.msra.mxu0 0.0
        %2340 = vmatprep.subr.mxu0 0.0
        %2341 = vmatpush1.msra.mxu0 0.0
        %2342 = vmatprep.subr.mxu0 0.0
        %2343 = vmatpush1.msra.mxu0 0.0
        %2344 = vmatprep.subr.mxu0 0.0
        %2345 = vmatpush1.msra.mxu0 0.0
        %2346 = vmatprep.subr.mxu0 0.0
        %2347 = vmatpush1.msra.mxu0 0.0
        %2348 = vmatprep.subr.mxu0 0.0
        %2349 = vmatpush1.msra.mxu0 0.0
        %2350 = vmatprep.subr.mxu0 0.0
        %2351 = vmatpush1.msra.mxu0 0.0
        %2352 = vmatprep.subr.mxu0 0.0
        %2353 = vmatpush1.msra.mxu0 0.0
        %2354 = vmatprep.subr.mxu0 0.0
        %2355 = vmatpush1.msra.mxu0 0.0
        %2356 = vmatprep.subr.mxu0 0.0
        %2357 = vmatpush1.msra.mxu0 0.0
        %2358 = vmatprep.subr.mxu0 0.0
        %2359 = vmatpush1.msra.mxu0 0.0
        %2360 = vmatprep.subr.mxu0 0.0
        %2361 = vmatpush1.msra.mxu0 0.0
        %2362 = vmatprep.subr.mxu0 0.0
        %2363 = vmatpush1.msra.mxu0 0.0
        %2364 = vmatprep.subr.mxu0 0.0
        %2365 = vmatpush1.msra.mxu0 0.0
        %2366 = vmatprep.subr.mxu0 0.0
        %2367 = vmatpush1.msra.mxu0 0.0
        %2368 = vmatprep.subr.mxu0 0.0
        %2369 = vmatpush1.msra.mxu0 0.0
        %2370 = vmatprep.subr.mxu0 0.0
        %2371 = vmatpush1.msra.mxu0 0.0
        %2372 = vmatprep.subr.mxu0 0.0
        %2373 = vmatpush1.msra.mxu0 0.0
        %2374 = vmatprep.mubr.f32.mxu0 0.0
        %2375 = vmatmul.mubr.f32.gmra.mrb[0].mxu0 %v965
        %v2376 = vpop.f32.mrb[0].mxu0
        %v2377 = vadd.f32 %v2308, %v2376
        %v2378 = vpop.f32.mrb[0].mxu0
        %2379 = vmatprep.mubr.f32.mxu0 0.0
        %2380 = vmatmul.mubr.f32.gmra.mrb[0].mxu0 %v968
        %v2381 = vpop.f32.mrb[0].mxu0
        %v2382 = vadd.f32 %v2308, %v2381
        %v2383 = vpop.f32.mrb[0].mxu0
        %2384 = vdwg.mxu0
        %s2385 = scalar_lea.vmem %s8, 64
        %v2386 = vld [vmem:[%s2385] sm:$0xff]
        %v2387 = vld [vmem:[%s2385 + $0x8] sm:$0xff]
        %v2388 = vld [vmem:[%s2385 + $0x10] sm:$0xff]
        %v2389 = vld [vmem:[%s2385 + $0x18] sm:$0xff]
        %s2390 = scalar_lea.vmem %s9, 2
        %v2391 = vld [vmem:[%s2390] sm:$0x1]
        %v2393 = vlaneseq
        %v2394 = vshrl.u32 %v2393, 7
        %v2395 = vsub.s32 0, %v2394
        %v2396 = vrot.slane %v2391, %v2395
        %2398 = vmatprep.subr.mxu0 0.0
        %2399 = vmatpush1.msra.mxu0 %v2386
        %2400 = vmatprep.subr.mxu0 0.0
        %2401 = vmatpush1.msra.mxu0 %v2387
        %2402 = vmatprep.subr.mxu0 0.0
        %2403 = vmatpush1.msra.mxu0 %v2388
        %2404 = vmatprep.subr.mxu0 0.0
        %2405 = vmatpush1.msra.mxu0 %v2389
        %2406 = vmatprep.subr.mxu0 0.0
        %2407 = vmatpush1.msra.mxu0 0.0
        %2408 = vmatprep.subr.mxu0 0.0
        %2409 = vmatpush1.msra.mxu0 0.0
        %2410 = vmatprep.subr.mxu0 0.0
        %2411 = vmatpush1.msra.mxu0 0.0
        %2412 = vmatprep.subr.mxu0 0.0
        %2413 = vmatpush1.msra.mxu0 0.0
        %2414 = vmatprep.subr.mxu0 0.0
        %2415 = vmatpush1.msra.mxu0 0.0
        %2416 = vmatprep.subr.mxu0 0.0
        %2417 = vmatpush1.msra.mxu0 0.0
        %2418 = vmatprep.subr.mxu0 0.0
        %2419 = vmatpush1.msra.mxu0 0.0
        %2420 = vmatprep.subr.mxu0 0.0
        %2421 = vmatpush1.msra.mxu0 0.0
        %2422 = vmatprep.subr.mxu0 0.0
        %2423 = vmatpush1.msra.mxu0 0.0
        %2424 = vmatprep.subr.mxu0 0.0
        %2425 = vmatpush1.msra.mxu0 0.0
        %2426 = vmatprep.subr.mxu0 0.0
        %2427 = vmatpush1.msra.mxu0 0.0
        %2428 = vmatprep.subr.mxu0 0.0
        %2429 = vmatpush1.msra.mxu0 0.0
        %2430 = vmatprep.subr.mxu0 0.0
        %2431 = vmatpush1.msra.mxu0 0.0
        %2432 = vmatprep.subr.mxu0 0.0
        %2433 = vmatpush1.msra.mxu0 0.0
        %2434 = vmatprep.subr.mxu0 0.0
        %2435 = vmatpush1.msra.mxu0 0.0
        %2436 = vmatprep.subr.mxu0 0.0
        %2437 = vmatpush1.msra.mxu0 0.0
        %2438 = vmatprep.subr.mxu0 0.0
        %2439 = vmatpush1.msra.mxu0 0.0
        %2440 = vmatprep.subr.mxu0 0.0
        %2441 = vmatpush1.msra.mxu0 0.0
        %2442 = vmatprep.subr.mxu0 0.0
        %2443 = vmatpush1.msra.mxu0 0.0
        %2444 = vmatprep.subr.mxu0 0.0
        %2445 = vmatpush1.msra.mxu0 0.0
        %2446 = vmatprep.subr.mxu0 0.0
        %2447 = vmatpush1.msra.mxu0 0.0
        %2448 = vmatprep.subr.mxu0 0.0
        %2449 = vmatpush1.msra.mxu0 0.0
        %2450 = vmatprep.subr.mxu0 0.0
        %2451 = vmatpush1.msra.mxu0 0.0
        %2452 = vmatprep.subr.mxu0 0.0
        %2453 = vmatpush1.msra.mxu0 0.0
        %2454 = vmatprep.subr.mxu0 0.0
        %2455 = vmatpush1.msra.mxu0 0.0
        %2456 = vmatprep.subr.mxu0 0.0
        %2457 = vmatpush1.msra.mxu0 0.0
        %2458 = vmatprep.subr.mxu0 0.0
        %2459 = vmatpush1.msra.mxu0 0.0
        %2460 = vmatprep.subr.mxu0 0.0
        %2461 = vmatpush1.msra.mxu0 0.0
        %2462 = vmatprep.mubr.f32.mxu0 0.0
        %2463 = vmatmul.mubr.f32.gmra.mrb[0].mxu0 %v965
        %v2464 = vpop.f32.mrb[0].mxu0
        %v2465 = vadd.f32 %v2396, %v2464
        %v2466 = vpop.f32.mrb[0].mxu0
        %2467 = vmatprep.mubr.f32.mxu0 0.0
        %2468 = vmatmul.mubr.f32.gmra.mrb[0].mxu0 %v968
        %v2469 = vpop.f32.mrb[0].mxu0
        %v2470 = vadd.f32 %v2396, %v2469
        %v2471 = vpop.f32.mrb[0].mxu0
        %2472 = vdwg.mxu0
        %s2473 = scalar_lea.vmem %s10, 64
        %v2474 = vld [vmem:[%s2473] sm:$0xff]
        %v2475 = vld [vmem:[%s2473 + $0x8] sm:$0xff]
        %v2476 = vld [vmem:[%s2473 + $0x10] sm:$0xff]
        %v2477 = vld [vmem:[%s2473 + $0x18] sm:$0xff]
        %s2478 = scalar_lea.vmem %s11, 2
        %v2479 = vld [vmem:[%s2478] sm:$0x1]
        %v2481 = vlaneseq
        %v2482 = vshrl.u32 %v2481, 7
        %v2483 = vsub.s32 0, %v2482
        %v2484 = vrot.slane %v2479, %v2483
        %2486 = vmatprep.subr.mxu0 0.0
        %2487 = vmatpush1.msra.mxu0 %v2474
        %2488 = vmatprep.subr.mxu0 0.0
        %2489 = vmatpush1.msra.mxu0 %v2475
        %2490 = vmatprep.subr.mxu0 0.0
        %2491 = vmatpush1.msra.mxu0 %v2476
        %2492 = vmatprep.subr.mxu0 0.0
        %2493 = vmatpush1.msra.mxu0 %v2477
        %2494 = vmatprep.subr.mxu0 0.0
        %2495 = vmatpush1.msra.mxu0 0.0
        %2496 = vmatprep.subr.mxu0 0.0
        %2497 = vmatpush1.msra.mxu0 0.0
        %2498 = vmatprep.subr.mxu0 0.0
        %2499 = vmatpush1.msra.mxu0 0.0
        %2500 = vmatprep.subr.mxu0 0.0
        %2501 = vmatpush1.msra.mxu0 0.0
        %2502 = vmatprep.subr.mxu0 0.0
        %2503 = vmatpush1.msra.mxu0 0.0
        %2504 = vmatprep.subr.mxu0 0.0
        %2505 = vmatpush1.msra.mxu0 0.0
        %2506 = vmatprep.subr.mxu0 0.0
        %2507 = vmatpush1.msra.mxu0 0.0
        %2508 = vmatprep.subr.mxu0 0.0
        %2509 = vmatpush1.msra.mxu0 0.0
        %2510 = vmatprep.subr.mxu0 0.0
        %2511 = vmatpush1.msra.mxu0 0.0
        %2512 = vmatprep.subr.mxu0 0.0
        %2513 = vmatpush1.msra.mxu0 0.0
        %2514 = vmatprep.subr.mxu0 0.0
        %2515 = vmatpush1.msra.mxu0 0.0
        %2516 = vmatprep.subr.mxu0 0.0
        %2517 = vmatpush1.msra.mxu0 0.0
        %2518 = vmatprep.subr.mxu0 0.0
        %2519 = vmatpush1.msra.mxu0 0.0
        %2520 = vmatprep.subr.mxu0 0.0
        %2521 = vmatpush1.msra.mxu0 0.0
        %2522 = vmatprep.subr.mxu0 0.0
        %2523 = vmatpush1.msra.mxu0 0.0
        %2524 = vmatprep.subr.mxu0 0.0
        %2525 = vmatpush1.msra.mxu0 0.0
        %2526 = vmatprep.subr.mxu0 0.0
        %2527 = vmatpush1.msra.mxu0 0.0
        %2528 = vmatprep.subr.mxu0 0.0
        %2529 = vmatpush1.msra.mxu0 0.0
        %2530 = vmatprep.subr.mxu0 0.0
        %2531 = vmatpush1.msra.mxu0 0.0
        %2532 = vmatprep.subr.mxu0 0.0
        %2533 = vmatpush1.msra.mxu0 0.0
        %2534 = vmatprep.subr.mxu0 0.0
        %2535 = vmatpush1.msra.mxu0 0.0
        %2536 = vmatprep.subr.mxu0 0.0
        %2537 = vmatpush1.msra.mxu0 0.0
        %2538 = vmatprep.subr.mxu0 0.0
        %2539 = vmatpush1.msra.mxu0 0.0
        %2540 = vmatprep.subr.mxu0 0.0
        %2541 = vmatpush1.msra.mxu0 0.0
        %2542 = vmatprep.subr.mxu0 0.0
        %2543 = vmatpush1.msra.mxu0 0.0
        %2544 = vmatprep.subr.mxu0 0.0
        %2545 = vmatpush1.msra.mxu0 0.0
        %2546 = vmatprep.subr.mxu0 0.0
        %2547 = vmatpush1.msra.mxu0 0.0
        %2548 = vmatprep.subr.mxu0 0.0
        %2549 = vmatpush1.msra.mxu0 0.0
        %2550 = vmatprep.mubr.f32.mxu0 0.0
        %2551 = vmatmul.mubr.f32.gmra.mrb[0].mxu0 %v965
        %v2552 = vpop.f32.mrb[0].mxu0
        %v2553 = vadd.f32 %v2484, %v2552
        %v2554 = vpop.f32.mrb[0].mxu0
        %2555 = vmatprep.mubr.f32.mxu0 0.0
        %2556 = vmatmul.mubr.f32.gmra.mrb[0].mxu0 %v968
        %v2557 = vpop.f32.mrb[0].mxu0
        %v2558 = vadd.f32 %v2484, %v2557
        %v2559 = vpop.f32.mrb[0].mxu0
        %2560 = vdwg.mxu0
        %v2561 = vmul.f32 %v2377, 0.35355338
        %v2562 = vmul.f32 %v2382, 0.35355338
        %v2564 = vsel %vm1219, %v2561, 0
        %v2567 = vsel %vm1219, %v2465, 0
        %2569 = vmatprep.subr.mxu0 0.0
        %2570 = vmatpush1.xpose.msra.mxu0 %v2567
        %2571 = vmatprep.subr.mxu0 0.0
        %2572 = vmatpush1.xpose.msra.mxu0 0.0
        %2573 = vmatprep.subr.mxu0 0.0
        %2574 = vmatpush1.xpose.msra.mxu0 0.0
        %2575 = vmatprep.subr.mxu0 0.0
        %2576 = vmatpush1.xpose.msra.mxu0 0.0
        %2577 = vmatprep.subr.mxu0 0.0
        %2578 = vmatpush1.xpose.msra.mxu0 0.0
        %2579 = vmatprep.subr.mxu0 0.0
        %2580 = vmatpush1.xpose.msra.mxu0 0.0
        %2581 = vmatprep.subr.mxu0 0.0
        %2582 = vmatpush1.xpose.msra.mxu0 0.0
        %2583 = vmatprep.subr.mxu0 0.0
        %2584 = vmatpush1.xpose.msra.mxu0 0.0
        %2585 = vmatprep.subr.mxu0 0.0
        %2586 = vmatpush1.xpose.msra.mxu0 0.0
        %2587 = vmatprep.subr.mxu0 0.0
        %2588 = vmatpush1.xpose.msra.mxu0 0.0
        %2589 = vmatprep.subr.mxu0 0.0
        %2590 = vmatpush1.xpose.msra.mxu0 0.0
        %2591 = vmatprep.subr.mxu0 0.0
        %2592 = vmatpush1.xpose.msra.mxu0 0.0
        %2593 = vmatprep.subr.mxu0 0.0
        %2594 = vmatpush1.xpose.msra.mxu0 0.0
        %2595 = vmatprep.subr.mxu0 0.0
        %2596 = vmatpush1.xpose.msra.mxu0 0.0
        %2597 = vmatprep.subr.mxu0 0.0
        %2598 = vmatpush1.xpose.msra.mxu0 0.0
        %2599 = vmatprep.subr.mxu0 0.0
        %2600 = vmatpush1.xpose.msra.mxu0 0.0
        %2601 = vmatprep.subr.mxu0 0.0
        %2602 = vmatpush1.xpose.msra.mxu0 0.0
        %2603 = vmatprep.subr.mxu0 0.0
        %2604 = vmatpush1.xpose.msra.mxu0 0.0
        %2605 = vmatprep.subr.mxu0 0.0
        %2606 = vmatpush1.xpose.msra.mxu0 0.0
        %2607 = vmatprep.subr.mxu0 0.0
        %2608 = vmatpush1.xpose.msra.mxu0 0.0
        %2609 = vmatprep.subr.mxu0 0.0
        %2610 = vmatpush1.xpose.msra.mxu0 0.0
        %2611 = vmatprep.subr.mxu0 0.0
        %2612 = vmatpush1.xpose.msra.mxu0 0.0
        %2613 = vmatprep.subr.mxu0 0.0
        %2614 = vmatpush1.xpose.msra.mxu0 0.0
        %2615 = vmatprep.subr.mxu0 0.0
        %2616 = vmatpush1.xpose.msra.mxu0 0.0
        %2617 = vmatprep.subr.mxu0 0.0
        %2618 = vmatpush1.xpose.msra.mxu0 0.0
        %2619 = vmatprep.subr.mxu0 0.0
        %2620 = vmatpush1.xpose.msra.mxu0 0.0
        %2621 = vmatprep.subr.mxu0 0.0
        %2622 = vmatpush1.xpose.msra.mxu0 0.0
        %2623 = vmatprep.subr.mxu0 0.0
        %2624 = vmatpush1.xpose.msra.mxu0 0.0
        %2625 = vmatprep.subr.mxu0 0.0
        %2626 = vmatpush1.xpose.msra.mxu0 0.0
        %2627 = vmatprep.subr.mxu0 0.0
        %2628 = vmatpush1.xpose.msra.mxu0 0.0
        %2629 = vmatprep.subr.mxu0 0.0
        %2630 = vmatpush1.xpose.msra.mxu0 0.0
        %2631 = vmatprep.subr.mxu0 0.0
        %2632 = vmatpush1.xpose.msra.mxu0 0.0
        %2633 = vmatprep.mubr.f32.mxu0 0.0
        %2634 = vmatmul.mubr.f32.gmra.mrb[0].mxu0 %v2564
        %v2635 = vpop.f32.mrb[0].mxu0
        %v2636 = vadd.f32 0.0, %v2635
        %v2637 = vpop.f32.mrb[0].mxu0
        %2638 = vdwg.mxu0
        %v2640 = vsel %vm1219, %v2562, 0
        %v2643 = vsel %vm1219, %v2470, 0
        %2645 = vmatprep.subr.mxu0 0.0
        %2646 = vmatpush1.xpose.msra.mxu0 %v2643
        %2647 = vmatprep.subr.mxu0 0.0
        %2648 = vmatpush1.xpose.msra.mxu0 0.0
        %2649 = vmatprep.subr.mxu0 0.0
        %2650 = vmatpush1.xpose.msra.mxu0 0.0
        %2651 = vmatprep.subr.mxu0 0.0
        %2652 = vmatpush1.xpose.msra.mxu0 0.0
        %2653 = vmatprep.subr.mxu0 0.0
        %2654 = vmatpush1.xpose.msra.mxu0 0.0
        %2655 = vmatprep.subr.mxu0 0.0
        %2656 = vmatpush1.xpose.msra.mxu0 0.0
        %2657 = vmatprep.subr.mxu0 0.0
        %2658 = vmatpush1.xpose.msra.mxu0 0.0
        %2659 = vmatprep.subr.mxu0 0.0
        %2660 = vmatpush1.xpose.msra.mxu0 0.0
        %2661 = vmatprep.subr.mxu0 0.0
        %2662 = vmatpush1.xpose.msra.mxu0 0.0
        %2663 = vmatprep.subr.mxu0 0.0
        %2664 = vmatpush1.xpose.msra.mxu0 0.0
        %2665 = vmatprep.subr.mxu0 0.0
        %2666 = vmatpush1.xpose.msra.mxu0 0.0
        %2667 = vmatprep.subr.mxu0 0.0
        %2668 = vmatpush1.xpose.msra.mxu0 0.0
        %2669 = vmatprep.subr.mxu0 0.0
        %2670 = vmatpush1.xpose.msra.mxu0 0.0
        %2671 = vmatprep.subr.mxu0 0.0
        %2672 = vmatpush1.xpose.msra.mxu0 0.0
        %2673 = vmatprep.subr.mxu0 0.0
        %2674 = vmatpush1.xpose.msra.mxu0 0.0
        %2675 = vmatprep.subr.mxu0 0.0
        %2676 = vmatpush1.xpose.msra.mxu0 0.0
        %2677 = vmatprep.subr.mxu0 0.0
        %2678 = vmatpush1.xpose.msra.mxu0 0.0
        %2679 = vmatprep.subr.mxu0 0.0
        %2680 = vmatpush1.xpose.msra.mxu0 0.0
        %2681 = vmatprep.subr.mxu0 0.0
        %2682 = vmatpush1.xpose.msra.mxu0 0.0
        %2683 = vmatprep.subr.mxu0 0.0
        %2684 = vmatpush1.xpose.msra.mxu0 0.0
        %2685 = vmatprep.subr.mxu0 0.0
        %2686 = vmatpush1.xpose.msra.mxu0 0.0
        %2687 = vmatprep.subr.mxu0 0.0
        %2688 = vmatpush1.xpose.msra.mxu0 0.0
        %2689 = vmatprep.subr.mxu0 0.0
        %2690 = vmatpush1.xpose.msra.mxu0 0.0
        %2691 = vmatprep.subr.mxu0 0.0
        %2692 = vmatpush1.xpose.msra.mxu0 0.0
        %2693 = vmatprep.subr.mxu0 0.0
        %2694 = vmatpush1.xpose.msra.mxu0 0.0
        %2695 = vmatprep.subr.mxu0 0.0
        %2696 = vmatpush1.xpose.msra.mxu0 0.0
        %2697 = vmatprep.subr.mxu0 0.0
        %2698 = vmatpush1.xpose.msra.mxu0 0.0
        %2699 = vmatprep.subr.mxu0 0.0
        %2700 = vmatpush1.xpose.msra.mxu0 0.0
        %2701 = vmatprep.subr.mxu0 0.0
        %2702 = vmatpush1.xpose.msra.mxu0 0.0
        %2703 = vmatprep.subr.mxu0 0.0
        %2704 = vmatpush1.xpose.msra.mxu0 0.0
        %2705 = vmatprep.subr.mxu0 0.0
        %2706 = vmatpush1.xpose.msra.mxu0 0.0
        %2707 = vmatprep.subr.mxu0 0.0
        %2708 = vmatpush1.xpose.msra.mxu0 0.0
        %2709 = vmatprep.mubr.f32.mxu0 0.0
        %2710 = vmatmul.mubr.f32.gmra.mrb[0].mxu0 %v2640
        %v2711 = vpop.f32.mrb[0].mxu0
        %v2712 = vadd.f32 0.0, %v2711
        %v2713 = vpop.f32.mrb[0].mxu0
        %2714 = vdwg.mxu0
        %v2715 = vsel %vm1372, -3.4028235e+38, %v2636
        %v2716 = vsel %vm1373, -3.4028235e+38, %v2712
        %v2717 = vsel %vm1219, %v2715, -inf
        %2718 = vmax.xlane.f32.xlu0 %v2717
        %v2719 = vpop.xlane.xlu0 %2718
        %v2720 = vsel %vm1219, %v2716, -inf
        %2721 = vmax.xlane.f32.xlu0 %v2720
        %v2722 = vpop.xlane.xlu0 %2721
        %v2723 = vsub.f32 %v2715, %v2719
        %v2724 = vsub.f32 %v2716, %v2722
        %v2725 = vmul.f32 %v2723, 1.442695
        %v2726 = vpow.pop %v2725
        %v2727 = vmul.f32 %v2724, 1.442695
        %v2728 = vpow.pop %v2727
        %v2729 = vsel %vm1219, %v2726, 0.0
        %2730 = vadd.xlane.f32.xlu0 %v2729
        %v2731 = vpop.xlane.xlu0 %2730
        %v2732 = vsel %vm1219, %v2728, 0.0
        %2733 = vadd.xlane.f32.xlu0 %v2732
        %v2734 = vpop.xlane.xlu0 %2733
        %v2735 = vrcp.pop %v2731
        %v2736 = vmul.f32 %v2726, %v2735
        %v2737 = vrcp.pop %v2734
        %v2738 = vmul.f32 %v2728, %v2737
        %v2740 = vsel %vm1219, %v2736, 0
        %2742 = vmatprep.subr.mxu0 0.0
        %2743 = vmatpush1.msra.mxu0 %v2553
        %2744 = vmatprep.subr.mxu0 0.0
        %2745 = vmatpush1.msra.mxu0 0.0
        %2746 = vmatprep.subr.mxu0 0.0
        %2747 = vmatpush1.msra.mxu0 0.0
        %2748 = vmatprep.subr.mxu0 0.0
        %2749 = vmatpush1.msra.mxu0 0.0
        %2750 = vmatprep.subr.mxu0 0.0
        %2751 = vmatpush1.msra.mxu0 0.0
        %2752 = vmatprep.subr.mxu0 0.0
        %2753 = vmatpush1.msra.mxu0 0.0
        %2754 = vmatprep.subr.mxu0 0.0
        %2755 = vmatpush1.msra.mxu0 0.0
        %2756 = vmatprep.subr.mxu0 0.0
        %2757 = vmatpush1.msra.mxu0 0.0
        %2758 = vmatprep.subr.mxu0 0.0
        %2759 = vmatpush1.msra.mxu0 0.0
        %2760 = vmatprep.subr.mxu0 0.0
        %2761 = vmatpush1.msra.mxu0 0.0
        %2762 = vmatprep.subr.mxu0 0.0
        %2763 = vmatpush1.msra.mxu0 0.0
        %2764 = vmatprep.subr.mxu0 0.0
        %2765 = vmatpush1.msra.mxu0 0.0
        %2766 = vmatprep.subr.mxu0 0.0
        %2767 = vmatpush1.msra.mxu0 0.0
        %2768 = vmatprep.subr.mxu0 0.0
        %2769 = vmatpush1.msra.mxu0 0.0
        %2770 = vmatprep.subr.mxu0 0.0
        %2771 = vmatpush1.msra.mxu0 0.0
        %2772 = vmatprep.subr.mxu0 0.0
        %2773 = vmatpush1.msra.mxu0 0.0
        %2774 = vmatprep.subr.mxu0 0.0
        %2775 = vmatpush1.msra.mxu0 0.0
        %2776 = vmatprep.subr.mxu0 0.0
        %2777 = vmatpush1.msra.mxu0 0.0
        %2778 = vmatprep.subr.mxu0 0.0
        %2779 = vmatpush1.msra.mxu0 0.0
        %2780 = vmatprep.subr.mxu0 0.0
        %2781 = vmatpush1.msra.mxu0 0.0
        %2782 = vmatprep.subr.mxu0 0.0
        %2783 = vmatpush1.msra.mxu0 0.0
        %2784 = vmatprep.subr.mxu0 0.0
        %2785 = vmatpush1.msra.mxu0 0.0
        %2786 = vmatprep.subr.mxu0 0.0
        %2787 = vmatpush1.msra.mxu0 0.0
        %2788 = vmatprep.subr.mxu0 0.0
        %2789 = vmatpush1.msra.mxu0 0.0
        %2790 = vmatprep.subr.mxu0 0.0
        %2791 = vmatpush1.msra.mxu0 0.0
        %2792 = vmatprep.subr.mxu0 0.0
        %2793 = vmatpush1.msra.mxu0 0.0
        %2794 = vmatprep.subr.mxu0 0.0
        %2795 = vmatpush1.msra.mxu0 0.0
        %2796 = vmatprep.subr.mxu0 0.0
        %2797 = vmatpush1.msra.mxu0 0.0
        %2798 = vmatprep.subr.mxu0 0.0
        %2799 = vmatpush1.msra.mxu0 0.0
        %2800 = vmatprep.subr.mxu0 0.0
        %2801 = vmatpush1.msra.mxu0 0.0
        %2802 = vmatprep.subr.mxu0 0.0
        %2803 = vmatpush1.msra.mxu0 0.0
        %2804 = vmatprep.subr.mxu0 0.0
        %2805 = vmatpush1.msra.mxu0 0.0
        %2806 = vmatprep.mubr.f32.mxu0 0.0
        %2807 = vmatmul.mubr.f32.gmra.mrb[0].mxu0 %v2740
        %v2808 = vpop.f32.mrb[0].mxu0
        %v2809 = vadd.f32 0.0, %v2808
        %v2810 = vpop.f32.mrb[0].mxu0
        %2811 = vdwg.mxu0
        %v2813 = vsel %vm1219, %v2738, 0
        %2815 = vmatprep.subr.mxu0 0.0
        %2816 = vmatpush1.msra.mxu0 %v2558
        %2817 = vmatprep.subr.mxu0 0.0
        %2818 = vmatpush1.msra.mxu0 0.0
        %2819 = vmatprep.subr.mxu0 0.0
        %2820 = vmatpush1.msra.mxu0 0.0
        %2821 = vmatprep.subr.mxu0 0.0
        %2822 = vmatpush1.msra.mxu0 0.0
        %2823 = vmatprep.subr.mxu0 0.0
        %2824 = vmatpush1.msra.mxu0 0.0
        %2825 = vmatprep.subr.mxu0 0.0
        %2826 = vmatpush1.msra.mxu0 0.0
        %2827 = vmatprep.subr.mxu0 0.0
        %2828 = vmatpush1.msra.mxu0 0.0
        %2829 = vmatprep.subr.mxu0 0.0
        %2830 = vmatpush1.msra.mxu0 0.0
        %2831 = vmatprep.subr.mxu0 0.0
        %2832 = vmatpush1.msra.mxu0 0.0
        %2833 = vmatprep.subr.mxu0 0.0
        %2834 = vmatpush1.msra.mxu0 0.0
        %2835 = vmatprep.subr.mxu0 0.0
        %2836 = vmatpush1.msra.mxu0 0.0
        %2837 = vmatprep.subr.mxu0 0.0
        %2838 = vmatpush1.msra.mxu0 0.0
        %2839 = vmatprep.subr.mxu0 0.0
        %2840 = vmatpush1.msra.mxu0 0.0
        %2841 = vmatprep.subr.mxu0 0.0
        %2842 = vmatpush1.msra.mxu0 0.0
        %2843 = vmatprep.subr.mxu0 0.0
        %2844 = vmatpush1.msra.mxu0 0.0
        %2845 = vmatprep.subr.mxu0 0.0
        %2846 = vmatpush1.msra.mxu0 0.0
        %2847 = vmatprep.subr.mxu0 0.0
        %2848 = vmatpush1.msra.mxu0 0.0
        %2849 = vmatprep.subr.mxu0 0.0
        %2850 = vmatpush1.msra.mxu0 0.0
        %2851 = vmatprep.subr.mxu0 0.0
        %2852 = vmatpush1.msra.mxu0 0.0
        %2853 = vmatprep.subr.mxu0 0.0
        %2854 = vmatpush1.msra.mxu0 0.0
        %2855 = vmatprep.subr.mxu0 0.0
        %2856 = vmatpush1.msra.mxu0 0.0
        %2857 = vmatprep.subr.mxu0 0.0
        %2858 = vmatpush1.msra.mxu0 0.0
        %2859 = vmatprep.subr.mxu0 0.0
        %2860 = vmatpush1.msra.mxu0 0.0
        %2861 = vmatprep.subr.mxu0 0.0
        %2862 = vmatpush1.msra.mxu0 0.0
        %2863 = vmatprep.subr.mxu0 0.0
        %2864 = vmatpush1.msra.mxu0 0.0
        %2865 = vmatprep.subr.mxu0 0.0
        %2866 = vmatpush1.msra.mxu0 0.0
        %2867 = vmatprep.subr.mxu0 0.0
        %2868 = vmatpush1.msra.mxu0 0.0
        %2869 = vmatprep.subr.mxu0 0.0
        %2870 = vmatpush1.msra.mxu0 0.0
        %2871 = vmatprep.subr.mxu0 0.0
        %2872 = vmatpush1.msra.mxu0 0.0
        %2873 = vmatprep.subr.mxu0 0.0
        %2874 = vmatpush1.msra.mxu0 0.0
        %2875 = vmatprep.subr.mxu0 0.0
        %2876 = vmatpush1.msra.mxu0 0.0
        %2877 = vmatprep.subr.mxu0 0.0
        %2878 = vmatpush1.msra.mxu0 0.0
        %2879 = vmatprep.mubr.f32.mxu0 0.0
        %2880 = vmatmul.mubr.f32.gmra.mrb[0].mxu0 %v2813
        %v2881 = vpop.f32.mrb[0].mxu0
        %v2882 = vadd.f32 0.0, %v2881
        %v2883 = vpop.f32.mrb[0].mxu0
        %2884 = vdwg.mxu0
        %s2885 = scalar_lea.vmem %s12, 16
        %v2886 = vld [vmem:[%s2885] sm:$0xff]
        %v2888 = vsel %vm1219, %v2809, 0
        %v2891 = vsel %vm1219, %v2882, 0
        %2893 = vmatprep.subr.mxu0 0.0
        %2894 = vmatpush1.msra.mxu0 %v2886
        %2895 = vmatprep.subr.mxu0 0.0
        %2896 = vmatpush1.msra.mxu0 0.0
        %2897 = vmatprep.subr.mxu0 0.0
        %2898 = vmatpush1.msra.mxu0 0.0
        %2899 = vmatprep.subr.mxu0 0.0
        %2900 = vmatpush1.msra.mxu0 0.0
        %2901 = vmatprep.subr.mxu0 0.0
        %2902 = vmatpush1.msra.mxu0 0.0
        %2903 = vmatprep.subr.mxu0 0.0
        %2904 = vmatpush1.msra.mxu0 0.0
        %2905 = vmatprep.subr.mxu0 0.0
        %2906 = vmatpush1.msra.mxu0 0.0
        %2907 = vmatprep.subr.mxu0 0.0
        %2908 = vmatpush1.msra.mxu0 0.0
        %2909 = vmatprep.subr.mxu0 0.0
        %2910 = vmatpush1.msra.mxu0 0.0
        %2911 = vmatprep.subr.mxu0 0.0
        %2912 = vmatpush1.msra.mxu0 0.0
        %2913 = vmatprep.subr.mxu0 0.0
        %2914 = vmatpush1.msra.mxu0 0.0
        %2915 = vmatprep.subr.mxu0 0.0
        %2916 = vmatpush1.msra.mxu0 0.0
        %2917 = vmatprep.subr.mxu0 0.0
        %2918 = vmatpush1.msra.mxu0 0.0
        %2919 = vmatprep.subr.mxu0 0.0
        %2920 = vmatpush1.msra.mxu0 0.0
        %2921 = vmatprep.subr.mxu0 0.0
        %2922 = vmatpush1.msra.mxu0 0.0
        %2923 = vmatprep.subr.mxu0 0.0
        %2924 = vmatpush1.msra.mxu0 0.0
        %2925 = vmatprep.subr.mxu0 0.0
        %2926 = vmatpush1.msra.mxu0 0.0
        %2927 = vmatprep.subr.mxu0 0.0
        %2928 = vmatpush1.msra.mxu0 0.0
        %2929 = vmatprep.subr.mxu0 0.0
        %2930 = vmatpush1.msra.mxu0 0.0
        %2931 = vmatprep.subr.mxu0 0.0
        %2932 = vmatpush1.msra.mxu0 0.0
        %2933 = vmatprep.subr.mxu0 0.0
        %2934 = vmatpush1.msra.mxu0 0.0
        %2935 = vmatprep.subr.mxu0 0.0
        %2936 = vmatpush1.msra.mxu0 0.0
        %2937 = vmatprep.subr.mxu0 0.0
        %2938 = vmatpush1.msra.mxu0 0.0
        %2939 = vmatprep.subr.mxu0 0.0
        %2940 = vmatpush1.msra.mxu0 0.0
        %2941 = vmatprep.subr.mxu0 0.0
        %2942 = vmatpush1.msra.mxu0 0.0
        %2943 = vmatprep.subr.mxu0 0.0
        %2944 = vmatpush1.msra.mxu0 0.0
        %2945 = vmatprep.subr.mxu0 0.0
        %2946 = vmatpush1.msra.mxu0 0.0
        %2947 = vmatprep.subr.mxu0 0.0
        %2948 = vmatpush1.msra.mxu0 0.0
        %2949 = vmatprep.subr.mxu0 0.0
        %2950 = vmatpush1.msra.mxu0 0.0
        %2951 = vmatprep.subr.mxu0 0.0
        %2952 = vmatpush1.msra.mxu0 0.0
        %2953 = vmatprep.subr.mxu0 0.0
        %2954 = vmatpush1.msra.mxu0 0.0
        %2955 = vmatprep.subr.mxu0 0.0
        %2956 = vmatpush1.msra.mxu0 0.0
        %2957 = vmatprep.mubr.f32.mxu0 0.0
        %2958 = vmatmul.mubr.f32.gmra.mrb[0].mxu0 %v2888
        %v2959 = vpop.f32.mrb[0].mxu0
        %v2960 = vadd.f32 0.0, %v2959
        %v2961 = vpop.f32.mrb[0].mxu0
        %2962 = vmatprep.mubr.f32.mxu0 0.0
        %2963 = vmatmul.mubr.f32.gmra.mrb[0].mxu0 %v2891
        %v2964 = vpop.f32.mrb[0].mxu0
        %v2965 = vadd.f32 0.0, %v2964
        %v2966 = vpop.f32.mrb[0].mxu0
        %2967 = vdwg.mxu0
        %v2968 = vadd.f32 %v2289, %v2960
        %v2969 = vadd.f32 %v2294, %v2965
        %s2970 = scalar_lea.vmem %s6, 96
        %v2971 = vld [vmem:[%s2970] sm:$0xff]
        %v2972 = vld [vmem:[%s2970 + $0x8] sm:$0xff]
        %v2973 = vld [vmem:[%s2970 + $0x10] sm:$0xff]
        %v2974 = vld [vmem:[%s2970 + $0x18] sm:$0xff]
        %s2975 = scalar_lea.vmem %s7, 3
        %v2976 = vld [vmem:[%s2975] sm:$0x1]
        %v2978 = vlaneseq
        %v2979 = vshrl.u32 %v2978, 7
        %v2980 = vsub.s32 0, %v2979
        %v2981 = vrot.slane %v2976, %v2980
        %2983 = vmatprep.subr.mxu0 0.0
        %2984 = vmatpush1.msra.mxu0 %v2971
        %2985 = vmatprep.subr.mxu0 0.0
        %2986 = vmatpush1.msra.mxu0 %v2972
        %2987 = vmatprep.subr.mxu0 0.0
        %2988 = vmatpush1.msra.mxu0 %v2973
        %2989 = vmatprep.subr.mxu0 0.0
        %2990 = vmatpush1.msra.mxu0 %v2974
        %2991 = vmatprep.subr.mxu0 0.0
        %2992 = vmatpush1.msra.mxu0 0.0
        %2993 = vmatprep.subr.mxu0 0.0
        %2994 = vmatpush1.msra.mxu0 0.0
        %2995 = vmatprep.subr.mxu0 0.0
        %2996 = vmatpush1.msra.mxu0 0.0
        %2997 = vmatprep.subr.mxu0 0.0
        %2998 = vmatpush1.msra.mxu0 0.0
        %2999 = vmatprep.subr.mxu0 0.0
        %3000 = vmatpush1.msra.mxu0 0.0
        %3001 = vmatprep.subr.mxu0 0.0
        %3002 = vmatpush1.msra.mxu0 0.0
        %3003 = vmatprep.subr.mxu0 0.0
        %3004 = vmatpush1.msra.mxu0 0.0
        %3005 = vmatprep.subr.mxu0 0.0
        %3006 = vmatpush1.msra.mxu0 0.0
        %3007 = vmatprep.subr.mxu0 0.0
        %3008 = vmatpush1.msra.mxu0 0.0
        %3009 = vmatprep.subr.mxu0 0.0
        %3010 = vmatpush1.msra.mxu0 0.0
        %3011 = vmatprep.subr.mxu0 0.0
        %3012 = vmatpush1.msra.mxu0 0.0
        %3013 = vmatprep.subr.mxu0 0.0
        %3014 = vmatpush1.msra.mxu0 0.0
        %3015 = vmatprep.subr.mxu0 0.0
        %3016 = vmatpush1.msra.mxu0 0.0
        %3017 = vmatprep.subr.mxu0 0.0
        %3018 = vmatpush1.msra.mxu0 0.0
        %3019 = vmatprep.subr.mxu0 0.0
        %3020 = vmatpush1.msra.mxu0 0.0
        %3021 = vmatprep.subr.mxu0 0.0
        %3022 = vmatpush1.msra.mxu0 0.0
        %3023 = vmatprep.subr.mxu0 0.0
        %3024 = vmatpush1.msra.mxu0 0.0
        %3025 = vmatprep.subr.mxu0 0.0
        %3026 = vmatpush1.msra.mxu0 0.0
        %3027 = vmatprep.subr.mxu0 0.0
        %3028 = vmatpush1.msra.mxu0 0.0
        %3029 = vmatprep.subr.mxu0 0.0
        %3030 = vmatpush1.msra.mxu0 0.0
        %3031 = vmatprep.subr.mxu0 0.0
        %3032 = vmatpush1.msra.mxu0 0.0
        %3033 = vmatprep.subr.mxu0 0.0
        %3034 = vmatpush1.msra.mxu0 0.0
        %3035 = vmatprep.subr.mxu0 0.0
        %3036 = vmatpush1.msra.mxu0 0.0
        %3037 = vmatprep.subr.mxu0 0.0
        %3038 = vmatpush1.msra.mxu0 0.0
        %3039 = vmatprep.subr.mxu0 0.0
        %3040 = vmatpush1.msra.mxu0 0.0
        %3041 = vmatprep.subr.mxu0 0.0
        %3042 = vmatpush1.msra.mxu0 0.0
        %3043 = vmatprep.subr.mxu0 0.0
        %3044 = vmatpush1.msra.mxu0 0.0
        %3045 = vmatprep.subr.mxu0 0.0
        %3046 = vmatpush1.msra.mxu0 0.0
        %3047 = vmatprep.mubr.f32.mxu0 0.0
        %3048 = vmatmul.mubr.f32.gmra.mrb[0].mxu0 %v965
        %v3049 = vpop.f32.mrb[0].mxu0
        %v3050 = vadd.f32 %v2981, %v3049
        %v3051 = vpop.f32.mrb[0].mxu0
        %3052 = vmatprep.mubr.f32.mxu0 0.0
        %3053 = vmatmul.mubr.f32.gmra.mrb[0].mxu0 %v968
        %v3054 = vpop.f32.mrb[0].mxu0
        %v3055 = vadd.f32 %v2981, %v3054
        %v3056 = vpop.f32.mrb[0].mxu0
        %3057 = vdwg.mxu0
        %s3058 = scalar_lea.vmem %s8, 96
        %v3059 = vld [vmem:[%s3058] sm:$0xff]
        %v3060 = vld [vmem:[%s3058 + $0x8] sm:$0xff]
        %v3061 = vld [vmem:[%s3058 + $0x10] sm:$0xff]
        %v3062 = vld [vmem:[%s3058 + $0x18] sm:$0xff]
        %s3063 = scalar_lea.vmem %s9, 3
        %v3064 = vld [vmem:[%s3063] sm:$0x1]
        %v3066 = vlaneseq
        %v3067 = vshrl.u32 %v3066, 7
        %v3068 = vsub.s32 0, %v3067
        %v3069 = vrot.slane %v3064, %v3068
        %3071 = vmatprep.subr.mxu0 0.0
        %3072 = vmatpush1.msra.mxu0 %v3059
        %3073 = vmatprep.subr.mxu0 0.0
        %3074 = vmatpush1.msra.mxu0 %v3060
        %3075 = vmatprep.subr.mxu0 0.0
        %3076 = vmatpush1.msra.mxu0 %v3061
        %3077 = vmatprep.subr.mxu0 0.0
        %3078 = vmatpush1.msra.mxu0 %v3062
        %3079 = vmatprep.subr.mxu0 0.0
        %3080 = vmatpush1.msra.mxu0 0.0
        %3081 = vmatprep.subr.mxu0 0.0
        %3082 = vmatpush1.msra.mxu0 0.0
        %3083 = vmatprep.subr.mxu0 0.0
        %3084 = vmatpush1.msra.mxu0 0.0
        %3085 = vmatprep.subr.mxu0 0.0
        %3086 = vmatpush1.msra.mxu0 0.0
        %3087 = vmatprep.subr.mxu0 0.0
        %3088 = vmatpush1.msra.mxu0 0.0
        %3089 = vmatprep.subr.mxu0 0.0
        %3090 = vmatpush1.msra.mxu0 0.0
        %3091 = vmatprep.subr.mxu0 0.0
        %3092 = vmatpush1.msra.mxu0 0.0
        %3093 = vmatprep.subr.mxu0 0.0
        %3094 = vmatpush1.msra.mxu0 0.0
        %3095 = vmatprep.subr.mxu0 0.0
        %3096 = vmatpush1.msra.mxu0 0.0
        %3097 = vmatprep.subr.mxu0 0.0
        %3098 = vmatpush1.msra.mxu0 0.0
        %3099 = vmatprep.subr.mxu0 0.0
        %3100 = vmatpush1.msra.mxu0 0.0
        %3101 = vmatprep.subr.mxu0 0.0
        %3102 = vmatpush1.msra.mxu0 0.0
        %3103 = vmatprep.subr.mxu0 0.0
        %3104 = vmatpush1.msra.mxu0 0.0
        %3105 = vmatprep.subr.mxu0 0.0
        %3106 = vmatpush1.msra.mxu0 0.0
        %3107 = vmatprep.subr.mxu0 0.0
        %3108 = vmatpush1.msra.mxu0 0.0
        %3109 = vmatprep.subr.mxu0 0.0
        %3110 = vmatpush1.msra.mxu0 0.0
        %3111 = vmatprep.subr.mxu0 0.0
        %3112 = vmatpush1.msra.mxu0 0.0
        %3113 = vmatprep.subr.mxu0 0.0
        %3114 = vmatpush1.msra.mxu0 0.0
        %3115 = vmatprep.subr.mxu0 0.0
        %3116 = vmatpush1.msra.mxu0 0.0
        %3117 = vmatprep.subr.mxu0 0.0
        %3118 = vmatpush1.msra.mxu0 0.0
        %3119 = vmatprep.subr.mxu0 0.0
        %3120 = vmatpush1.msra.mxu0 0.0
        %3121 = vmatprep.subr.mxu0 0.0
        %3122 = vmatpush1.msra.mxu0 0.0
        %3123 = vmatprep.subr.mxu0 0.0
        %3124 = vmatpush1.msra.mxu0 0.0
        %3125 = vmatprep.subr.mxu0 0.0
        %3126 = vmatpush1.msra.mxu0 0.0
        %3127 = vmatprep.subr.mxu0 0.0
        %3128 = vmatpush1.msra.mxu0 0.0
        %3129 = vmatprep.subr.mxu0 0.0
        %3130 = vmatpush1.msra.mxu0 0.0
        %3131 = vmatprep.subr.mxu0 0.0
        %3132 = vmatpush1.msra.mxu0 0.0
        %3133 = vmatprep.subr.mxu0 0.0
        %3134 = vmatpush1.msra.mxu0 0.0
        %3135 = vmatprep.mubr.f32.mxu0 0.0
        %3136 = vmatmul.mubr.f32.gmra.mrb[0].mxu0 %v965
        %v3137 = vpop.f32.mrb[0].mxu0
        %v3138 = vadd.f32 %v3069, %v3137
        %v3139 = vpop.f32.mrb[0].mxu0
        %3140 = vmatprep.mubr.f32.mxu0 0.0
        %3141 = vmatmul.mubr.f32.gmra.mrb[0].mxu0 %v968
        %v3142 = vpop.f32.mrb[0].mxu0
        %v3143 = vadd.f32 %v3069, %v3142
        %v3144 = vpop.f32.mrb[0].mxu0
        %3145 = vdwg.mxu0
        %s3146 = scalar_lea.vmem %s10, 96
        %v3147 = vld [vmem:[%s3146] sm:$0xff]
        %v3148 = vld [vmem:[%s3146 + $0x8] sm:$0xff]
        %v3149 = vld [vmem:[%s3146 + $0x10] sm:$0xff]
        %v3150 = vld [vmem:[%s3146 + $0x18] sm:$0xff]
        %s3151 = scalar_lea.vmem %s11, 3
        %v3152 = vld [vmem:[%s3151] sm:$0x1]
        %v3154 = vlaneseq
        %v3155 = vshrl.u32 %v3154, 7
        %v3156 = vsub.s32 0, %v3155
        %v3157 = vrot.slane %v3152, %v3156
        %3159 = vmatprep.subr.mxu0 0.0
        %3160 = vmatpush1.msra.mxu0 %v3147
        %3161 = vmatprep.subr.mxu0 0.0
        %3162 = vmatpush1.msra.mxu0 %v3148
        %3163 = vmatprep.subr.mxu0 0.0
        %3164 = vmatpush1.msra.mxu0 %v3149
        %3165 = vmatprep.subr.mxu0 0.0
        %3166 = vmatpush1.msra.mxu0 %v3150
        %3167 = vmatprep.subr.mxu0 0.0
        %3168 = vmatpush1.msra.mxu0 0.0
        %3169 = vmatprep.subr.mxu0 0.0
        %3170 = vmatpush1.msra.mxu0 0.0
        %3171 = vmatprep.subr.mxu0 0.0
        %3172 = vmatpush1.msra.mxu0 0.0
        %3173 = vmatprep.subr.mxu0 0.0
        %3174 = vmatpush1.msra.mxu0 0.0
        %3175 = vmatprep.subr.mxu0 0.0
        %3176 = vmatpush1.msra.mxu0 0.0
        %3177 = vmatprep.subr.mxu0 0.0
        %3178 = vmatpush1.msra.mxu0 0.0
        %3179 = vmatprep.subr.mxu0 0.0
        %3180 = vmatpush1.msra.mxu0 0.0
        %3181 = vmatprep.subr.mxu0 0.0
        %3182 = vmatpush1.msra.mxu0 0.0
        %3183 = vmatprep.subr.mxu0 0.0
        %3184 = vmatpush1.msra.mxu0 0.0
        %3185 = vmatprep.subr.mxu0 0.0
        %3186 = vmatpush1.msra.mxu0 0.0
        %3187 = vmatprep.subr.mxu0 0.0
        %3188 = vmatpush1.msra.mxu0 0.0
        %3189 = vmatprep.subr.mxu0 0.0
        %3190 = vmatpush1.msra.mxu0 0.0
        %3191 = vmatprep.subr.mxu0 0.0
        %3192 = vmatpush1.msra.mxu0 0.0
        %3193 = vmatprep.subr.mxu0 0.0
        %3194 = vmatpush1.msra.mxu0 0.0
        %3195 = vmatprep.subr.mxu0 0.0
        %3196 = vmatpush1.msra.mxu0 0.0
        %3197 = vmatprep.subr.mxu0 0.0
        %3198 = vmatpush1.msra.mxu0 0.0
        %3199 = vmatprep.subr.mxu0 0.0
        %3200 = vmatpush1.msra.mxu0 0.0
        %3201 = vmatprep.subr.mxu0 0.0
        %3202 = vmatpush1.msra.mxu0 0.0
        %3203 = vmatprep.subr.mxu0 0.0
        %3204 = vmatpush1.msra.mxu0 0.0
        %3205 = vmatprep.subr.mxu0 0.0
        %3206 = vmatpush1.msra.mxu0 0.0
        %3207 = vmatprep.subr.mxu0 0.0
        %3208 = vmatpush1.msra.mxu0 0.0
        %3209 = vmatprep.subr.mxu0 0.0
        %3210 = vmatpush1.msra.mxu0 0.0
        %3211 = vmatprep.subr.mxu0 0.0
        %3212 = vmatpush1.msra.mxu0 0.0
        %3213 = vmatprep.subr.mxu0 0.0
        %3214 = vmatpush1.msra.mxu0 0.0
        %3215 = vmatprep.subr.mxu0 0.0
        %3216 = vmatpush1.msra.mxu0 0.0
        %3217 = vmatprep.subr.mxu0 0.0
        %3218 = vmatpush1.msra.mxu0 0.0
        %3219 = vmatprep.subr.mxu0 0.0
        %3220 = vmatpush1.msra.mxu0 0.0
        %3221 = vmatprep.subr.mxu0 0.0
        %3222 = vmatpush1.msra.mxu0 0.0
        %3223 = vmatprep.mubr.f32.mxu0 0.0
        %3224 = vmatmul.mubr.f32.gmra.mrb[0].mxu0 %v965
        %v3225 = vpop.f32.mrb[0].mxu0
        %v3226 = vadd.f32 %v3157, %v3225
        %v3227 = vpop.f32.mrb[0].mxu0
        %3228 = vmatprep.mubr.f32.mxu0 0.0
        %3229 = vmatmul.mubr.f32.gmra.mrb[0].mxu0 %v968
        %v3230 = vpop.f32.mrb[0].mxu0
        %v3231 = vadd.f32 %v3157, %v3230
        %v3232 = vpop.f32.mrb[0].mxu0
        %3233 = vdwg.mxu0
        %v3234 = vmul.f32 %v3050, 0.35355338
        %v3235 = vmul.f32 %v3055, 0.35355338
        %v3237 = vsel %vm1219, %v3234, 0
        %v3240 = vsel %vm1219, %v3138, 0
        %3242 = vmatprep.subr.mxu0 0.0
        %3243 = vmatpush1.xpose.msra.mxu0 %v3240
        %3244 = vmatprep.subr.mxu0 0.0
        %3245 = vmatpush1.xpose.msra.mxu0 0.0
        %3246 = vmatprep.subr.mxu0 0.0
        %3247 = vmatpush1.xpose.msra.mxu0 0.0
        %3248 = vmatprep.subr.mxu0 0.0
        %3249 = vmatpush1.xpose.msra.mxu0 0.0
        %3250 = vmatprep.subr.mxu0 0.0
        %3251 = vmatpush1.xpose.msra.mxu0 0.0
        %3252 = vmatprep.subr.mxu0 0.0
        %3253 = vmatpush1.xpose.msra.mxu0 0.0
        %3254 = vmatprep.subr.mxu0 0.0
        %3255 = vmatpush1.xpose.msra.mxu0 0.0
        %3256 = vmatprep.subr.mxu0 0.0
        %3257 = vmatpush1.xpose.msra.mxu0 0.0
        %3258 = vmatprep.subr.mxu0 0.0
        %3259 = vmatpush1.xpose.msra.mxu0 0.0
        %3260 = vmatprep.subr.mxu0 0.0
        %3261 = vmatpush1.xpose.msra.mxu0 0.0
        %3262 = vmatprep.subr.mxu0 0.0
        %3263 = vmatpush1.xpose.msra.mxu0 0.0
        %3264 = vmatprep.subr.mxu0 0.0
        %3265 = vmatpush1.xpose.msra.mxu0 0.0
        %3266 = vmatprep.subr.mxu0 0.0
        %3267 = vmatpush1.xpose.msra.mxu0 0.0
        %3268 = vmatprep.subr.mxu0 0.0
        %3269 = vmatpush1.xpose.msra.mxu0 0.0
        %3270 = vmatprep.subr.mxu0 0.0
        %3271 = vmatpush1.xpose.msra.mxu0 0.0
        %3272 = vmatprep.subr.mxu0 0.0
        %3273 = vmatpush1.xpose.msra.mxu0 0.0
        %3274 = vmatprep.subr.mxu0 0.0
        %3275 = vmatpush1.xpose.msra.mxu0 0.0
        %3276 = vmatprep.subr.mxu0 0.0
        %3277 = vmatpush1.xpose.msra.mxu0 0.0
        %3278 = vmatprep.subr.mxu0 0.0
        %3279 = vmatpush1.xpose.msra.mxu0 0.0
        %3280 = vmatprep.subr.mxu0 0.0
        %3281 = vmatpush1.xpose.msra.mxu0 0.0
        %3282 = vmatprep.subr.mxu0 0.0
        %3283 = vmatpush1.xpose.msra.mxu0 0.0
        %3284 = vmatprep.subr.mxu0 0.0
        %3285 = vmatpush1.xpose.msra.mxu0 0.0
        %3286 = vmatprep.subr.mxu0 0.0
        %3287 = vmatpush1.xpose.msra.mxu0 0.0
        %3288 = vmatprep.subr.mxu0 0.0
        %3289 = vmatpush1.xpose.msra.mxu0 0.0
        %3290 = vmatprep.subr.mxu0 0.0
        %3291 = vmatpush1.xpose.msra.mxu0 0.0
        %3292 = vmatprep.subr.mxu0 0.0
        %3293 = vmatpush1.xpose.msra.mxu0 0.0
        %3294 = vmatprep.subr.mxu0 0.0
        %3295 = vmatpush1.xpose.msra.mxu0 0.0
        %3296 = vmatprep.subr.mxu0 0.0
        %3297 = vmatpush1.xpose.msra.mxu0 0.0
        %3298 = vmatprep.subr.mxu0 0.0
        %3299 = vmatpush1.xpose.msra.mxu0 0.0
        %3300 = vmatprep.subr.mxu0 0.0
        %3301 = vmatpush1.xpose.msra.mxu0 0.0
        %3302 = vmatprep.subr.mxu0 0.0
        %3303 = vmatpush1.xpose.msra.mxu0 0.0
        %3304 = vmatprep.subr.mxu0 0.0
        %3305 = vmatpush1.xpose.msra.mxu0 0.0
        %3306 = vmatprep.mubr.f32.mxu0 0.0
        %3307 = vmatmul.mubr.f32.gmra.mrb[0].mxu0 %v3237
        %v3308 = vpop.f32.mrb[0].mxu0
        %v3309 = vadd.f32 0.0, %v3308
        %v3310 = vpop.f32.mrb[0].mxu0
        %3311 = vdwg.mxu0
        %v3313 = vsel %vm1219, %v3235, 0
        %v3316 = vsel %vm1219, %v3143, 0
        %3318 = vmatprep.subr.mxu0 0.0
        %3319 = vmatpush1.xpose.msra.mxu0 %v3316
        %3320 = vmatprep.subr.mxu0 0.0
        %3321 = vmatpush1.xpose.msra.mxu0 0.0
        %3322 = vmatprep.subr.mxu0 0.0
        %3323 = vmatpush1.xpose.msra.mxu0 0.0
        %3324 = vmatprep.subr.mxu0 0.0
        %3325 = vmatpush1.xpose.msra.mxu0 0.0
        %3326 = vmatprep.subr.mxu0 0.0
        %3327 = vmatpush1.xpose.msra.mxu0 0.0
        %3328 = vmatprep.subr.mxu0 0.0
        %3329 = vmatpush1.xpose.msra.mxu0 0.0
        %3330 = vmatprep.subr.mxu0 0.0
        %3331 = vmatpush1.xpose.msra.mxu0 0.0
        %3332 = vmatprep.subr.mxu0 0.0
        %3333 = vmatpush1.xpose.msra.mxu0 0.0
        %3334 = vmatprep.subr.mxu0 0.0
        %3335 = vmatpush1.xpose.msra.mxu0 0.0
        %3336 = vmatprep.subr.mxu0 0.0
        %3337 = vmatpush1.xpose.msra.mxu0 0.0
        %3338 = vmatprep.subr.mxu0 0.0
        %3339 = vmatpush1.xpose.msra.mxu0 0.0
        %3340 = vmatprep.subr.mxu0 0.0
        %3341 = vmatpush1.xpose.msra.mxu0 0.0
        %3342 = vmatprep.subr.mxu0 0.0
        %3343 = vmatpush1.xpose.msra.mxu0 0.0
        %3344 = vmatprep.subr.mxu0 0.0
        %3345 = vmatpush1.xpose.msra.mxu0 0.0
        %3346 = vmatprep.subr.mxu0 0.0
        %3347 = vmatpush1.xpose.msra.mxu0 0.0
        %3348 = vmatprep.subr.mxu0 0.0
        %3349 = vmatpush1.xpose.msra.mxu0 0.0
        %3350 = vmatprep.subr.mxu0 0.0
        %3351 = vmatpush1.xpose.msra.mxu0 0.0
        %3352 = vmatprep.subr.mxu0 0.0
        %3353 = vmatpush1.xpose.msra.mxu0 0.0
        %3354 = vmatprep.subr.mxu0 0.0
        %3355 = vmatpush1.xpose.msra.mxu0 0.0
        %3356 = vmatprep.subr.mxu0 0.0
        %3357 = vmatpush1.xpose.msra.mxu0 0.0
        %3358 = vmatprep.subr.mxu0 0.0
        %3359 = vmatpush1.xpose.msra.mxu0 0.0
        %3360 = vmatprep.subr.mxu0 0.0
        %3361 = vmatpush1.xpose.msra.mxu0 0.0
        %3362 = vmatprep.subr.mxu0 0.0
        %3363 = vmatpush1.xpose.msra.mxu0 0.0
        %3364 = vmatprep.subr.mxu0 0.0
        %3365 = vmatpush1.xpose.msra.mxu0 0.0
        %3366 = vmatprep.subr.mxu0 0.0
        %3367 = vmatpush1.xpose.msra.mxu0 0.0
        %3368 = vmatprep.subr.mxu0 0.0
        %3369 = vmatpush1.xpose.msra.mxu0 0.0
        %3370 = vmatprep.subr.mxu0 0.0
        %3371 = vmatpush1.xpose.msra.mxu0 0.0
        %3372 = vmatprep.subr.mxu0 0.0
        %3373 = vmatpush1.xpose.msra.mxu0 0.0
        %3374 = vmatprep.subr.mxu0 0.0
        %3375 = vmatpush1.xpose.msra.mxu0 0.0
        %3376 = vmatprep.subr.mxu0 0.0
        %3377 = vmatpush1.xpose.msra.mxu0 0.0
        %3378 = vmatprep.subr.mxu0 0.0
        %3379 = vmatpush1.xpose.msra.mxu0 0.0
        %3380 = vmatprep.subr.mxu0 0.0
        %3381 = vmatpush1.xpose.msra.mxu0 0.0
        %3382 = vmatprep.mubr.f32.mxu0 0.0
        %3383 = vmatmul.mubr.f32.gmra.mrb[0].mxu0 %v3313
        %v3384 = vpop.f32.mrb[0].mxu0
        %v3385 = vadd.f32 0.0, %v3384
        %v3386 = vpop.f32.mrb[0].mxu0
        %3387 = vdwg.mxu0
        %v3388 = vsel %vm1372, -3.4028235e+38, %v3309
        %v3389 = vsel %vm1373, -3.4028235e+38, %v3385
        %v3390 = vsel %vm1219, %v3388, -inf
        %3391 = vmax.xlane.f32.xlu0 %v3390
        %v3392 = vpop.xlane.xlu0 %3391
        %v3393 = vsel %vm1219, %v3389, -inf
        %3394 = vmax.xlane.f32.xlu0 %v3393
        %v3395 = vpop.xlane.xlu0 %3394
        %v3396 = vsub.f32 %v3388, %v3392
        %v3397 = vsub.f32 %v3389, %v3395
        %v3398 = vmul.f32 %v3396, 1.442695
        %v3399 = vpow.pop %v3398
        %v3400 = vmul.f32 %v3397, 1.442695
        %v3401 = vpow.pop %v3400
        %v3402 = vsel %vm1219, %v3399, 0.0
        %3403 = vadd.xlane.f32.xlu0 %v3402
        %v3404 = vpop.xlane.xlu0 %3403
        %v3405 = vsel %vm1219, %v3401, 0.0
        %3406 = vadd.xlane.f32.xlu0 %v3405
        %v3407 = vpop.xlane.xlu0 %3406
        %v3408 = vrcp.pop %v3404
        %v3409 = vmul.f32 %v3399, %v3408
        %v3410 = vrcp.pop %v3407
        %v3411 = vmul.f32 %v3401, %v3410
        %v3413 = vsel %vm1219, %v3409, 0
        %3415 = vmatprep.subr.mxu0 0.0
        %3416 = vmatpush1.msra.mxu0 %v3226
        %3417 = vmatprep.subr.mxu0 0.0
        %3418 = vmatpush1.msra.mxu0 0.0
        %3419 = vmatprep.subr.mxu0 0.0
        %3420 = vmatpush1.msra.mxu0 0.0
        %3421 = vmatprep.subr.mxu0 0.0
        %3422 = vmatpush1.msra.mxu0 0.0
        %3423 = vmatprep.subr.mxu0 0.0
        %3424 = vmatpush1.msra.mxu0 0.0
        %3425 = vmatprep.subr.mxu0 0.0
        %3426 = vmatpush1.msra.mxu0 0.0
        %3427 = vmatprep.subr.mxu0 0.0
        %3428 = vmatpush1.msra.mxu0 0.0
        %3429 = vmatprep.subr.mxu0 0.0
        %3430 = vmatpush1.msra.mxu0 0.0
        %3431 = vmatprep.subr.mxu0 0.0
        %3432 = vmatpush1.msra.mxu0 0.0
        %3433 = vmatprep.subr.mxu0 0.0
        %3434 = vmatpush1.msra.mxu0 0.0
        %3435 = vmatprep.subr.mxu0 0.0
        %3436 = vmatpush1.msra.mxu0 0.0
        %3437 = vmatprep.subr.mxu0 0.0
        %3438 = vmatpush1.msra.mxu0 0.0
        %3439 = vmatprep.subr.mxu0 0.0
        %3440 = vmatpush1.msra.mxu0 0.0
        %3441 = vmatprep.subr.mxu0 0.0
        %3442 = vmatpush1.msra.mxu0 0.0
        %3443 = vmatprep.subr.mxu0 0.0
        %3444 = vmatpush1.msra.mxu0 0.0
        %3445 = vmatprep.subr.mxu0 0.0
        %3446 = vmatpush1.msra.mxu0 0.0
        %3447 = vmatprep.subr.mxu0 0.0
        %3448 = vmatpush1.msra.mxu0 0.0
        %3449 = vmatprep.subr.mxu0 0.0
        %3450 = vmatpush1.msra.mxu0 0.0
        %3451 = vmatprep.subr.mxu0 0.0
        %3452 = vmatpush1.msra.mxu0 0.0
        %3453 = vmatprep.subr.mxu0 0.0
        %3454 = vmatpush1.msra.mxu0 0.0
        %3455 = vmatprep.subr.mxu0 0.0
        %3456 = vmatpush1.msra.mxu0 0.0
        %3457 = vmatprep.subr.mxu0 0.0
        %3458 = vmatpush1.msra.mxu0 0.0
        %3459 = vmatprep.subr.mxu0 0.0
        %3460 = vmatpush1.msra.mxu0 0.0
        %3461 = vmatprep.subr.mxu0 0.0
        %3462 = vmatpush1.msra.mxu0 0.0
        %3463 = vmatprep.subr.mxu0 0.0
        %3464 = vmatpush1.msra.mxu0 0.0
        %3465 = vmatprep.subr.mxu0 0.0
        %3466 = vmatpush1.msra.mxu0 0.0
        %3467 = vmatprep.subr.mxu0 0.0
        %3468 = vmatpush1.msra.mxu0 0.0
        %3469 = vmatprep.subr.mxu0 0.0
        %3470 = vmatpush1.msra.mxu0 0.0
        %3471 = vmatprep.subr.mxu0 0.0
        %3472 = vmatpush1.msra.mxu0 0.0
        %3473 = vmatprep.subr.mxu0 0.0
        %3474 = vmatpush1.msra.mxu0 0.0
        %3475 = vmatprep.subr.mxu0 0.0
        %3476 = vmatpush1.msra.mxu0 0.0
        %3477 = vmatprep.subr.mxu0 0.0
        %3478 = vmatpush1.msra.mxu0 0.0
        %3479 = vmatprep.mubr.f32.mxu0 0.0
        %3480 = vmatmul.mubr.f32.gmra.mrb[0].mxu0 %v3413
        %v3481 = vpop.f32.mrb[0].mxu0
        %v3482 = vadd.f32 0.0, %v3481
        %v3483 = vpop.f32.mrb[0].mxu0
        %3484 = vdwg.mxu0
        %v3486 = vsel %vm1219, %v3411, 0
        %3488 = vmatprep.subr.mxu0 0.0
        %3489 = vmatpush1.msra.mxu0 %v3231
        %3490 = vmatprep.subr.mxu0 0.0
        %3491 = vmatpush1.msra.mxu0 0.0
        %3492 = vmatprep.subr.mxu0 0.0
        %3493 = vmatpush1.msra.mxu0 0.0
        %3494 = vmatprep.subr.mxu0 0.0
        %3495 = vmatpush1.msra.mxu0 0.0
        %3496 = vmatprep.subr.mxu0 0.0
        %3497 = vmatpush1.msra.mxu0 0.0
        %3498 = vmatprep.subr.mxu0 0.0
        %3499 = vmatpush1.msra.mxu0 0.0
        %3500 = vmatprep.subr.mxu0 0.0
        %3501 = vmatpush1.msra.mxu0 0.0
        %3502 = vmatprep.subr.mxu0 0.0
        %3503 = vmatpush1.msra.mxu0 0.0
        %3504 = vmatprep.subr.mxu0 0.0
        %3505 = vmatpush1.msra.mxu0 0.0
        %3506 = vmatprep.subr.mxu0 0.0
        %3507 = vmatpush1.msra.mxu0 0.0
        %3508 = vmatprep.subr.mxu0 0.0
        %3509 = vmatpush1.msra.mxu0 0.0
        %3510 = vmatprep.subr.mxu0 0.0
        %3511 = vmatpush1.msra.mxu0 0.0
        %3512 = vmatprep.subr.mxu0 0.0
        %3513 = vmatpush1.msra.mxu0 0.0
        %3514 = vmatprep.subr.mxu0 0.0
        %3515 = vmatpush1.msra.mxu0 0.0
        %3516 = vmatprep.subr.mxu0 0.0
        %3517 = vmatpush1.msra.mxu0 0.0
        %3518 = vmatprep.subr.mxu0 0.0
        %3519 = vmatpush1.msra.mxu0 0.0
        %3520 = vmatprep.subr.mxu0 0.0
        %3521 = vmatpush1.msra.mxu0 0.0
        %3522 = vmatprep.subr.mxu0 0.0
        %3523 = vmatpush1.msra.mxu0 0.0
        %3524 = vmatprep.subr.mxu0 0.0
        %3525 = vmatpush1.msra.mxu0 0.0
        %3526 = vmatprep.subr.mxu0 0.0
        %3527 = vmatpush1.msra.mxu0 0.0
        %3528 = vmatprep.subr.mxu0 0.0
        %3529 = vmatpush1.msra.mxu0 0.0
        %3530 = vmatprep.subr.mxu0 0.0
        %3531 = vmatpush1.msra.mxu0 0.0
        %3532 = vmatprep.subr.mxu0 0.0
        %3533 = vmatpush1.msra.mxu0 0.0
        %3534 = vmatprep.subr.mxu0 0.0
        %3535 = vmatpush1.msra.mxu0 0.0
        %3536 = vmatprep.subr.mxu0 0.0
        %3537 = vmatpush1.msra.mxu0 0.0
        %3538 = vmatprep.subr.mxu0 0.0
        %3539 = vmatpush1.msra.mxu0 0.0
        %3540 = vmatprep.subr.mxu0 0.0
        %3541 = vmatpush1.msra.mxu0 0.0
        %3542 = vmatprep.subr.mxu0 0.0
        %3543 = vmatpush1.msra.mxu0 0.0
        %3544 = vmatprep.subr.mxu0 0.0
        %3545 = vmatpush1.msra.mxu0 0.0
        %3546 = vmatprep.subr.mxu0 0.0
        %3547 = vmatpush1.msra.mxu0 0.0
        %3548 = vmatprep.subr.mxu0 0.0
        %3549 = vmatpush1.msra.mxu0 0.0
        %3550 = vmatprep.subr.mxu0 0.0
        %3551 = vmatpush1.msra.mxu0 0.0
        %3552 = vmatprep.mubr.f32.mxu0 0.0
        %3553 = vmatmul.mubr.f32.gmra.mrb[0].mxu0 %v3486
        %v3554 = vpop.f32.mrb[0].mxu0
        %v3555 = vadd.f32 0.0, %v3554
        %v3556 = vpop.f32.mrb[0].mxu0
        %3557 = vdwg.mxu0
        %s3558 = scalar_lea.vmem %s12, 24
        %v3559 = vld [vmem:[%s3558] sm:$0xff]
        %v3561 = vsel %vm1219, %v3482, 0
        %v3564 = vsel %vm1219, %v3555, 0
        %3566 = vmatprep.subr.mxu0 0.0
        %3567 = vmatpush1.msra.mxu0 %v3559
        %3568 = vmatprep.subr.mxu0 0.0
        %3569 = vmatpush1.msra.mxu0 0.0
        %3570 = vmatprep.subr.mxu0 0.0
        %3571 = vmatpush1.msra.mxu0 0.0
        %3572 = vmatprep.subr.mxu0 0.0
        %3573 = vmatpush1.msra.mxu0 0.0
        %3574 = vmatprep.subr.mxu0 0.0
        %3575 = vmatpush1.msra.mxu0 0.0
        %3576 = vmatprep.subr.mxu0 0.0
        %3577 = vmatpush1.msra.mxu0 0.0
        %3578 = vmatprep.subr.mxu0 0.0
        %3579 = vmatpush1.msra.mxu0 0.0
        %3580 = vmatprep.subr.mxu0 0.0
        %3581 = vmatpush1.msra.mxu0 0.0
        %3582 = vmatprep.subr.mxu0 0.0
        %3583 = vmatpush1.msra.mxu0 0.0
        %3584 = vmatprep.subr.mxu0 0.0
        %3585 = vmatpush1.msra.mxu0 0.0
        %3586 = vmatprep.subr.mxu0 0.0
        %3587 = vmatpush1.msra.mxu0 0.0
        %3588 = vmatprep.subr.mxu0 0.0
        %3589 = vmatpush1.msra.mxu0 0.0
        %3590 = vmatprep.subr.mxu0 0.0
        %3591 = vmatpush1.msra.mxu0 0.0
        %3592 = vmatprep.subr.mxu0 0.0
        %3593 = vmatpush1.msra.mxu0 0.0
        %3594 = vmatprep.subr.mxu0 0.0
        %3595 = vmatpush1.msra.mxu0 0.0
        %3596 = vmatprep.subr.mxu0 0.0
        %3597 = vmatpush1.msra.mxu0 0.0
        %3598 = vmatprep.subr.mxu0 0.0
        %3599 = vmatpush1.msra.mxu0 0.0
        %3600 = vmatprep.subr.mxu0 0.0
        %3601 = vmatpush1.msra.mxu0 0.0
        %3602 = vmatprep.subr.mxu0 0.0
        %3603 = vmatpush1.msra.mxu0 0.0
        %3604 = vmatprep.subr.mxu0 0.0
        %3605 = vmatpush1.msra.mxu0 0.0
        %3606 = vmatprep.subr.mxu0 0.0
        %3607 = vmatpush1.msra.mxu0 0.0
        %3608 = vmatprep.subr.mxu0 0.0
        %3609 = vmatpush1.msra.mxu0 0.0
        %3610 = vmatprep.subr.mxu0 0.0
        %3611 = vmatpush1.msra.mxu0 0.0
        %3612 = vmatprep.subr.mxu0 0.0
        %3613 = vmatpush1.msra.mxu0 0.0
        %3614 = vmatprep.subr.mxu0 0.0
        %3615 = vmatpush1.msra.mxu0 0.0
        %3616 = vmatprep.subr.mxu0 0.0
        %3617 = vmatpush1.msra.mxu0 0.0
        %3618 = vmatprep.subr.mxu0 0.0
        %3619 = vmatpush1.msra.mxu0 0.0
        %3620 = vmatprep.subr.mxu0 0.0
        %3621 = vmatpush1.msra.mxu0 0.0
        %3622 = vmatprep.subr.mxu0 0.0
        %3623 = vmatpush1.msra.mxu0 0.0
        %3624 = vmatprep.subr.mxu0 0.0
        %3625 = vmatpush1.msra.mxu0 0.0
        %3626 = vmatprep.subr.mxu0 0.0
        %3627 = vmatpush1.msra.mxu0 0.0
        %3628 = vmatprep.subr.mxu0 0.0
        %3629 = vmatpush1.msra.mxu0 0.0
        %3630 = vmatprep.mubr.f32.mxu0 0.0
        %3631 = vmatmul.mubr.f32.gmra.mrb[0].mxu0 %v3561
        %v3632 = vpop.f32.mrb[0].mxu0
        %v3633 = vadd.f32 0.0, %v3632
        %v3634 = vpop.f32.mrb[0].mxu0
        %3635 = vmatprep.mubr.f32.mxu0 0.0
        %3636 = vmatmul.mubr.f32.gmra.mrb[0].mxu0 %v3564
        %v3637 = vpop.f32.mrb[0].mxu0
        %v3638 = vadd.f32 0.0, %v3637
        %v3639 = vpop.f32.mrb[0].mxu0
        %3640 = vdwg.mxu0
        %v3641 = vadd.f32 %v2968, %v3633
        %v3642 = vadd.f32 %v2969, %v3638
        %v3643 = vld [vmem:[%s13] sm:$0x1]
        %v3645 = vlaneseq
        %v3646 = vshrl.u32 %v3645, 7
        %v3647 = vsub.s32 0, %v3646
        %v3648 = vrot.slane %v3643, %v3647
        %v3650 = vadd.f32 %v3641, %v3648
        %v3651 = vadd.f32 %v3642, %v3648
        %v3652 = vadd.f32 %v3650, %v937
        %v3653 = vadd.f32 %v3651, %v938
        %v3654 = vld [vmem:[%s14] sm:$0x1]
        %v3655 = vld [vmem:[%s15] sm:$0x1]
        %v3656 = vsel %vm895, %v3652, 0.0
        %3657 = vadd.xlane.f32.xlu0 %v3656
        %v3658 = vpop.xlane.xlu0 %3657
        %v3659 = vsel %vm895, %v3653, 0.0
        %3660 = vadd.xlane.f32.xlu0 %v3659
        %v3661 = vpop.xlane.xlu0 %3660
        %v3662 = vmul.f32 %v3658, %v902
        %v3663 = vmul.f32 %v3661, %v902
        %v3664 = vsub.f32 %v3652, %v3662
        %v3665 = vsub.f32 %v3653, %v3663
        %v3666 = vmul.f32 %v3664, %v3664
        %v3667 = vmul.f32 %v3665, %v3665
        %v3668 = vsel %vm895, %v3666, 0.0
        %3669 = vadd.xlane.f32.xlu0 %v3668
        %v3670 = vpop.xlane.xlu0 %3669
        %v3671 = vsel %vm895, %v3667, 0.0
        %3672 = vadd.xlane.f32.xlu0 %v3671
        %v3673 = vpop.xlane.xlu0 %3672
        %v3674 = vmul.f32 %v3670, %v902
        %v3675 = vmul.f32 %v3673, %v902
        %v3676 = vadd.f32 %v3674, 1e-12
        %v3677 = vadd.f32 %v3675, 1e-12
        %v3678 = vrsqrt.pop %v3676
        %v3679 = vrsqrt.pop %v3677
        %v3680 = vmul.f32 %v3664, %v3678
        %v3681 = vmul.f32 %v3665, %v3679
        %v3683 = vlaneseq
        %v3684 = vshrl.u32 %v3683, 7
        %v3685 = vsub.s32 0, %v3684
        %v3686 = vrot.slane %v3654, %v3685
        %v3688 = vmul.f32 %v3680, %v3686
        %v3689 = vmul.f32 %v3681, %v3686
        %v3691 = vlaneseq
        %v3692 = vshrl.u32 %v3691, 7
        %v3693 = vsub.s32 0, %v3692
        %v3694 = vrot.slane %v3655, %v3693
        %v3696 = vadd.f32 %v3688, %v3694
        %v3697 = vadd.f32 %v3689, %v3694
        %v3698 = vld [vmem:[%s16] sm:$0xff]
        %v3699 = vld [vmem:[%s16 + $0x8] sm:$0xff]
        %v3700 = vld [vmem:[%s16 + $0x10] sm:$0xff]
        %v3701 = vld [vmem:[%s16 + $0x18] sm:$0xff]
        %v3702 = vld [vmem:[%s17] sm:$0x1]
        %v3704 = vlaneseq
        %v3705 = vshrl.u32 %v3704, 7
        %v3706 = vsub.s32 0, %v3705
        %v3707 = vrot.slane %v3702, %v3706
        %v3710 = vsel %vm895, %v3696, 0
        %v3713 = vsel %vm895, %v3697, 0
        %3715 = vmatprep.subr.mxu0 0.0
        %3716 = vmatpush1.msra.mxu0 %v3698
        %3717 = vmatprep.subr.mxu0 0.0
        %3718 = vmatpush1.msra.mxu0 %v3699
        %3719 = vmatprep.subr.mxu0 0.0
        %3720 = vmatpush1.msra.mxu0 %v3700
        %3721 = vmatprep.subr.mxu0 0.0
        %3722 = vmatpush1.msra.mxu0 %v3701
        %3723 = vmatprep.subr.mxu0 0.0
        %3724 = vmatpush1.msra.mxu0 0.0
        %3725 = vmatprep.subr.mxu0 0.0
        %3726 = vmatpush1.msra.mxu0 0.0
        %3727 = vmatprep.subr.mxu0 0.0
        %3728 = vmatpush1.msra.mxu0 0.0
        %3729 = vmatprep.subr.mxu0 0.0
        %3730 = vmatpush1.msra.mxu0 0.0
        %3731 = vmatprep.subr.mxu0 0.0
        %3732 = vmatpush1.msra.mxu0 0.0
        %3733 = vmatprep.subr.mxu0 0.0
        %3734 = vmatpush1.msra.mxu0 0.0
        %3735 = vmatprep.subr.mxu0 0.0
        %3736 = vmatpush1.msra.mxu0 0.0
        %3737 = vmatprep.subr.mxu0 0.0
        %3738 = vmatpush1.msra.mxu0 0.0
        %3739 = vmatprep.subr.mxu0 0.0
        %3740 = vmatpush1.msra.mxu0 0.0
        %3741 = vmatprep.subr.mxu0 0.0
        %3742 = vmatpush1.msra.mxu0 0.0
        %3743 = vmatprep.subr.mxu0 0.0
        %3744 = vmatpush1.msra.mxu0 0.0
        %3745 = vmatprep.subr.mxu0 0.0
        %3746 = vmatpush1.msra.mxu0 0.0
        %3747 = vmatprep.subr.mxu0 0.0
        %3748 = vmatpush1.msra.mxu0 0.0
        %3749 = vmatprep.subr.mxu0 0.0
        %3750 = vmatpush1.msra.mxu0 0.0
        %3751 = vmatprep.subr.mxu0 0.0
        %3752 = vmatpush1.msra.mxu0 0.0
        %3753 = vmatprep.subr.mxu0 0.0
        %3754 = vmatpush1.msra.mxu0 0.0
        %3755 = vmatprep.subr.mxu0 0.0
        %3756 = vmatpush1.msra.mxu0 0.0
        %3757 = vmatprep.subr.mxu0 0.0
        %3758 = vmatpush1.msra.mxu0 0.0
        %3759 = vmatprep.subr.mxu0 0.0
        %3760 = vmatpush1.msra.mxu0 0.0
        %3761 = vmatprep.subr.mxu0 0.0
        %3762 = vmatpush1.msra.mxu0 0.0
        %3763 = vmatprep.subr.mxu0 0.0
        %3764 = vmatpush1.msra.mxu0 0.0
        %3765 = vmatprep.subr.mxu0 0.0
        %3766 = vmatpush1.msra.mxu0 0.0
        %3767 = vmatprep.subr.mxu0 0.0
        %3768 = vmatpush1.msra.mxu0 0.0
        %3769 = vmatprep.subr.mxu0 0.0
        %3770 = vmatpush1.msra.mxu0 0.0
        %3771 = vmatprep.subr.mxu0 0.0
        %3772 = vmatpush1.msra.mxu0 0.0
        %3773 = vmatprep.subr.mxu0 0.0
        %3774 = vmatpush1.msra.mxu0 0.0
        %3775 = vmatprep.subr.mxu0 0.0
        %3776 = vmatpush1.msra.mxu0 0.0
        %3777 = vmatprep.subr.mxu0 0.0
        %3778 = vmatpush1.msra.mxu0 0.0
        %3779 = vmatprep.mubr.f32.mxu0 0.0
        %3780 = vmatmul.mubr.f32.gmra.mrb[0].mxu0 %v3710
        %v3781 = vpop.f32.mrb[0].mxu0
        %v3782 = vadd.f32 %v3707, %v3781
        %v3783 = vpop.f32.mrb[0].mxu0
        %3784 = vmatprep.mubr.f32.mxu0 0.0
        %3785 = vmatmul.mubr.f32.gmra.mrb[0].mxu0 %v3713
        %v3786 = vpop.f32.mrb[0].mxu0
        %v3787 = vadd.f32 %v3707, %v3786
        %v3788 = vpop.f32.mrb[0].mxu0
        %3789 = vdwg.mxu0
        %v3790 = vmul.f32 %v3782, 0.5
        %v3791 = vmul.f32 %v3787, 0.5
        %v3792 = vmul.f32 %v3782, 0.044715
        %v3793 = vmul.f32 %v3787, 0.044715
        %v3794 = vmul.f32 %v3792, %v3782
        %v3795 = vmul.f32 %v3793, %v3787
        %v3796 = vmul.f32 %v3794, %v3782
        %v3797 = vmul.f32 %v3795, %v3787
        %v3798 = vadd.f32 %v3782, %v3796
        %v3799 = vadd.f32 %v3787, %v3797
        %v3800 = vmul.f32 %v3798, 0.7978846
        %v3801 = vmul.f32 %v3799, 0.7978846
        %v3802 = vtanh.pop %v3800
        %v3803 = vtanh.pop %v3801
        %v3804 = vadd.f32 %v3802, 1.0
        %v3805 = vadd.f32 %v3803, 1.0
        %v3806 = vmul.f32 %v3790, %v3804
        %v3807 = vmul.f32 %v3791, %v3805
        %v3808 = vld [vmem:[%s18] sm:$0xff]
        %v3809 = vld [vmem:[%s18 + $0x8] sm:$0xff]
        %v3810 = vld [vmem:[%s18 + $0x10] sm:$0xff]
        %v3811 = vld [vmem:[%s18 + $0x18] sm:$0xff]
        %v3812 = vld [vmem:[%s18 + $0x20] sm:$0xff]
        %v3813 = vld [vmem:[%s18 + $0x28] sm:$0xff]
        %v3814 = vld [vmem:[%s18 + $0x30] sm:$0xff]
        %v3815 = vld [vmem:[%s18 + $0x38] sm:$0xff]
        %v3816 = vld [vmem:[%s18 + $0x40] sm:$0xff]
        %v3817 = vld [vmem:[%s18 + $0x48] sm:$0xff]
        %v3818 = vld [vmem:[%s18 + $0x50] sm:$0xff]
        %v3819 = vld [vmem:[%s18 + $0x58] sm:$0xff]
        %v3820 = vld [vmem:[%s18 + $0x60] sm:$0xff]
        %v3821 = vld [vmem:[%s18 + $0x68] sm:$0xff]
        %v3822 = vld [vmem:[%s18 + $0x70] sm:$0xff]
        %v3823 = vld [vmem:[%s18 + $0x78] sm:$0xff]
        %v3824 = vld [vmem:[%s19] sm:$0x1]
        %v3826 = vlaneseq
        %v3827 = vshrl.u32 %v3826, 7
        %v3828 = vsub.s32 0, %v3827
        %v3829 = vrot.slane %v3824, %v3828
        %3831 = vmatprep.subr.mxu0 0.0
        %3832 = vmatpush1.msra.mxu0 %v3808
        %3833 = vmatprep.subr.mxu0 0.0
        %3834 = vmatpush1.msra.mxu0 %v3809
        %3835 = vmatprep.subr.mxu0 0.0
        %3836 = vmatpush1.msra.mxu0 %v3810
        %3837 = vmatprep.subr.mxu0 0.0
        %3838 = vmatpush1.msra.mxu0 %v3811
        %3839 = vmatprep.subr.mxu0 0.0
        %3840 = vmatpush1.msra.mxu0 %v3812
        %3841 = vmatprep.subr.mxu0 0.0
        %3842 = vmatpush1.msra.mxu0 %v3813
        %3843 = vmatprep.subr.mxu0 0.0
        %3844 = vmatpush1.msra.mxu0 %v3814
        %3845 = vmatprep.subr.mxu0 0.0
        %3846 = vmatpush1.msra.mxu0 %v3815
        %3847 = vmatprep.subr.mxu0 0.0
        %3848 = vmatpush1.msra.mxu0 %v3816
        %3849 = vmatprep.subr.mxu0 0.0
        %3850 = vmatpush1.msra.mxu0 %v3817
        %3851 = vmatprep.subr.mxu0 0.0
        %3852 = vmatpush1.msra.mxu0 %v3818
        %3853 = vmatprep.subr.mxu0 0.0
        %3854 = vmatpush1.msra.mxu0 %v3819
        %3855 = vmatprep.subr.mxu0 0.0
        %3856 = vmatpush1.msra.mxu0 %v3820
        %3857 = vmatprep.subr.mxu0 0.0
        %3858 = vmatpush1.msra.mxu0 %v3821
        %3859 = vmatprep.subr.mxu0 0.0
        %3860 = vmatpush1.msra.mxu0 %v3822
        %3861 = vmatprep.subr.mxu0 0.0
        %3862 = vmatpush1.msra.mxu0 %v3823
        %3863 = vmatprep.subr.mxu0 0.0
        %3864 = vmatpush1.msra.mxu0 0.0
        %3865 = vmatprep.subr.mxu0 0.0
        %3866 = vmatpush1.msra.mxu0 0.0
        %3867 = vmatprep.subr.mxu0 0.0
        %3868 = vmatpush1.msra.mxu0 0.0
        %3869 = vmatprep.subr.mxu0 0.0
        %3870 = vmatpush1.msra.mxu0 0.0
        %3871 = vmatprep.subr.mxu0 0.0
        %3872 = vmatpush1.msra.mxu0 0.0
        %3873 = vmatprep.subr.mxu0 0.0
        %3874 = vmatpush1.msra.mxu0 0.0
        %3875 = vmatprep.subr.mxu0 0.0
        %3876 = vmatpush1.msra.mxu0 0.0
        %3877 = vmatprep.subr.mxu0 0.0
        %3878 = vmatpush1.msra.mxu0 0.0
        %3879 = vmatprep.subr.mxu0 0.0
        %3880 = vmatpush1.msra.mxu0 0.0
        %3881 = vmatprep.subr.mxu0 0.0
        %3882 = vmatpush1.msra.mxu0 0.0
        %3883 = vmatprep.subr.mxu0 0.0
        %3884 = vmatpush1.msra.mxu0 0.0
        %3885 = vmatprep.subr.mxu0 0.0
        %3886 = vmatpush1.msra.mxu0 0.0
        %3887 = vmatprep.subr.mxu0 0.0
        %3888 = vmatpush1.msra.mxu0 0.0
        %3889 = vmatprep.subr.mxu0 0.0
        %3890 = vmatpush1.msra.mxu0 0.0
        %3891 = vmatprep.subr.mxu0 0.0
        %3892 = vmatpush1.msra.mxu0 0.0
        %3893 = vmatprep.subr.mxu0 0.0
        %3894 = vmatpush1.msra.mxu0 0.0
        %3895 = vmatprep.mubr.f32.mxu0 0.0
        %3896 = vmatmul.mubr.f32.gmra.mrb[0].mxu0 %v3806
        %v3897 = vpop.f32.mrb[0].mxu0
        %v3898 = vadd.f32 %v3829, %v3897
        %v3899 = vpop.f32.mrb[0].mxu0
        %3900 = vmatprep.mubr.f32.mxu0 0.0
        %3901 = vmatmul.mubr.f32.gmra.mrb[0].mxu0 %v3807
        %v3902 = vpop.f32.mrb[0].mxu0
        %v3903 = vadd.f32 %v3829, %v3902
        %v3904 = vpop.f32.mrb[0].mxu0
        %3905 = vdwg.mxu0
        %v3906 = vadd.f32 %v3898, %v3696
        %v3907 = vadd.f32 %v3903, %v3697
        %v3908 = vld [vmem:[%s20] sm:$0x1]
        %v3909 = vld [vmem:[%s21] sm:$0x1]
        %v3910 = vsel %vm895, %v3906, 0.0
        %3911 = vadd.xlane.f32.xlu0 %v3910
        %v3912 = vpop.xlane.xlu0 %3911
        %v3913 = vsel %vm895, %v3907, 0.0
        %3914 = vadd.xlane.f32.xlu0 %v3913
        %v3915 = vpop.xlane.xlu0 %3914
        %v3916 = vmul.f32 %v3912, %v902
        %v3917 = vmul.f32 %v3915, %v902
        %v3918 = vsub.f32 %v3906, %v3916
        %v3919 = vsub.f32 %v3907, %v3917
        %v3920 = vmul.f32 %v3918, %v3918
        %v3921 = vmul.f32 %v3919, %v3919
        %v3922 = vsel %vm895, %v3920, 0.0
        %3923 = vadd.xlane.f32.xlu0 %v3922
        %v3924 = vpop.xlane.xlu0 %3923
        %v3925 = vsel %vm895, %v3921, 0.0
        %3926 = vadd.xlane.f32.xlu0 %v3925
        %v3927 = vpop.xlane.xlu0 %3926
        %v3928 = vmul.f32 %v3924, %v902
        %v3929 = vmul.f32 %v3927, %v902
        %v3930 = vadd.f32 %v3928, 1e-12
        %v3931 = vadd.f32 %v3929, 1e-12
        %v3932 = vrsqrt.pop %v3930
        %v3933 = vrsqrt.pop %v3931
        %v3934 = vmul.f32 %v3918, %v3932
        %v3935 = vmul.f32 %v3919, %v3933
        %v3937 = vlaneseq
        %v3938 = vshrl.u32 %v3937, 7
        %v3939 = vsub.s32 0, %v3938
        %v3940 = vrot.slane %v3908, %v3939
        %v3942 = vmul.f32 %v3934, %v3940
        %v3943 = vmul.f32 %v3935, %v3940
        %v3945 = vlaneseq
        %v3946 = vshrl.u32 %v3945, 7
        %v3947 = vsub.s32 0, %v3946
        %v3948 = vrot.slane %v3909, %v3947
        %v3950 = vadd.f32 %v3942, %v3948
        %v3951 = vadd.f32 %v3943, %v3948
        %s3952 = scalar_lea.vmem %s6, 128
        %v3953 = vld [vmem:[%s3952] sm:$0xff]
        %v3954 = vld [vmem:[%s3952 + $0x8] sm:$0xff]
        %v3955 = vld [vmem:[%s3952 + $0x10] sm:$0xff]
        %v3956 = vld [vmem:[%s3952 + $0x18] sm:$0xff]
        %s3957 = scalar_lea.vmem %s7, 4
        %v3958 = vld [vmem:[%s3957] sm:$0x1]
        %v3960 = vlaneseq
        %v3961 = vshrl.u32 %v3960, 7
        %v3962 = vsub.s32 0, %v3961
        %v3963 = vrot.slane %v3958, %v3962
        %v3966 = vsel %vm895, %v3950, 0
        %v3969 = vsel %vm895, %v3951, 0
        %3971 = vmatprep.subr.mxu0 0.0
        %3972 = vmatpush1.msra.mxu0 %v3953
        %3973 = vmatprep.subr.mxu0 0.0
        %3974 = vmatpush1.msra.mxu0 %v3954
        %3975 = vmatprep.subr.mxu0 0.0
        %3976 = vmatpush1.msra.mxu0 %v3955
        %3977 = vmatprep.subr.mxu0 0.0
        %3978 = vmatpush1.msra.mxu0 %v3956
        %3979 = vmatprep.subr.mxu0 0.0
        %3980 = vmatpush1.msra.mxu0 0.0
        %3981 = vmatprep.subr.mxu0 0.0
        %3982 = vmatpush1.msra.mxu0 0.0
        %3983 = vmatprep.subr.mxu0 0.0
        %3984 = vmatpush1.msra.mxu0 0.0
        %3985 = vmatprep.subr.mxu0 0.0
        %3986 = vmatpush1.msra.mxu0 0.0
        %3987 = vmatprep.subr.mxu0 0.0
        %3988 = vmatpush1.msra.mxu0 0.0
        %3989 = vmatprep.subr.mxu0 0.0
        %3990 = vmatpush1.msra.mxu0 0.0
        %3991 = vmatprep.subr.mxu0 0.0
        %3992 = vmatpush1.msra.mxu0 0.0
        %3993 = vmatprep.subr.mxu0 0.0
        %3994 = vmatpush1.msra.mxu0 0.0
        %3995 = vmatprep.subr.mxu0 0.0
        %3996 = vmatpush1.msra.mxu0 0.0
        %3997 = vmatprep.subr.mxu0 0.0
        %3998 = vmatpush1.msra.mxu0 0.0
        %3999 = vmatprep.subr.mxu0 0.0
        %4000 = vmatpush1.msra.mxu0 0.0
        %4001 = vmatprep.subr.mxu0 0.0
        %4002 = vmatpush1.msra.mxu0 0.0
        %4003 = vmatprep.subr.mxu0 0.0
        %4004 = vmatpush1.msra.mxu0 0.0
        %4005 = vmatprep.subr.mxu0 0.0
        %4006 = vmatpush1.msra.mxu0 0.0
        %4007 = vmatprep.subr.mxu0 0.0
        %4008 = vmatpush1.msra.mxu0 0.0
        %4009 = vmatprep.subr.mxu0 0.0
        %4010 = vmatpush1.msra.mxu0 0.0
        %4011 = vmatprep.subr.mxu0 0.0
        %4012 = vmatpush1.msra.mxu0 0.0
        %4013 = vmatprep.subr.mxu0 0.0
        %4014 = vmatpush1.msra.mxu0 0.0
        %4015 = vmatprep.subr.mxu0 0.0
        %4016 = vmatpush1.msra.mxu0 0.0
        %4017 = vmatprep.subr.mxu0 0.0
        %4018 = vmatpush1.msra.mxu0 0.0
        %4019 = vmatprep.subr.mxu0 0.0
        %4020 = vmatpush1.msra.mxu0 0.0
        %4021 = vmatprep.subr.mxu0 0.0
        %4022 = vmatpush1.msra.mxu0 0.0
        %4023 = vmatprep.subr.mxu0 0.0
        %4024 = vmatpush1.msra.mxu0 0.0
        %4025 = vmatprep.subr.mxu0 0.0
        %4026 = vmatpush1.msra.mxu0 0.0
        %4027 = vmatprep.subr.mxu0 0.0
        %4028 = vmatpush1.msra.mxu0 0.0
        %4029 = vmatprep.subr.mxu0 0.0
        %4030 = vmatpush1.msra.mxu0 0.0
        %4031 = vmatprep.subr.mxu0 0.0
        %4032 = vmatpush1.msra.mxu0 0.0
        %4033 = vmatprep.subr.mxu0 0.0
        %4034 = vmatpush1.msra.mxu0 0.0
        %4035 = vmatprep.mubr.f32.mxu0 0.0
        %4036 = vmatmul.mubr.f32.gmra.mrb[0].mxu0 %v3966
        %v4037 = vpop.f32.mrb[0].mxu0
        %v4038 = vadd.f32 %v3963, %v4037
        %v4039 = vpop.f32.mrb[0].mxu0
        %4040 = vmatprep.mubr.f32.mxu0 0.0
        %4041 = vmatmul.mubr.f32.gmra.mrb[0].mxu0 %v3969
        %v4042 = vpop.f32.mrb[0].mxu0
        %v4043 = vadd.f32 %v3963, %v4042
        %v4044 = vpop.f32.mrb[0].mxu0
        %4045 = vdwg.mxu0
        %s4046 = scalar_lea.vmem %s8, 128
        %v4047 = vld [vmem:[%s4046] sm:$0xff]
        %v4048 = vld [vmem:[%s4046 + $0x8] sm:$0xff]
        %v4049 = vld [vmem:[%s4046 + $0x10] sm:$0xff]
        %v4050 = vld [vmem:[%s4046 + $0x18] sm:$0xff]
        %s4051 = scalar_lea.vmem %s9, 4
        %v4052 = vld [vmem:[%s4051] sm:$0x1]
        %v4054 = vlaneseq
        %v4055 = vshrl.u32 %v4054, 7
        %v4056 = vsub.s32 0, %v4055
        %v4057 = vrot.slane %v4052, %v4056
        %4059 = vmatprep.subr.mxu0 0.0
        %4060 = vmatpush1.msra.mxu0 %v4047
        %4061 = vmatprep.subr.mxu0 0.0
        %4062 = vmatpush1.msra.mxu0 %v4048
        %4063 = vmatprep.subr.mxu0 0.0
        %4064 = vmatpush1.msra.mxu0 %v4049
        %4065 = vmatprep.subr.mxu0 0.0
        %4066 = vmatpush1.msra.mxu0 %v4050
        %4067 = vmatprep.subr.mxu0 0.0
        %4068 = vmatpush1.msra.mxu0 0.0
        %4069 = vmatprep.subr.mxu0 0.0
        %4070 = vmatpush1.msra.mxu0 0.0
        %4071 = vmatprep.subr.mxu0 0.0
        %4072 = vmatpush1.msra.mxu0 0.0
        %4073 = vmatprep.subr.mxu0 0.0
        %4074 = vmatpush1.msra.mxu0 0.0
        %4075 = vmatprep.subr.mxu0 0.0
        %4076 = vmatpush1.msra.mxu0 0.0
        %4077 = vmatprep.subr.mxu0 0.0
        %4078 = vmatpush1.msra.mxu0 0.0
        %4079 = vmatprep.subr.mxu0 0.0
        %4080 = vmatpush1.msra.mxu0 0.0
        %4081 = vmatprep.subr.mxu0 0.0
        %4082 = vmatpush1.msra.mxu0 0.0
        %4083 = vmatprep.subr.mxu0 0.0
        %4084 = vmatpush1.msra.mxu0 0.0
        %4085 = vmatprep.subr.mxu0 0.0
        %4086 = vmatpush1.msra.mxu0 0.0
        %4087 = vmatprep.subr.mxu0 0.0
        %4088 = vmatpush1.msra.mxu0 0.0
        %4089 = vmatprep.subr.mxu0 0.0
        %4090 = vmatpush1.msra.mxu0 0.0
        %4091 = vmatprep.subr.mxu0 0.0
        %4092 = vmatpush1.msra.mxu0 0.0
        %4093 = vmatprep.subr.mxu0 0.0
        %4094 = vmatpush1.msra.mxu0 0.0
        %4095 = vmatprep.subr.mxu0 0.0
        %4096 = vmatpush1.msra.mxu0 0.0
        %4097 = vmatprep.subr.mxu0 0.0
        %4098 = vmatpush1.msra.mxu0 0.0
        %4099 = vmatprep.subr.mxu0 0.0
        %4100 = vmatpush1.msra.mxu0 0.0
        %4101 = vmatprep.subr.mxu0 0.0
        %4102 = vmatpush1.msra.mxu0 0.0
        %4103 = vmatprep.subr.mxu0 0.0
        %4104 = vmatpush1.msra.mxu0 0.0
        %4105 = vmatprep.subr.mxu0 0.0
        %4106 = vmatpush1.msra.mxu0 0.0
        %4107 = vmatprep.subr.mxu0 0.0
        %4108 = vmatpush1.msra.mxu0 0.0
        %4109 = vmatprep.subr.mxu0 0.0
        %4110 = vmatpush1.msra.mxu0 0.0
        %4111 = vmatprep.subr.mxu0 0.0
        %4112 = vmatpush1.msra.mxu0 0.0
        %4113 = vmatprep.subr.mxu0 0.0
        %4114 = vmatpush1.msra.mxu0 0.0
        %4115 = vmatprep.subr.mxu0 0.0
        %4116 = vmatpush1.msra.mxu0 0.0
        %4117 = vmatprep.subr.mxu0 0.0
        %4118 = vmatpush1.msra.mxu0 0.0
        %4119 = vmatprep.subr.mxu0 0.0
        %4120 = vmatpush1.msra.mxu0 0.0
        %4121 = vmatprep.subr.mxu0 0.0
        %4122 = vmatpush1.msra.mxu0 0.0
        %4123 = vmatprep.mubr.f32.mxu0 0.0
        %4124 = vmatmul.mubr.f32.gmra.mrb[0].mxu0 %v3966
        %v4125 = vpop.f32.mrb[0].mxu0
        %v4126 = vadd.f32 %v4057, %v4125
        %v4127 = vpop.f32.mrb[0].mxu0
        %4128 = vmatprep.mubr.f32.mxu0 0.0
        %4129 = vmatmul.mubr.f32.gmra.mrb[0].mxu0 %v3969
        %v4130 = vpop.f32.mrb[0].mxu0
        %v4131 = vadd.f32 %v4057, %v4130
        %v4132 = vpop.f32.mrb[0].mxu0
        %4133 = vdwg.mxu0
        %s4134 = scalar_lea.vmem %s10, 128
        %v4135 = vld [vmem:[%s4134] sm:$0xff]
        %v4136 = vld [vmem:[%s4134 + $0x8] sm:$0xff]
        %v4137 = vld [vmem:[%s4134 + $0x10] sm:$0xff]
        %v4138 = vld [vmem:[%s4134 + $0x18] sm:$0xff]
        %s4139 = scalar_lea.vmem %s11, 4
        %v4140 = vld [vmem:[%s4139] sm:$0x1]
        %v4142 = vlaneseq
        %v4143 = vshrl.u32 %v4142, 7
        %v4144 = vsub.s32 0, %v4143
        %v4145 = vrot.slane %v4140, %v4144
        %4147 = vmatprep.subr.mxu0 0.0
        %4148 = vmatpush1.msra.mxu0 %v4135
        %4149 = vmatprep.subr.mxu0 0.0
        %4150 = vmatpush1.msra.mxu0 %v4136
        %4151 = vmatprep.subr.mxu0 0.0
        %4152 = vmatpush1.msra.mxu0 %v4137
        %4153 = vmatprep.subr.mxu0 0.0
        %4154 = vmatpush1.msra.mxu0 %v4138
        %4155 = vmatprep.subr.mxu0 0.0
        %4156 = vmatpush1.msra.mxu0 0.0
        %4157 = vmatprep.subr.mxu0 0.0
        %4158 = vmatpush1.msra.mxu0 0.0
        %4159 = vmatprep.subr.mxu0 0.0
        %4160 = vmatpush1.msra.mxu0 0.0
        %4161 = vmatprep.subr.mxu0 0.0
        %4162 = vmatpush1.msra.mxu0 0.0
        %4163 = vmatprep.subr.mxu0 0.0
        %4164 = vmatpush1.msra.mxu0 0.0
        %4165 = vmatprep.subr.mxu0 0.0
        %4166 = vmatpush1.msra.mxu0 0.0
        %4167 = vmatprep.subr.mxu0 0.0
        %4168 = vmatpush1.msra.mxu0 0.0
        %4169 = vmatprep.subr.mxu0 0.0
        %4170 = vmatpush1.msra.mxu0 0.0
        %4171 = vmatprep.subr.mxu0 0.0
        %4172 = vmatpush1.msra.mxu0 0.0
        %4173 = vmatprep.subr.mxu0 0.0
        %4174 = vmatpush1.msra.mxu0 0.0
        %4175 = vmatprep.subr.mxu0 0.0
        %4176 = vmatpush1.msra.mxu0 0.0
        %4177 = vmatprep.subr.mxu0 0.0
        %4178 = vmatpush1.msra.mxu0 0.0
        %4179 = vmatprep.subr.mxu0 0.0
        %4180 = vmatpush1.msra.mxu0 0.0
        %4181 = vmatprep.subr.mxu0 0.0
        %4182 = vmatpush1.msra.mxu0 0.0
        %4183 = vmatprep.subr.mxu0 0.0
        %4184 = vmatpush1.msra.mxu0 0.0
        %4185 = vmatprep.subr.mxu0 0.0
        %4186 = vmatpush1.msra.mxu0 0.0
        %4187 = vmatprep.subr.mxu0 0.0
        %4188 = vmatpush1.msra.mxu0 0.0
        %4189 = vmatprep.subr.mxu0 0.0
        %4190 = vmatpush1.msra.mxu0 0.0
        %4191 = vmatprep.subr.mxu0 0.0
        %4192 = vmatpush1.msra.mxu0 0.0
        %4193 = vmatprep.subr.mxu0 0.0
        %4194 = vmatpush1.msra.mxu0 0.0
        %4195 = vmatprep.subr.mxu0 0.0
        %4196 = vmatpush1.msra.mxu0 0.0
        %4197 = vmatprep.subr.mxu0 0.0
        %4198 = vmatpush1.msra.mxu0 0.0
        %4199 = vmatprep.subr.mxu0 0.0
        %4200 = vmatpush1.msra.mxu0 0.0
        %4201 = vmatprep.subr.mxu0 0.0
        %4202 = vmatpush1.msra.mxu0 0.0
        %4203 = vmatprep.subr.mxu0 0.0
        %4204 = vmatpush1.msra.mxu0 0.0
        %4205 = vmatprep.subr.mxu0 0.0
        %4206 = vmatpush1.msra.mxu0 0.0
        %4207 = vmatprep.subr.mxu0 0.0
        %4208 = vmatpush1.msra.mxu0 0.0
        %4209 = vmatprep.subr.mxu0 0.0
        %4210 = vmatpush1.msra.mxu0 0.0
        %4211 = vmatprep.mubr.f32.mxu0 0.0
        %4212 = vmatmul.mubr.f32.gmra.mrb[0].mxu0 %v3966
        %v4213 = vpop.f32.mrb[0].mxu0
        %v4214 = vadd.f32 %v4145, %v4213
        %v4215 = vpop.f32.mrb[0].mxu0
        %4216 = vmatprep.mubr.f32.mxu0 0.0
        %4217 = vmatmul.mubr.f32.gmra.mrb[0].mxu0 %v3969
        %v4218 = vpop.f32.mrb[0].mxu0
        %v4219 = vadd.f32 %v4145, %v4218
        %v4220 = vpop.f32.mrb[0].mxu0
        %4221 = vdwg.mxu0
        %v4222 = vmul.f32 %v4038, 0.35355338
        %v4223 = vmul.f32 %v4043, 0.35355338
        %v4225 = vsel %vm1219, %v4222, 0
        %v4228 = vsel %vm1219, %v4126, 0
        %4230 = vmatprep.subr.mxu0 0.0
        %4231 = vmatpush1.xpose.msra.mxu0 %v4228
        %4232 = vmatprep.subr.mxu0 0.0
        %4233 = vmatpush1.xpose.msra.mxu0 0.0
        %4234 = vmatprep.subr.mxu0 0.0
        %4235 = vmatpush1.xpose.msra.mxu0 0.0
        %4236 = vmatprep.subr.mxu0 0.0
        %4237 = vmatpush1.xpose.msra.mxu0 0.0
        %4238 = vmatprep.subr.mxu0 0.0
        %4239 = vmatpush1.xpose.msra.mxu0 0.0
        %4240 = vmatprep.subr.mxu0 0.0
        %4241 = vmatpush1.xpose.msra.mxu0 0.0
        %4242 = vmatprep.subr.mxu0 0.0
        %4243 = vmatpush1.xpose.msra.mxu0 0.0
        %4244 = vmatprep.subr.mxu0 0.0
        %4245 = vmatpush1.xpose.msra.mxu0 0.0
        %4246 = vmatprep.subr.mxu0 0.0
        %4247 = vmatpush1.xpose.msra.mxu0 0.0
        %4248 = vmatprep.subr.mxu0 0.0
        %4249 = vmatpush1.xpose.msra.mxu0 0.0
        %4250 = vmatprep.subr.mxu0 0.0
        %4251 = vmatpush1.xpose.msra.mxu0 0.0
        %4252 = vmatprep.subr.mxu0 0.0
        %4253 = vmatpush1.xpose.msra.mxu0 0.0
        %4254 = vmatprep.subr.mxu0 0.0
        %4255 = vmatpush1.xpose.msra.mxu0 0.0
        %4256 = vmatprep.subr.mxu0 0.0
        %4257 = vmatpush1.xpose.msra.mxu0 0.0
        %4258 = vmatprep.subr.mxu0 0.0
        %4259 = vmatpush1.xpose.msra.mxu0 0.0
        %4260 = vmatprep.subr.mxu0 0.0
        %4261 = vmatpush1.xpose.msra.mxu0 0.0
        %4262 = vmatprep.subr.mxu0 0.0
        %4263 = vmatpush1.xpose.msra.mxu0 0.0
        %4264 = vmatprep.subr.mxu0 0.0
        %4265 = vmatpush1.xpose.msra.mxu0 0.0
        %4266 = vmatprep.subr.mxu0 0.0
        %4267 = vmatpush1.xpose.msra.mxu0 0.0
        %4268 = vmatprep.subr.mxu0 0.0
        %4269 = vmatpush1.xpose.msra.mxu0 0.0
        %4270 = vmatprep.subr.mxu0 0.0
        %4271 = vmatpush1.xpose.msra.mxu0 0.0
        %4272 = vmatprep.subr.mxu0 0.0
        %4273 = vmatpush1.xpose.msra.mxu0 0.0
        %4274 = vmatprep.subr.mxu0 0.0
        %4275 = vmatpush1.xpose.msra.mxu0 0.0
        %4276 = vmatprep.subr.mxu0 0.0
        %4277 = vmatpush1.xpose.msra.mxu0 0.0
        %4278 = vmatprep.subr.mxu0 0.0
        %4279 = vmatpush1.xpose.msra.mxu0 0.0
        %4280 = vmatprep.subr.mxu0 0.0
        %4281 = vmatpush1.xpose.msra.mxu0 0.0
        %4282 = vmatprep.subr.mxu0 0.0
        %4283 = vmatpush1.xpose.msra.mxu0 0.0
        %4284 = vmatprep.subr.mxu0 0.0
        %4285 = vmatpush1.xpose.msra.mxu0 0.0
        %4286 = vmatprep.subr.mxu0 0.0
        %4287 = vmatpush1.xpose.msra.mxu0 0.0
        %4288 = vmatprep.subr.mxu0 0.0
        %4289 = vmatpush1.xpose.msra.mxu0 0.0
        %4290 = vmatprep.subr.mxu0 0.0
        %4291 = vmatpush1.xpose.msra.mxu0 0.0
        %4292 = vmatprep.subr.mxu0 0.0
        %4293 = vmatpush1.xpose.msra.mxu0 0.0
        %4294 = vmatprep.mubr.f32.mxu0 0.0
        %4295 = vmatmul.mubr.f32.gmra.mrb[0].mxu0 %v4225
        %v4296 = vpop.f32.mrb[0].mxu0
        %v4297 = vadd.f32 0.0, %v4296
        %v4298 = vpop.f32.mrb[0].mxu0
        %4299 = vdwg.mxu0
        %v4301 = vsel %vm1219, %v4223, 0
        %v4304 = vsel %vm1219, %v4131, 0
        %4306 = vmatprep.subr.mxu0 0.0
        %4307 = vmatpush1.xpose.msra.mxu0 %v4304
        %4308 = vmatprep.subr.mxu0 0.0
        %4309 = vmatpush1.xpose.msra.mxu0 0.0
        %4310 = vmatprep.subr.mxu0 0.0
        %4311 = vmatpush1.xpose.msra.mxu0 0.0
        %4312 = vmatprep.subr.mxu0 0.0
        %4313 = vmatpush1.xpose.msra.mxu0 0.0
        %4314 = vmatprep.subr.mxu0 0.0
        %4315 = vmatpush1.xpose.msra.mxu0 0.0
        %4316 = vmatprep.subr.mxu0 0.0
        %4317 = vmatpush1.xpose.msra.mxu0 0.0
        %4318 = vmatprep.subr.mxu0 0.0
        %4319 = vmatpush1.xpose.msra.mxu0 0.0
        %4320 = vmatprep.subr.mxu0 0.0
        %4321 = vmatpush1.xpose.msra.mxu0 0.0
        %4322 = vmatprep.subr.mxu0 0.0
        %4323 = vmatpush1.xpose.msra.mxu0 0.0
        %4324 = vmatprep.subr.mxu0 0.0
        %4325 = vmatpush1.xpose.msra.mxu0 0.0
        %4326 = vmatprep.subr.mxu0 0.0
        %4327 = vmatpush1.xpose.msra.mxu0 0.0
        %4328 = vmatprep.subr.mxu0 0.0
        %4329 = vmatpush1.xpose.msra.mxu0 0.0
        %4330 = vmatprep.subr.mxu0 0.0
        %4331 = vmatpush1.xpose.msra.mxu0 0.0
        %4332 = vmatprep.subr.mxu0 0.0
        %4333 = vmatpush1.xpose.msra.mxu0 0.0
        %4334 = vmatprep.subr.mxu0 0.0
        %4335 = vmatpush1.xpose.msra.mxu0 0.0
        %4336 = vmatprep.subr.mxu0 0.0
        %4337 = vmatpush1.xpose.msra.mxu0 0.0
        %4338 = vmatprep.subr.mxu0 0.0
        %4339 = vmatpush1.xpose.msra.mxu0 0.0
        %4340 = vmatprep.subr.mxu0 0.0
        %4341 = vmatpush1.xpose.msra.mxu0 0.0
        %4342 = vmatprep.subr.mxu0 0.0
        %4343 = vmatpush1.xpose.msra.mxu0 0.0
        %4344 = vmatprep.subr.mxu0 0.0
        %4345 = vmatpush1.xpose.msra.mxu0 0.0
        %4346 = vmatprep.subr.mxu0 0.0
        %4347 = vmatpush1.xpose.msra.mxu0 0.0
        %4348 = vmatprep.subr.mxu0 0.0
        %4349 = vmatpush1.xpose.msra.mxu0 0.0
        %4350 = vmatprep.subr.mxu0 0.0
        %4351 = vmatpush1.xpose.msra.mxu0 0.0
        %4352 = vmatprep.subr.mxu0 0.0
        %4353 = vmatpush1.xpose.msra.mxu0 0.0
        %4354 = vmatprep.subr.mxu0 0.0
        %4355 = vmatpush1.xpose.msra.mxu0 0.0
        %4356 = vmatprep.subr.mxu0 0.0
        %4357 = vmatpush1.xpose.msra.mxu0 0.0
        %4358 = vmatprep.subr.mxu0 0.0
        %4359 = vmatpush1.xpose.msra.mxu0 0.0
        %4360 = vmatprep.subr.mxu0 0.0
        %4361 = vmatpush1.xpose.msra.mxu0 0.0
        %4362 = vmatprep.subr.mxu0 0.0
        %4363 = vmatpush1.xpose.msra.mxu0 0.0
        %4364 = vmatprep.subr.mxu0 0.0
        %4365 = vmatpush1.xpose.msra.mxu0 0.0
        %4366 = vmatprep.subr.mxu0 0.0
        %4367 = vmatpush1.xpose.msra.mxu0 0.0
        %4368 = vmatprep.subr.mxu0 0.0
        %4369 = vmatpush1.xpose.msra.mxu0 0.0
        %4370 = vmatprep.mubr.f32.mxu0 0.0
        %4371 = vmatmul.mubr.f32.gmra.mrb[0].mxu0 %v4301
        %v4372 = vpop.f32.mrb[0].mxu0
        %v4373 = vadd.f32 0.0, %v4372
        %v4374 = vpop.f32.mrb[0].mxu0
        %4375 = vdwg.mxu0
        %v4376 = vsel %vm1372, -3.4028235e+38, %v4297
        %v4377 = vsel %vm1373, -3.4028235e+38, %v4373
        %v4378 = vsel %vm1219, %v4376, -inf
        %4379 = vmax.xlane.f32.xlu0 %v4378
        %v4380 = vpop.xlane.xlu0 %4379
        %v4381 = vsel %vm1219, %v4377, -inf
        %4382 = vmax.xlane.f32.xlu0 %v4381
        %v4383 = vpop.xlane.xlu0 %4382
        %v4384 = vsub.f32 %v4376, %v4380
        %v4385 = vsub.f32 %v4377, %v4383
        %v4386 = vmul.f32 %v4384, 1.442695
        %v4387 = vpow.pop %v4386
        %v4388 = vmul.f32 %v4385, 1.442695
        %v4389 = vpow.pop %v4388
        %v4390 = vsel %vm1219, %v4387, 0.0
        %4391 = vadd.xlane.f32.xlu0 %v4390
        %v4392 = vpop.xlane.xlu0 %4391
        %v4393 = vsel %vm1219, %v4389, 0.0
        %4394 = vadd.xlane.f32.xlu0 %v4393
        %v4395 = vpop.xlane.xlu0 %4394
        %v4396 = vrcp.pop %v4392
        %v4397 = vmul.f32 %v4387, %v4396
        %v4398 = vrcp.pop %v4395
        %v4399 = vmul.f32 %v4389, %v4398
        %v4401 = vsel %vm1219, %v4397, 0
        %4403 = vmatprep.subr.mxu0 0.0
        %4404 = vmatpush1.msra.mxu0 %v4214
        %4405 = vmatprep.subr.mxu0 0.0
        %4406 = vmatpush1.msra.mxu0 0.0
        %4407 = vmatprep.subr.mxu0 0.0
        %4408 = vmatpush1.msra.mxu0 0.0
        %4409 = vmatprep.subr.mxu0 0.0
        %4410 = vmatpush1.msra.mxu0 0.0
        %4411 = vmatprep.subr.mxu0 0.0
        %4412 = vmatpush1.msra.mxu0 0.0
        %4413 = vmatprep.subr.mxu0 0.0
        %4414 = vmatpush1.msra.mxu0 0.0
        %4415 = vmatprep.subr.mxu0 0.0
        %4416 = vmatpush1.msra.mxu0 0.0
        %4417 = vmatprep.subr.mxu0 0.0
        %4418 = vmatpush1.msra.mxu0 0.0
        %4419 = vmatprep.subr.mxu0 0.0
        %4420 = vmatpush1.msra.mxu0 0.0
        %4421 = vmatprep.subr.mxu0 0.0
        %4422 = vmatpush1.msra.mxu0 0.0
        %4423 = vmatprep.subr.mxu0 0.0
        %4424 = vmatpush1.msra.mxu0 0.0
        %4425 = vmatprep.subr.mxu0 0.0
        %4426 = vmatpush1.msra.mxu0 0.0
        %4427 = vmatprep.subr.mxu0 0.0
        %4428 = vmatpush1.msra.mxu0 0.0
        %4429 = vmatprep.subr.mxu0 0.0
        %4430 = vmatpush1.msra.mxu0 0.0
        %4431 = vmatprep.subr.mxu0 0.0
        %4432 = vmatpush1.msra.mxu0 0.0
        %4433 = vmatprep.subr.mxu0 0.0
        %4434 = vmatpush1.msra.mxu0 0.0
        %4435 = vmatprep.subr.mxu0 0.0
        %4436 = vmatpush1.msra.mxu0 0.0
        %4437 = vmatprep.subr.mxu0 0.0
        %4438 = vmatpush1.msra.mxu0 0.0
        %4439 = vmatprep.subr.mxu0 0.0
        %4440 = vmatpush1.msra.mxu0 0.0
        %4441 = vmatprep.subr.mxu0 0.0
        %4442 = vmatpush1.msra.mxu0 0.0
        %4443 = vmatprep.subr.mxu0 0.0
        %4444 = vmatpush1.msra.mxu0 0.0
        %4445 = vmatprep.subr.mxu0 0.0
        %4446 = vmatpush1.msra.mxu0 0.0
        %4447 = vmatprep.subr.mxu0 0.0
        %4448 = vmatpush1.msra.mxu0 0.0
        %4449 = vmatprep.subr.mxu0 0.0
        %4450 = vmatpush1.msra.mxu0 0.0
        %4451 = vmatprep.subr.mxu0 0.0
        %4452 = vmatpush1.msra.mxu0 0.0
        %4453 = vmatprep.subr.mxu0 0.0
        %4454 = vmatpush1.msra.mxu0 0.0
        %4455 = vmatprep.subr.mxu0 0.0
        %4456 = vmatpush1.msra.mxu0 0.0
        %4457 = vmatprep.subr.mxu0 0.0
        %4458 = vmatpush1.msra.mxu0 0.0
        %4459 = vmatprep.subr.mxu0 0.0
        %4460 = vmatpush1.msra.mxu0 0.0
        %4461 = vmatprep.subr.mxu0 0.0
        %4462 = vmatpush1.msra.mxu0 0.0
        %4463 = vmatprep.subr.mxu0 0.0
        %4464 = vmatpush1.msra.mxu0 0.0
        %4465 = vmatprep.subr.mxu0 0.0
        %4466 = vmatpush1.msra.mxu0 0.0
        %4467 = vmatprep.mubr.f32.mxu0 0.0
        %4468 = vmatmul.mubr.f32.gmra.mrb[0].mxu0 %v4401
        %v4469 = vpop.f32.mrb[0].mxu0
        %v4470 = vadd.f32 0.0, %v4469
        %v4471 = vpop.f32.mrb[0].mxu0
        %4472 = vdwg.mxu0
        %v4474 = vsel %vm1219, %v4399, 0
        %4476 = vmatprep.subr.mxu0 0.0
        %4477 = vmatpush1.msra.mxu0 %v4219
        %4478 = vmatprep.subr.mxu0 0.0
        %4479 = vmatpush1.msra.mxu0 0.0
        %4480 = vmatprep.subr.mxu0 0.0
        %4481 = vmatpush1.msra.mxu0 0.0
        %4482 = vmatprep.subr.mxu0 0.0
        %4483 = vmatpush1.msra.mxu0 0.0
        %4484 = vmatprep.subr.mxu0 0.0
        %4485 = vmatpush1.msra.mxu0 0.0
        %4486 = vmatprep.subr.mxu0 0.0
        %4487 = vmatpush1.msra.mxu0 0.0
        %4488 = vmatprep.subr.mxu0 0.0
        %4489 = vmatpush1.msra.mxu0 0.0
        %4490 = vmatprep.subr.mxu0 0.0
        %4491 = vmatpush1.msra.mxu0 0.0
        %4492 = vmatprep.subr.mxu0 0.0
        %4493 = vmatpush1.msra.mxu0 0.0
        %4494 = vmatprep.subr.mxu0 0.0
        %4495 = vmatpush1.msra.mxu0 0.0
        %4496 = vmatprep.subr.mxu0 0.0
        %4497 = vmatpush1.msra.mxu0 0.0
        %4498 = vmatprep.subr.mxu0 0.0
        %4499 = vmatpush1.msra.mxu0 0.0
        %4500 = vmatprep.subr.mxu0 0.0
        %4501 = vmatpush1.msra.mxu0 0.0
        %4502 = vmatprep.subr.mxu0 0.0
        %4503 = vmatpush1.msra.mxu0 0.0
        %4504 = vmatprep.subr.mxu0 0.0
        %4505 = vmatpush1.msra.mxu0 0.0
        %4506 = vmatprep.subr.mxu0 0.0
        %4507 = vmatpush1.msra.mxu0 0.0
        %4508 = vmatprep.subr.mxu0 0.0
        %4509 = vmatpush1.msra.mxu0 0.0
        %4510 = vmatprep.subr.mxu0 0.0
        %4511 = vmatpush1.msra.mxu0 0.0
        %4512 = vmatprep.subr.mxu0 0.0
        %4513 = vmatpush1.msra.mxu0 0.0
        %4514 = vmatprep.subr.mxu0 0.0
        %4515 = vmatpush1.msra.mxu0 0.0
        %4516 = vmatprep.subr.mxu0 0.0
        %4517 = vmatpush1.msra.mxu0 0.0
        %4518 = vmatprep.subr.mxu0 0.0
        %4519 = vmatpush1.msra.mxu0 0.0
        %4520 = vmatprep.subr.mxu0 0.0
        %4521 = vmatpush1.msra.mxu0 0.0
        %4522 = vmatprep.subr.mxu0 0.0
        %4523 = vmatpush1.msra.mxu0 0.0
        %4524 = vmatprep.subr.mxu0 0.0
        %4525 = vmatpush1.msra.mxu0 0.0
        %4526 = vmatprep.subr.mxu0 0.0
        %4527 = vmatpush1.msra.mxu0 0.0
        %4528 = vmatprep.subr.mxu0 0.0
        %4529 = vmatpush1.msra.mxu0 0.0
        %4530 = vmatprep.subr.mxu0 0.0
        %4531 = vmatpush1.msra.mxu0 0.0
        %4532 = vmatprep.subr.mxu0 0.0
        %4533 = vmatpush1.msra.mxu0 0.0
        %4534 = vmatprep.subr.mxu0 0.0
        %4535 = vmatpush1.msra.mxu0 0.0
        %4536 = vmatprep.subr.mxu0 0.0
        %4537 = vmatpush1.msra.mxu0 0.0
        %4538 = vmatprep.subr.mxu0 0.0
        %4539 = vmatpush1.msra.mxu0 0.0
        %4540 = vmatprep.mubr.f32.mxu0 0.0
        %4541 = vmatmul.mubr.f32.gmra.mrb[0].mxu0 %v4474
        %v4542 = vpop.f32.mrb[0].mxu0
        %v4543 = vadd.f32 0.0, %v4542
        %v4544 = vpop.f32.mrb[0].mxu0
        %4545 = vdwg.mxu0
        %s4546 = scalar_lea.vmem %s12, 32
        %v4547 = vld [vmem:[%s4546] sm:$0xff]
        %s4548 = scalar_lea.vmem %s6, 160
        %v4549 = vld [vmem:[%s4548] sm:$0xff]
        %v4550 = vld [vmem:[%s4548 + $0x8] sm:$0xff]
        %v4551 = vld [vmem:[%s4548 + $0x10] sm:$0xff]
        %v4552 = vld [vmem:[%s4548 + $0x18] sm:$0xff]
        %s4553 = scalar_lea.vmem %s7, 5
        %v4554 = vld [vmem:[%s4553] sm:$0x1]
        %v4556 = vlaneseq
        %v4557 = vshrl.u32 %v4556, 7
        %v4558 = vsub.s32 0, %v4557
        %v4559 = vrot.slane %v4554, %v4558
        %4561 = vmatprep.subr.mxu0 0.0
        %4562 = vmatpush1.msra.mxu0 %v4549
        %4563 = vmatprep.subr.mxu0 0.0
        %4564 = vmatpush1.msra.mxu0 %v4550
        %4565 = vmatprep.subr.mxu0 0.0
        %4566 = vmatpush1.msra.mxu0 %v4551
        %4567 = vmatprep.subr.mxu0 0.0
        %4568 = vmatpush1.msra.mxu0 %v4552
        %4569 = vmatprep.subr.mxu0 0.0
        %4570 = vmatpush1.msra.mxu0 0.0
        %4571 = vmatprep.subr.mxu0 0.0
        %4572 = vmatpush1.msra.mxu0 0.0
        %4573 = vmatprep.subr.mxu0 0.0
        %4574 = vmatpush1.msra.mxu0 0.0
        %4575 = vmatprep.subr.mxu0 0.0
        %4576 = vmatpush1.msra.mxu0 0.0
        %4577 = vmatprep.subr.mxu0 0.0
        %4578 = vmatpush1.msra.mxu0 0.0
        %4579 = vmatprep.subr.mxu0 0.0
        %4580 = vmatpush1.msra.mxu0 0.0
        %4581 = vmatprep.subr.mxu0 0.0
        %4582 = vmatpush1.msra.mxu0 0.0
        %4583 = vmatprep.subr.mxu0 0.0
        %4584 = vmatpush1.msra.mxu0 0.0
        %4585 = vmatprep.subr.mxu0 0.0
        %4586 = vmatpush1.msra.mxu0 0.0
        %4587 = vmatprep.subr.mxu0 0.0
        %4588 = vmatpush1.msra.mxu0 0.0
        %4589 = vmatprep.subr.mxu0 0.0
        %4590 = vmatpush1.msra.mxu0 0.0
        %4591 = vmatprep.subr.mxu0 0.0
        %4592 = vmatpush1.msra.mxu0 0.0
        %4593 = vmatprep.subr.mxu0 0.0
        %4594 = vmatpush1.msra.mxu0 0.0
        %4595 = vmatprep.subr.mxu0 0.0
        %4596 = vmatpush1.msra.mxu0 0.0
        %4597 = vmatprep.subr.mxu0 0.0
        %4598 = vmatpush1.msra.mxu0 0.0
        %4599 = vmatprep.subr.mxu0 0.0
        %4600 = vmatpush1.msra.mxu0 0.0
        %4601 = vmatprep.subr.mxu0 0.0
        %4602 = vmatpush1.msra.mxu0 0.0
        %4603 = vmatprep.subr.mxu0 0.0
        %4604 = vmatpush1.msra.mxu0 0.0
        %4605 = vmatprep.subr.mxu0 0.0
        %4606 = vmatpush1.msra.mxu0 0.0
        %4607 = vmatprep.subr.mxu0 0.0
        %4608 = vmatpush1.msra.mxu0 0.0
        %4609 = vmatprep.subr.mxu0 0.0
        %4610 = vmatpush1.msra.mxu0 0.0
        %4611 = vmatprep.subr.mxu0 0.0
        %4612 = vmatpush1.msra.mxu0 0.0
        %4613 = vmatprep.subr.mxu0 0.0
        %4614 = vmatpush1.msra.mxu0 0.0
        %4615 = vmatprep.subr.mxu0 0.0
        %4616 = vmatpush1.msra.mxu0 0.0
        %4617 = vmatprep.subr.mxu0 0.0
        %4618 = vmatpush1.msra.mxu0 0.0
        %4619 = vmatprep.subr.mxu0 0.0
        %4620 = vmatpush1.msra.mxu0 0.0
        %4621 = vmatprep.subr.mxu0 0.0
        %4622 = vmatpush1.msra.mxu0 0.0
        %4623 = vmatprep.subr.mxu0 0.0
        %4624 = vmatpush1.msra.mxu0 0.0
        %4625 = vmatprep.mubr.f32.mxu0 0.0
        %4626 = vmatmul.mubr.f32.gmra.mrb[0].mxu0 %v3966
        %v4627 = vpop.f32.mrb[0].mxu0
        %v4628 = vadd.f32 %v4559, %v4627
        %v4629 = vpop.f32.mrb[0].mxu0
        %4630 = vmatprep.mubr.f32.mxu0 0.0
        %4631 = vmatmul.mubr.f32.gmra.mrb[0].mxu0 %v3969
        %v4632 = vpop.f32.mrb[0].mxu0
        %v4633 = vadd.f32 %v4559, %v4632
        %v4634 = vpop.f32.mrb[0].mxu0
        %4635 = vdwg.mxu0
        %s4636 = scalar_lea.vmem %s8, 160
        %v4637 = vld [vmem:[%s4636] sm:$0xff]
        %v4638 = vld [vmem:[%s4636 + $0x8] sm:$0xff]
        %v4639 = vld [vmem:[%s4636 + $0x10] sm:$0xff]
        %v4640 = vld [vmem:[%s4636 + $0x18] sm:$0xff]
        %s4641 = scalar_lea.vmem %s9, 5
        %v4642 = vld [vmem:[%s4641] sm:$0x1]
        %v4644 = vlaneseq
        %v4645 = vshrl.u32 %v4644, 7
        %v4646 = vsub.s32 0, %v4645
        %v4647 = vrot.slane %v4642, %v4646
        %4649 = vmatprep.subr.mxu0 0.0
        %4650 = vmatpush1.msra.mxu0 %v4637
        %4651 = vmatprep.subr.mxu0 0.0
        %4652 = vmatpush1.msra.mxu0 %v4638
        %4653 = vmatprep.subr.mxu0 0.0
        %4654 = vmatpush1.msra.mxu0 %v4639
        %4655 = vmatprep.subr.mxu0 0.0
        %4656 = vmatpush1.msra.mxu0 %v4640
        %4657 = vmatprep.subr.mxu0 0.0
        %4658 = vmatpush1.msra.mxu0 0.0
        %4659 = vmatprep.subr.mxu0 0.0
        %4660 = vmatpush1.msra.mxu0 0.0
        %4661 = vmatprep.subr.mxu0 0.0
        %4662 = vmatpush1.msra.mxu0 0.0
        %4663 = vmatprep.subr.mxu0 0.0
        %4664 = vmatpush1.msra.mxu0 0.0
        %4665 = vmatprep.subr.mxu0 0.0
        %4666 = vmatpush1.msra.mxu0 0.0
        %4667 = vmatprep.subr.mxu0 0.0
        %4668 = vmatpush1.msra.mxu0 0.0
        %4669 = vmatprep.subr.mxu0 0.0
        %4670 = vmatpush1.msra.mxu0 0.0
        %4671 = vmatprep.subr.mxu0 0.0
        %4672 = vmatpush1.msra.mxu0 0.0
        %4673 = vmatprep.subr.mxu0 0.0
        %4674 = vmatpush1.msra.mxu0 0.0
        %4675 = vmatprep.subr.mxu0 0.0
        %4676 = vmatpush1.msra.mxu0 0.0
        %4677 = vmatprep.subr.mxu0 0.0
        %4678 = vmatpush1.msra.mxu0 0.0
        %4679 = vmatprep.subr.mxu0 0.0
        %4680 = vmatpush1.msra.mxu0 0.0
        %4681 = vmatprep.subr.mxu0 0.0
        %4682 = vmatpush1.msra.mxu0 0.0
        %4683 = vmatprep.subr.mxu0 0.0
        %4684 = vmatpush1.msra.mxu0 0.0
        %4685 = vmatprep.subr.mxu0 0.0
        %4686 = vmatpush1.msra.mxu0 0.0
        %4687 = vmatprep.subr.mxu0 0.0
        %4688 = vmatpush1.msra.mxu0 0.0
        %4689 = vmatprep.subr.mxu0 0.0
        %4690 = vmatpush1.msra.mxu0 0.0
        %4691 = vmatprep.subr.mxu0 0.0
        %4692 = vmatpush1.msra.mxu0 0.0
        %4693 = vmatprep.subr.mxu0 0.0
        %4694 = vmatpush1.msra.mxu0 0.0
        %4695 = vmatprep.subr.mxu0 0.0
        %4696 = vmatpush1.msra.mxu0 0.0
        %4697 = vmatprep.subr.mxu0 0.0
        %4698 = vmatpush1.msra.mxu0 0.0
        %4699 = vmatprep.subr.mxu0 0.0
        %4700 = vmatpush1.msra.mxu0 0.0
        %4701 = vmatprep.subr.mxu0 0.0
        %4702 = vmatpush1.msra.mxu0 0.0
        %4703 = vmatprep.subr.mxu0 0.0
        %4704 = vmatpush1.msra.mxu0 0.0
        %4705 = vmatprep.subr.mxu0 0.0
        %4706 = vmatpush1.msra.mxu0 0.0
        %4707 = vmatprep.subr.mxu0 0.0
        %4708 = vmatpush1.msra.mxu0 0.0
        %4709 = vmatprep.subr.mxu0 0.0
        %4710 = vmatpush1.msra.mxu0 0.0
        %4711 = vmatprep.subr.mxu0 0.0
        %4712 = vmatpush1.msra.mxu0 0.0
        %4713 = vmatprep.mubr.f32.mxu0 0.0
        %4714 = vmatmul.mubr.f32.gmra.mrb[0].mxu0 %v3966
        %v4715 = vpop.f32.mrb[0].mxu0
        %v4716 = vadd.f32 %v4647, %v4715
        %v4717 = vpop.f32.mrb[0].mxu0
        %4718 = vmatprep.mubr.f32.mxu0 0.0
        %4719 = vmatmul.mubr.f32.gmra.mrb[0].mxu0 %v3969
        %v4720 = vpop.f32.mrb[0].mxu0
        %v4721 = vadd.f32 %v4647, %v4720
        %v4722 = vpop.f32.mrb[0].mxu0
        %4723 = vdwg.mxu0
        %s4724 = scalar_lea.vmem %s10, 160
        %v4725 = vld [vmem:[%s4724] sm:$0xff]
        %v4726 = vld [vmem:[%s4724 + $0x8] sm:$0xff]
        %v4727 = vld [vmem:[%s4724 + $0x10] sm:$0xff]
        %v4728 = vld [vmem:[%s4724 + $0x18] sm:$0xff]
        %s4729 = scalar_lea.vmem %s11, 5
        %v4730 = vld [vmem:[%s4729] sm:$0x1]
        %v4732 = vlaneseq
        %v4733 = vshrl.u32 %v4732, 7
        %v4734 = vsub.s32 0, %v4733
        %v4735 = vrot.slane %v4730, %v4734
        %4737 = vmatprep.subr.mxu0 0.0
        %4738 = vmatpush1.msra.mxu0 %v4725
        %4739 = vmatprep.subr.mxu0 0.0
        %4740 = vmatpush1.msra.mxu0 %v4726
        %4741 = vmatprep.subr.mxu0 0.0
        %4742 = vmatpush1.msra.mxu0 %v4727
        %4743 = vmatprep.subr.mxu0 0.0
        %4744 = vmatpush1.msra.mxu0 %v4728
        %4745 = vmatprep.subr.mxu0 0.0
        %4746 = vmatpush1.msra.mxu0 0.0
        %4747 = vmatprep.subr.mxu0 0.0
        %4748 = vmatpush1.msra.mxu0 0.0
        %4749 = vmatprep.subr.mxu0 0.0
        %4750 = vmatpush1.msra.mxu0 0.0
        %4751 = vmatprep.subr.mxu0 0.0
        %4752 = vmatpush1.msra.mxu0 0.0
        %4753 = vmatprep.subr.mxu0 0.0
        %4754 = vmatpush1.msra.mxu0 0.0
        %4755 = vmatprep.subr.mxu0 0.0
        %4756 = vmatpush1.msra.mxu0 0.0
        %4757 = vmatprep.subr.mxu0 0.0
        %4758 = vmatpush1.msra.mxu0 0.0
        %4759 = vmatprep.subr.mxu0 0.0
        %4760 = vmatpush1.msra.mxu0 0.0
        %4761 = vmatprep.subr.mxu0 0.0
        %4762 = vmatpush1.msra.mxu0 0.0
        %4763 = vmatprep.subr.mxu0 0.0
        %4764 = vmatpush1.msra.mxu0 0.0
        %4765 = vmatprep.subr.mxu0 0.0
        %4766 = vmatpush1.msra.mxu0 0.0
        %4767 = vmatprep.subr.mxu0 0.0
        %4768 = vmatpush1.msra.mxu0 0.0
        %4769 = vmatprep.subr.mxu0 0.0
        %4770 = vmatpush1.msra.mxu0 0.0
        %4771 = vmatprep.subr.mxu0 0.0
        %4772 = vmatpush1.msra.mxu0 0.0
        %4773 = vmatprep.subr.mxu0 0.0
        %4774 = vmatpush1.msra.mxu0 0.0
        %4775 = vmatprep.subr.mxu0 0.0
        %4776 = vmatpush1.msra.mxu0 0.0
        %4777 = vmatprep.subr.mxu0 0.0
        %4778 = vmatpush1.msra.mxu0 0.0
        %4779 = vmatprep.subr.mxu0 0.0
        %4780 = vmatpush1.msra.mxu0 0.0
        %4781 = vmatprep.subr.mxu0 0.0
        %4782 = vmatpush1.msra.mxu0 0.0
        %4783 = vmatprep.subr.mxu0 0.0
        %4784 = vmatpush1.msra.mxu0 0.0
        %4785 = vmatprep.subr.mxu0 0.0
        %4786 = vmatpush1.msra.mxu0 0.0
        %4787 = vmatprep.subr.mxu0 0.0
        %4788 = vmatpush1.msra.mxu0 0.0
        %4789 = vmatprep.subr.mxu0 0.0
        %4790 = vmatpush1.msra.mxu0 0.0
        %4791 = vmatprep.subr.mxu0 0.0
        %4792 = vmatpush1.msra.mxu0 0.0
        %4793 = vmatprep.subr.mxu0 0.0
        %4794 = vmatpush1.msra.mxu0 0.0
        %4795 = vmatprep.subr.mxu0 0.0
        %4796 = vmatpush1.msra.mxu0 0.0
        %4797 = vmatprep.subr.mxu0 0.0
        %4798 = vmatpush1.msra.mxu0 0.0
        %4799 = vmatprep.subr.mxu0 0.0
        %4800 = vmatpush1.msra.mxu0 0.0
        %4801 = vmatprep.mubr.f32.mxu0 0.0
        %4802 = vmatmul.mubr.f32.gmra.mrb[0].mxu0 %v3966
        %v4803 = vpop.f32.mrb[0].mxu0
        %v4804 = vadd.f32 %v4735, %v4803
        %v4805 = vpop.f32.mrb[0].mxu0
        %4806 = vmatprep.mubr.f32.mxu0 0.0
        %4807 = vmatmul.mubr.f32.gmra.mrb[0].mxu0 %v3969
        %v4808 = vpop.f32.mrb[0].mxu0
        %v4809 = vadd.f32 %v4735, %v4808
        %v4810 = vpop.f32.mrb[0].mxu0
        %4811 = vdwg.mxu0
        %v4812 = vmul.f32 %v4628, 0.35355338
        %v4813 = vmul.f32 %v4633, 0.35355338
        %v4815 = vsel %vm1219, %v4812, 0
        %v4818 = vsel %vm1219, %v4716, 0
        %4820 = vmatprep.subr.mxu0 0.0
        %4821 = vmatpush1.xpose.msra.mxu0 %v4818
        %4822 = vmatprep.subr.mxu0 0.0
        %4823 = vmatpush1.xpose.msra.mxu0 0.0
        %4824 = vmatprep.subr.mxu0 0.0
        %4825 = vmatpush1.xpose.msra.mxu0 0.0
        %4826 = vmatprep.subr.mxu0 0.0
        %4827 = vmatpush1.xpose.msra.mxu0 0.0
        %4828 = vmatprep.subr.mxu0 0.0
        %4829 = vmatpush1.xpose.msra.mxu0 0.0
        %4830 = vmatprep.subr.mxu0 0.0
        %4831 = vmatpush1.xpose.msra.mxu0 0.0
        %4832 = vmatprep.subr.mxu0 0.0
        %4833 = vmatpush1.xpose.msra.mxu0 0.0
        %4834 = vmatprep.subr.mxu0 0.0
        %4835 = vmatpush1.xpose.msra.mxu0 0.0
        %4836 = vmatprep.subr.mxu0 0.0
        %4837 = vmatpush1.xpose.msra.mxu0 0.0
        %4838 = vmatprep.subr.mxu0 0.0
        %4839 = vmatpush1.xpose.msra.mxu0 0.0
        %4840 = vmatprep.subr.mxu0 0.0
        %4841 = vmatpush1.xpose.msra.mxu0 0.0
        %4842 = vmatprep.subr.mxu0 0.0
        %4843 = vmatpush1.xpose.msra.mxu0 0.0
        %4844 = vmatprep.subr.mxu0 0.0
        %4845 = vmatpush1.xpose.msra.mxu0 0.0
        %4846 = vmatprep.subr.mxu0 0.0
        %4847 = vmatpush1.xpose.msra.mxu0 0.0
        %4848 = vmatprep.subr.mxu0 0.0
        %4849 = vmatpush1.xpose.msra.mxu0 0.0
        %4850 = vmatprep.subr.mxu0 0.0
        %4851 = vmatpush1.xpose.msra.mxu0 0.0
        %4852 = vmatprep.subr.mxu0 0.0
        %4853 = vmatpush1.xpose.msra.mxu0 0.0
        %4854 = vmatprep.subr.mxu0 0.0
        %4855 = vmatpush1.xpose.msra.mxu0 0.0
        %4856 = vmatprep.subr.mxu0 0.0
        %4857 = vmatpush1.xpose.msra.mxu0 0.0
        %4858 = vmatprep.subr.mxu0 0.0
        %4859 = vmatpush1.xpose.msra.mxu0 0.0
        %4860 = vmatprep.subr.mxu0 0.0
        %4861 = vmatpush1.xpose.msra.mxu0 0.0
        %4862 = vmatprep.subr.mxu0 0.0
        %4863 = vmatpush1.xpose.msra.mxu0 0.0
        %4864 = vmatprep.subr.mxu0 0.0
        %4865 = vmatpush1.xpose.msra.mxu0 0.0
        %4866 = vmatprep.subr.mxu0 0.0
        %4867 = vmatpush1.xpose.msra.mxu0 0.0
        %4868 = vmatprep.subr.mxu0 0.0
        %4869 = vmatpush1.xpose.msra.mxu0 0.0
        %4870 = vmatprep.subr.mxu0 0.0
        %4871 = vmatpush1.xpose.msra.mxu0 0.0
        %4872 = vmatprep.subr.mxu0 0.0
        %4873 = vmatpush1.xpose.msra.mxu0 0.0
        %4874 = vmatprep.subr.mxu0 0.0
        %4875 = vmatpush1.xpose.msra.mxu0 0.0
        %4876 = vmatprep.subr.mxu0 0.0
        %4877 = vmatpush1.xpose.msra.mxu0 0.0
        %4878 = vmatprep.subr.mxu0 0.0
        %4879 = vmatpush1.xpose.msra.mxu0 0.0
        %4880 = vmatprep.subr.mxu0 0.0
        %4881 = vmatpush1.xpose.msra.mxu0 0.0
        %4882 = vmatprep.subr.mxu0 0.0
        %4883 = vmatpush1.xpose.msra.mxu0 0.0
        %4884 = vmatprep.mubr.f32.mxu0 0.0
        %4885 = vmatmul.mubr.f32.gmra.mrb[0].mxu0 %v4815
        %v4886 = vpop.f32.mrb[0].mxu0
        %v4887 = vadd.f32 0.0, %v4886
        %v4888 = vpop.f32.mrb[0].mxu0
        %4889 = vdwg.mxu0
        %v4891 = vsel %vm1219, %v4813, 0
        %v4894 = vsel %vm1219, %v4721, 0
        %4896 = vmatprep.subr.mxu0 0.0
        %4897 = vmatpush1.xpose.msra.mxu0 %v4894
        %4898 = vmatprep.subr.mxu0 0.0
        %4899 = vmatpush1.xpose.msra.mxu0 0.0
        %4900 = vmatprep.subr.mxu0 0.0
        %4901 = vmatpush1.xpose.msra.mxu0 0.0
        %4902 = vmatprep.subr.mxu0 0.0
        %4903 = vmatpush1.xpose.msra.mxu0 0.0
        %4904 = vmatprep.subr.mxu0 0.0
        %4905 = vmatpush1.xpose.msra.mxu0 0.0
        %4906 = vmatprep.subr.mxu0 0.0
        %4907 = vmatpush1.xpose.msra.mxu0 0.0
        %4908 = vmatprep.subr.mxu0 0.0
        %4909 = vmatpush1.xpose.msra.mxu0 0.0
        %4910 = vmatprep.subr.mxu0 0.0
        %4911 = vmatpush1.xpose.msra.mxu0 0.0
        %4912 = vmatprep.subr.mxu0 0.0
        %4913 = vmatpush1.xpose.msra.mxu0 0.0
        %4914 = vmatprep.subr.mxu0 0.0
        %4915 = vmatpush1.xpose.msra.mxu0 0.0
        %4916 = vmatprep.subr.mxu0 0.0
        %4917 = vmatpush1.xpose.msra.mxu0 0.0
        %4918 = vmatprep.subr.mxu0 0.0
        %4919 = vmatpush1.xpose.msra.mxu0 0.0
        %4920 = vmatprep.subr.mxu0 0.0
        %4921 = vmatpush1.xpose.msra.mxu0 0.0
        %4922 = vmatprep.subr.mxu0 0.0
        %4923 = vmatpush1.xpose.msra.mxu0 0.0
        %4924 = vmatprep.subr.mxu0 0.0
        %4925 = vmatpush1.xpose.msra.mxu0 0.0
        %4926 = vmatprep.subr.mxu0 0.0
        %4927 = vmatpush1.xpose.msra.mxu0 0.0
        %4928 = vmatprep.subr.mxu0 0.0
        %4929 = vmatpush1.xpose.msra.mxu0 0.0
        %4930 = vmatprep.subr.mxu0 0.0
        %4931 = vmatpush1.xpose.msra.mxu0 0.0
        %4932 = vmatprep.subr.mxu0 0.0
        %4933 = vmatpush1.xpose.msra.mxu0 0.0
        %4934 = vmatprep.subr.mxu0 0.0
        %4935 = vmatpush1.xpose.msra.mxu0 0.0
        %4936 = vmatprep.subr.mxu0 0.0
        %4937 = vmatpush1.xpose.msra.mxu0 0.0
        %4938 = vmatprep.subr.mxu0 0.0
        %4939 = vmatpush1.xpose.msra.mxu0 0.0
        %4940 = vmatprep.subr.mxu0 0.0
        %4941 = vmatpush1.xpose.msra.mxu0 0.0
        %4942 = vmatprep.subr.mxu0 0.0
        %4943 = vmatpush1.xpose.msra.mxu0 0.0
        %4944 = vmatprep.subr.mxu0 0.0
        %4945 = vmatpush1.xpose.msra.mxu0 0.0
        %4946 = vmatprep.subr.mxu0 0.0
        %4947 = vmatpush1.xpose.msra.mxu0 0.0
        %4948 = vmatprep.subr.mxu0 0.0
        %4949 = vmatpush1.xpose.msra.mxu0 0.0
        %4950 = vmatprep.subr.mxu0 0.0
        %4951 = vmatpush1.xpose.msra.mxu0 0.0
        %4952 = vmatprep.subr.mxu0 0.0
        %4953 = vmatpush1.xpose.msra.mxu0 0.0
        %4954 = vmatprep.subr.mxu0 0.0
        %4955 = vmatpush1.xpose.msra.mxu0 0.0
        %4956 = vmatprep.subr.mxu0 0.0
        %4957 = vmatpush1.xpose.msra.mxu0 0.0
        %4958 = vmatprep.subr.mxu0 0.0
        %4959 = vmatpush1.xpose.msra.mxu0 0.0
        %4960 = vmatprep.mubr.f32.mxu0 0.0
        %4961 = vmatmul.mubr.f32.gmra.mrb[0].mxu0 %v4891
        %v4962 = vpop.f32.mrb[0].mxu0
        %v4963 = vadd.f32 0.0, %v4962
        %v4964 = vpop.f32.mrb[0].mxu0
        %4965 = vdwg.mxu0
        %v4966 = vsel %vm1372, -3.4028235e+38, %v4887
        %v4967 = vsel %vm1373, -3.4028235e+38, %v4963
        %v4968 = vsel %vm1219, %v4966, -inf
        %4969 = vmax.xlane.f32.xlu0 %v4968
        %v4970 = vpop.xlane.xlu0 %4969
        %v4971 = vsel %vm1219, %v4967, -inf
        %4972 = vmax.xlane.f32.xlu0 %v4971
        %v4973 = vpop.xlane.xlu0 %4972
        %v4974 = vsub.f32 %v4966, %v4970
        %v4975 = vsub.f32 %v4967, %v4973
        %v4976 = vmul.f32 %v4974, 1.442695
        %v4977 = vpow.pop %v4976
        %v4978 = vmul.f32 %v4975, 1.442695
        %v4979 = vpow.pop %v4978
        %v4980 = vsel %vm1219, %v4977, 0.0
        %4981 = vadd.xlane.f32.xlu0 %v4980
        %v4982 = vpop.xlane.xlu0 %4981
        %v4983 = vsel %vm1219, %v4979, 0.0
        %4984 = vadd.xlane.f32.xlu0 %v4983
        %v4985 = vpop.xlane.xlu0 %4984
        %v4986 = vrcp.pop %v4982
        %v4987 = vmul.f32 %v4977, %v4986
        %v4988 = vrcp.pop %v4985
        %v4989 = vmul.f32 %v4979, %v4988
        %v4991 = vsel %vm1219, %v4987, 0
        %4993 = vmatprep.subr.mxu0 0.0
        %4994 = vmatpush1.msra.mxu0 %v4804
        %4995 = vmatprep.subr.mxu0 0.0
        %4996 = vmatpush1.msra.mxu0 0.0
        %4997 = vmatprep.subr.mxu0 0.0
        %4998 = vmatpush1.msra.mxu0 0.0
        %4999 = vmatprep.subr.mxu0 0.0
        %5000 = vmatpush1.msra.mxu0 0.0
        %5001 = vmatprep.subr.mxu0 0.0
        %5002 = vmatpush1.msra.mxu0 0.0
        %5003 = vmatprep.subr.mxu0 0.0
        %5004 = vmatpush1.msra.mxu0 0.0
        %5005 = vmatprep.subr.mxu0 0.0
        %5006 = vmatpush1.msra.mxu0 0.0
        %5007 = vmatprep.subr.mxu0 0.0
        %5008 = vmatpush1.msra.mxu0 0.0
        %5009 = vmatprep.subr.mxu0 0.0
        %5010 = vmatpush1.msra.mxu0 0.0
        %5011 = vmatprep.subr.mxu0 0.0
        %5012 = vmatpush1.msra.mxu0 0.0
        %5013 = vmatprep.subr.mxu0 0.0
        %5014 = vmatpush1.msra.mxu0 0.0
        %5015 = vmatprep.subr.mxu0 0.0
        %5016 = vmatpush1.msra.mxu0 0.0
        %5017 = vmatprep.subr.mxu0 0.0
        %5018 = vmatpush1.msra.mxu0 0.0
        %5019 = vmatprep.subr.mxu0 0.0
        %5020 = vmatpush1.msra.mxu0 0.0
        %5021 = vmatprep.subr.mxu0 0.0
        %5022 = vmatpush1.msra.mxu0 0.0
        %5023 = vmatprep.subr.mxu0 0.0
        %5024 = vmatpush1.msra.mxu0 0.0
        %5025 = vmatprep.subr.mxu0 0.0
        %5026 = vmatpush1.msra.mxu0 0.0
        %5027 = vmatprep.subr.mxu0 0.0
        %5028 = vmatpush1.msra.mxu0 0.0
        %5029 = vmatprep.subr.mxu0 0.0
        %5030 = vmatpush1.msra.mxu0 0.0
        %5031 = vmatprep.subr.mxu0 0.0
        %5032 = vmatpush1.msra.mxu0 0.0
        %5033 = vmatprep.subr.mxu0 0.0
        %5034 = vmatpush1.msra.mxu0 0.0
        %5035 = vmatprep.subr.mxu0 0.0
        %5036 = vmatpush1.msra.mxu0 0.0
        %5037 = vmatprep.subr.mxu0 0.0
        %5038 = vmatpush1.msra.mxu0 0.0
        %5039 = vmatprep.subr.mxu0 0.0
        %5040 = vmatpush1.msra.mxu0 0.0
        %5041 = vmatprep.subr.mxu0 0.0
        %5042 = vmatpush1.msra.mxu0 0.0
        %5043 = vmatprep.subr.mxu0 0.0
        %5044 = vmatpush1.msra.mxu0 0.0
        %5045 = vmatprep.subr.mxu0 0.0
        %5046 = vmatpush1.msra.mxu0 0.0
        %5047 = vmatprep.subr.mxu0 0.0
        %5048 = vmatpush1.msra.mxu0 0.0
        %5049 = vmatprep.subr.mxu0 0.0
        %5050 = vmatpush1.msra.mxu0 0.0
        %5051 = vmatprep.subr.mxu0 0.0
        %5052 = vmatpush1.msra.mxu0 0.0
        %5053 = vmatprep.subr.mxu0 0.0
        %5054 = vmatpush1.msra.mxu0 0.0
        %5055 = vmatprep.subr.mxu0 0.0
        %5056 = vmatpush1.msra.mxu0 0.0
        %5057 = vmatprep.mubr.f32.mxu0 0.0
        %5058 = vmatmul.mubr.f32.gmra.mrb[0].mxu0 %v4991
        %v5059 = vpop.f32.mrb[0].mxu0
        %v5060 = vadd.f32 0.0, %v5059
        %v5061 = vpop.f32.mrb[0].mxu0
        %5062 = vdwg.mxu0
        %v5064 = vsel %vm1219, %v4989, 0
        %5066 = vmatprep.subr.mxu0 0.0
        %5067 = vmatpush1.msra.mxu0 %v4809
        %5068 = vmatprep.subr.mxu0 0.0
        %5069 = vmatpush1.msra.mxu0 0.0
        %5070 = vmatprep.subr.mxu0 0.0
        %5071 = vmatpush1.msra.mxu0 0.0
        %5072 = vmatprep.subr.mxu0 0.0
        %5073 = vmatpush1.msra.mxu0 0.0
        %5074 = vmatprep.subr.mxu0 0.0
        %5075 = vmatpush1.msra.mxu0 0.0
        %5076 = vmatprep.subr.mxu0 0.0
        %5077 = vmatpush1.msra.mxu0 0.0
        %5078 = vmatprep.subr.mxu0 0.0
        %5079 = vmatpush1.msra.mxu0 0.0
        %5080 = vmatprep.subr.mxu0 0.0
        %5081 = vmatpush1.msra.mxu0 0.0
        %5082 = vmatprep.subr.mxu0 0.0
        %5083 = vmatpush1.msra.mxu0 0.0
        %5084 = vmatprep.subr.mxu0 0.0
        %5085 = vmatpush1.msra.mxu0 0.0
        %5086 = vmatprep.subr.mxu0 0.0
        %5087 = vmatpush1.msra.mxu0 0.0
        %5088 = vmatprep.subr.mxu0 0.0
        %5089 = vmatpush1.msra.mxu0 0.0
        %5090 = vmatprep.subr.mxu0 0.0
        %5091 = vmatpush1.msra.mxu0 0.0
        %5092 = vmatprep.subr.mxu0 0.0
        %5093 = vmatpush1.msra.mxu0 0.0
        %5094 = vmatprep.subr.mxu0 0.0
        %5095 = vmatpush1.msra.mxu0 0.0
        %5096 = vmatprep.subr.mxu0 0.0
        %5097 = vmatpush1.msra.mxu0 0.0
        %5098 = vmatprep.subr.mxu0 0.0
        %5099 = vmatpush1.msra.mxu0 0.0
        %5100 = vmatprep.subr.mxu0 0.0
        %5101 = vmatpush1.msra.mxu0 0.0
        %5102 = vmatprep.subr.mxu0 0.0
        %5103 = vmatpush1.msra.mxu0 0.0
        %5104 = vmatprep.subr.mxu0 0.0
        %5105 = vmatpush1.msra.mxu0 0.0
        %5106 = vmatprep.subr.mxu0 0.0
        %5107 = vmatpush1.msra.mxu0 0.0
        %5108 = vmatprep.subr.mxu0 0.0
        %5109 = vmatpush1.msra.mxu0 0.0
        %5110 = vmatprep.subr.mxu0 0.0
        %5111 = vmatpush1.msra.mxu0 0.0
        %5112 = vmatprep.subr.mxu0 0.0
        %5113 = vmatpush1.msra.mxu0 0.0
        %5114 = vmatprep.subr.mxu0 0.0
        %5115 = vmatpush1.msra.mxu0 0.0
        %5116 = vmatprep.subr.mxu0 0.0
        %5117 = vmatpush1.msra.mxu0 0.0
        %5118 = vmatprep.subr.mxu0 0.0
        %5119 = vmatpush1.msra.mxu0 0.0
        %5120 = vmatprep.subr.mxu0 0.0
        %5121 = vmatpush1.msra.mxu0 0.0
        %5122 = vmatprep.subr.mxu0 0.0
        %5123 = vmatpush1.msra.mxu0 0.0
        %5124 = vmatprep.subr.mxu0 0.0
        %5125 = vmatpush1.msra.mxu0 0.0
        %5126 = vmatprep.subr.mxu0 0.0
        %5127 = vmatpush1.msra.mxu0 0.0
        %5128 = vmatprep.subr.mxu0 0.0
        %5129 = vmatpush1.msra.mxu0 0.0
        %5130 = vmatprep.mubr.f32.mxu0 0.0
        %5131 = vmatmul.mubr.f32.gmra.mrb[0].mxu0 %v5064
        %v5132 = vpop.f32.mrb[0].mxu0
        %v5133 = vadd.f32 0.0, %v5132
        %v5134 = vpop.f32.mrb[0].mxu0
        %5135 = vdwg.mxu0
        %s5136 = scalar_lea.vmem %s12, 40
        %v5137 = vld [vmem:[%s5136] sm:$0xff]
        %v5139 = vsel %vm1219, %v5060, 0
        %v5142 = vsel %vm1219, %v5133, 0
        %5144 = vmatprep.subr.mxu0 0.0
        %5145 = vmatpush1.msra.mxu0 %v5137
        %5146 = vmatprep.subr.mxu0 0.0
        %5147 = vmatpush1.msra.mxu0 0.0
        %5148 = vmatprep.subr.mxu0 0.0
        %5149 = vmatpush1.msra.mxu0 0.0
        %5150 = vmatprep.subr.mxu0 0.0
        %5151 = vmatpush1.msra.mxu0 0.0
        %5152 = vmatprep.subr.mxu0 0.0
        %5153 = vmatpush1.msra.mxu0 0.0
        %5154 = vmatprep.subr.mxu0 0.0
        %5155 = vmatpush1.msra.mxu0 0.0
        %5156 = vmatprep.subr.mxu0 0.0
        %5157 = vmatpush1.msra.mxu0 0.0
        %5158 = vmatprep.subr.mxu0 0.0
        %5159 = vmatpush1.msra.mxu0 0.0
        %5160 = vmatprep.subr.mxu0 0.0
        %5161 = vmatpush1.msra.mxu0 0.0
        %5162 = vmatprep.subr.mxu0 0.0
        %5163 = vmatpush1.msra.mxu0 0.0
        %5164 = vmatprep.subr.mxu0 0.0
        %5165 = vmatpush1.msra.mxu0 0.0
        %5166 = vmatprep.subr.mxu0 0.0
        %5167 = vmatpush1.msra.mxu0 0.0
        %5168 = vmatprep.subr.mxu0 0.0
        %5169 = vmatpush1.msra.mxu0 0.0
        %5170 = vmatprep.subr.mxu0 0.0
        %5171 = vmatpush1.msra.mxu0 0.0
        %5172 = vmatprep.subr.mxu0 0.0
        %5173 = vmatpush1.msra.mxu0 0.0
        %5174 = vmatprep.subr.mxu0 0.0
        %5175 = vmatpush1.msra.mxu0 0.0
        %5176 = vmatprep.subr.mxu0 0.0
        %5177 = vmatpush1.msra.mxu0 0.0
        %5178 = vmatprep.subr.mxu0 0.0
        %5179 = vmatpush1.msra.mxu0 0.0
        %5180 = vmatprep.subr.mxu0 0.0
        %5181 = vmatpush1.msra.mxu0 0.0
        %5182 = vmatprep.subr.mxu0 0.0
        %5183 = vmatpush1.msra.mxu0 0.0
        %5184 = vmatprep.subr.mxu0 0.0
        %5185 = vmatpush1.msra.mxu0 0.0
        %5186 = vmatprep.subr.mxu0 0.0
        %5187 = vmatpush1.msra.mxu0 0.0
        %5188 = vmatprep.subr.mxu0 0.0
        %5189 = vmatpush1.msra.mxu0 0.0
        %5190 = vmatprep.subr.mxu0 0.0
        %5191 = vmatpush1.msra.mxu0 0.0
        %5192 = vmatprep.subr.mxu0 0.0
        %5193 = vmatpush1.msra.mxu0 0.0
        %5194 = vmatprep.subr.mxu0 0.0
        %5195 = vmatpush1.msra.mxu0 0.0
        %5196 = vmatprep.subr.mxu0 0.0
        %5197 = vmatpush1.msra.mxu0 0.0
        %5198 = vmatprep.subr.mxu0 0.0
        %5199 = vmatpush1.msra.mxu0 0.0
        %5200 = vmatprep.subr.mxu0 0.0
        %5201 = vmatpush1.msra.mxu0 0.0
        %5202 = vmatprep.subr.mxu0 0.0
        %5203 = vmatpush1.msra.mxu0 0.0
        %5204 = vmatprep.subr.mxu0 0.0
        %5205 = vmatpush1.msra.mxu0 0.0
        %5206 = vmatprep.subr.mxu0 0.0
        %5207 = vmatpush1.msra.mxu0 0.0
        %5208 = vmatprep.mubr.f32.mxu0 0.0
        %5209 = vmatmul.mubr.f32.gmra.mrb[0].mxu0 %v5139
        %v5210 = vpop.f32.mrb[0].mxu0
        %v5211 = vadd.f32 0.0, %v5210
        %v5212 = vpop.f32.mrb[0].mxu0
        %5213 = vmatprep.mubr.f32.mxu0 0.0
        %5214 = vmatmul.mubr.f32.gmra.mrb[0].mxu0 %v5142
        %v5215 = vpop.f32.mrb[0].mxu0
        %v5216 = vadd.f32 0.0, %v5215
        %v5217 = vpop.f32.mrb[0].mxu0
        %5218 = vdwg.mxu0
        %v5220 = vsel %vm1219, %v4470, 0
        %v5223 = vsel %vm1219, %v4543, 0
        %5225 = vmatprep.subr.mxu0 0.0
        %5226 = vmatpush1.msra.mxu0 %v4547
        %5227 = vmatprep.subr.mxu0 0.0
        %5228 = vmatpush1.msra.mxu0 0.0
        %5229 = vmatprep.subr.mxu0 0.0
        %5230 = vmatpush1.msra.mxu0 0.0
        %5231 = vmatprep.subr.mxu0 0.0
        %5232 = vmatpush1.msra.mxu0 0.0
        %5233 = vmatprep.subr.mxu0 0.0
        %5234 = vmatpush1.msra.mxu0 0.0
        %5235 = vmatprep.subr.mxu0 0.0
        %5236 = vmatpush1.msra.mxu0 0.0
        %5237 = vmatprep.subr.mxu0 0.0
        %5238 = vmatpush1.msra.mxu0 0.0
        %5239 = vmatprep.subr.mxu0 0.0
        %5240 = vmatpush1.msra.mxu0 0.0
        %5241 = vmatprep.subr.mxu0 0.0
        %5242 = vmatpush1.msra.mxu0 0.0
        %5243 = vmatprep.subr.mxu0 0.0
        %5244 = vmatpush1.msra.mxu0 0.0
        %5245 = vmatprep.subr.mxu0 0.0
        %5246 = vmatpush1.msra.mxu0 0.0
        %5247 = vmatprep.subr.mxu0 0.0
        %5248 = vmatpush1.msra.mxu0 0.0
        %5249 = vmatprep.subr.mxu0 0.0
        %5250 = vmatpush1.msra.mxu0 0.0
        %5251 = vmatprep.subr.mxu0 0.0
        %5252 = vmatpush1.msra.mxu0 0.0
        %5253 = vmatprep.subr.mxu0 0.0
        %5254 = vmatpush1.msra.mxu0 0.0
        %5255 = vmatprep.subr.mxu0 0.0
        %5256 = vmatpush1.msra.mxu0 0.0
        %5257 = vmatprep.subr.mxu0 0.0
        %5258 = vmatpush1.msra.mxu0 0.0
        %5259 = vmatprep.subr.mxu0 0.0
        %5260 = vmatpush1.msra.mxu0 0.0
        %5261 = vmatprep.subr.mxu0 0.0
        %5262 = vmatpush1.msra.mxu0 0.0
        %5263 = vmatprep.subr.mxu0 0.0
        %5264 = vmatpush1.msra.mxu0 0.0
        %5265 = vmatprep.subr.mxu0 0.0
        %5266 = vmatpush1.msra.mxu0 0.0
        %5267 = vmatprep.subr.mxu0 0.0
        %5268 = vmatpush1.msra.mxu0 0.0
        %5269 = vmatprep.subr.mxu0 0.0
        %5270 = vmatpush1.msra.mxu0 0.0
        %5271 = vmatprep.subr.mxu0 0.0
        %5272 = vmatpush1.msra.mxu0 0.0
        %5273 = vmatprep.subr.mxu0 0.0
        %5274 = vmatpush1.msra.mxu0 0.0
        %5275 = vmatprep.subr.mxu0 0.0
        %5276 = vmatpush1.msra.mxu0 0.0
        %5277 = vmatprep.subr.mxu0 0.0
        %5278 = vmatpush1.msra.mxu0 0.0
        %5279 = vmatprep.subr.mxu0 0.0
        %5280 = vmatpush1.msra.mxu0 0.0
        %5281 = vmatprep.subr.mxu0 0.0
        %5282 = vmatpush1.msra.mxu0 0.0
        %5283 = vmatprep.subr.mxu0 0.0
        %5284 = vmatpush1.msra.mxu0 0.0
        %5285 = vmatprep.subr.mxu0 0.0
        %5286 = vmatpush1.msra.mxu0 0.0
        %5287 = vmatprep.subr.mxu0 0.0
        %5288 = vmatpush1.msra.mxu0 0.0
        %5289 = vmatprep.mubr.f32.mxu0 0.0
        %5290 = vmatmul.mubr.f32.gmra.mrb[0].mxu0 %v5220
        %v5291 = vpop.f32.mrb[0].mxu0
        %v5292 = vadd.f32 %v5211, %v5291
        %v5293 = vpop.f32.mrb[0].mxu0
        %5294 = vmatprep.mubr.f32.mxu0 0.0
        %5295 = vmatmul.mubr.f32.gmra.mrb[0].mxu0 %v5223
        %v5296 = vpop.f32.mrb[0].mxu0
        %v5297 = vadd.f32 %v5216, %v5296
        %v5298 = vpop.f32.mrb[0].mxu0
        %5299 = vdwg.mxu0
        %s5300 = scalar_lea.vmem %s6, 192
        %v5301 = vld [vmem:[%s5300] sm:$0xff]
        %v5302 = vld [vmem:[%s5300 + $0x8] sm:$0xff]
        %v5303 = vld [vmem:[%s5300 + $0x10] sm:$0xff]
        %v5304 = vld [vmem:[%s5300 + $0x18] sm:$0xff]
        %s5305 = scalar_lea.vmem %s7, 6
        %v5306 = vld [vmem:[%s5305] sm:$0x1]
        %v5308 = vlaneseq
        %v5309 = vshrl.u32 %v5308, 7
        %v5310 = vsub.s32 0, %v5309
        %v5311 = vrot.slane %v5306, %v5310
        %5313 = vmatprep.subr.mxu0 0.0
        %5314 = vmatpush1.msra.mxu0 %v5301
        %5315 = vmatprep.subr.mxu0 0.0
        %5316 = vmatpush1.msra.mxu0 %v5302
        %5317 = vmatprep.subr.mxu0 0.0
        %5318 = vmatpush1.msra.mxu0 %v5303
        %5319 = vmatprep.subr.mxu0 0.0
        %5320 = vmatpush1.msra.mxu0 %v5304
        %5321 = vmatprep.subr.mxu0 0.0
        %5322 = vmatpush1.msra.mxu0 0.0
        %5323 = vmatprep.subr.mxu0 0.0
        %5324 = vmatpush1.msra.mxu0 0.0
        %5325 = vmatprep.subr.mxu0 0.0
        %5326 = vmatpush1.msra.mxu0 0.0
        %5327 = vmatprep.subr.mxu0 0.0
        %5328 = vmatpush1.msra.mxu0 0.0
        %5329 = vmatprep.subr.mxu0 0.0
        %5330 = vmatpush1.msra.mxu0 0.0
        %5331 = vmatprep.subr.mxu0 0.0
        %5332 = vmatpush1.msra.mxu0 0.0
        %5333 = vmatprep.subr.mxu0 0.0
        %5334 = vmatpush1.msra.mxu0 0.0
        %5335 = vmatprep.subr.mxu0 0.0
        %5336 = vmatpush1.msra.mxu0 0.0
        %5337 = vmatprep.subr.mxu0 0.0
        %5338 = vmatpush1.msra.mxu0 0.0
        %5339 = vmatprep.subr.mxu0 0.0
        %5340 = vmatpush1.msra.mxu0 0.0
        %5341 = vmatprep.subr.mxu0 0.0
        %5342 = vmatpush1.msra.mxu0 0.0
        %5343 = vmatprep.subr.mxu0 0.0
        %5344 = vmatpush1.msra.mxu0 0.0
        %5345 = vmatprep.subr.mxu0 0.0
        %5346 = vmatpush1.msra.mxu0 0.0
        %5347 = vmatprep.subr.mxu0 0.0
        %5348 = vmatpush1.msra.mxu0 0.0
        %5349 = vmatprep.subr.mxu0 0.0
        %5350 = vmatpush1.msra.mxu0 0.0
        %5351 = vmatprep.subr.mxu0 0.0
        %5352 = vmatpush1.msra.mxu0 0.0
        %5353 = vmatprep.subr.mxu0 0.0
        %5354 = vmatpush1.msra.mxu0 0.0
        %5355 = vmatprep.subr.mxu0 0.0
        %5356 = vmatpush1.msra.mxu0 0.0
        %5357 = vmatprep.subr.mxu0 0.0
        %5358 = vmatpush1.msra.mxu0 0.0
        %5359 = vmatprep.subr.mxu0 0.0
        %5360 = vmatpush1.msra.mxu0 0.0
        %5361 = vmatprep.subr.mxu0 0.0
        %5362 = vmatpush1.msra.mxu0 0.0
        %5363 = vmatprep.subr.mxu0 0.0
        %5364 = vmatpush1.msra.mxu0 0.0
        %5365 = vmatprep.subr.mxu0 0.0
        %5366 = vmatpush1.msra.mxu0 0.0
        %5367 = vmatprep.subr.mxu0 0.0
        %5368 = vmatpush1.msra.mxu0 0.0
        %5369 = vmatprep.subr.mxu0 0.0
        %5370 = vmatpush1.msra.mxu0 0.0
        %5371 = vmatprep.subr.mxu0 0.0
        %5372 = vmatpush1.msra.mxu0 0.0
        %5373 = vmatprep.subr.mxu0 0.0
        %5374 = vmatpush1.msra.mxu0 0.0
        %5375 = vmatprep.subr.mxu0 0.0
        %5376 = vmatpush1.msra.mxu0 0.0
        %5377 = vmatprep.mubr.f32.mxu0 0.0
        %5378 = vmatmul.mubr.f32.gmra.mrb[0].mxu0 %v3966
        %v5379 = vpop.f32.mrb[0].mxu0
        %v5380 = vadd.f32 %v5311, %v5379
        %v5381 = vpop.f32.mrb[0].mxu0
        %5382 = vmatprep.mubr.f32.mxu0 0.0
        %5383 = vmatmul.mubr.f32.gmra.mrb[0].mxu0 %v3969
        %v5384 = vpop.f32.mrb[0].mxu0
        %v5385 = vadd.f32 %v5311, %v5384
        %v5386 = vpop.f32.mrb[0].mxu0
        %5387 = vdwg.mxu0
        %s5388 = scalar_lea.vmem %s8, 192
        %v5389 = vld [vmem:[%s5388] sm:$0xff]
        %v5390 = vld [vmem:[%s5388 + $0x8] sm:$0xff]
        %v5391 = vld [vmem:[%s5388 + $0x10] sm:$0xff]
        %v5392 = vld [vmem:[%s5388 + $0x18] sm:$0xff]
        %s5393 = scalar_lea.vmem %s9, 6
        %v5394 = vld [vmem:[%s5393] sm:$0x1]
        %v5396 = vlaneseq
        %v5397 = vshrl.u32 %v5396, 7
        %v5398 = vsub.s32 0, %v5397
        %v5399 = vrot.slane %v5394, %v5398
        %5401 = vmatprep.subr.mxu0 0.0
        %5402 = vmatpush1.msra.mxu0 %v5389
        %5403 = vmatprep.subr.mxu0 0.0
        %5404 = vmatpush1.msra.mxu0 %v5390
        %5405 = vmatprep.subr.mxu0 0.0
        %5406 = vmatpush1.msra.mxu0 %v5391
        %5407 = vmatprep.subr.mxu0 0.0
        %5408 = vmatpush1.msra.mxu0 %v5392
        %5409 = vmatprep.subr.mxu0 0.0
        %5410 = vmatpush1.msra.mxu0 0.0
        %5411 = vmatprep.subr.mxu0 0.0
        %5412 = vmatpush1.msra.mxu0 0.0
        %5413 = vmatprep.subr.mxu0 0.0
        %5414 = vmatpush1.msra.mxu0 0.0
        %5415 = vmatprep.subr.mxu0 0.0
        %5416 = vmatpush1.msra.mxu0 0.0
        %5417 = vmatprep.subr.mxu0 0.0
        %5418 = vmatpush1.msra.mxu0 0.0
        %5419 = vmatprep.subr.mxu0 0.0
        %5420 = vmatpush1.msra.mxu0 0.0
        %5421 = vmatprep.subr.mxu0 0.0
        %5422 = vmatpush1.msra.mxu0 0.0
        %5423 = vmatprep.subr.mxu0 0.0
        %5424 = vmatpush1.msra.mxu0 0.0
        %5425 = vmatprep.subr.mxu0 0.0
        %5426 = vmatpush1.msra.mxu0 0.0
        %5427 = vmatprep.subr.mxu0 0.0
        %5428 = vmatpush1.msra.mxu0 0.0
        %5429 = vmatprep.subr.mxu0 0.0
        %5430 = vmatpush1.msra.mxu0 0.0
        %5431 = vmatprep.subr.mxu0 0.0
        %5432 = vmatpush1.msra.mxu0 0.0
        %5433 = vmatprep.subr.mxu0 0.0
        %5434 = vmatpush1.msra.mxu0 0.0
        %5435 = vmatprep.subr.mxu0 0.0
        %5436 = vmatpush1.msra.mxu0 0.0
        %5437 = vmatprep.subr.mxu0 0.0
        %5438 = vmatpush1.msra.mxu0 0.0
        %5439 = vmatprep.subr.mxu0 0.0
        %5440 = vmatpush1.msra.mxu0 0.0
        %5441 = vmatprep.subr.mxu0 0.0
        %5442 = vmatpush1.msra.mxu0 0.0
        %5443 = vmatprep.subr.mxu0 0.0
        %5444 = vmatpush1.msra.mxu0 0.0
        %5445 = vmatprep.subr.mxu0 0.0
        %5446 = vmatpush1.msra.mxu0 0.0
        %5447 = vmatprep.subr.mxu0 0.0
        %5448 = vmatpush1.msra.mxu0 0.0
        %5449 = vmatprep.subr.mxu0 0.0
        %5450 = vmatpush1.msra.mxu0 0.0
        %5451 = vmatprep.subr.mxu0 0.0
        %5452 = vmatpush1.msra.mxu0 0.0
        %5453 = vmatprep.subr.mxu0 0.0
        %5454 = vmatpush1.msra.mxu0 0.0
        %5455 = vmatprep.subr.mxu0 0.0
        %5456 = vmatpush1.msra.mxu0 0.0
        %5457 = vmatprep.subr.mxu0 0.0
        %5458 = vmatpush1.msra.mxu0 0.0
        %5459 = vmatprep.subr.mxu0 0.0
        %5460 = vmatpush1.msra.mxu0 0.0
        %5461 = vmatprep.subr.mxu0 0.0
        %5462 = vmatpush1.msra.mxu0 0.0
        %5463 = vmatprep.subr.mxu0 0.0
        %5464 = vmatpush1.msra.mxu0 0.0
        %5465 = vmatprep.mubr.f32.mxu0 0.0
        %5466 = vmatmul.mubr.f32.gmra.mrb[0].mxu0 %v3966
        %v5467 = vpop.f32.mrb[0].mxu0
        %v5468 = vadd.f32 %v5399, %v5467
        %v5469 = vpop.f32.mrb[0].mxu0
        %5470 = vmatprep.mubr.f32.mxu0 0.0
        %5471 = vmatmul.mubr.f32.gmra.mrb[0].mxu0 %v3969
        %v5472 = vpop.f32.mrb[0].mxu0
        %v5473 = vadd.f32 %v5399, %v5472
        %v5474 = vpop.f32.mrb[0].mxu0
        %5475 = vdwg.mxu0
        %s5476 = scalar_lea.vmem %s10, 192
        %v5477 = vld [vmem:[%s5476] sm:$0xff]
        %v5478 = vld [vmem:[%s5476 + $0x8] sm:$0xff]
        %v5479 = vld [vmem:[%s5476 + $0x10] sm:$0xff]
        %v5480 = vld [vmem:[%s5476 + $0x18] sm:$0xff]
        %s5481 = scalar_lea.vmem %s11, 6
        %v5482 = vld [vmem:[%s5481] sm:$0x1]
        %v5484 = vlaneseq
        %v5485 = vshrl.u32 %v5484, 7
        %v5486 = vsub.s32 0, %v5485
        %v5487 = vrot.slane %v5482, %v5486
        %5489 = vmatprep.subr.mxu0 0.0
        %5490 = vmatpush1.msra.mxu0 %v5477
        %5491 = vmatprep.subr.mxu0 0.0
        %5492 = vmatpush1.msra.mxu0 %v5478
        %5493 = vmatprep.subr.mxu0 0.0
        %5494 = vmatpush1.msra.mxu0 %v5479
        %5495 = vmatprep.subr.mxu0 0.0
        %5496 = vmatpush1.msra.mxu0 %v5480
        %5497 = vmatprep.subr.mxu0 0.0
        %5498 = vmatpush1.msra.mxu0 0.0
        %5499 = vmatprep.subr.mxu0 0.0
        %5500 = vmatpush1.msra.mxu0 0.0
        %5501 = vmatprep.subr.mxu0 0.0
        %5502 = vmatpush1.msra.mxu0 0.0
        %5503 = vmatprep.subr.mxu0 0.0
        %5504 = vmatpush1.msra.mxu0 0.0
        %5505 = vmatprep.subr.mxu0 0.0
        %5506 = vmatpush1.msra.mxu0 0.0
        %5507 = vmatprep.subr.mxu0 0.0
        %5508 = vmatpush1.msra.mxu0 0.0
        %5509 = vmatprep.subr.mxu0 0.0
        %5510 = vmatpush1.msra.mxu0 0.0
        %5511 = vmatprep.subr.mxu0 0.0
        %5512 = vmatpush1.msra.mxu0 0.0
        %5513 = vmatprep.subr.mxu0 0.0
        %5514 = vmatpush1.msra.mxu0 0.0
        %5515 = vmatprep.subr.mxu0 0.0
        %5516 = vmatpush1.msra.mxu0 0.0
        %5517 = vmatprep.subr.mxu0 0.0
        %5518 = vmatpush1.msra.mxu0 0.0
        %5519 = vmatprep.subr.mxu0 0.0
        %5520 = vmatpush1.msra.mxu0 0.0
        %5521 = vmatprep.subr.mxu0 0.0
        %5522 = vmatpush1.msra.mxu0 0.0
        %5523 = vmatprep.subr.mxu0 0.0
        %5524 = vmatpush1.msra.mxu0 0.0
        %5525 = vmatprep.subr.mxu0 0.0
        %5526 = vmatpush1.msra.mxu0 0.0
        %5527 = vmatprep.subr.mxu0 0.0
        %5528 = vmatpush1.msra.mxu0 0.0
        %5529 = vmatprep.subr.mxu0 0.0
        %5530 = vmatpush1.msra.mxu0 0.0
        %5531 = vmatprep.subr.mxu0 0.0
        %5532 = vmatpush1.msra.mxu0 0.0
        %5533 = vmatprep.subr.mxu0 0.0
        %5534 = vmatpush1.msra.mxu0 0.0
        %5535 = vmatprep.subr.mxu0 0.0
        %5536 = vmatpush1.msra.mxu0 0.0
        %5537 = vmatprep.subr.mxu0 0.0
        %5538 = vmatpush1.msra.mxu0 0.0
        %5539 = vmatprep.subr.mxu0 0.0
        %5540 = vmatpush1.msra.mxu0 0.0
        %5541 = vmatprep.subr.mxu0 0.0
        %5542 = vmatpush1.msra.mxu0 0.0
        %5543 = vmatprep.subr.mxu0 0.0
        %5544 = vmatpush1.msra.mxu0 0.0
        %5545 = vmatprep.subr.mxu0 0.0
        %5546 = vmatpush1.msra.mxu0 0.0
        %5547 = vmatprep.subr.mxu0 0.0
        %5548 = vmatpush1.msra.mxu0 0.0
        %5549 = vmatprep.subr.mxu0 0.0
        %5550 = vmatpush1.msra.mxu0 0.0
        %5551 = vmatprep.subr.mxu0 0.0
        %5552 = vmatpush1.msra.mxu0 0.0
        %5553 = vmatprep.mubr.f32.mxu0 0.0
        %5554 = vmatmul.mubr.f32.gmra.mrb[0].mxu0 %v3966
        %v5555 = vpop.f32.mrb[0].mxu0
        %v5556 = vadd.f32 %v5487, %v5555
        %v5557 = vpop.f32.mrb[0].mxu0
        %5558 = vmatprep.mubr.f32.mxu0 0.0
        %5559 = vmatmul.mubr.f32.gmra.mrb[0].mxu0 %v3969
        %v5560 = vpop.f32.mrb[0].mxu0
        %v5561 = vadd.f32 %v5487, %v5560
        %v5562 = vpop.f32.mrb[0].mxu0
        %5563 = vdwg.mxu0
        %v5564 = vmul.f32 %v5380, 0.35355338
        %v5565 = vmul.f32 %v5385, 0.35355338
        %v5567 = vsel %vm1219, %v5564, 0
        %v5570 = vsel %vm1219, %v5468, 0
        %5572 = vmatprep.subr.mxu0 0.0
        %5573 = vmatpush1.xpose.msra.mxu0 %v5570
        %5574 = vmatprep.subr.mxu0 0.0
        %5575 = vmatpush1.xpose.msra.mxu0 0.0
        %5576 = vmatprep.subr.mxu0 0.0
        %5577 = vmatpush1.xpose.msra.mxu0 0.0
        %5578 = vmatprep.subr.mxu0 0.0
        %5579 = vmatpush1.xpose.msra.mxu0 0.0
        %5580 = vmatprep.subr.mxu0 0.0
        %5581 = vmatpush1.xpose.msra.mxu0 0.0
        %5582 = vmatprep.subr.mxu0 0.0
        %5583 = vmatpush1.xpose.msra.mxu0 0.0
        %5584 = vmatprep.subr.mxu0 0.0
        %5585 = vmatpush1.xpose.msra.mxu0 0.0
        %5586 = vmatprep.subr.mxu0 0.0
        %5587 = vmatpush1.xpose.msra.mxu0 0.0
        %5588 = vmatprep.subr.mxu0 0.0
        %5589 = vmatpush1.xpose.msra.mxu0 0.0
        %5590 = vmatprep.subr.mxu0 0.0
        %5591 = vmatpush1.xpose.msra.mxu0 0.0
        %5592 = vmatprep.subr.mxu0 0.0
        %5593 = vmatpush1.xpose.msra.mxu0 0.0
        %5594 = vmatprep.subr.mxu0 0.0
        %5595 = vmatpush1.xpose.msra.mxu0 0.0
        %5596 = vmatprep.subr.mxu0 0.0
        %5597 = vmatpush1.xpose.msra.mxu0 0.0
        %5598 = vmatprep.subr.mxu0 0.0
        %5599 = vmatpush1.xpose.msra.mxu0 0.0
        %5600 = vmatprep.subr.mxu0 0.0
        %5601 = vmatpush1.xpose.msra.mxu0 0.0
        %5602 = vmatprep.subr.mxu0 0.0
        %5603 = vmatpush1.xpose.msra.mxu0 0.0
        %5604 = vmatprep.subr.mxu0 0.0
        %5605 = vmatpush1.xpose.msra.mxu0 0.0
        %5606 = vmatprep.subr.mxu0 0.0
        %5607 = vmatpush1.xpose.msra.mxu0 0.0
        %5608 = vmatprep.subr.mxu0 0.0
        %5609 = vmatpush1.xpose.msra.mxu0 0.0
        %5610 = vmatprep.subr.mxu0 0.0
        %5611 = vmatpush1.xpose.msra.mxu0 0.0
        %5612 = vmatprep.subr.mxu0 0.0
        %5613 = vmatpush1.xpose.msra.mxu0 0.0
        %5614 = vmatprep.subr.mxu0 0.0
        %5615 = vmatpush1.xpose.msra.mxu0 0.0
        %5616 = vmatprep.subr.mxu0 0.0
        %5617 = vmatpush1.xpose.msra.mxu0 0.0
        %5618 = vmatprep.subr.mxu0 0.0
        %5619 = vmatpush1.xpose.msra.mxu0 0.0
        %5620 = vmatprep.subr.mxu0 0.0
        %5621 = vmatpush1.xpose.msra.mxu0 0.0
        %5622 = vmatprep.subr.mxu0 0.0
        %5623 = vmatpush1.xpose.msra.mxu0 0.0
        %5624 = vmatprep.subr.mxu0 0.0
        %5625 = vmatpush1.xpose.msra.mxu0 0.0
        %5626 = vmatprep.subr.mxu0 0.0
        %5627 = vmatpush1.xpose.msra.mxu0 0.0
        %5628 = vmatprep.subr.mxu0 0.0
        %5629 = vmatpush1.xpose.msra.mxu0 0.0
        %5630 = vmatprep.subr.mxu0 0.0
        %5631 = vmatpush1.xpose.msra.mxu0 0.0
        %5632 = vmatprep.subr.mxu0 0.0
        %5633 = vmatpush1.xpose.msra.mxu0 0.0
        %5634 = vmatprep.subr.mxu0 0.0
        %5635 = vmatpush1.xpose.msra.mxu0 0.0
        %5636 = vmatprep.mubr.f32.mxu0 0.0
        %5637 = vmatmul.mubr.f32.gmra.mrb[0].mxu0 %v5567
        %v5638 = vpop.f32.mrb[0].mxu0
        %v5639 = vadd.f32 0.0, %v5638
        %v5640 = vpop.f32.mrb[0].mxu0
        %5641 = vdwg.mxu0
        %v5643 = vsel %vm1219, %v5565, 0
        %v5646 = vsel %vm1219, %v5473, 0
        %5648 = vmatprep.subr.mxu0 0.0
        %5649 = vmatpush1.xpose.msra.mxu0 %v5646
        %5650 = vmatprep.subr.mxu0 0.0
        %5651 = vmatpush1.xpose.msra.mxu0 0.0
        %5652 = vmatprep.subr.mxu0 0.0
        %5653 = vmatpush1.xpose.msra.mxu0 0.0
        %5654 = vmatprep.subr.mxu0 0.0
        %5655 = vmatpush1.xpose.msra.mxu0 0.0
        %5656 = vmatprep.subr.mxu0 0.0
        %5657 = vmatpush1.xpose.msra.mxu0 0.0
        %5658 = vmatprep.subr.mxu0 0.0
        %5659 = vmatpush1.xpose.msra.mxu0 0.0
        %5660 = vmatprep.subr.mxu0 0.0
        %5661 = vmatpush1.xpose.msra.mxu0 0.0
        %5662 = vmatprep.subr.mxu0 0.0
        %5663 = vmatpush1.xpose.msra.mxu0 0.0
        %5664 = vmatprep.subr.mxu0 0.0
        %5665 = vmatpush1.xpose.msra.mxu0 0.0
        %5666 = vmatprep.subr.mxu0 0.0
        %5667 = vmatpush1.xpose.msra.mxu0 0.0
        %5668 = vmatprep.subr.mxu0 0.0
        %5669 = vmatpush1.xpose.msra.mxu0 0.0
        %5670 = vmatprep.subr.mxu0 0.0
        %5671 = vmatpush1.xpose.msra.mxu0 0.0
        %5672 = vmatprep.subr.mxu0 0.0
        %5673 = vmatpush1.xpose.msra.mxu0 0.0
        %5674 = vmatprep.subr.mxu0 0.0
        %5675 = vmatpush1.xpose.msra.mxu0 0.0
        %5676 = vmatprep.subr.mxu0 0.0
        %5677 = vmatpush1.xpose.msra.mxu0 0.0
        %5678 = vmatprep.subr.mxu0 0.0
        %5679 = vmatpush1.xpose.msra.mxu0 0.0
        %5680 = vmatprep.subr.mxu0 0.0
        %5681 = vmatpush1.xpose.msra.mxu0 0.0
        %5682 = vmatprep.subr.mxu0 0.0
        %5683 = vmatpush1.xpose.msra.mxu0 0.0
        %5684 = vmatprep.subr.mxu0 0.0
        %5685 = vmatpush1.xpose.msra.mxu0 0.0
        %5686 = vmatprep.subr.mxu0 0.0
        %5687 = vmatpush1.xpose.msra.mxu0 0.0
        %5688 = vmatprep.subr.mxu0 0.0
        %5689 = vmatpush1.xpose.msra.mxu0 0.0
        %5690 = vmatprep.subr.mxu0 0.0
        %5691 = vmatpush1.xpose.msra.mxu0 0.0
        %5692 = vmatprep.subr.mxu0 0.0
        %5693 = vmatpush1.xpose.msra.mxu0 0.0
        %5694 = vmatprep.subr.mxu0 0.0
        %5695 = vmatpush1.xpose.msra.mxu0 0.0
        %5696 = vmatprep.subr.mxu0 0.0
        %5697 = vmatpush1.xpose.msra.mxu0 0.0
        %5698 = vmatprep.subr.mxu0 0.0
        %5699 = vmatpush1.xpose.msra.mxu0 0.0
        %5700 = vmatprep.subr.mxu0 0.0
        %5701 = vmatpush1.xpose.msra.mxu0 0.0
        %5702 = vmatprep.subr.mxu0 0.0
        %5703 = vmatpush1.xpose.msra.mxu0 0.0
        %5704 = vmatprep.subr.mxu0 0.0
        %5705 = vmatpush1.xpose.msra.mxu0 0.0
        %5706 = vmatprep.subr.mxu0 0.0
        %5707 = vmatpush1.xpose.msra.mxu0 0.0
        %5708 = vmatprep.subr.mxu0 0.0
        %5709 = vmatpush1.xpose.msra.mxu0 0.0
        %5710 = vmatprep.subr.mxu0 0.0
        %5711 = vmatpush1.xpose.msra.mxu0 0.0
        %5712 = vmatprep.mubr.f32.mxu0 0.0
        %5713 = vmatmul.mubr.f32.gmra.mrb[0].mxu0 %v5643
        %v5714 = vpop.f32.mrb[0].mxu0
        %v5715 = vadd.f32 0.0, %v5714
        %v5716 = vpop.f32.mrb[0].mxu0
        %5717 = vdwg.mxu0
        %v5718 = vsel %vm1372, -3.4028235e+38, %v5639
        %v5719 = vsel %vm1373, -3.4028235e+38, %v5715
        %v5720 = vsel %vm1219, %v5718, -inf
        %5721 = vmax.xlane.f32.xlu0 %v5720
        %v5722 = vpop.xlane.xlu0 %5721
        %v5723 = vsel %vm1219, %v5719, -inf
        %5724 = vmax.xlane.f32.xlu0 %v5723
        %v5725 = vpop.xlane.xlu0 %5724
        %v5726 = vsub.f32 %v5718, %v5722
        %v5727 = vsub.f32 %v5719, %v5725
        %v5728 = vmul.f32 %v5726, 1.442695
        %v5729 = vpow.pop %v5728
        %v5730 = vmul.f32 %v5727, 1.442695
        %v5731 = vpow.pop %v5730
        %v5732 = vsel %vm1219, %v5729, 0.0
        %5733 = vadd.xlane.f32.xlu0 %v5732
        %v5734 = vpop.xlane.xlu0 %5733
        %v5735 = vsel %vm1219, %v5731, 0.0
        %5736 = vadd.xlane.f32.xlu0 %v5735
        %v5737 = vpop.xlane.xlu0 %5736
        %v5738 = vrcp.pop %v5734
        %v5739 = vmul.f32 %v5729, %v5738
        %v5740 = vrcp.pop %v5737
        %v5741 = vmul.f32 %v5731, %v5740
        %v5743 = vsel %vm1219, %v5739, 0
        %5745 = vmatprep.subr.mxu0 0.0
        %5746 = vmatpush1.msra.mxu0 %v5556
        %5747 = vmatprep.subr.mxu0 0.0
        %5748 = vmatpush1.msra.mxu0 0.0
        %5749 = vmatprep.subr.mxu0 0.0
        %5750 = vmatpush1.msra.mxu0 0.0
        %5751 = vmatprep.subr.mxu0 0.0
        %5752 = vmatpush1.msra.mxu0 0.0
        %5753 = vmatprep.subr.mxu0 0.0
        %5754 = vmatpush1.msra.mxu0 0.0
        %5755 = vmatprep.subr.mxu0 0.0
        %5756 = vmatpush1.msra.mxu0 0.0
        %5757 = vmatprep.subr.mxu0 0.0
        %5758 = vmatpush1.msra.mxu0 0.0
        %5759 = vmatprep.subr.mxu0 0.0
        %5760 = vmatpush1.msra.mxu0 0.0
        %5761 = vmatprep.subr.mxu0 0.0
        %5762 = vmatpush1.msra.mxu0 0.0
        %5763 = vmatprep.subr.mxu0 0.0
        %5764 = vmatpush1.msra.mxu0 0.0
        %5765 = vmatprep.subr.mxu0 0.0
        %5766 = vmatpush1.msra.mxu0 0.0
        %5767 = vmatprep.subr.mxu0 0.0
        %5768 = vmatpush1.msra.mxu0 0.0
        %5769 = vmatprep.subr.mxu0 0.0
        %5770 = vmatpush1.msra.mxu0 0.0
        %5771 = vmatprep.subr.mxu0 0.0
        %5772 = vmatpush1.msra.mxu0 0.0
        %5773 = vmatprep.subr.mxu0 0.0
        %5774 = vmatpush1.msra.mxu0 0.0
        %5775 = vmatprep.subr.mxu0 0.0
        %5776 = vmatpush1.msra.mxu0 0.0
        %5777 = vmatprep.subr.mxu0 0.0
        %5778 = vmatpush1.msra.mxu0 0.0
        %5779 = vmatprep.subr.mxu0 0.0
        %5780 = vmatpush1.msra.mxu0 0.0
        %5781 = vmatprep.subr.mxu0 0.0
        %5782 = vmatpush1.msra.mxu0 0.0
        %5783 = vmatprep.subr.mxu0 0.0
        %5784 = vmatpush1.msra.mxu0 0.0
        %5785 = vmatprep.subr.mxu0 0.0
        %5786 = vmatpush1.msra.mxu0 0.0
        %5787 = vmatprep.subr.mxu0 0.0
        %5788 = vmatpush1.msra.mxu0 0.0
        %5789 = vmatprep.subr.mxu0 0.0
        %5790 = vmatpush1.msra.mxu0 0.0
        %5791 = vmatprep.subr.mxu0 0.0
        %5792 = vmatpush1.msra.mxu0 0.0
        %5793 = vmatprep.subr.mxu0 0.0
        %5794 = vmatpush1.msra.mxu0 0.0
        %5795 = vmatprep.subr.mxu0 0.0
        %5796 = vmatpush1.msra.mxu0 0.0
        %5797 = vmatprep.subr.mxu0 0.0
        %5798 = vmatpush1.msra.mxu0 0.0
        %5799 = vmatprep.subr.mxu0 0.0
        %5800 = vmatpush1.msra.mxu0 0.0
        %5801 = vmatprep.subr.mxu0 0.0
        %5802 = vmatpush1.msra.mxu0 0.0
        %5803 = vmatprep.subr.mxu0 0.0
        %5804 = vmatpush1.msra.mxu0 0.0
        %5805 = vmatprep.subr.mxu0 0.0
        %5806 = vmatpush1.msra.mxu0 0.0
        %5807 = vmatprep.subr.mxu0 0.0
        %5808 = vmatpush1.msra.mxu0 0.0
        %5809 = vmatprep.mubr.f32.mxu0 0.0
        %5810 = vmatmul.mubr.f32.gmra.mrb[0].mxu0 %v5743
        %v5811 = vpop.f32.mrb[0].mxu0
        %v5812 = vadd.f32 0.0, %v5811
        %v5813 = vpop.f32.mrb[0].mxu0
        %5814 = vdwg.mxu0
        %v5816 = vsel %vm1219, %v5741, 0
        %5818 = vmatprep.subr.mxu0 0.0
        %5819 = vmatpush1.msra.mxu0 %v5561
        %5820 = vmatprep.subr.mxu0 0.0
        %5821 = vmatpush1.msra.mxu0 0.0
        %5822 = vmatprep.subr.mxu0 0.0
        %5823 = vmatpush1.msra.mxu0 0.0
        %5824 = vmatprep.subr.mxu0 0.0
        %5825 = vmatpush1.msra.mxu0 0.0
        %5826 = vmatprep.subr.mxu0 0.0
        %5827 = vmatpush1.msra.mxu0 0.0
        %5828 = vmatprep.subr.mxu0 0.0
        %5829 = vmatpush1.msra.mxu0 0.0
        %5830 = vmatprep.subr.mxu0 0.0
        %5831 = vmatpush1.msra.mxu0 0.0
        %5832 = vmatprep.subr.mxu0 0.0
        %5833 = vmatpush1.msra.mxu0 0.0
        %5834 = vmatprep.subr.mxu0 0.0
        %5835 = vmatpush1.msra.mxu0 0.0
        %5836 = vmatprep.subr.mxu0 0.0
        %5837 = vmatpush1.msra.mxu0 0.0
        %5838 = vmatprep.subr.mxu0 0.0
        %5839 = vmatpush1.msra.mxu0 0.0
        %5840 = vmatprep.subr.mxu0 0.0
        %5841 = vmatpush1.msra.mxu0 0.0
        %5842 = vmatprep.subr.mxu0 0.0
        %5843 = vmatpush1.msra.mxu0 0.0
        %5844 = vmatprep.subr.mxu0 0.0
        %5845 = vmatpush1.msra.mxu0 0.0
        %5846 = vmatprep.subr.mxu0 0.0
        %5847 = vmatpush1.msra.mxu0 0.0
        %5848 = vmatprep.subr.mxu0 0.0
        %5849 = vmatpush1.msra.mxu0 0.0
        %5850 = vmatprep.subr.mxu0 0.0
        %5851 = vmatpush1.msra.mxu0 0.0
        %5852 = vmatprep.subr.mxu0 0.0
        %5853 = vmatpush1.msra.mxu0 0.0
        %5854 = vmatprep.subr.mxu0 0.0
        %5855 = vmatpush1.msra.mxu0 0.0
        %5856 = vmatprep.subr.mxu0 0.0
        %5857 = vmatpush1.msra.mxu0 0.0
        %5858 = vmatprep.subr.mxu0 0.0
        %5859 = vmatpush1.msra.mxu0 0.0
        %5860 = vmatprep.subr.mxu0 0.0
        %5861 = vmatpush1.msra.mxu0 0.0
        %5862 = vmatprep.subr.mxu0 0.0
        %5863 = vmatpush1.msra.mxu0 0.0
        %5864 = vmatprep.subr.mxu0 0.0
        %5865 = vmatpush1.msra.mxu0 0.0
        %5866 = vmatprep.subr.mxu0 0.0
        %5867 = vmatpush1.msra.mxu0 0.0
        %5868 = vmatprep.subr.mxu0 0.0
        %5869 = vmatpush1.msra.mxu0 0.0
        %5870 = vmatprep.subr.mxu0 0.0
        %5871 = vmatpush1.msra.mxu0 0.0
        %5872 = vmatprep.subr.mxu0 0.0
        %5873 = vmatpush1.msra.mxu0 0.0
        %5874 = vmatprep.subr.mxu0 0.0
        %5875 = vmatpush1.msra.mxu0 0.0
        %5876 = vmatprep.subr.mxu0 0.0
        %5877 = vmatpush1.msra.mxu0 0.0
        %5878 = vmatprep.subr.mxu0 0.0
        %5879 = vmatpush1.msra.mxu0 0.0
        %5880 = vmatprep.subr.mxu0 0.0
        %5881 = vmatpush1.msra.mxu0 0.0
        %5882 = vmatprep.mubr.f32.mxu0 0.0
        %5883 = vmatmul.mubr.f32.gmra.mrb[0].mxu0 %v5816
        %v5884 = vpop.f32.mrb[0].mxu0
        %v5885 = vadd.f32 0.0, %v5884
        %v5886 = vpop.f32.mrb[0].mxu0
        %5887 = vdwg.mxu0
        %s5888 = scalar_lea.vmem %s12, 48
        %v5889 = vld [vmem:[%s5888] sm:$0xff]
        %v5891 = vsel %vm1219, %v5812, 0
        %v5894 = vsel %vm1219, %v5885, 0
        %5896 = vmatprep.subr.mxu0 0.0
        %5897 = vmatpush1.msra.mxu0 %v5889
        %5898 = vmatprep.subr.mxu0 0.0
        %5899 = vmatpush1.msra.mxu0 0.0
        %5900 = vmatprep.subr.mxu0 0.0
        %5901 = vmatpush1.msra.mxu0 0.0
        %5902 = vmatprep.subr.mxu0 0.0
        %5903 = vmatpush1.msra.mxu0 0.0
        %5904 = vmatprep.subr.mxu0 0.0
        %5905 = vmatpush1.msra.mxu0 0.0
        %5906 = vmatprep.subr.mxu0 0.0
        %5907 = vmatpush1.msra.mxu0 0.0
        %5908 = vmatprep.subr.mxu0 0.0
        %5909 = vmatpush1.msra.mxu0 0.0
        %5910 = vmatprep.subr.mxu0 0.0
        %5911 = vmatpush1.msra.mxu0 0.0
        %5912 = vmatprep.subr.mxu0 0.0
        %5913 = vmatpush1.msra.mxu0 0.0
        %5914 = vmatprep.subr.mxu0 0.0
        %5915 = vmatpush1.msra.mxu0 0.0
        %5916 = vmatprep.subr.mxu0 0.0
        %5917 = vmatpush1.msra.mxu0 0.0
        %5918 = vmatprep.subr.mxu0 0.0
        %5919 = vmatpush1.msra.mxu0 0.0
        %5920 = vmatprep.subr.mxu0 0.0
        %5921 = vmatpush1.msra.mxu0 0.0
        %5922 = vmatprep.subr.mxu0 0.0
        %5923 = vmatpush1.msra.mxu0 0.0
        %5924 = vmatprep.subr.mxu0 0.0
        %5925 = vmatpush1.msra.mxu0 0.0
        %5926 = vmatprep.subr.mxu0 0.0
        %5927 = vmatpush1.msra.mxu0 0.0
        %5928 = vmatprep.subr.mxu0 0.0
        %5929 = vmatpush1.msra.mxu0 0.0
        %5930 = vmatprep.subr.mxu0 0.0
        %5931 = vmatpush1.msra.mxu0 0.0
        %5932 = vmatprep.subr.mxu0 0.0
        %5933 = vmatpush1.msra.mxu0 0.0
        %5934 = vmatprep.subr.mxu0 0.0
        %5935 = vmatpush1.msra.mxu0 0.0
        %5936 = vmatprep.subr.mxu0 0.0
        %5937 = vmatpush1.msra.mxu0 0.0
        %5938 = vmatprep.subr.mxu0 0.0
        %5939 = vmatpush1.msra.mxu0 0.0
        %5940 = vmatprep.subr.mxu0 0.0
        %5941 = vmatpush1.msra.mxu0 0.0
        %5942 = vmatprep.subr.mxu0 0.0
        %5943 = vmatpush1.msra.mxu0 0.0
        %5944 = vmatprep.subr.mxu0 0.0
        %5945 = vmatpush1.msra.mxu0 0.0
        %5946 = vmatprep.subr.mxu0 0.0
        %5947 = vmatpush1.msra.mxu0 0.0
        %5948 = vmatprep.subr.mxu0 0.0
        %5949 = vmatpush1.msra.mxu0 0.0
        %5950 = vmatprep.subr.mxu0 0.0
        %5951 = vmatpush1.msra.mxu0 0.0
        %5952 = vmatprep.subr.mxu0 0.0
        %5953 = vmatpush1.msra.mxu0 0.0
        %5954 = vmatprep.subr.mxu0 0.0
        %5955 = vmatpush1.msra.mxu0 0.0
        %5956 = vmatprep.subr.mxu0 0.0
        %5957 = vmatpush1.msra.mxu0 0.0
        %5958 = vmatprep.subr.mxu0 0.0
        %5959 = vmatpush1.msra.mxu0 0.0
        %5960 = vmatprep.mubr.f32.mxu0 0.0
        %5961 = vmatmul.mubr.f32.gmra.mrb[0].mxu0 %v5891
        %v5962 = vpop.f32.mrb[0].mxu0
        %v5963 = vadd.f32 0.0, %v5962
        %v5964 = vpop.f32.mrb[0].mxu0
        %5965 = vmatprep.mubr.f32.mxu0 0.0
        %5966 = vmatmul.mubr.f32.gmra.mrb[0].mxu0 %v5894
        %v5967 = vpop.f32.mrb[0].mxu0
        %v5968 = vadd.f32 0.0, %v5967
        %v5969 = vpop.f32.mrb[0].mxu0
        %5970 = vdwg.mxu0
        %v5971 = vadd.f32 %v5292, %v5963
        %v5972 = vadd.f32 %v5297, %v5968
        %s5973 = scalar_lea.vmem %s6, 224
        %v5974 = vld [vmem:[%s5973] sm:$0xff]
        %v5975 = vld [vmem:[%s5973 + $0x8] sm:$0xff]
        %v5976 = vld [vmem:[%s5973 + $0x10] sm:$0xff]
        %v5977 = vld [vmem:[%s5973 + $0x18] sm:$0xff]
        %s5978 = scalar_lea.vmem %s7, 7
        %v5979 = vld [vmem:[%s5978] sm:$0x1]
        %v5981 = vlaneseq
        %v5982 = vshrl.u32 %v5981, 7
        %v5983 = vsub.s32 0, %v5982
        %v5984 = vrot.slane %v5979, %v5983
        %5986 = vmatprep.subr.mxu0 0.0
        %5987 = vmatpush1.msra.mxu0 %v5974
        %5988 = vmatprep.subr.mxu0 0.0
        %5989 = vmatpush1.msra.mxu0 %v5975
        %5990 = vmatprep.subr.mxu0 0.0
        %5991 = vmatpush1.msra.mxu0 %v5976
        %5992 = vmatprep.subr.mxu0 0.0
        %5993 = vmatpush1.msra.mxu0 %v5977
        %5994 = vmatprep.subr.mxu0 0.0
        %5995 = vmatpush1.msra.mxu0 0.0
        %5996 = vmatprep.subr.mxu0 0.0
        %5997 = vmatpush1.msra.mxu0 0.0
        %5998 = vmatprep.subr.mxu0 0.0
        %5999 = vmatpush1.msra.mxu0 0.0
        %6000 = vmatprep.subr.mxu0 0.0
        %6001 = vmatpush1.msra.mxu0 0.0
        %6002 = vmatprep.subr.mxu0 0.0
        %6003 = vmatpush1.msra.mxu0 0.0
        %6004 = vmatprep.subr.mxu0 0.0
        %6005 = vmatpush1.msra.mxu0 0.0
        %6006 = vmatprep.subr.mxu0 0.0
        %6007 = vmatpush1.msra.mxu0 0.0
        %6008 = vmatprep.subr.mxu0 0.0
        %6009 = vmatpush1.msra.mxu0 0.0
        %6010 = vmatprep.subr.mxu0 0.0
        %6011 = vmatpush1.msra.mxu0 0.0
        %6012 = vmatprep.subr.mxu0 0.0
        %6013 = vmatpush1.msra.mxu0 0.0
        %6014 = vmatprep.subr.mxu0 0.0
        %6015 = vmatpush1.msra.mxu0 0.0
        %6016 = vmatprep.subr.mxu0 0.0
        %6017 = vmatpush1.msra.mxu0 0.0
        %6018 = vmatprep.subr.mxu0 0.0
        %6019 = vmatpush1.msra.mxu0 0.0
        %6020 = vmatprep.subr.mxu0 0.0
        %6021 = vmatpush1.msra.mxu0 0.0
        %6022 = vmatprep.subr.mxu0 0.0
        %6023 = vmatpush1.msra.mxu0 0.0
        %6024 = vmatprep.subr.mxu0 0.0
        %6025 = vmatpush1.msra.mxu0 0.0
        %6026 = vmatprep.subr.mxu0 0.0
        %6027 = vmatpush1.msra.mxu0 0.0
        %6028 = vmatprep.subr.mxu0 0.0
        %6029 = vmatpush1.msra.mxu0 0.0
        %6030 = vmatprep.subr.mxu0 0.0
        %6031 = vmatpush1.msra.mxu0 0.0
        %6032 = vmatprep.subr.mxu0 0.0
        %6033 = vmatpush1.msra.mxu0 0.0
        %6034 = vmatprep.subr.mxu0 0.0
        %6035 = vmatpush1.msra.mxu0 0.0
        %6036 = vmatprep.subr.mxu0 0.0
        %6037 = vmatpush1.msra.mxu0 0.0
        %6038 = vmatprep.subr.mxu0 0.0
        %6039 = vmatpush1.msra.mxu0 0.0
        %6040 = vmatprep.subr.mxu0 0.0
        %6041 = vmatpush1.msra.mxu0 0.0
        %6042 = vmatprep.subr.mxu0 0.0
        %6043 = vmatpush1.msra.mxu0 0.0
        %6044 = vmatprep.subr.mxu0 0.0
        %6045 = vmatpush1.msra.mxu0 0.0
        %6046 = vmatprep.subr.mxu0 0.0
        %6047 = vmatpush1.msra.mxu0 0.0
        %6048 = vmatprep.subr.mxu0 0.0
        %6049 = vmatpush1.msra.mxu0 0.0
        %6050 = vmatprep.mubr.f32.mxu0 0.0
        %6051 = vmatmul.mubr.f32.gmra.mrb[0].mxu0 %v3966
        %v6052 = vpop.f32.mrb[0].mxu0
        %v6053 = vadd.f32 %v5984, %v6052
        %v6054 = vpop.f32.mrb[0].mxu0
        %6055 = vmatprep.mubr.f32.mxu0 0.0
        %6056 = vmatmul.mubr.f32.gmra.mrb[0].mxu0 %v3969
        %v6057 = vpop.f32.mrb[0].mxu0
        %v6058 = vadd.f32 %v5984, %v6057
        %v6059 = vpop.f32.mrb[0].mxu0
        %6060 = vdwg.mxu0
        %s6061 = scalar_lea.vmem %s8, 224
        %v6062 = vld [vmem:[%s6061] sm:$0xff]
        %v6063 = vld [vmem:[%s6061 + $0x8] sm:$0xff]
        %v6064 = vld [vmem:[%s6061 + $0x10] sm:$0xff]
        %v6065 = vld [vmem:[%s6061 + $0x18] sm:$0xff]
        %s6066 = scalar_lea.vmem %s9, 7
        %v6067 = vld [vmem:[%s6066] sm:$0x1]
        %v6069 = vlaneseq
        %v6070 = vshrl.u32 %v6069, 7
        %v6071 = vsub.s32 0, %v6070
        %v6072 = vrot.slane %v6067, %v6071
        %6074 = vmatprep.subr.mxu0 0.0
        %6075 = vmatpush1.msra.mxu0 %v6062
        %6076 = vmatprep.subr.mxu0 0.0
        %6077 = vmatpush1.msra.mxu0 %v6063
        %6078 = vmatprep.subr.mxu0 0.0
        %6079 = vmatpush1.msra.mxu0 %v6064
        %6080 = vmatprep.subr.mxu0 0.0
        %6081 = vmatpush1.msra.mxu0 %v6065
        %6082 = vmatprep.subr.mxu0 0.0
        %6083 = vmatpush1.msra.mxu0 0.0
        %6084 = vmatprep.subr.mxu0 0.0
        %6085 = vmatpush1.msra.mxu0 0.0
        %6086 = vmatprep.subr.mxu0 0.0
        %6087 = vmatpush1.msra.mxu0 0.0
        %6088 = vmatprep.subr.mxu0 0.0
        %6089 = vmatpush1.msra.mxu0 0.0
        %6090 = vmatprep.subr.mxu0 0.0
        %6091 = vmatpush1.msra.mxu0 0.0
        %6092 = vmatprep.subr.mxu0 0.0
        %6093 = vmatpush1.msra.mxu0 0.0
        %6094 = vmatprep.subr.mxu0 0.0
        %6095 = vmatpush1.msra.mxu0 0.0
        %6096 = vmatprep.subr.mxu0 0.0
        %6097 = vmatpush1.msra.mxu0 0.0
        %6098 = vmatprep.subr.mxu0 0.0
        %6099 = vmatpush1.msra.mxu0 0.0
        %6100 = vmatprep.subr.mxu0 0.0
        %6101 = vmatpush1.msra.mxu0 0.0
        %6102 = vmatprep.subr.mxu0 0.0
        %6103 = vmatpush1.msra.mxu0 0.0
        %6104 = vmatprep.subr.mxu0 0.0
        %6105 = vmatpush1.msra.mxu0 0.0
        %6106 = vmatprep.subr.mxu0 0.0
        %6107 = vmatpush1.msra.mxu0 0.0
        %6108 = vmatprep.subr.mxu0 0.0
        %6109 = vmatpush1.msra.mxu0 0.0
        %6110 = vmatprep.subr.mxu0 0.0
        %6111 = vmatpush1.msra.mxu0 0.0
        %6112 = vmatprep.subr.mxu0 0.0
        %6113 = vmatpush1.msra.mxu0 0.0
        %6114 = vmatprep.subr.mxu0 0.0
        %6115 = vmatpush1.msra.mxu0 0.0
        %6116 = vmatprep.subr.mxu0 0.0
        %6117 = vmatpush1.msra.mxu0 0.0
        %6118 = vmatprep.subr.mxu0 0.0
        %6119 = vmatpush1.msra.mxu0 0.0
        %6120 = vmatprep.subr.mxu0 0.0
        %6121 = vmatpush1.msra.mxu0 0.0
        %6122 = vmatprep.subr.mxu0 0.0
        %6123 = vmatpush1.msra.mxu0 0.0
        %6124 = vmatprep.subr.mxu0 0.0
        %6125 = vmatpush1.msra.mxu0 0.0
        %6126 = vmatprep.subr.mxu0 0.0
        %6127 = vmatpush1.msra.mxu0 0.0
        %6128 = vmatprep.subr.mxu0 0.0
        %6129 = vmatpush1.msra.mxu0 0.0
        %6130 = vmatprep.subr.mxu0 0.0
        %6131 = vmatpush1.msra.mxu0 0.0
        %6132 = vmatprep.subr.mxu0 0.0
        %6133 = vmatpush1.msra.mxu0 0.0
        %6134 = vmatprep.subr.mxu0 0.0
        %6135 = vmatpush1.msra.mxu0 0.0
        %6136 = vmatprep.subr.mxu0 0.0
        %6137 = vmatpush1.msra.mxu0 0.0
        %6138 = vmatprep.mubr.f32.mxu0 0.0
        %6139 = vmatmul.mubr.f32.gmra.mrb[0].mxu0 %v3966
        %v6140 = vpop.f32.mrb[0].mxu0
        %v6141 = vadd.f32 %v6072, %v6140
        %v6142 = vpop.f32.mrb[0].mxu0
        %6143 = vmatprep.mubr.f32.mxu0 0.0
        %6144 = vmatmul.mubr.f32.gmra.mrb[0].mxu0 %v3969
        %v6145 = vpop.f32.mrb[0].mxu0
        %v6146 = vadd.f32 %v6072, %v6145
        %v6147 = vpop.f32.mrb[0].mxu0
        %6148 = vdwg.mxu0
        %s6149 = scalar_lea.vmem %s10, 224
        %v6150 = vld [vmem:[%s6149] sm:$0xff]
        %v6151 = vld [vmem:[%s6149 + $0x8] sm:$0xff]
        %v6152 = vld [vmem:[%s6149 + $0x10] sm:$0xff]
        %v6153 = vld [vmem:[%s6149 + $0x18] sm:$0xff]
        %s6154 = scalar_lea.vmem %s11, 7
        %v6155 = vld [vmem:[%s6154] sm:$0x1]
        %v6157 = vlaneseq
        %v6158 = vshrl.u32 %v6157, 7
        %v6159 = vsub.s32 0, %v6158
        %v6160 = vrot.slane %v6155, %v6159
        %6162 = vmatprep.subr.mxu0 0.0
        %6163 = vmatpush1.msra.mxu0 %v6150
        %6164 = vmatprep.subr.mxu0 0.0
        %6165 = vmatpush1.msra.mxu0 %v6151
        %6166 = vmatprep.subr.mxu0 0.0
        %6167 = vmatpush1.msra.mxu0 %v6152
        %6168 = vmatprep.subr.mxu0 0.0
        %6169 = vmatpush1.msra.mxu0 %v6153
        %6170 = vmatprep.subr.mxu0 0.0
        %6171 = vmatpush1.msra.mxu0 0.0
        %6172 = vmatprep.subr.mxu0 0.0
        %6173 = vmatpush1.msra.mxu0 0.0
        %6174 = vmatprep.subr.mxu0 0.0
        %6175 = vmatpush1.msra.mxu0 0.0
        %6176 = vmatprep.subr.mxu0 0.0
        %6177 = vmatpush1.msra.mxu0 0.0
        %6178 = vmatprep.subr.mxu0 0.0
        %6179 = vmatpush1.msra.mxu0 0.0
        %6180 = vmatprep.subr.mxu0 0.0
        %6181 = vmatpush1.msra.mxu0 0.0
        %6182 = vmatprep.subr.mxu0 0.0
        %6183 = vmatpush1.msra.mxu0 0.0
        %6184 = vmatprep.subr.mxu0 0.0
        %6185 = vmatpush1.msra.mxu0 0.0
        %6186 = vmatprep.subr.mxu0 0.0
        %6187 = vmatpush1.msra.mxu0 0.0
        %6188 = vmatprep.subr.mxu0 0.0
        %6189 = vmatpush1.msra.mxu0 0.0
        %6190 = vmatprep.subr.mxu0 0.0
        %6191 = vmatpush1.msra.mxu0 0.0
        %6192 = vmatprep.subr.mxu0 0.0
        %6193 = vmatpush1.msra.mxu0 0.0
        %6194 = vmatprep.subr.mxu0 0.0
        %6195 = vmatpush1.msra.mxu0 0.0
        %6196 = vmatprep.subr.mxu0 0.0
        %6197 = vmatpush1.msra.mxu0 0.0
        %6198 = vmatprep.subr.mxu0 0.0
        %6199 = vmatpush1.msra.mxu0 0.0
        %6200 = vmatprep.subr.mxu0 0.0
        %6201 = vmatpush1.msra.mxu0 0.0
        %6202 = vmatprep.subr.mxu0 0.0
        %6203 = vmatpush1.msra.mxu0 0.0
        %6204 = vmatprep.subr.mxu0 0.0
        %6205 = vmatpush1.msra.mxu0 0.0
        %6206 = vmatprep.subr.mxu0 0.0
        %6207 = vmatpush1.msra.mxu0 0.0
        %6208 = vmatprep.subr.mxu0 0.0
        %6209 = vmatpush1.msra.mxu0 0.0
        %6210 = vmatprep.subr.mxu0 0.0
        %6211 = vmatpush1.msra.mxu0 0.0
        %6212 = vmatprep.subr.mxu0 0.0
        %6213 = vmatpush1.msra.mxu0 0.0
        %6214 = vmatprep.subr.mxu0 0.0
        %6215 = vmatpush1.msra.mxu0 0.0
        %6216 = vmatprep.subr.mxu0 0.0
        %6217 = vmatpush1.msra.mxu0 0.0
        %6218 = vmatprep.subr.mxu0 0.0
        %6219 = vmatpush1.msra.mxu0 0.0
        %6220 = vmatprep.subr.mxu0 0.0
        %6221 = vmatpush1.msra.mxu0 0.0
        %6222 = vmatprep.subr.mxu0 0.0
        %6223 = vmatpush1.msra.mxu0 0.0
        %6224 = vmatprep.subr.mxu0 0.0
        %6225 = vmatpush1.msra.mxu0 0.0
        %6226 = vmatprep.mubr.f32.mxu0 0.0
        %6227 = vmatmul.mubr.f32.gmra.mrb[0].mxu0 %v3966
        %v6228 = vpop.f32.mrb[0].mxu0
        %v6229 = vadd.f32 %v6160, %v6228
        %v6230 = vpop.f32.mrb[0].mxu0
        %6231 = vmatprep.mubr.f32.mxu0 0.0
        %6232 = vmatmul.mubr.f32.gmra.mrb[0].mxu0 %v3969
        %v6233 = vpop.f32.mrb[0].mxu0
        %v6234 = vadd.f32 %v6160, %v6233
        %v6235 = vpop.f32.mrb[0].mxu0
        %6236 = vdwg.mxu0
        %v6237 = vmul.f32 %v6053, 0.35355338
        %v6238 = vmul.f32 %v6058, 0.35355338
        %v6240 = vsel %vm1219, %v6237, 0
        %v6243 = vsel %vm1219, %v6141, 0
        %6245 = vmatprep.subr.mxu0 0.0
        %6246 = vmatpush1.xpose.msra.mxu0 %v6243
        %6247 = vmatprep.subr.mxu0 0.0
        %6248 = vmatpush1.xpose.msra.mxu0 0.0
        %6249 = vmatprep.subr.mxu0 0.0
        %6250 = vmatpush1.xpose.msra.mxu0 0.0
        %6251 = vmatprep.subr.mxu0 0.0
        %6252 = vmatpush1.xpose.msra.mxu0 0.0
        %6253 = vmatprep.subr.mxu0 0.0
        %6254 = vmatpush1.xpose.msra.mxu0 0.0
        %6255 = vmatprep.subr.mxu0 0.0
        %6256 = vmatpush1.xpose.msra.mxu0 0.0
        %6257 = vmatprep.subr.mxu0 0.0
        %6258 = vmatpush1.xpose.msra.mxu0 0.0
        %6259 = vmatprep.subr.mxu0 0.0
        %6260 = vmatpush1.xpose.msra.mxu0 0.0
        %6261 = vmatprep.subr.mxu0 0.0
        %6262 = vmatpush1.xpose.msra.mxu0 0.0
        %6263 = vmatprep.subr.mxu0 0.0
        %6264 = vmatpush1.xpose.msra.mxu0 0.0
        %6265 = vmatprep.subr.mxu0 0.0
        %6266 = vmatpush1.xpose.msra.mxu0 0.0
        %6267 = vmatprep.subr.mxu0 0.0
        %6268 = vmatpush1.xpose.msra.mxu0 0.0
        %6269 = vmatprep.subr.mxu0 0.0
        %6270 = vmatpush1.xpose.msra.mxu0 0.0
        %6271 = vmatprep.subr.mxu0 0.0
        %6272 = vmatpush1.xpose.msra.mxu0 0.0
        %6273 = vmatprep.subr.mxu0 0.0
        %6274 = vmatpush1.xpose.msra.mxu0 0.0
        %6275 = vmatprep.subr.mxu0 0.0
        %6276 = vmatpush1.xpose.msra.mxu0 0.0
        %6277 = vmatprep.subr.mxu0 0.0
        %6278 = vmatpush1.xpose.msra.mxu0 0.0
        %6279 = vmatprep.subr.mxu0 0.0
        %6280 = vmatpush1.xpose.msra.mxu0 0.0
        %6281 = vmatprep.subr.mxu0 0.0
        %6282 = vmatpush1.xpose.msra.mxu0 0.0
        %6283 = vmatprep.subr.mxu0 0.0
        %6284 = vmatpush1.xpose.msra.mxu0 0.0
        %6285 = vmatprep.subr.mxu0 0.0
        %6286 = vmatpush1.xpose.msra.mxu0 0.0
        %6287 = vmatprep.subr.mxu0 0.0
        %6288 = vmatpush1.xpose.msra.mxu0 0.0
        %6289 = vmatprep.subr.mxu0 0.0
        %6290 = vmatpush1.xpose.msra.mxu0 0.0
        %6291 = vmatprep.subr.mxu0 0.0
        %6292 = vmatpush1.xpose.msra.mxu0 0.0
        %6293 = vmatprep.subr.mxu0 0.0
        %6294 = vmatpush1.xpose.msra.mxu0 0.0
        %6295 = vmatprep.subr.mxu0 0.0
        %6296 = vmatpush1.xpose.msra.mxu0 0.0
        %6297 = vmatprep.subr.mxu0 0.0
        %6298 = vmatpush1.xpose.msra.mxu0 0.0
        %6299 = vmatprep.subr.mxu0 0.0
        %6300 = vmatpush1.xpose.msra.mxu0 0.0
        %6301 = vmatprep.subr.mxu0 0.0
        %6302 = vmatpush1.xpose.msra.mxu0 0.0
        %6303 = vmatprep.subr.mxu0 0.0
        %6304 = vmatpush1.xpose.msra.mxu0 0.0
        %6305 = vmatprep.subr.mxu0 0.0
        %6306 = vmatpush1.xpose.msra.mxu0 0.0
        %6307 = vmatprep.subr.mxu0 0.0
        %6308 = vmatpush1.xpose.msra.mxu0 0.0
        %6309 = vmatprep.mubr.f32.mxu0 0.0
        %6310 = vmatmul.mubr.f32.gmra.mrb[0].mxu0 %v6240
        %v6311 = vpop.f32.mrb[0].mxu0
        %v6312 = vadd.f32 0.0, %v6311
        %v6313 = vpop.f32.mrb[0].mxu0
        %6314 = vdwg.mxu0
        %v6316 = vsel %vm1219, %v6238, 0
        %v6319 = vsel %vm1219, %v6146, 0
        %6321 = vmatprep.subr.mxu0 0.0
        %6322 = vmatpush1.xpose.msra.mxu0 %v6319
        %6323 = vmatprep.subr.mxu0 0.0
        %6324 = vmatpush1.xpose.msra.mxu0 0.0
        %6325 = vmatprep.subr.mxu0 0.0
        %6326 = vmatpush1.xpose.msra.mxu0 0.0
        %6327 = vmatprep.subr.mxu0 0.0
        %6328 = vmatpush1.xpose.msra.mxu0 0.0
        %6329 = vmatprep.subr.mxu0 0.0
        %6330 = vmatpush1.xpose.msra.mxu0 0.0
        %6331 = vmatprep.subr.mxu0 0.0
        %6332 = vmatpush1.xpose.msra.mxu0 0.0
        %6333 = vmatprep.subr.mxu0 0.0
        %6334 = vmatpush1.xpose.msra.mxu0 0.0
        %6335 = vmatprep.subr.mxu0 0.0
        %6336 = vmatpush1.xpose.msra.mxu0 0.0
        %6337 = vmatprep.subr.mxu0 0.0
        %6338 = vmatpush1.xpose.msra.mxu0 0.0
        %6339 = vmatprep.subr.mxu0 0.0
        %6340 = vmatpush1.xpose.msra.mxu0 0.0
        %6341 = vmatprep.subr.mxu0 0.0
        %6342 = vmatpush1.xpose.msra.mxu0 0.0
        %6343 = vmatprep.subr.mxu0 0.0
        %6344 = vmatpush1.xpose.msra.mxu0 0.0
        %6345 = vmatprep.subr.mxu0 0.0
        %6346 = vmatpush1.xpose.msra.mxu0 0.0
        %6347 = vmatprep.subr.mxu0 0.0
        %6348 = vmatpush1.xpose.msra.mxu0 0.0
        %6349 = vmatprep.subr.mxu0 0.0
        %6350 = vmatpush1.xpose.msra.mxu0 0.0
        %6351 = vmatprep.subr.mxu0 0.0
        %6352 = vmatpush1.xpose.msra.mxu0 0.0
        %6353 = vmatprep.subr.mxu0 0.0
        %6354 = vmatpush1.xpose.msra.mxu0 0.0
        %6355 = vmatprep.subr.mxu0 0.0
        %6356 = vmatpush1.xpose.msra.mxu0 0.0
        %6357 = vmatprep.subr.mxu0 0.0
        %6358 = vmatpush1.xpose.msra.mxu0 0.0
        %6359 = vmatprep.subr.mxu0 0.0
        %6360 = vmatpush1.xpose.msra.mxu0 0.0
        %6361 = vmatprep.subr.mxu0 0.0
        %6362 = vmatpush1.xpose.msra.mxu0 0.0
        %6363 = vmatprep.subr.mxu0 0.0
        %6364 = vmatpush1.xpose.msra.mxu0 0.0
        %6365 = vmatprep.subr.mxu0 0.0
        %6366 = vmatpush1.xpose.msra.mxu0 0.0
        %6367 = vmatprep.subr.mxu0 0.0
        %6368 = vmatpush1.xpose.msra.mxu0 0.0
        %6369 = vmatprep.subr.mxu0 0.0
        %6370 = vmatpush1.xpose.msra.mxu0 0.0
        %6371 = vmatprep.subr.mxu0 0.0
        %6372 = vmatpush1.xpose.msra.mxu0 0.0
        %6373 = vmatprep.subr.mxu0 0.0
        %6374 = vmatpush1.xpose.msra.mxu0 0.0
        %6375 = vmatprep.subr.mxu0 0.0
        %6376 = vmatpush1.xpose.msra.mxu0 0.0
        %6377 = vmatprep.subr.mxu0 0.0
        %6378 = vmatpush1.xpose.msra.mxu0 0.0
        %6379 = vmatprep.subr.mxu0 0.0
        %6380 = vmatpush1.xpose.msra.mxu0 0.0
        %6381 = vmatprep.subr.mxu0 0.0
        %6382 = vmatpush1.xpose.msra.mxu0 0.0
        %6383 = vmatprep.subr.mxu0 0.0
        %6384 = vmatpush1.xpose.msra.mxu0 0.0
        %6385 = vmatprep.mubr.f32.mxu0 0.0
        %6386 = vmatmul.mubr.f32.gmra.mrb[0].mxu0 %v6316
        %v6387 = vpop.f32.mrb[0].mxu0
        %v6388 = vadd.f32 0.0, %v6387
        %v6389 = vpop.f32.mrb[0].mxu0
        %6390 = vdwg.mxu0
        %v6391 = vsel %vm1372, -3.4028235e+38, %v6312
        %v6392 = vsel %vm1373, -3.4028235e+38, %v6388
        %v6393 = vsel %vm1219, %v6391, -inf
        %6394 = vmax.xlane.f32.xlu0 %v6393
        %v6395 = vpop.xlane.xlu0 %6394
        %v6396 = vsel %vm1219, %v6392, -inf
        %6397 = vmax.xlane.f32.xlu0 %v6396
        %v6398 = vpop.xlane.xlu0 %6397
        %v6399 = vsub.f32 %v6391, %v6395
        %v6400 = vsub.f32 %v6392, %v6398
        %v6401 = vmul.f32 %v6399, 1.442695
        %v6402 = vpow.pop %v6401
        %v6403 = vmul.f32 %v6400, 1.442695
        %v6404 = vpow.pop %v6403
        %v6405 = vsel %vm1219, %v6402, 0.0
        %6406 = vadd.xlane.f32.xlu0 %v6405
        %v6407 = vpop.xlane.xlu0 %6406
        %v6408 = vsel %vm1219, %v6404, 0.0
        %6409 = vadd.xlane.f32.xlu0 %v6408
        %v6410 = vpop.xlane.xlu0 %6409
        %v6411 = vrcp.pop %v6407
        %v6412 = vmul.f32 %v6402, %v6411
        %v6413 = vrcp.pop %v6410
        %v6414 = vmul.f32 %v6404, %v6413
        %v6416 = vsel %vm1219, %v6412, 0
        %6418 = vmatprep.subr.mxu0 0.0
        %6419 = vmatpush1.msra.mxu0 %v6229
        %6420 = vmatprep.subr.mxu0 0.0
        %6421 = vmatpush1.msra.mxu0 0.0
        %6422 = vmatprep.subr.mxu0 0.0
        %6423 = vmatpush1.msra.mxu0 0.0
        %6424 = vmatprep.subr.mxu0 0.0
        %6425 = vmatpush1.msra.mxu0 0.0
        %6426 = vmatprep.subr.mxu0 0.0
        %6427 = vmatpush1.msra.mxu0 0.0
        %6428 = vmatprep.subr.mxu0 0.0
        %6429 = vmatpush1.msra.mxu0 0.0
        %6430 = vmatprep.subr.mxu0 0.0
        %6431 = vmatpush1.msra.mxu0 0.0
        %6432 = vmatprep.subr.mxu0 0.0
        %6433 = vmatpush1.msra.mxu0 0.0
        %6434 = vmatprep.subr.mxu0 0.0
        %6435 = vmatpush1.msra.mxu0 0.0
        %6436 = vmatprep.subr.mxu0 0.0
        %6437 = vmatpush1.msra.mxu0 0.0
        %6438 = vmatprep.subr.mxu0 0.0
        %6439 = vmatpush1.msra.mxu0 0.0
        %6440 = vmatprep.subr.mxu0 0.0
        %6441 = vmatpush1.msra.mxu0 0.0
        %6442 = vmatprep.subr.mxu0 0.0
        %6443 = vmatpush1.msra.mxu0 0.0
        %6444 = vmatprep.subr.mxu0 0.0
        %6445 = vmatpush1.msra.mxu0 0.0
        %6446 = vmatprep.subr.mxu0 0.0
        %6447 = vmatpush1.msra.mxu0 0.0
        %6448 = vmatprep.subr.mxu0 0.0
        %6449 = vmatpush1.msra.mxu0 0.0
        %6450 = vmatprep.subr.mxu0 0.0
        %6451 = vmatpush1.msra.mxu0 0.0
        %6452 = vmatprep.subr.mxu0 0.0
        %6453 = vmatpush1.msra.mxu0 0.0
        %6454 = vmatprep.subr.mxu0 0.0
        %6455 = vmatpush1.msra.mxu0 0.0
        %6456 = vmatprep.subr.mxu0 0.0
        %6457 = vmatpush1.msra.mxu0 0.0
        %6458 = vmatprep.subr.mxu0 0.0
        %6459 = vmatpush1.msra.mxu0 0.0
        %6460 = vmatprep.subr.mxu0 0.0
        %6461 = vmatpush1.msra.mxu0 0.0
        %6462 = vmatprep.subr.mxu0 0.0
        %6463 = vmatpush1.msra.mxu0 0.0
        %6464 = vmatprep.subr.mxu0 0.0
        %6465 = vmatpush1.msra.mxu0 0.0
        %6466 = vmatprep.subr.mxu0 0.0
        %6467 = vmatpush1.msra.mxu0 0.0
        %6468 = vmatprep.subr.mxu0 0.0
        %6469 = vmatpush1.msra.mxu0 0.0
        %6470 = vmatprep.subr.mxu0 0.0
        %6471 = vmatpush1.msra.mxu0 0.0
        %6472 = vmatprep.subr.mxu0 0.0
        %6473 = vmatpush1.msra.mxu0 0.0
        %6474 = vmatprep.subr.mxu0 0.0
        %6475 = vmatpush1.msra.mxu0 0.0
        %6476 = vmatprep.subr.mxu0 0.0
        %6477 = vmatpush1.msra.mxu0 0.0
        %6478 = vmatprep.subr.mxu0 0.0
        %6479 = vmatpush1.msra.mxu0 0.0
        %6480 = vmatprep.subr.mxu0 0.0
        %6481 = vmatpush1.msra.mxu0 0.0
        %6482 = vmatprep.mubr.f32.mxu0 0.0
        %6483 = vmatmul.mubr.f32.gmra.mrb[0].mxu0 %v6416
        %v6484 = vpop.f32.mrb[0].mxu0
        %v6485 = vadd.f32 0.0, %v6484
        %v6486 = vpop.f32.mrb[0].mxu0
        %6487 = vdwg.mxu0
        %v6489 = vsel %vm1219, %v6414, 0
        %6491 = vmatprep.subr.mxu0 0.0
        %6492 = vmatpush1.msra.mxu0 %v6234
        %6493 = vmatprep.subr.mxu0 0.0
        %6494 = vmatpush1.msra.mxu0 0.0
        %6495 = vmatprep.subr.mxu0 0.0
        %6496 = vmatpush1.msra.mxu0 0.0
        %6497 = vmatprep.subr.mxu0 0.0
        %6498 = vmatpush1.msra.mxu0 0.0
        %6499 = vmatprep.subr.mxu0 0.0
        %6500 = vmatpush1.msra.mxu0 0.0
        %6501 = vmatprep.subr.mxu0 0.0
        %6502 = vmatpush1.msra.mxu0 0.0
        %6503 = vmatprep.subr.mxu0 0.0
        %6504 = vmatpush1.msra.mxu0 0.0
        %6505 = vmatprep.subr.mxu0 0.0
        %6506 = vmatpush1.msra.mxu0 0.0
        %6507 = vmatprep.subr.mxu0 0.0
        %6508 = vmatpush1.msra.mxu0 0.0
        %6509 = vmatprep.subr.mxu0 0.0
        %6510 = vmatpush1.msra.mxu0 0.0
        %6511 = vmatprep.subr.mxu0 0.0
        %6512 = vmatpush1.msra.mxu0 0.0
        %6513 = vmatprep.subr.mxu0 0.0
        %6514 = vmatpush1.msra.mxu0 0.0
        %6515 = vmatprep.subr.mxu0 0.0
        %6516 = vmatpush1.msra.mxu0 0.0
        %6517 = vmatprep.subr.mxu0 0.0
        %6518 = vmatpush1.msra.mxu0 0.0
        %6519 = vmatprep.subr.mxu0 0.0
        %6520 = vmatpush1.msra.mxu0 0.0
        %6521 = vmatprep.subr.mxu0 0.0
        %6522 = vmatpush1.msra.mxu0 0.0
        %6523 = vmatprep.subr.mxu0 0.0
        %6524 = vmatpush1.msra.mxu0 0.0
        %6525 = vmatprep.subr.mxu0 0.0
        %6526 = vmatpush1.msra.mxu0 0.0
        %6527 = vmatprep.subr.mxu0 0.0
        %6528 = vmatpush1.msra.mxu0 0.0
        %6529 = vmatprep.subr.mxu0 0.0
        %6530 = vmatpush1.msra.mxu0 0.0
        %6531 = vmatprep.subr.mxu0 0.0
        %6532 = vmatpush1.msra.mxu0 0.0
        %6533 = vmatprep.subr.mxu0 0.0
        %6534 = vmatpush1.msra.mxu0 0.0
        %6535 = vmatprep.subr.mxu0 0.0
        %6536 = vmatpush1.msra.mxu0 0.0
        %6537 = vmatprep.subr.mxu0 0.0
        %6538 = vmatpush1.msra.mxu0 0.0
        %6539 = vmatprep.subr.mxu0 0.0
        %6540 = vmatpush1.msra.mxu0 0.0
        %6541 = vmatprep.subr.mxu0 0.0
        %6542 = vmatpush1.msra.mxu0 0.0
        %6543 = vmatprep.subr.mxu0 0.0
        %6544 = vmatpush1.msra.mxu0 0.0
        %6545 = vmatprep.subr.mxu0 0.0
        %6546 = vmatpush1.msra.mxu0 0.0
        %6547 = vmatprep.subr.mxu0 0.0
        %6548 = vmatpush1.msra.mxu0 0.0
        %6549 = vmatprep.subr.mxu0 0.0
        %6550 = vmatpush1.msra.mxu0 0.0
        %6551 = vmatprep.subr.mxu0 0.0
        %6552 = vmatpush1.msra.mxu0 0.0
        %6553 = vmatprep.subr.mxu0 0.0
        %6554 = vmatpush1.msra.mxu0 0.0
        %6555 = vmatprep.mubr.f32.mxu0 0.0
        %6556 = vmatmul.mubr.f32.gmra.mrb[0].mxu0 %v6489
        %v6557 = vpop.f32.mrb[0].mxu0
        %v6558 = vadd.f32 0.0, %v6557
        %v6559 = vpop.f32.mrb[0].mxu0
        %6560 = vdwg.mxu0
        %s6561 = scalar_lea.vmem %s12, 56
        %v6562 = vld [vmem:[%s6561] sm:$0xff]
        %v6564 = vsel %vm1219, %v6485, 0
        %v6567 = vsel %vm1219, %v6558, 0
        %6569 = vmatprep.subr.mxu0 0.0
        %6570 = vmatpush1.msra.mxu0 %v6562
        %6571 = vmatprep.subr.mxu0 0.0
        %6572 = vmatpush1.msra.mxu0 0.0
        %6573 = vmatprep.subr.mxu0 0.0
        %6574 = vmatpush1.msra.mxu0 0.0
        %6575 = vmatprep.subr.mxu0 0.0
        %6576 = vmatpush1.msra.mxu0 0.0
        %6577 = vmatprep.subr.mxu0 0.0
        %6578 = vmatpush1.msra.mxu0 0.0
        %6579 = vmatprep.subr.mxu0 0.0
        %6580 = vmatpush1.msra.mxu0 0.0
        %6581 = vmatprep.subr.mxu0 0.0
        %6582 = vmatpush1.msra.mxu0 0.0
        %6583 = vmatprep.subr.mxu0 0.0
        %6584 = vmatpush1.msra.mxu0 0.0
        %6585 = vmatprep.subr.mxu0 0.0
        %6586 = vmatpush1.msra.mxu0 0.0
        %6587 = vmatprep.subr.mxu0 0.0
        %6588 = vmatpush1.msra.mxu0 0.0
        %6589 = vmatprep.subr.mxu0 0.0
        %6590 = vmatpush1.msra.mxu0 0.0
        %6591 = vmatprep.subr.mxu0 0.0
        %6592 = vmatpush1.msra.mxu0 0.0
        %6593 = vmatprep.subr.mxu0 0.0
        %6594 = vmatpush1.msra.mxu0 0.0
        %6595 = vmatprep.subr.mxu0 0.0
        %6596 = vmatpush1.msra.mxu0 0.0
        %6597 = vmatprep.subr.mxu0 0.0
        %6598 = vmatpush1.msra.mxu0 0.0
        %6599 = vmatprep.subr.mxu0 0.0
        %6600 = vmatpush1.msra.mxu0 0.0
        %6601 = vmatprep.subr.mxu0 0.0
        %6602 = vmatpush1.msra.mxu0 0.0
        %6603 = vmatprep.subr.mxu0 0.0
        %6604 = vmatpush1.msra.mxu0 0.0
        %6605 = vmatprep.subr.mxu0 0.0
        %6606 = vmatpush1.msra.mxu0 0.0
        %6607 = vmatprep.subr.mxu0 0.0
        %6608 = vmatpush1.msra.mxu0 0.0
        %6609 = vmatprep.subr.mxu0 0.0
        %6610 = vmatpush1.msra.mxu0 0.0
        %6611 = vmatprep.subr.mxu0 0.0
        %6612 = vmatpush1.msra.mxu0 0.0
        %6613 = vmatprep.subr.mxu0 0.0
        %6614 = vmatpush1.msra.mxu0 0.0
        %6615 = vmatprep.subr.mxu0 0.0
        %6616 = vmatpush1.msra.mxu0 0.0
        %6617 = vmatprep.subr.mxu0 0.0
        %6618 = vmatpush1.msra.mxu0 0.0
        %6619 = vmatprep.subr.mxu0 0.0
        %6620 = vmatpush1.msra.mxu0 0.0
        %6621 = vmatprep.subr.mxu0 0.0
        %6622 = vmatpush1.msra.mxu0 0.0
        %6623 = vmatprep.subr.mxu0 0.0
        %6624 = vmatpush1.msra.mxu0 0.0
        %6625 = vmatprep.subr.mxu0 0.0
        %6626 = vmatpush1.msra.mxu0 0.0
        %6627 = vmatprep.subr.mxu0 0.0
        %6628 = vmatpush1.msra.mxu0 0.0
        %6629 = vmatprep.subr.mxu0 0.0
        %6630 = vmatpush1.msra.mxu0 0.0
        %6631 = vmatprep.subr.mxu0 0.0
        %6632 = vmatpush1.msra.mxu0 0.0
        %6633 = vmatprep.mubr.f32.mxu0 0.0
        %6634 = vmatmul.mubr.f32.gmra.mrb[0].mxu0 %v6564
        %v6635 = vpop.f32.mrb[0].mxu0
        %v6636 = vadd.f32 0.0, %v6635
        %v6637 = vpop.f32.mrb[0].mxu0
        %6638 = vmatprep.mubr.f32.mxu0 0.0
        %6639 = vmatmul.mubr.f32.gmra.mrb[0].mxu0 %v6567
        %v6640 = vpop.f32.mrb[0].mxu0
        %v6641 = vadd.f32 0.0, %v6640
        %v6642 = vpop.f32.mrb[0].mxu0
        %6643 = vdwg.mxu0
        %v6644 = vadd.f32 %v5971, %v6636
        %v6645 = vadd.f32 %v5972, %v6641
        %s6646 = scalar_lea.vmem %s13, 1
        %v6647 = vld [vmem:[%s6646] sm:$0x1]
        %v6649 = vlaneseq
        %v6650 = vshrl.u32 %v6649, 7
        %v6651 = vsub.s32 0, %v6650
        %v6652 = vrot.slane %v6647, %v6651
        %v6654 = vadd.f32 %v6644, %v6652
        %v6655 = vadd.f32 %v6645, %v6652
        %v6656 = vadd.f32 %v6654, %v3950
        %v6657 = vadd.f32 %v6655, %v3951
        %s6658 = scalar_lea.vmem %s14, 1
        %v6659 = vld [vmem:[%s6658] sm:$0x1]
        %s6660 = scalar_lea.vmem %s15, 1
        %v6661 = vld [vmem:[%s6660] sm:$0x1]
        %v6662 = vsel %vm895, %v6656, 0.0
        %6663 = vadd.xlane.f32.xlu0 %v6662
        %v6664 = vpop.xlane.xlu0 %6663
        %v6665 = vsel %vm895, %v6657, 0.0
        %6666 = vadd.xlane.f32.xlu0 %v6665
        %v6667 = vpop.xlane.xlu0 %6666
        %v6668 = vmul.f32 %v6664, %v902
        %v6669 = vmul.f32 %v6667, %v902
        %v6670 = vsub.f32 %v6656, %v6668
        %v6671 = vsub.f32 %v6657, %v6669
        %v6672 = vmul.f32 %v6670, %v6670
        %v6673 = vmul.f32 %v6671, %v6671
        %v6674 = vsel %vm895, %v6672, 0.0
        %6675 = vadd.xlane.f32.xlu0 %v6674
        %v6676 = vpop.xlane.xlu0 %6675
        %v6677 = vsel %vm895, %v6673, 0.0
        %6678 = vadd.xlane.f32.xlu0 %v6677
        %v6679 = vpop.xlane.xlu0 %6678
        %v6680 = vmul.f32 %v6676, %v902
        %v6681 = vmul.f32 %v6679, %v902
        %v6682 = vadd.f32 %v6680, 1e-12
        %v6683 = vadd.f32 %v6681, 1e-12
        %v6684 = vrsqrt.pop %v6682
        %v6685 = vrsqrt.pop %v6683
        %v6686 = vmul.f32 %v6670, %v6684
        %v6687 = vmul.f32 %v6671, %v6685
        %v6689 = vlaneseq
        %v6690 = vshrl.u32 %v6689, 7
        %v6691 = vsub.s32 0, %v6690
        %v6692 = vrot.slane %v6659, %v6691
        %v6694 = vmul.f32 %v6686, %v6692
        %v6695 = vmul.f32 %v6687, %v6692
        %v6697 = vlaneseq
        %v6698 = vshrl.u32 %v6697, 7
        %v6699 = vsub.s32 0, %v6698
        %v6700 = vrot.slane %v6661, %v6699
        %v6702 = vadd.f32 %v6694, %v6700
        %v6703 = vadd.f32 %v6695, %v6700
        %s6704 = scalar_lea.vmem %s16, 32
        %v6705 = vld [vmem:[%s6704] sm:$0xff]
        %v6706 = vld [vmem:[%s6704 + $0x8] sm:$0xff]
        %v6707 = vld [vmem:[%s6704 + $0x10] sm:$0xff]
        %v6708 = vld [vmem:[%s6704 + $0x18] sm:$0xff]
        %s6709 = scalar_lea.vmem %s17, 1
        %v6710 = vld [vmem:[%s6709] sm:$0x1]
        %v6712 = vlaneseq
        %v6713 = vshrl.u32 %v6712, 7
        %v6714 = vsub.s32 0, %v6713
        %v6715 = vrot.slane %v6710, %v6714
        %v6718 = vsel %vm895, %v6702, 0
        %v6721 = vsel %vm895, %v6703, 0
        %6723 = vmatprep.subr.mxu0 0.0
        %6724 = vmatpush1.msra.mxu0 %v6705
        %6725 = vmatprep.subr.mxu0 0.0
        %6726 = vmatpush1.msra.mxu0 %v6706
        %6727 = vmatprep.subr.mxu0 0.0
        %6728 = vmatpush1.msra.mxu0 %v6707
        %6729 = vmatprep.subr.mxu0 0.0
        %6730 = vmatpush1.msra.mxu0 %v6708
        %6731 = vmatprep.subr.mxu0 0.0
        %6732 = vmatpush1.msra.mxu0 0.0
        %6733 = vmatprep.subr.mxu0 0.0
        %6734 = vmatpush1.msra.mxu0 0.0
        %6735 = vmatprep.subr.mxu0 0.0
        %6736 = vmatpush1.msra.mxu0 0.0
        %6737 = vmatprep.subr.mxu0 0.0
        %6738 = vmatpush1.msra.mxu0 0.0
        %6739 = vmatprep.subr.mxu0 0.0
        %6740 = vmatpush1.msra.mxu0 0.0
        %6741 = vmatprep.subr.mxu0 0.0
        %6742 = vmatpush1.msra.mxu0 0.0
        %6743 = vmatprep.subr.mxu0 0.0
        %6744 = vmatpush1.msra.mxu0 0.0
        %6745 = vmatprep.subr.mxu0 0.0
        %6746 = vmatpush1.msra.mxu0 0.0
        %6747 = vmatprep.subr.mxu0 0.0
        %6748 = vmatpush1.msra.mxu0 0.0
        %6749 = vmatprep.subr.mxu0 0.0
        %6750 = vmatpush1.msra.mxu0 0.0
        %6751 = vmatprep.subr.mxu0 0.0
        %6752 = vmatpush1.msra.mxu0 0.0
        %6753 = vmatprep.subr.mxu0 0.0
        %6754 = vmatpush1.msra.mxu0 0.0
        %6755 = vmatprep.subr.mxu0 0.0
        %6756 = vmatpush1.msra.mxu0 0.0
        %6757 = vmatprep.subr.mxu0 0.0
        %6758 = vmatpush1.msra.mxu0 0.0
        %6759 = vmatprep.subr.mxu0 0.0
        %6760 = vmatpush1.msra.mxu0 0.0
        %6761 = vmatprep.subr.mxu0 0.0
        %6762 = vmatpush1.msra.mxu0 0.0
        %6763 = vmatprep.subr.mxu0 0.0
        %6764 = vmatpush1.msra.mxu0 0.0
        %6765 = vmatprep.subr.mxu0 0.0
        %6766 = vmatpush1.msra.mxu0 0.0
        %6767 = vmatprep.subr.mxu0 0.0
        %6768 = vmatpush1.msra.mxu0 0.0
        %6769 = vmatprep.subr.mxu0 0.0
        %6770 = vmatpush1.msra.mxu0 0.0
        %6771 = vmatprep.subr.mxu0 0.0
        %6772 = vmatpush1.msra.mxu0 0.0
        %6773 = vmatprep.subr.mxu0 0.0
        %6774 = vmatpush1.msra.mxu0 0.0
        %6775 = vmatprep.subr.mxu0 0.0
        %6776 = vmatpush1.msra.mxu0 0.0
        %6777 = vmatprep.subr.mxu0 0.0
        %6778 = vmatpush1.msra.mxu0 0.0
        %6779 = vmatprep.subr.mxu0 0.0
        %6780 = vmatpush1.msra.mxu0 0.0
        %6781 = vmatprep.subr.mxu0 0.0
        %6782 = vmatpush1.msra.mxu0 0.0
        %6783 = vmatprep.subr.mxu0 0.0
        %6784 = vmatpush1.msra.mxu0 0.0
        %6785 = vmatprep.subr.mxu0 0.0
        %6786 = vmatpush1.msra.mxu0 0.0
        %6787 = vmatprep.mubr.f32.mxu0 0.0
        %6788 = vmatmul.mubr.f32.gmra.mrb[0].mxu0 %v6718
        %v6789 = vpop.f32.mrb[0].mxu0
        %v6790 = vadd.f32 %v6715, %v6789
        %v6791 = vpop.f32.mrb[0].mxu0
        %6792 = vmatprep.mubr.f32.mxu0 0.0
        %6793 = vmatmul.mubr.f32.gmra.mrb[0].mxu0 %v6721
        %v6794 = vpop.f32.mrb[0].mxu0
        %v6795 = vadd.f32 %v6715, %v6794
        %v6796 = vpop.f32.mrb[0].mxu0
        %6797 = vdwg.mxu0
        %v6798 = vmul.f32 %v6790, 0.5
        %v6799 = vmul.f32 %v6795, 0.5
        %v6800 = vmul.f32 %v6790, 0.044715
        %v6801 = vmul.f32 %v6795, 0.044715
        %v6802 = vmul.f32 %v6800, %v6790
        %v6803 = vmul.f32 %v6801, %v6795
        %v6804 = vmul.f32 %v6802, %v6790
        %v6805 = vmul.f32 %v6803, %v6795
        %v6806 = vadd.f32 %v6790, %v6804
        %v6807 = vadd.f32 %v6795, %v6805
        %v6808 = vmul.f32 %v6806, 0.7978846
        %v6809 = vmul.f32 %v6807, 0.7978846
        %v6810 = vtanh.pop %v6808
        %v6811 = vtanh.pop %v6809
        %v6812 = vadd.f32 %v6810, 1.0
        %v6813 = vadd.f32 %v6811, 1.0
        %v6814 = vmul.f32 %v6798, %v6812
        %v6815 = vmul.f32 %v6799, %v6813
        %s6816 = scalar_lea.vmem %s18, 128
        %v6817 = vld [vmem:[%s6816] sm:$0xff]
        %v6818 = vld [vmem:[%s6816 + $0x8] sm:$0xff]
        %v6819 = vld [vmem:[%s6816 + $0x10] sm:$0xff]
        %v6820 = vld [vmem:[%s6816 + $0x18] sm:$0xff]
        %v6821 = vld [vmem:[%s6816 + $0x20] sm:$0xff]
        %v6822 = vld [vmem:[%s6816 + $0x28] sm:$0xff]
        %v6823 = vld [vmem:[%s6816 + $0x30] sm:$0xff]
        %v6824 = vld [vmem:[%s6816 + $0x38] sm:$0xff]
        %v6825 = vld [vmem:[%s6816 + $0x40] sm:$0xff]
        %v6826 = vld [vmem:[%s6816 + $0x48] sm:$0xff]
        %v6827 = vld [vmem:[%s6816 + $0x50] sm:$0xff]
        %v6828 = vld [vmem:[%s6816 + $0x58] sm:$0xff]
        %v6829 = vld [vmem:[%s6816 + $0x60] sm:$0xff]
        %v6830 = vld [vmem:[%s6816 + $0x68] sm:$0xff]
        %v6831 = vld [vmem:[%s6816 + $0x70] sm:$0xff]
        %v6832 = vld [vmem:[%s6816 + $0x78] sm:$0xff]
        %s6833 = scalar_lea.vmem %s19, 1
        %v6834 = vld [vmem:[%s6833] sm:$0x1]
        %v6836 = vlaneseq
        %v6837 = vshrl.u32 %v6836, 7
        %v6838 = vsub.s32 0, %v6837
        %v6839 = vrot.slane %v6834, %v6838
        %6841 = vmatprep.subr.mxu0 0.0
        %6842 = vmatpush1.msra.mxu0 %v6817
        %6843 = vmatprep.subr.mxu0 0.0
        %6844 = vmatpush1.msra.mxu0 %v6818
        %6845 = vmatprep.subr.mxu0 0.0
        %6846 = vmatpush1.msra.mxu0 %v6819
        %6847 = vmatprep.subr.mxu0 0.0
        %6848 = vmatpush1.msra.mxu0 %v6820
        %6849 = vmatprep.subr.mxu0 0.0
        %6850 = vmatpush1.msra.mxu0 %v6821
        %6851 = vmatprep.subr.mxu0 0.0
        %6852 = vmatpush1.msra.mxu0 %v6822
        %6853 = vmatprep.subr.mxu0 0.0
        %6854 = vmatpush1.msra.mxu0 %v6823
        %6855 = vmatprep.subr.mxu0 0.0
        %6856 = vmatpush1.msra.mxu0 %v6824
        %6857 = vmatprep.subr.mxu0 0.0
        %6858 = vmatpush1.msra.mxu0 %v6825
        %6859 = vmatprep.subr.mxu0 0.0
        %6860 = vmatpush1.msra.mxu0 %v6826
        %6861 = vmatprep.subr.mxu0 0.0
        %6862 = vmatpush1.msra.mxu0 %v6827
        %6863 = vmatprep.subr.mxu0 0.0
        %6864 = vmatpush1.msra.mxu0 %v6828
        %6865 = vmatprep.subr.mxu0 0.0
        %6866 = vmatpush1.msra.mxu0 %v6829
        %6867 = vmatprep.subr.mxu0 0.0
        %6868 = vmatpush1.msra.mxu0 %v6830
        %6869 = vmatprep.subr.mxu0 0.0
        %6870 = vmatpush1.msra.mxu0 %v6831
        %6871 = vmatprep.subr.mxu0 0.0
        %6872 = vmatpush1.msra.mxu0 %v6832
        %6873 = vmatprep.subr.mxu0 0.0
        %6874 = vmatpush1.msra.mxu0 0.0
        %6875 = vmatprep.subr.mxu0 0.0
        %6876 = vmatpush1.msra.mxu0 0.0
        %6877 = vmatprep.subr.mxu0 0.0
        %6878 = vmatpush1.msra.mxu0 0.0
        %6879 = vmatprep.subr.mxu0 0.0
        %6880 = vmatpush1.msra.mxu0 0.0
        %6881 = vmatprep.subr.mxu0 0.0
        %6882 = vmatpush1.msra.mxu0 0.0
        %6883 = vmatprep.subr.mxu0 0.0
        %6884 = vmatpush1.msra.mxu0 0.0
        %6885 = vmatprep.subr.mxu0 0.0
        %6886 = vmatpush1.msra.mxu0 0.0
        %6887 = vmatprep.subr.mxu0 0.0
        %6888 = vmatpush1.msra.mxu0 0.0
        %6889 = vmatprep.subr.mxu0 0.0
        %6890 = vmatpush1.msra.mxu0 0.0
        %6891 = vmatprep.subr.mxu0 0.0
        %6892 = vmatpush1.msra.mxu0 0.0
        %6893 = vmatprep.subr.mxu0 0.0
        %6894 = vmatpush1.msra.mxu0 0.0
        %6895 = vmatprep.subr.mxu0 0.0
        %6896 = vmatpush1.msra.mxu0 0.0
        %6897 = vmatprep.subr.mxu0 0.0
        %6898 = vmatpush1.msra.mxu0 0.0
        %6899 = vmatprep.subr.mxu0 0.0
        %6900 = vmatpush1.msra.mxu0 0.0
        %6901 = vmatprep.subr.mxu0 0.0
        %6902 = vmatpush1.msra.mxu0 0.0
        %6903 = vmatprep.subr.mxu0 0.0
        %6904 = vmatpush1.msra.mxu0 0.0
        %6905 = vmatprep.mubr.f32.mxu0 0.0
        %6906 = vmatmul.mubr.f32.gmra.mrb[0].mxu0 %v6814
        %v6907 = vpop.f32.mrb[0].mxu0
        %v6908 = vadd.f32 %v6839, %v6907
        %v6909 = vpop.f32.mrb[0].mxu0
        %6910 = vmatprep.mubr.f32.mxu0 0.0
        %6911 = vmatmul.mubr.f32.gmra.mrb[0].mxu0 %v6815
        %v6912 = vpop.f32.mrb[0].mxu0
        %v6913 = vadd.f32 %v6839, %v6912
        %v6914 = vpop.f32.mrb[0].mxu0
        %6915 = vdwg.mxu0
        %v6916 = vadd.f32 %v6908, %v6702
        %v6917 = vadd.f32 %v6913, %v6703
        %s6918 = scalar_lea.vmem %s20, 1
        %v6919 = vld [vmem:[%s6918] sm:$0x1]
        %s6920 = scalar_lea.vmem %s21, 1
        %v6921 = vld [vmem:[%s6920] sm:$0x1]
        %v6922 = vsel %vm895, %v6916, 0.0
        %6923 = vadd.xlane.f32.xlu0 %v6922
        %v6924 = vpop.xlane.xlu0 %6923
        %v6925 = vsel %vm895, %v6917, 0.0
        %6926 = vadd.xlane.f32.xlu0 %v6925
        %v6927 = vpop.xlane.xlu0 %6926
        %v6928 = vmul.f32 %v6924, %v902
        %v6929 = vmul.f32 %v6927, %v902
        %v6930 = vsub.f32 %v6916, %v6928
        %v6931 = vsub.f32 %v6917, %v6929
        %v6932 = vmul.f32 %v6930, %v6930
        %v6933 = vmul.f32 %v6931, %v6931
        %v6934 = vsel %vm895, %v6932, 0.0
        %6935 = vadd.xlane.f32.xlu0 %v6934
        %v6936 = vpop.xlane.xlu0 %6935
        %v6937 = vsel %vm895, %v6933, 0.0
        %6938 = vadd.xlane.f32.xlu0 %v6937
        %v6939 = vpop.xlane.xlu0 %6938
        %v6940 = vmul.f32 %v6936, %v902
        %v6941 = vmul.f32 %v6939, %v902
        %v6942 = vadd.f32 %v6940, 1e-12
        %v6943 = vadd.f32 %v6941, 1e-12
        %v6944 = vrsqrt.pop %v6942
        %v6945 = vrsqrt.pop %v6943
        %v6946 = vmul.f32 %v6930, %v6944
        %v6947 = vmul.f32 %v6931, %v6945
        %v6949 = vlaneseq
        %v6950 = vshrl.u32 %v6949, 7
        %v6951 = vsub.s32 0, %v6950
        %v6952 = vrot.slane %v6919, %v6951
        %v6954 = vmul.f32 %v6946, %v6952
        %v6955 = vmul.f32 %v6947, %v6952
        %v6957 = vlaneseq
        %v6958 = vshrl.u32 %v6957, 7
        %v6959 = vsub.s32 0, %v6958
        %v6960 = vrot.slane %v6921, %v6959
        %v6962 = vadd.f32 %v6954, %v6960
        %v6963 = vadd.f32 %v6955, %v6960
        %v6964 = vld [vmem:[%s22] sm:$0x3]
        %vm6965 = vcmask 130048
        %v6967 = vsel %vm6965, %v6964, 0
        %6969 = vmatprep.subr.mxu0 0.0
        %6970 = vmatpush1.msra.mxu0 %v6962
        %6971 = vmatprep.subr.mxu0 0.0
        %6972 = vmatpush1.msra.mxu0 %v6963
        %6973 = vmatprep.subr.mxu0 0.0
        %6974 = vmatpush1.msra.mxu0 0.0
        %6975 = vmatprep.subr.mxu0 0.0
        %6976 = vmatpush1.msra.mxu0 0.0
        %6977 = vmatprep.subr.mxu0 0.0
        %6978 = vmatpush1.msra.mxu0 0.0
        %6979 = vmatprep.subr.mxu0 0.0
        %6980 = vmatpush1.msra.mxu0 0.0
        %6981 = vmatprep.subr.mxu0 0.0
        %6982 = vmatpush1.msra.mxu0 0.0
        %6983 = vmatprep.subr.mxu0 0.0
        %6984 = vmatpush1.msra.mxu0 0.0
        %6985 = vmatprep.subr.mxu0 0.0
        %6986 = vmatpush1.msra.mxu0 0.0
        %6987 = vmatprep.subr.mxu0 0.0
        %6988 = vmatpush1.msra.mxu0 0.0
        %6989 = vmatprep.subr.mxu0 0.0
        %6990 = vmatpush1.msra.mxu0 0.0
        %6991 = vmatprep.subr.mxu0 0.0
        %6992 = vmatpush1.msra.mxu0 0.0
        %6993 = vmatprep.subr.mxu0 0.0
        %6994 = vmatpush1.msra.mxu0 0.0
        %6995 = vmatprep.subr.mxu0 0.0
        %6996 = vmatpush1.msra.mxu0 0.0
        %6997 = vmatprep.subr.mxu0 0.0
        %6998 = vmatpush1.msra.mxu0 0.0
        %6999 = vmatprep.subr.mxu0 0.0
        %7000 = vmatpush1.msra.mxu0 0.0
        %7001 = vmatprep.subr.mxu0 0.0
        %7002 = vmatpush1.msra.mxu0 0.0
        %7003 = vmatprep.subr.mxu0 0.0
        %7004 = vmatpush1.msra.mxu0 0.0
        %7005 = vmatprep.subr.mxu0 0.0
        %7006 = vmatpush1.msra.mxu0 0.0
        %7007 = vmatprep.subr.mxu0 0.0
        %7008 = vmatpush1.msra.mxu0 0.0
        %7009 = vmatprep.subr.mxu0 0.0
        %7010 = vmatpush1.msra.mxu0 0.0
        %7011 = vmatprep.subr.mxu0 0.0
        %7012 = vmatpush1.msra.mxu0 0.0
        %7013 = vmatprep.subr.mxu0 0.0
        %7014 = vmatpush1.msra.mxu0 0.0
        %7015 = vmatprep.subr.mxu0 0.0
        %7016 = vmatpush1.msra.mxu0 0.0
        %7017 = vmatprep.subr.mxu0 0.0
        %7018 = vmatpush1.msra.mxu0 0.0
        %7019 = vmatprep.subr.mxu0 0.0
        %7020 = vmatpush1.msra.mxu0 0.0
        %7021 = vmatprep.subr.mxu0 0.0
        %7022 = vmatpush1.msra.mxu0 0.0
        %7023 = vmatprep.subr.mxu0 0.0
        %7024 = vmatpush1.msra.mxu0 0.0
        %7025 = vmatprep.subr.mxu0 0.0
        %7026 = vmatpush1.msra.mxu0 0.0
        %7027 = vmatprep.subr.mxu0 0.0
        %7028 = vmatpush1.msra.mxu0 0.0
        %7029 = vmatprep.subr.mxu0 0.0
        %7030 = vmatpush1.msra.mxu0 0.0
        %7031 = vmatprep.subr.mxu0 0.0
        %7032 = vmatpush1.msra.mxu0 0.0
        %7033 = vmatprep.mubr.f32.mxu0 0.0
        %7034 = vmatmul.mubr.f32.gmra.mrb[0].mxu0 %v6967
        %v7035 = vpop.f32.mrb[0].mxu0
        %v7036 = vadd.f32 0.0, %v7035
        %v7037 = vpop.f32.mrb[0].mxu0
        %7038 = vdwg.mxu0
        %v7039 = vld [vmem:[%s23] sm:$0xff]
        %v7040 = vld [vmem:[%s23 + $0x8] sm:$0xff]
        %v7041 = vld [vmem:[%s23 + $0x10] sm:$0xff]
        %v7042 = vld [vmem:[%s23 + $0x18] sm:$0xff]
        %v7043 = vld [vmem:[%s24] sm:$0x1]
        %v7045 = vlaneseq
        %v7046 = vshrl.u32 %v7045, 7
        %v7047 = vsub.s32 0, %v7046
        %v7048 = vrot.slane %v7043, %v7047
        %v7051 = vsel %vm895, %v7036, 0
        %7053 = vmatprep.subr.mxu0 0.0
        %7054 = vmatpush1.msra.mxu0 %v7039
        %7055 = vmatprep.subr.mxu0 0.0
        %7056 = vmatpush1.msra.mxu0 %v7040
        %7057 = vmatprep.subr.mxu0 0.0
        %7058 = vmatpush1.msra.mxu0 %v7041
        %7059 = vmatprep.subr.mxu0 0.0
        %7060 = vmatpush1.msra.mxu0 %v7042
        %7061 = vmatprep.subr.mxu0 0.0
        %7062 = vmatpush1.msra.mxu0 0.0
        %7063 = vmatprep.subr.mxu0 0.0
        %7064 = vmatpush1.msra.mxu0 0.0
        %7065 = vmatprep.subr.mxu0 0.0
        %7066 = vmatpush1.msra.mxu0 0.0
        %7067 = vmatprep.subr.mxu0 0.0
        %7068 = vmatpush1.msra.mxu0 0.0
        %7069 = vmatprep.subr.mxu0 0.0
        %7070 = vmatpush1.msra.mxu0 0.0
        %7071 = vmatprep.subr.mxu0 0.0
        %7072 = vmatpush1.msra.mxu0 0.0
        %7073 = vmatprep.subr.mxu0 0.0
        %7074 = vmatpush1.msra.mxu0 0.0
        %7075 = vmatprep.subr.mxu0 0.0
        %7076 = vmatpush1.msra.mxu0 0.0
        %7077 = vmatprep.subr.mxu0 0.0
        %7078 = vmatpush1.msra.mxu0 0.0
        %7079 = vmatprep.subr.mxu0 0.0
        %7080 = vmatpush1.msra.mxu0 0.0
        %7081 = vmatprep.subr.mxu0 0.0
        %7082 = vmatpush1.msra.mxu0 0.0
        %7083 = vmatprep.subr.mxu0 0.0
        %7084 = vmatpush1.msra.mxu0 0.0
        %7085 = vmatprep.subr.mxu0 0.0
        %7086 = vmatpush1.msra.mxu0 0.0
        %7087 = vmatprep.subr.mxu0 0.0
        %7088 = vmatpush1.msra.mxu0 0.0
        %7089 = vmatprep.subr.mxu0 0.0
        %7090 = vmatpush1.msra.mxu0 0.0
        %7091 = vmatprep.subr.mxu0 0.0
        %7092 = vmatpush1.msra.mxu0 0.0
        %7093 = vmatprep.subr.mxu0 0.0
        %7094 = vmatpush1.msra.mxu0 0.0
        %7095 = vmatprep.subr.mxu0 0.0
        %7096 = vmatpush1.msra.mxu0 0.0
        %7097 = vmatprep.subr.mxu0 0.0
        %7098 = vmatpush1.msra.mxu0 0.0
        %7099 = vmatprep.subr.mxu0 0.0
        %7100 = vmatpush1.msra.mxu0 0.0
        %7101 = vmatprep.subr.mxu0 0.0
        %7102 = vmatpush1.msra.mxu0 0.0
        %7103 = vmatprep.subr.mxu0 0.0
        %7104 = vmatpush1.msra.mxu0 0.0
        %7105 = vmatprep.subr.mxu0 0.0
        %7106 = vmatpush1.msra.mxu0 0.0
        %7107 = vmatprep.subr.mxu0 0.0
        %7108 = vmatpush1.msra.mxu0 0.0
        %7109 = vmatprep.subr.mxu0 0.0
        %7110 = vmatpush1.msra.mxu0 0.0
        %7111 = vmatprep.subr.mxu0 0.0
        %7112 = vmatpush1.msra.mxu0 0.0
        %7113 = vmatprep.subr.mxu0 0.0
        %7114 = vmatpush1.msra.mxu0 0.0
        %7115 = vmatprep.subr.mxu0 0.0
        %7116 = vmatpush1.msra.mxu0 0.0
        %7117 = vmatprep.mubr.f32.mxu0 0.0
        %7118 = vmatmul.mubr.f32.gmra.mrb[0].mxu0 %v7051
        %v7119 = vpop.f32.mrb[0].mxu0
        %v7120 = vadd.f32 %v7048, %v7119
        %v7121 = vpop.f32.mrb[0].mxu0
        %7122 = vdwg.mxu0
        %7123 = vst [vmem:[%s772] sm:$0x3] %v7120
        %s7124 = sand.u32 %s582, 1
        %s7125 = scalar_lea.sflag [#allocation3], %s7124
        %s7126 = sand.u32 %s582, 1
        %s7127 = smul.addr %s7126, 2
        %s7128 = scalar_lea.vmem [#allocation2], %s7127
        // Predicated region
        $region121: #{tpu_custom_call.1} parent=119 // pred_check
          %p7129 = pneg %p592
        $region122: #{tpu_custom_call.1} parent=119 // pred_check_branch
          %7131 = sbr.rel (%p7129) target = $region124
        $region123: #{tpu_custom_call.1} parent=119 // pred_region
          %s7133 = ssub.s32 32, 32
          %7134 = vsyncadd %s7125, %s7133
          %s7135 = smul.addr %s39, 32
          %s7136 = scalar_lea.hbm %s25, %s7135
          %s7138 = sshll.u32 %s7128, 4
          %s7139 = int_to_ptr.vmem [resolvable:$true] %s7138
          %7141 = dma.vmem_to_hbm [thread:$0]  %s7139, 32, %s7136, %s7125
        $region124: #{tpu_custom_call.1} parent=119 // pred_fallthru
          _
      $region120: #{tpu_custom_call.1} parent=5 // pred_fallthru
        _
      %p7142 = scmp.le.s32.totalorder 2, %s34
      // Predicated region
      $region125: #{tpu_custom_call.1} parent=5 // pred_check
        %p7143 = pneg %p7142
      $region126: #{tpu_custom_call.1} parent=5 // pred_check_branch
        %7145 = sbr.rel (%p7143) target = $region128
      $region127: #{tpu_custom_call.1} parent=5 // pred_region
        %s7146 = ssub.s32 %s34, 2
        // Predicated region
        $region129: #{tpu_custom_call.1} parent=127 // pred_check
          %p7147 = pneg %p598
        $region130: #{tpu_custom_call.1} parent=127 // pred_check_branch
          %7149 = sbr.rel (%p7147) target = $region132
        $region131: #{tpu_custom_call.1} parent=127 // pred_region
          %s7150 = sand.u32 %s583, 1
          %s7151 = scalar_lea.sflag [#allocation3], %s7150
          %s7152 = sand.u32 %s583, 1
          %s7153 = smul.addr %s7152, 2
          %s7154 = scalar_lea.vmem [#allocation2], %s7153
          %7155 = dma.done %s7151, 32
        $region132: #{tpu_custom_call.1} parent=127 // pred_fallthru
          _
      $region128: #{tpu_custom_call.1} parent=5 // pred_fallthru
        _
    $region6: #{tpu_custom_call.1} parent=1 // loop_footer
      %s38 = sadd.s32 1, %s34
    $region7: #{tpu_custom_call.1} parent=1 // loop_footer_branch
      %33 = sbr.rel target = $region3
    $region8: #{tpu_custom_call.1} parent=1 // loop_exit
      _
    %7156 = vsyncpa [#allocation3], 1
    %s7157 = scalar_lea.sflag [#allocation3], 1
    %7158 = vsyncpa %s7157, 1

</llo_original>
